<compile_context>
chip_gen: v7x
topology: tpu7x:2x2x1
jax: 0.10.0
libtpu: 0.0.40
codegen_flags: <defaults>
</compile_context>

<pallas_src>
import math
import functools

import jax
import jax.numpy as jnp
from jax.experimental import pallas as pl
from jax.experimental.pallas import tpu as pltpu


def _flash_attn_dropout_kernel(q_ref, k_ref, v_ref, mask_ref, drop_ref, o_ref,
                               m_sc, l_sc, acc_sc, *, scale):
    # q_ref:    (1, H, TQ, D)   bf16
    # k_ref:    (1, H, TK, D)   bf16
    # v_ref:    (1, H, TK, Dv)  bf16
    # mask_ref: (1, 1, TQ, TK)  f32   additive attention mask (shared over heads)
    # drop_ref: (1, H, TQ, TK)  bf16  dropout scale: 0 or 1/keep_prob
    # o_ref:    (1, H, TQ, Dv)  f32
    ki = pl.program_id(2)

    @pl.when(ki == 0)
    def _():
        m_sc[...] = jnp.full_like(m_sc, -jnp.inf)
        l_sc[...] = jnp.zeros_like(l_sc)
        acc_sc[...] = jnp.zeros_like(acc_sc)

    q = q_ref[0]
    k = k_ref[0]
    v = v_ref[0]
    mask = mask_ref[0, 0]
    drop = drop_ref[0]

    # Batched-over-heads QK^T: contract the shared head dim directly
    # (no explicit transpose), f32 accumulation on the MXU.
    s = jnp.einsum("hqd,hkd->hqk", q, k,
                   preferred_element_type=jnp.float32) * scale
    s = s + mask[None, :, :]

    m_prev = m_sc[...]
    m_new = jnp.maximum(m_prev, jnp.max(s, axis=-1, keepdims=True))
    alpha = jnp.exp(m_prev - m_new)
    p = jnp.exp(s - m_new)

    # Softmax denominator uses the *undropped* weights.
    l_sc[...] = alpha * l_sc[...] + jnp.sum(p, axis=-1, keepdims=True)

    # Dropout is an elementwise scale applied to the normalized weights; it
    # commutes with the final 1/l normalization, so applying it to the
    # unnormalized p inside the flash accumulation is exact.
    pd = (p * drop.astype(jnp.float32)).astype(v.dtype)
    acc_sc[...] = alpha * acc_sc[...] + jnp.einsum(
        "hqk,hkd->hqd", pd, v, preferred_element_type=jnp.float32)

    m_sc[...] = m_new

    @pl.when(ki == pl.num_programs(2) - 1)
    def _():
        o_ref[0] = (acc_sc[...] / l_sc[...]).astype(o_ref.dtype)


def attention_dropout(query, key, value, attn_mask, *, p_drop=0.8,
                      rng_key=None, tq=128, tk=128):
    """Pallas equivalent of the PyTorch Model.forward (training-mode dropout)."""
    B, Hq, Lq, D = query.shape
    Bk, H, Lk, Dk = key.shape
    Bv, Hv, Lkv, Dv = value.shape
    assert B == Bk == Bv, "batch dims must match"
    assert H == Hv and Lk == Lkv, "key/value shapes must match"
    assert D == Dk, "query/key head dims must match"
    assert Hq in (1, H), "query head dim must be 1 (broadcast) or H"
    assert attn_mask.shape == (1, 1, Lq, Lk), (
        "attn_mask must be (1, 1, Lq, Lk); per-batch/head masks unsupported")
    assert Lq % tq == 0 and Lk % tk == 0

    scale = 1.0 / math.sqrt(D)
    keep_prob = 1.0 - p_drop

    # bf16 MXU operands, f32 accumulation happens inside the kernel.
    q = jnp.broadcast_to(query, (B, H, Lq, D)).astype(jnp.bfloat16)
    k = key.astype(jnp.bfloat16)
    v = value.astype(jnp.bfloat16)
    mask = attn_mask.astype(jnp.float32)

    if rng_key is None:
        rng_key = jax.random.PRNGKey(0)
    if keep_prob >= 1.0:                       # p_drop == 0: no-op dropout
        drop = jnp.ones((B, H, Lq, Lk), dtype=jnp.bfloat16)
    else:
        keep = jax.random.bernoulli(rng_key, keep_prob, (B, H, Lq, Lk))
        drop = keep.astype(jnp.bfloat16) * (1.0 / keep_prob)

    grid = (B, Lq // tq, Lk // tk)
    kernel = functools.partial(_flash_attn_dropout_kernel, scale=scale)

    out = pl.pallas_call(
        kernel,
        out_shape=jax.ShapeDtypeStruct((B, H, Lq, Dv), jnp.float32),
        grid_spec=pltpu.PrefetchScalarGridSpec(
            num_scalar_prefetch=0,
            grid=grid,
            in_specs=[
                pl.BlockSpec((1, H, tq, D), lambda b, qi, ki: (b, 0, qi, 0)),
                pl.BlockSpec((1, H, tk, D), lambda b, qi, ki: (b, 0, ki, 0)),
                pl.BlockSpec((1, H, tk, Dv), lambda b, qi, ki: (b, 0, ki, 0)),
                pl.BlockSpec((1, 1, tq, tk), lambda b, qi, ki: (0, 0, qi, ki)),
                pl.BlockSpec((1, H, tq, tk), lambda b, qi, ki: (b, 0, qi, ki)),
            ],
            out_specs=pl.BlockSpec((1, H, tq, Dv),
                                   lambda b, qi, ki: (b, 0, qi, 0)),
            scratch_shapes=[
                pltpu.VMEM((H, tq, 1), jnp.float32),   # running max
                pltpu.VMEM((H, tq, 1), jnp.float32),   # running denom
                pltpu.VMEM((H, tq, Dv), jnp.float32),  # output accumulator
            ],
        ),
        compiler_params=pltpu.CompilerParams(
            dimension_semantics=("parallel", "parallel", "arbitrary")),
    )(q, k, v, mask, drop)

    return out


if __name__ == "__main__":
    # Small, mutually-consistent attention shapes (the shapes hard-coded in the
    # fuzz script are not matmul-compatible; the forward pass implies standard
    # multi-head attention with a broadcast single-head query).
    B, H, Lq, Lk, D, Dv = 1, 4, 256, 256, 32, 32

    root = jax.random.PRNGKey(0)
    kq, kk, kv, km, kd = jax.random.split(root, 5)
    query = jax.random.normal(kq, (B, 1, Lq, D), dtype=jnp.float32)
    key_t = jax.random.normal(kk, (B, H, Lk, D), dtype=jnp.float32)
    value = jax.random.normal(kv, (B, H, Lk, Dv), dtype=jnp.float32)
    attn_mask = jax.random.normal(km, (1, 1, Lq, Lk), dtype=jnp.float32)

    out = attention_dropout(query, key_t, value, attn_mask,
                            p_drop=0.8, rng_key=kd)
    jax.block_until_ready(out)
    assert out.shape == (B, H, Lq, Dv)
    assert bool(jnp.all(jnp.isfinite(out)))
    print("KERNEL_OK")
</pallas_src>

<mosaic_0001>
module attributes {stable_mosaic.version = 11 : i64} {
  func.func @_flash_attn_dropout_kernel(%arg0: i32, %arg1: i32, %arg2: i32, %arg3: memref<1x4x128x32xbf16, #tpu.memory_space<vmem>>, %arg4: memref<1x4x128x32xbf16, #tpu.memory_space<vmem>>, %arg5: memref<1x4x128x32xbf16, #tpu.memory_space<vmem>>, %arg6: memref<1x1x128x128xf32, #tpu.memory_space<vmem>>, %arg7: memref<1x4x128x128xbf16, #tpu.memory_space<vmem>>, %arg8: memref<1x4x128x32xf32, #tpu.memory_space<vmem>>, %arg9: memref<4x128x1xf32, #tpu.memory_space<vmem>>, %arg10: memref<4x128x1xf32, #tpu.memory_space<vmem>>, %arg11: memref<4x128x32xf32, #tpu.memory_space<vmem>>) attributes {dimension_semantics = [#tpu.dimension_semantics<parallel>, #tpu.dimension_semantics<parallel>, #tpu.dimension_semantics<arbitrary>], iteration_bounds = array<i64: 1, 2, 2>, scalar_prefetch = 0 : i64, scratch_operands = 3 : i64, tpu.core_type = #tpu.core_type<tc>, window_params = [{transform_indices = @transform_0, window_bounds = array<i64: 1, 4, 128, 32>}, {transform_indices = @transform_1, window_bounds = array<i64: 1, 4, 128, 32>}, {transform_indices = @transform_2, window_bounds = array<i64: 1, 4, 128, 32>}, {transform_indices = @transform_3, window_bounds = array<i64: 1, 1, 128, 128>}, {transform_indices = @transform_4, window_bounds = array<i64: 1, 4, 128, 128>}, {transform_indices = @transform_5, window_bounds = array<i64: 1, 4, 128, 32>}]} {
    %c0_i32 = arith.constant 0 : i32
    %0 = arith.cmpi eq, %arg2, %c0_i32 : i32
    %1 = arith.extui %0 : i1 to i32
    %c0_i32_0 = arith.constant 0 : i32
    %2 = arith.cmpi ne, %1, %c0_i32_0 : i32
    scf.if %2 {
      %cst_43 = arith.constant 0xFF800000 : f32
      %47 = vector.broadcast %cst_43 : f32 to vector<4x128x1xf32>
      %c0_44 = arith.constant 0 : index
      %c0_45 = arith.constant 0 : index
      %c0_46 = arith.constant 0 : index
      %48 = vector.load %arg9[%c0_44, %c0_45, %c0_46] : memref<4x128x1xf32, #tpu.memory_space<vmem>>, vector<4x128x1xf32>
      tpu.vector_store %arg9[%c0_44, %c0_45, %c0_46], %47 {strides = array<i32>} : memref<4x128x1xf32, #tpu.memory_space<vmem>>, vector<4x128x1xf32>,
      %cst_47 = arith.constant 0.000000e+00 : f32
      %49 = vector.broadcast %cst_47 : f32 to vector<4x128x1xf32>
      %c0_48 = arith.constant 0 : index
      %c0_49 = arith.constant 0 : index
      %c0_50 = arith.constant 0 : index
      %50 = vector.load %arg10[%c0_48, %c0_49, %c0_50] : memref<4x128x1xf32, #tpu.memory_space<vmem>>, vector<4x128x1xf32>
      tpu.vector_store %arg10[%c0_48, %c0_49, %c0_50], %49 {strides = array<i32>} : memref<4x128x1xf32, #tpu.memory_space<vmem>>, vector<4x128x1xf32>,
      %cst_51 = arith.constant 0.000000e+00 : f32
      %51 = vector.broadcast %cst_51 : f32 to vector<4x128x32xf32>
      %c0_52 = arith.constant 0 : index
      %c0_53 = arith.constant 0 : index
      %c0_54 = arith.constant 0 : index
      %52 = vector.load %arg11[%c0_52, %c0_53, %c0_54] : memref<4x128x32xf32, #tpu.memory_space<vmem>>, vector<4x128x32xf32>
      tpu.vector_store %arg11[%c0_52, %c0_53, %c0_54], %51 {strides = array<i32>} : memref<4x128x32xf32, #tpu.memory_space<vmem>>, vector<4x128x32xf32>,
    } else {
    }
    %c0 = arith.constant 0 : index
    %c0_1 = arith.constant 0 : index
    %c0_2 = arith.constant 0 : index
    %c0_3 = arith.constant 0 : index
    %3 = vector.load %arg3[%c0, %c0_1, %c0_2, %c0_3] : memref<1x4x128x32xbf16, #tpu.memory_space<vmem>>, vector<1x4x128x32xbf16>
    %4 = vector.shape_cast %3 : vector<1x4x128x32xbf16> to vector<4x128x32xbf16>
    %c0_4 = arith.constant 0 : index
    %c0_5 = arith.constant 0 : index
    %c0_6 = arith.constant 0 : index
    %c0_7 = arith.constant 0 : index
    %5 = vector.load %arg4[%c0_4, %c0_5, %c0_6, %c0_7] : memref<1x4x128x32xbf16, #tpu.memory_space<vmem>>, vector<1x4x128x32xbf16>
    %6 = vector.shape_cast %5 : vector<1x4x128x32xbf16> to vector<4x128x32xbf16>
    %c0_8 = arith.constant 0 : index
    %c0_9 = arith.constant 0 : index
    %c0_10 = arith.constant 0 : index
    %c0_11 = arith.constant 0 : index
    %7 = vector.load %arg5[%c0_8, %c0_9, %c0_10, %c0_11] : memref<1x4x128x32xbf16, #tpu.memory_space<vmem>>, vector<1x4x128x32xbf16>
    %8 = vector.shape_cast %7 : vector<1x4x128x32xbf16> to vector<4x128x32xbf16>
    %c0_12 = arith.constant 0 : index
    %c0_13 = arith.constant 0 : index
    %c0_14 = arith.constant 0 : index
    %c0_15 = arith.constant 0 : index
    %9 = vector.load %arg6[%c0_12, %c0_13, %c0_14, %c0_15] : memref<1x1x128x128xf32, #tpu.memory_space<vmem>>, vector<1x1x128x128xf32>
    %10 = vector.shape_cast %9 : vector<1x1x128x128xf32> to vector<128x128xf32>
    %c0_16 = arith.constant 0 : index
    %c0_17 = arith.constant 0 : index
    %c0_18 = arith.constant 0 : index
    %c0_19 = arith.constant 0 : index
    %11 = vector.load %arg7[%c0_16, %c0_17, %c0_18, %c0_19] : memref<1x4x128x128xbf16, #tpu.memory_space<vmem>>, vector<1x4x128x128xbf16>
    %12 = vector.shape_cast %11 : vector<1x4x128x128xbf16> to vector<4x128x128xbf16>
    "tpu.trace_start"() <{level = 10 : i32, message = "hqd,hkd->hqk"}> : () -> ()
    %cst = arith.constant dense<0.000000e+00> : vector<4x128x128xf32>
    %13 = tpu.matmul %4, %6, %cst {dimension_numbers = #tpu.dot_dimension_numbers<[2], [2], [1], [1], [0, 0, 0, 1, 1, 1], [0], [0]>} : vector<4x128x32xbf16>, vector<4x128x32xbf16>, vector<4x128x128xf32> -> vector<4x128x128xf32>
    "tpu.trace_stop"() : () -> ()
    %cst_20 = arith.constant 0.176776692 : f32
    %14 = vector.broadcast %cst_20 : f32 to vector<4x128x128xf32>
    %15 = arith.mulf %13, %14 : vector<4x128x128xf32>
    %16 = vector.shape_cast %10 : vector<128x128xf32> to vector<1x128x128xf32>
    %17 = vector.broadcast %16 : vector<1x128x128xf32> to vector<4x128x128xf32>
    %18 = arith.addf %15, %17 : vector<4x128x128xf32>
    %c0_21 = arith.constant 0 : index
    %c0_22 = arith.constant 0 : index
    %c0_23 = arith.constant 0 : index
    %19 = vector.load %arg9[%c0_21, %c0_22, %c0_23] : memref<4x128x1xf32, #tpu.memory_space<vmem>>, vector<4x128x1xf32>
    %cst_24 = arith.constant dense<0xFF800000> : vector<4x128xf32>
    %20 = vector.multi_reduction <maximumf>, %18, %cst_24 [2] : vector<4x128x128xf32> to vector<4x128xf32>
    %21 = vector.shape_cast %20 : vector<4x128xf32> to vector<4x128x1xf32>
    %22 = arith.maximumf %19, %21 : vector<4x128x1xf32>
    %23 = arith.subf %19, %22 : vector<4x128x1xf32>
    %24 = math.exp %23 : vector<4x128x1xf32>
    %25 = vector.broadcast %22 : vector<4x128x1xf32> to vector<4x128x128xf32>
    %26 = arith.subf %18, %25 : vector<4x128x128xf32>
    %27 = math.exp %26 : vector<4x128x128xf32>
    %c0_25 = arith.constant 0 : index
    %c0_26 = arith.constant 0 : index
    %c0_27 = arith.constant 0 : index
    %28 = vector.load %arg10[%c0_25, %c0_26, %c0_27] : memref<4x128x1xf32, #tpu.memory_space<vmem>>, vector<4x128x1xf32>
    %29 = arith.mulf %24, %28 : vector<4x128x1xf32>
    %cst_28 = arith.constant dense<0.000000e+00> : vector<4x128xf32>
    %30 = vector.multi_reduction <add>, %27, %cst_28 [2] : vector<4x128x128xf32> to vector<4x128xf32>
    %31 = vector.shape_cast %30 : vector<4x128xf32> to vector<4x128x1xf32>
    %32 = arith.addf %29, %31 : vector<4x128x1xf32>
    %c0_29 = arith.constant 0 : index
    %c0_30 = arith.constant 0 : index
    %c0_31 = arith.constant 0 : index
    %33 = vector.load %arg10[%c0_29, %c0_30, %c0_31] : memref<4x128x1xf32, #tpu.memory_space<vmem>>, vector<4x128x1xf32>
    tpu.vector_store %arg10[%c0_29, %c0_30, %c0_31], %32 {strides = array<i32>} : memref<4x128x1xf32, #tpu.memory_space<vmem>>, vector<4x128x1xf32>,
    %34 = arith.extf %12 : vector<4x128x128xbf16> to vector<4x128x128xf32>
    %35 = arith.mulf %27, %34 : vector<4x128x128xf32>
    %36 = arith.truncf %35 : vector<4x128x128xf32> to vector<4x128x128xbf16>
    %c0_32 = arith.constant 0 : index
    %c0_33 = arith.constant 0 : index
    %c0_34 = arith.constant 0 : index
    %37 = vector.load %arg11[%c0_32, %c0_33, %c0_34] : memref<4x128x32xf32, #tpu.memory_space<vmem>>, vector<4x128x32xf32>
    %38 = vector.broadcast %24 : vector<4x128x1xf32> to vector<4x128x32xf32>
    %39 = arith.mulf %38, %37 : vector<4x128x32xf32>
    "tpu.trace_start"() <{level = 10 : i32, message = "hqk,hkd->hqd"}> : () -> ()
    %cst_35 = arith.constant dense<0.000000e+00> : vector<4x128x32xf32>
    %40 = tpu.matmul %36, %8, %cst_35 {dimension_numbers = #tpu.dot_dimension_numbers<[2], [1], [1], [2], [0, 0, 0, 1, 1, 2], [0], [0]>} : vector<4x128x128xbf16>, vector<4x128x32xbf16>, vector<4x128x32xf32> -> vector<4x128x32xf32>
    "tpu.trace_stop"() : () -> ()
    %41 = arith.addf %39, %40 : vector<4x128x32xf32>
    %c0_36 = arith.constant 0 : index
    %c0_37 = arith.constant 0 : index
    %c0_38 = arith.constant 0 : index
    %42 = vector.load %arg11[%c0_36, %c0_37, %c0_38] : memref<4x128x32xf32, #tpu.memory_space<vmem>>, vector<4x128x32xf32>
    tpu.vector_store %arg11[%c0_36, %c0_37, %c0_38], %41 {strides = array<i32>} : memref<4x128x32xf32, #tpu.memory_space<vmem>>, vector<4x128x32xf32>,
    %c0_39 = arith.constant 0 : index
    %c0_40 = arith.constant 0 : index
    %c0_41 = arith.constant 0 : index
    %43 = vector.load %arg9[%c0_39, %c0_40, %c0_41] : memref<4x128x1xf32, #tpu.memory_space<vmem>>, vector<4x128x1xf32>
    tpu.vector_store %arg9[%c0_39, %c0_40, %c0_41], %22 {strides = array<i32>} : memref<4x128x1xf32, #tpu.memory_space<vmem>>, vector<4x128x1xf32>,
    %c1_i32 = arith.constant 1 : i32
    %44 = arith.cmpi eq, %arg2, %c1_i32 : i32
    %45 = arith.extui %44 : i1 to i32
    %c0_i32_42 = arith.constant 0 : i32
    %46 = arith.cmpi ne, %45, %c0_i32_42 : i32
    scf.if %46 {
      %c0_43 = arith.constant 0 : index
      %c0_44 = arith.constant 0 : index
      %c0_45 = arith.constant 0 : index
      %47 = vector.load %arg11[%c0_43, %c0_44, %c0_45] : memref<4x128x32xf32, #tpu.memory_space<vmem>>, vector<4x128x32xf32>
      %c0_46 = arith.constant 0 : index
      %c0_47 = arith.constant 0 : index
      %c0_48 = arith.constant 0 : index
      %48 = vector.load %arg10[%c0_46, %c0_47, %c0_48] : memref<4x128x1xf32, #tpu.memory_space<vmem>>, vector<4x128x1xf32>
      %49 = vector.broadcast %48 : vector<4x128x1xf32> to vector<4x128x32xf32>
      %50 = arith.divf %47, %49 : vector<4x128x32xf32>
      %c0_49 = arith.constant 0 : index
      %c0_50 = arith.constant 0 : index
      %c0_51 = arith.constant 0 : index
      %c0_52 = arith.constant 0 : index
      %51 = vector.load %arg8[%c0_49, %c0_50, %c0_51, %c0_52] : memref<1x4x128x32xf32, #tpu.memory_space<vmem>>, vector<1x4x128x32xf32>
      %52 = vector.shape_cast %51 : vector<1x4x128x32xf32> to vector<4x128x32xf32>
      %53 = vector.shape_cast %50 : vector<4x128x32xf32> to vector<1x4x128x32xf32>
      tpu.vector_store %arg8[%c0_49, %c0_50, %c0_51, %c0_52], %53 {strides = array<i32>} : memref<1x4x128x32xf32, #tpu.memory_space<vmem>>, vector<1x4x128x32xf32>,
    } else {
    }
    return
  }
  func.func @transform_0(%arg0: i32, %arg1: i32, %arg2: i32) -> (i32, i32, i32, i32) {
    %c0_i32 = arith.constant 0 : i32
    %c0_i32_0 = arith.constant 0 : i32
    %c0_i32_1 = arith.constant 0 : i32
    return %arg0, %c0_i32, %arg1, %c0_i32_0 : i32, i32, i32, i32
  }
  func.func @transform_1(%arg0: i32, %arg1: i32, %arg2: i32) -> (i32, i32, i32, i32) {
    %c0_i32 = arith.constant 0 : i32
    %c0_i32_0 = arith.constant 0 : i32
    %c0_i32_1 = arith.constant 0 : i32
    return %arg0, %c0_i32, %arg2, %c0_i32_0 : i32, i32, i32, i32
  }
  func.func @transform_2(%arg0: i32, %arg1: i32, %arg2: i32) -> (i32, i32, i32, i32) {
    %c0_i32 = arith.constant 0 : i32
    %c0_i32_0 = arith.constant 0 : i32
    %c0_i32_1 = arith.constant 0 : i32
    return %arg0, %c0_i32, %arg2, %c0_i32_0 : i32, i32, i32, i32
  }
  func.func @transform_3(%arg0: i32, %arg1: i32, %arg2: i32) -> (i32, i32, i32, i32) {
    %c0_i32 = arith.constant 0 : i32
    %c0_i32_0 = arith.constant 0 : i32
    %c0_i32_1 = arith.constant 0 : i32
    return %c0_i32, %c0_i32_0, %arg1, %arg2 : i32, i32, i32, i32
  }
  func.func @transform_4(%arg0: i32, %arg1: i32, %arg2: i32) -> (i32, i32, i32, i32) {
    %c0_i32 = arith.constant 0 : i32
    %c0_i32_0 = arith.constant 0 : i32
    return %arg0, %c0_i32, %arg1, %arg2 : i32, i32, i32, i32
  }
  func.func @transform_5(%arg0: i32, %arg1: i32, %arg2: i32) -> (i32, i32, i32, i32) {
    %c0_i32 = arith.constant 0 : i32
    %c0_i32_0 = arith.constant 0 : i32
    %c0_i32_1 = arith.constant 0 : i32
    return %arg0, %c0_i32, %arg1, %c0_i32_0 : i32, i32, i32, i32
  }
}

</mosaic_0001>

<llo_original>
// kernel: tpu_custom_call.1
$region0: #{tpu_custom_call.1}
  #allocation0 [shape = 'u32[]', space=smem, size = 0x4, offset = 0x4, fixed_abs, tag = 'smem constant byte address 0x4 - core index']
  #allocation1 [shape = 'u32[144,128]{1,0:T(1,128)}', space=vmem, size = 0x12000, scoped, tag = 'internal scratch']
  #allocation2 [shape = 'f32[4,128,1]{2,1,0:T(8,128)}', space=vmem, size = 0x40000, scoped, tag = 'scratch operand']
  #allocation3 [shape = 'f32[4,128,1]{2,1,0:T(8,128)}', space=vmem, size = 0x40000, scoped, tag = 'scratch operand']
  #allocation4 [shape = 'f32[4,128,32]{2,1,0:T(8,128)}', space=vmem, size = 0x40000, scoped, tag = 'scratch operand']
  %s0 = inlined_call_operand.vmem [shape: bf16[1,4,256,32], index: 0, kind: input, shape index: {}]
  %s1 = inlined_call_operand.vmem [shape: bf16[1,4,256,32], index: 1, kind: input, shape index: {}]
  %s2 = inlined_call_operand.vmem [shape: bf16[1,4,256,32], index: 2, kind: input, shape index: {}]
  %s3 = inlined_call_operand.vmem [shape: f32[1,1,256,256], index: 3, kind: input, shape index: {}]
  %s4 = inlined_call_operand.vmem [shape: bf16[1,4,256,256], index: 4, kind: input, shape index: {}]
  %s5 = inlined_call_operand.vmem [shape: f32[1,4,256,32], index: 5, kind: output, shape index: {}]
  %s6 = sld [smem:[#allocation0]]
  $region297: #{tpu_custom_call.1} parent=0
    _
  %s8 = ssub.s32 1, %s6
  %s9 = scalar_select 0, %s8, %s6
  $region1: #{tpu_custom_call.1} parent=0
    #allocation5 [shape = 'u8[262144]{0}', space=vmem, size = 0x40000, scoped, tag = 'input window, operand 0']
    #allocation6 [shape = 'u8[262144]{0}', space=vmem, size = 0x40000, scoped, tag = 'input window, operand 1']
    #allocation7 [shape = 'u8[262144]{0}', space=vmem, size = 0x40000, scoped, tag = 'input window, operand 2']
    #allocation8 [shape = 'u8[131072]{0}', space=vmem, size = 0x20000, scoped, tag = 'input window, operand 3']
    #allocation9 [shape = 'u8[262144]{0}', space=vmem, size = 0x40000, scoped, tag = 'input window, operand 4']
    #allocation10 [shape = 'u8[524288]{0}', space=vmem, size = 0x80000, scoped, tag = 'output window, operand 0']
    loop: start=0, step=1, limit=6
    $region2: #{tpu_custom_call.1} parent=1 // loop_pre_header
      _
    $region3: #{tpu_custom_call.1} parent=1 // loop_header
      %s11 = sphi 0, %s15
      %p12 = scmp.ge.s32.totalorder %s11, 6
      %s18 = sphi 0, %s37
      %s19 = sphi 0, %s33
      %s20 = sphi 0, %s29
      %s21 = sphi 0, %s18
      %s22 = sphi 0, %s19
      %s23 = sphi 0, %s20
      %s24 = sphi 0, %s21
      %s25 = sphi 0, %s22
      %s26 = sphi 0, %s23
      %s42 = sphi 0, %s44
      %s45 = sphi 0, %s42
      %s46 = sphi 0, %s45
      %s62 = sphi 0, %s46
      %s70 = sphi 0, %s72
      %s73 = sphi 0, %s70
      %s74 = sphi 0, %s73
      %s90 = sphi 0, %s74
      %s98 = sphi 0, %s100
      %s101 = sphi 0, %s98
      %s102 = sphi 0, %s101
      %s118 = sphi 0, %s102
      %s126 = sphi 0, %s128
      %s129 = sphi 0, %s126
      %s130 = sphi 0, %s129
      %s146 = sphi 0, %s130
      %s156 = sphi 0, %s158
      %s159 = sphi 0, %s156
      %s160 = sphi 0, %s159
      %s176 = sphi 0, %s160
      %s184 = sphi 0, %s186
      %s187 = sphi 0, %s184
      %s188 = sphi 0, %s187
      %s204 = sphi 0, %s188
    $region4: #{tpu_custom_call.1} parent=1 // loop_header_branch
      %14 = sbr.rel (%p12) target = $region8
    $region5: #{tpu_custom_call.1} parent=1 // loop_body
      %s16 = ssub.s32 %s11, 1
      %s17 = ssub.s32 %s11, 2
      %s27 = sadd.s32 1, %s20
      %p28 = scmp.ge.s32.totalorder %s27, 2
      %s29 = scalar_select %p28, 0, %s27
      %s30 = sadd.s32 1, %s19
      %s31 = scalar_select %p28, %s30, %s19
      %p32 = scmp.ge.s32.totalorder %s31, 2
      %s33 = scalar_select %p32, 0, %s31
      %s34 = sadd.s32 1, %s18
      %s35 = scalar_select %p32, %s34, %s18
      %p36 = scmp.ge.s32.totalorder %s35, 1
      %s37 = scalar_select %p36, 0, %s35
      %s38 = ssub.s32 %s18, %s37
      %s39 = ssub.s32 %s19, %s33
      %s40 = sor.u32 %s38, %s39
      %p41 = scmp.eq.s32.totalorder %s40, 0
      %s43 = sadd.s32 %s42, 1
      %s44 = scalar_select %p41, %s42, %s43
      %p47 = pneg %p41
      %p48 = scmp.eq.s32.totalorder %s11, 3
      %p49 = por %p47, %p48
      %p50 = scmp.ne.s32.totalorder %s42, %s45
      %p51 = scmp.eq.s32.totalorder %s11, 0
      %p52 = por %p50, %p51
      %p53 = scmp.ne.s32.totalorder %s42, %s45
      %p54 = scmp.eq.s32.totalorder %s16, 3
      %p55 = por %p53, %p54
      %p56 = scmp.ne.s32.totalorder %s45, %s46
      %p57 = scmp.eq.s32.totalorder %s16, 0
      %p58 = por %p56, %p57
      %p59 = scmp.ne.s32.totalorder %s45, %s46
      %p60 = scmp.eq.s32.totalorder %s17, 3
      %p61 = por %p59, %p60
      %p63 = scmp.ne.s32.totalorder %s46, %s62
      %p64 = scmp.eq.s32.totalorder %s17, 0
      %p65 = por %p63, %p64
      %s66 = ssub.s32 %s18, %s37
      %s67 = ssub.s32 %s20, %s29
      %s68 = sor.u32 %s66, %s67
      %p69 = scmp.eq.s32.totalorder %s68, 0
      %s71 = sadd.s32 %s70, 1
      %s72 = scalar_select %p69, %s70, %s71
      %p75 = pneg %p69
      %p76 = scmp.eq.s32.totalorder %s11, 3
      %p77 = por %p75, %p76
      %p78 = scmp.ne.s32.totalorder %s70, %s73
      %p79 = scmp.eq.s32.totalorder %s11, 0
      %p80 = por %p78, %p79
      %p81 = scmp.ne.s32.totalorder %s70, %s73
      %p82 = scmp.eq.s32.totalorder %s16, 3
      %p83 = por %p81, %p82
      %p84 = scmp.ne.s32.totalorder %s73, %s74
      %p85 = scmp.eq.s32.totalorder %s16, 0
      %p86 = por %p84, %p85
      %p87 = scmp.ne.s32.totalorder %s73, %s74
      %p88 = scmp.eq.s32.totalorder %s17, 3
      %p89 = por %p87, %p88
      %p91 = scmp.ne.s32.totalorder %s74, %s90
      %p92 = scmp.eq.s32.totalorder %s17, 0
      %p93 = por %p91, %p92
      %s94 = ssub.s32 %s18, %s37
      %s95 = ssub.s32 %s20, %s29
      %s96 = sor.u32 %s94, %s95
      %p97 = scmp.eq.s32.totalorder %s96, 0
      %s99 = sadd.s32 %s98, 1
      %s100 = scalar_select %p97, %s98, %s99
      %p103 = pneg %p97
      %p104 = scmp.eq.s32.totalorder %s11, 3
      %p105 = por %p103, %p104
      %p106 = scmp.ne.s32.totalorder %s98, %s101
      %p107 = scmp.eq.s32.totalorder %s11, 0
      %p108 = por %p106, %p107
      %p109 = scmp.ne.s32.totalorder %s98, %s101
      %p110 = scmp.eq.s32.totalorder %s16, 3
      %p111 = por %p109, %p110
      %p112 = scmp.ne.s32.totalorder %s101, %s102
      %p113 = scmp.eq.s32.totalorder %s16, 0
      %p114 = por %p112, %p113
      %p115 = scmp.ne.s32.totalorder %s101, %s102
      %p116 = scmp.eq.s32.totalorder %s17, 3
      %p117 = por %p115, %p116
      %p119 = scmp.ne.s32.totalorder %s102, %s118
      %p120 = scmp.eq.s32.totalorder %s17, 0
      %p121 = por %p119, %p120
      %s122 = ssub.s32 %s19, %s33
      %s123 = ssub.s32 %s20, %s29
      %s124 = sor.u32 %s122, %s123
      %p125 = scmp.eq.s32.totalorder %s124, 0
      %s127 = sadd.s32 %s126, 1
      %s128 = scalar_select %p125, %s126, %s127
      %p131 = pneg %p125
      %p132 = scmp.eq.s32.totalorder %s11, 3
      %p133 = por %p131, %p132
      %p134 = scmp.ne.s32.totalorder %s126, %s129
      %p135 = scmp.eq.s32.totalorder %s11, 0
      %p136 = por %p134, %p135
      %p137 = scmp.ne.s32.totalorder %s126, %s129
      %p138 = scmp.eq.s32.totalorder %s16, 3
      %p139 = por %p137, %p138
      %p140 = scmp.ne.s32.totalorder %s129, %s130
      %p141 = scmp.eq.s32.totalorder %s16, 0
      %p142 = por %p140, %p141
      %p143 = scmp.ne.s32.totalorder %s129, %s130
      %p144 = scmp.eq.s32.totalorder %s17, 3
      %p145 = por %p143, %p144
      %p147 = scmp.ne.s32.totalorder %s130, %s146
      %p148 = scmp.eq.s32.totalorder %s17, 0
      %p149 = por %p147, %p148
      %s150 = ssub.s32 %s18, %s37
      %s151 = ssub.s32 %s19, %s33
      %s152 = sor.u32 %s150, %s151
      %s153 = ssub.s32 %s20, %s29
      %s154 = sor.u32 %s152, %s153
      %p155 = scmp.eq.s32.totalorder %s154, 0
      %s157 = sadd.s32 %s156, 1
      %s158 = scalar_select %p155, %s156, %s157
      %p161 = pneg %p155
      %p162 = scmp.eq.s32.totalorder %s11, 3
      %p163 = por %p161, %p162
      %p164 = scmp.ne.s32.totalorder %s156, %s159
      %p165 = scmp.eq.s32.totalorder %s11, 0
      %p166 = por %p164, %p165
      %p167 = scmp.ne.s32.totalorder %s156, %s159
      %p168 = scmp.eq.s32.totalorder %s16, 3
      %p169 = por %p167, %p168
      %p170 = scmp.ne.s32.totalorder %s159, %s160
      %p171 = scmp.eq.s32.totalorder %s16, 0
      %p172 = por %p170, %p171
      %p173 = scmp.ne.s32.totalorder %s159, %s160
      %p174 = scmp.eq.s32.totalorder %s17, 3
      %p175 = por %p173, %p174
      %p177 = scmp.ne.s32.totalorder %s160, %s176
      %p178 = scmp.eq.s32.totalorder %s17, 0
      %p179 = por %p177, %p178
      %s180 = ssub.s32 %s18, %s37
      %s181 = ssub.s32 %s19, %s33
      %s182 = sor.u32 %s180, %s181
      %p183 = scmp.eq.s32.totalorder %s182, 0
      %s185 = sadd.s32 %s184, 1
      %s186 = scalar_select %p183, %s184, %s185
      %p189 = pneg %p183
      %p190 = scmp.eq.s32.totalorder %s11, 3
      %p191 = por %p189, %p190
      %p192 = scmp.ne.s32.totalorder %s184, %s187
      %p193 = scmp.eq.s32.totalorder %s11, 0
      %p194 = por %p192, %p193
      %p195 = scmp.ne.s32.totalorder %s184, %s187
      %p196 = scmp.eq.s32.totalorder %s16, 3
      %p197 = por %p195, %p196
      %p198 = scmp.ne.s32.totalorder %s187, %s188
      %p199 = scmp.eq.s32.totalorder %s16, 0
      %p200 = por %p198, %p199
      %p201 = scmp.ne.s32.totalorder %s187, %s188
      %p202 = scmp.eq.s32.totalorder %s17, 3
      %p203 = por %p201, %p202
      %p205 = scmp.ne.s32.totalorder %s188, %s204
      %p206 = scmp.eq.s32.totalorder %s17, 0
      %p207 = por %p205, %p206
      %p208 = scmp.le.s32.totalorder 1, %s11
      %p209 = scmp.lt.s32.totalorder %s11, 5
      %p210 = pnand %p208, %p209
      %p211 = pneg %p210
      // Predicated region
      $region9: #{tpu_custom_call.1} parent=5 // pred_check
        _
      $region10: #{tpu_custom_call.1} parent=5 // pred_check_branch
        %213 = sbr.rel (%p210) target = $region12
      $region11: #{tpu_custom_call.1} parent=5 // pred_region
        %s214 = ssub.s32 %s11, 1
      $region12: #{tpu_custom_call.1} parent=5 // pred_fallthru
        _
      %p215 = scmp.lt.s32.totalorder %s11, 4
      // Predicated region
      $region13: #{tpu_custom_call.1} parent=5 // pred_check
        %p216 = pneg %p215
      $region14: #{tpu_custom_call.1} parent=5 // pred_check_branch
        %218 = sbr.rel (%p216) target = $region16
      $region15: #{tpu_custom_call.1} parent=5 // pred_region
        // Predicated region
        $region17: #{tpu_custom_call.1} parent=15 // pred_check
          %p219 = pneg %p52
        $region18: #{tpu_custom_call.1} parent=15 // pred_check_branch
          %221 = sbr.rel (%p219) target = $region20
        $region19: #{tpu_custom_call.1} parent=15 // pred_region
          %s222 = sand.u32 %s42, 1
          %s223 = sand.u32 %s42, 1
          %s224 = smul.addr %s223, 256
          %s225 = scalar_lea.vmem [#allocation5], %s224
          %s226 = smul.u32 16, %s19
          %s227 = smul.addr %s18, 128
          %s228 = sadd.s32 %s226, %s227
          %s229 = smul.addr %s228, 4
          %s230 = scalar_lea.vmem %s0, %s229
          // Predicated region
          $region21: #{tpu_custom_call.1} parent=19 // pred_check
            _
          $region22: #{tpu_custom_call.1} parent=19 // pred_check_branch
            %232 = sbr.rel (0) target = $region24
          $region23: #{tpu_custom_call.1} parent=19 // pred_region
            // Predicated region
            $region25: #{tpu_custom_call.1} parent=23 // pred_check
              _
            $region26: #{tpu_custom_call.1} parent=23 // pred_check_branch
              %234 = sbr.rel target = $region28
            $region27: #{tpu_custom_call.1} parent=23 // pred_region
              // Predicated region
              $region40: #{tpu_custom_call.1} parent=27 // pred_check
                _
              $region41: #{tpu_custom_call.1} parent=27 // pred_check_branch
                %375 = sbr.rel (0) target = $region43
              $region42: #{tpu_custom_call.1} parent=27 // pred_region
                loop: start=0, step=1, limit=1
                $region44: #{tpu_custom_call.1} parent=42 // loop_pre_header
                  _
                $region45: #{tpu_custom_call.1} parent=42 // loop_header
                  %s377 = sphi 0, %s381
                  %p378 = scmp.ge.s32.totalorder %s377, 1
                  %s382 = sphi %s230, %s230
                  %s383 = sphi %s225, %s225
                $region46: #{tpu_custom_call.1} parent=42 // loop_header_branch
                  %380 = sbr.rel (%p378) target = $region50
                $region47: #{tpu_custom_call.1} parent=42 // loop_body
                  _
                $region48: #{tpu_custom_call.1} parent=42 // loop_footer
                  %s381 = sadd.s32 1, %s377
                $region49: #{tpu_custom_call.1} parent=42 // loop_footer_branch
                  %376 = sbr.rel target = $region45
                $region50: #{tpu_custom_call.1} parent=42 // loop_exit
                  _
                loop: start=0, step=1, limit=1
                $region51: #{tpu_custom_call.1} parent=42 // loop_pre_header
                  _
                $region52: #{tpu_custom_call.1} parent=42 // loop_header
                  %s386 = sphi 0, %s390
                  %p387 = scmp.ge.s32.totalorder %s386, 1
                  %s391 = sphi %s230, %s230
                  %s392 = sphi %s225, %s225
                $region53: #{tpu_custom_call.1} parent=42 // loop_header_branch
                  %389 = sbr.rel (%p387) target = $region57
                $region54: #{tpu_custom_call.1} parent=42 // loop_body
                  %v393 = vld [vmem:[%s391] sm:$0xf]
                  %394 = vst [vmem:[%s392] sm:$0xf] %v393
                  %v395 = vld [vmem:[%s391 + $0x4] sm:$0xf]
                  %396 = vst [vmem:[%s392 + $0x4] sm:$0xf] %v395
                  %v397 = vld [vmem:[%s391 + $0x8] sm:$0xf]
                  %398 = vst [vmem:[%s392 + $0x8] sm:$0xf] %v397
                  %v399 = vld [vmem:[%s391 + $0xc] sm:$0xf]
                  %400 = vst [vmem:[%s392 + $0xc] sm:$0xf] %v399
                  %v401 = vld [vmem:[%s391 + $0x10] sm:$0xf]
                  %402 = vst [vmem:[%s392 + $0x10] sm:$0xf] %v401
                  %v403 = vld [vmem:[%s391 + $0x14] sm:$0xf]
                  %404 = vst [vmem:[%s392 + $0x14] sm:$0xf] %v403
                  %v405 = vld [vmem:[%s391 + $0x18] sm:$0xf]
                  %406 = vst [vmem:[%s392 + $0x18] sm:$0xf] %v405
                  %v407 = vld [vmem:[%s391 + $0x1c] sm:$0xf]
                  %408 = vst [vmem:[%s392 + $0x1c] sm:$0xf] %v407
                  %v409 = vld [vmem:[%s391 + $0x20] sm:$0xf]
                  %410 = vst [vmem:[%s392 + $0x20] sm:$0xf] %v409
                  %v411 = vld [vmem:[%s391 + $0x24] sm:$0xf]
                  %412 = vst [vmem:[%s392 + $0x24] sm:$0xf] %v411
                  %v413 = vld [vmem:[%s391 + $0x28] sm:$0xf]
                  %414 = vst [vmem:[%s392 + $0x28] sm:$0xf] %v413
                  %v415 = vld [vmem:[%s391 + $0x2c] sm:$0xf]
                  %416 = vst [vmem:[%s392 + $0x2c] sm:$0xf] %v415
                  %v417 = vld [vmem:[%s391 + $0x30] sm:$0xf]
                  %418 = vst [vmem:[%s392 + $0x30] sm:$0xf] %v417
                  %v419 = vld [vmem:[%s391 + $0x34] sm:$0xf]
                  %420 = vst [vmem:[%s392 + $0x34] sm:$0xf] %v419
                  %v421 = vld [vmem:[%s391 + $0x38] sm:$0xf]
                  %422 = vst [vmem:[%s392 + $0x38] sm:$0xf] %v421
                  %v423 = vld [vmem:[%s391 + $0x3c] sm:$0xf]
                  %424 = vst [vmem:[%s392 + $0x3c] sm:$0xf] %v423
                  %v425 = vld [vmem:[%s391 + $0x80] sm:$0xf]
                  %426 = vst [vmem:[%s392 + $0x40] sm:$0xf] %v425
                  %v427 = vld [vmem:[%s391 + $0x84] sm:$0xf]
                  %428 = vst [vmem:[%s392 + $0x44] sm:$0xf] %v427
                  %v429 = vld [vmem:[%s391 + $0x88] sm:$0xf]
                  %430 = vst [vmem:[%s392 + $0x48] sm:$0xf] %v429
                  %v431 = vld [vmem:[%s391 + $0x8c] sm:$0xf]
                  %432 = vst [vmem:[%s392 + $0x4c] sm:$0xf] %v431
                  %v433 = vld [vmem:[%s391 + $0x90] sm:$0xf]
                  %434 = vst [vmem:[%s392 + $0x50] sm:$0xf] %v433
                  %v435 = vld [vmem:[%s391 + $0x94] sm:$0xf]
                  %436 = vst [vmem:[%s392 + $0x54] sm:$0xf] %v435
                  %v437 = vld [vmem:[%s391 + $0x98] sm:$0xf]
                  %438 = vst [vmem:[%s392 + $0x58] sm:$0xf] %v437
                  %v439 = vld [vmem:[%s391 + $0x9c] sm:$0xf]
                  %440 = vst [vmem:[%s392 + $0x5c] sm:$0xf] %v439
                  %v441 = vld [vmem:[%s391 + $0xa0] sm:$0xf]
                  %442 = vst [vmem:[%s392 + $0x60] sm:$0xf] %v441
                  %v443 = vld [vmem:[%s391 + $0xa4] sm:$0xf]
                  %444 = vst [vmem:[%s392 + $0x64] sm:$0xf] %v443
                  %v445 = vld [vmem:[%s391 + $0xa8] sm:$0xf]
                  %446 = vst [vmem:[%s392 + $0x68] sm:$0xf] %v445
                  %v447 = vld [vmem:[%s391 + $0xac] sm:$0xf]
                  %448 = vst [vmem:[%s392 + $0x6c] sm:$0xf] %v447
                  %v449 = vld [vmem:[%s391 + $0xb0] sm:$0xf]
                  %450 = vst [vmem:[%s392 + $0x70] sm:$0xf] %v449
                  %v451 = vld [vmem:[%s391 + $0xb4] sm:$0xf]
                  %452 = vst [vmem:[%s392 + $0x74] sm:$0xf] %v451
                  %v453 = vld [vmem:[%s391 + $0xb8] sm:$0xf]
                  %454 = vst [vmem:[%s392 + $0x78] sm:$0xf] %v453
                  %v455 = vld [vmem:[%s391 + $0xbc] sm:$0xf]
                  %456 = vst [vmem:[%s392 + $0x7c] sm:$0xf] %v455
                  %v457 = vld [vmem:[%s391 + $0x100] sm:$0xf]
                  %458 = vst [vmem:[%s392 + $0x80] sm:$0xf] %v457
                  %v459 = vld [vmem:[%s391 + $0x104] sm:$0xf]
                  %460 = vst [vmem:[%s392 + $0x84] sm:$0xf] %v459
                  %v461 = vld [vmem:[%s391 + $0x108] sm:$0xf]
                  %462 = vst [vmem:[%s392 + $0x88] sm:$0xf] %v461
                  %v463 = vld [vmem:[%s391 + $0x10c] sm:$0xf]
                  %464 = vst [vmem:[%s392 + $0x8c] sm:$0xf] %v463
                  %v465 = vld [vmem:[%s391 + $0x110] sm:$0xf]
                  %466 = vst [vmem:[%s392 + $0x90] sm:$0xf] %v465
                  %v467 = vld [vmem:[%s391 + $0x114] sm:$0xf]
                  %468 = vst [vmem:[%s392 + $0x94] sm:$0xf] %v467
                  %v469 = vld [vmem:[%s391 + $0x118] sm:$0xf]
                  %470 = vst [vmem:[%s392 + $0x98] sm:$0xf] %v469
                  %v471 = vld [vmem:[%s391 + $0x11c] sm:$0xf]
                  %472 = vst [vmem:[%s392 + $0x9c] sm:$0xf] %v471
                  %v473 = vld [vmem:[%s391 + $0x120] sm:$0xf]
                  %474 = vst [vmem:[%s392 + $0xa0] sm:$0xf] %v473
                  %v475 = vld [vmem:[%s391 + $0x124] sm:$0xf]
                  %476 = vst [vmem:[%s392 + $0xa4] sm:$0xf] %v475
                  %v477 = vld [vmem:[%s391 + $0x128] sm:$0xf]
                  %478 = vst [vmem:[%s392 + $0xa8] sm:$0xf] %v477
                  %v479 = vld [vmem:[%s391 + $0x12c] sm:$0xf]
                  %480 = vst [vmem:[%s392 + $0xac] sm:$0xf] %v479
                  %v481 = vld [vmem:[%s391 + $0x130] sm:$0xf]
                  %482 = vst [vmem:[%s392 + $0xb0] sm:$0xf] %v481
                  %v483 = vld [vmem:[%s391 + $0x134] sm:$0xf]
                  %484 = vst [vmem:[%s392 + $0xb4] sm:$0xf] %v483
                  %v485 = vld [vmem:[%s391 + $0x138] sm:$0xf]
                  %486 = vst [vmem:[%s392 + $0xb8] sm:$0xf] %v485
                  %v487 = vld [vmem:[%s391 + $0x13c] sm:$0xf]
                  %488 = vst [vmem:[%s392 + $0xbc] sm:$0xf] %v487
                  %v489 = vld [vmem:[%s391 + $0x180] sm:$0xf]
                  %490 = vst [vmem:[%s392 + $0xc0] sm:$0xf] %v489
                  %v491 = vld [vmem:[%s391 + $0x184] sm:$0xf]
                  %492 = vst [vmem:[%s392 + $0xc4] sm:$0xf] %v491
                  %v493 = vld [vmem:[%s391 + $0x188] sm:$0xf]
                  %494 = vst [vmem:[%s392 + $0xc8] sm:$0xf] %v493
                  %v495 = vld [vmem:[%s391 + $0x18c] sm:$0xf]
                  %496 = vst [vmem:[%s392 + $0xcc] sm:$0xf] %v495
                  %v497 = vld [vmem:[%s391 + $0x190] sm:$0xf]
                  %498 = vst [vmem:[%s392 + $0xd0] sm:$0xf] %v497
                  %v499 = vld [vmem:[%s391 + $0x194] sm:$0xf]
                  %500 = vst [vmem:[%s392 + $0xd4] sm:$0xf] %v499
                  %v501 = vld [vmem:[%s391 + $0x198] sm:$0xf]
                  %502 = vst [vmem:[%s392 + $0xd8] sm:$0xf] %v501
                  %v503 = vld [vmem:[%s391 + $0x19c] sm:$0xf]
                  %504 = vst [vmem:[%s392 + $0xdc] sm:$0xf] %v503
                  %v505 = vld [vmem:[%s391 + $0x1a0] sm:$0xf]
                  %506 = vst [vmem:[%s392 + $0xe0] sm:$0xf] %v505
                  %v507 = vld [vmem:[%s391 + $0x1a4] sm:$0xf]
                  %508 = vst [vmem:[%s392 + $0xe4] sm:$0xf] %v507
                  %v509 = vld [vmem:[%s391 + $0x1a8] sm:$0xf]
                  %510 = vst [vmem:[%s392 + $0xe8] sm:$0xf] %v509
                  %v511 = vld [vmem:[%s391 + $0x1ac] sm:$0xf]
                  %512 = vst [vmem:[%s392 + $0xec] sm:$0xf] %v511
                  %v513 = vld [vmem:[%s391 + $0x1b0] sm:$0xf]
                  %514 = vst [vmem:[%s392 + $0xf0] sm:$0xf] %v513
                  %v515 = vld [vmem:[%s391 + $0x1b4] sm:$0xf]
                  %516 = vst [vmem:[%s392 + $0xf4] sm:$0xf] %v515
                  %v517 = vld [vmem:[%s391 + $0x1b8] sm:$0xf]
                  %518 = vst [vmem:[%s392 + $0xf8] sm:$0xf] %v517
                  %v519 = vld [vmem:[%s391 + $0x1bc] sm:$0xf]
                  %520 = vst [vmem:[%s392 + $0xfc] sm:$0xf] %v519
                $region55: #{tpu_custom_call.1} parent=42 // loop_footer
                  %s390 = sadd.s32 1, %s386
                $region56: #{tpu_custom_call.1} parent=42 // loop_footer_branch
                  %385 = sbr.rel target = $region52
                $region57: #{tpu_custom_call.1} parent=42 // loop_exit
                  _
              $region43: #{tpu_custom_call.1} parent=27 // pred_fallthru
                _
            $region28: #{tpu_custom_call.1} parent=23 // pred_fallthru
              _
            // Predicated region
            $region29: #{tpu_custom_call.1} parent=23 // pred_check
              _
            $region30: #{tpu_custom_call.1} parent=23 // pred_check_branch
              %236 = sbr.rel (0) target = $region32
            $region31: #{tpu_custom_call.1} parent=23 // pred_region
              loop: start=0, step=1, limit=1
              $region33: #{tpu_custom_call.1} parent=31 // loop_pre_header
                _
              $region34: #{tpu_custom_call.1} parent=31 // loop_header
                %s239 = sphi 0, %s243
                %p240 = scmp.ge.s32.totalorder %s239, 1
                %s244 = sphi %s230, %s230
                %s245 = sphi %s225, %s225
              $region35: #{tpu_custom_call.1} parent=31 // loop_header_branch
                %242 = sbr.rel (%p240) target = $region39
              $region36: #{tpu_custom_call.1} parent=31 // loop_body
                %v246 = vld [vmem:[%s244] sm:$0xf]
                %247 = vst [vmem:[%s245] sm:$0xf] %v246
                %v248 = vld [vmem:[%s244 + $0x4] sm:$0xf]
                %249 = vst [vmem:[%s245 + $0x4] sm:$0xf] %v248
                %v250 = vld [vmem:[%s244 + $0x8] sm:$0xf]
                %251 = vst [vmem:[%s245 + $0x8] sm:$0xf] %v250
                %v252 = vld [vmem:[%s244 + $0xc] sm:$0xf]
                %253 = vst [vmem:[%s245 + $0xc] sm:$0xf] %v252
                %v254 = vld [vmem:[%s244 + $0x10] sm:$0xf]
                %255 = vst [vmem:[%s245 + $0x10] sm:$0xf] %v254
                %v256 = vld [vmem:[%s244 + $0x14] sm:$0xf]
                %257 = vst [vmem:[%s245 + $0x14] sm:$0xf] %v256
                %v258 = vld [vmem:[%s244 + $0x18] sm:$0xf]
                %259 = vst [vmem:[%s245 + $0x18] sm:$0xf] %v258
                %v260 = vld [vmem:[%s244 + $0x1c] sm:$0xf]
                %261 = vst [vmem:[%s245 + $0x1c] sm:$0xf] %v260
                %v262 = vld [vmem:[%s244 + $0x20] sm:$0xf]
                %263 = vst [vmem:[%s245 + $0x20] sm:$0xf] %v262
                %v264 = vld [vmem:[%s244 + $0x24] sm:$0xf]
                %265 = vst [vmem:[%s245 + $0x24] sm:$0xf] %v264
                %v266 = vld [vmem:[%s244 + $0x28] sm:$0xf]
                %267 = vst [vmem:[%s245 + $0x28] sm:$0xf] %v266
                %v268 = vld [vmem:[%s244 + $0x2c] sm:$0xf]
                %269 = vst [vmem:[%s245 + $0x2c] sm:$0xf] %v268
                %v270 = vld [vmem:[%s244 + $0x30] sm:$0xf]
                %271 = vst [vmem:[%s245 + $0x30] sm:$0xf] %v270
                %v272 = vld [vmem:[%s244 + $0x34] sm:$0xf]
                %273 = vst [vmem:[%s245 + $0x34] sm:$0xf] %v272
                %v274 = vld [vmem:[%s244 + $0x38] sm:$0xf]
                %275 = vst [vmem:[%s245 + $0x38] sm:$0xf] %v274
                %v276 = vld [vmem:[%s244 + $0x3c] sm:$0xf]
                %277 = vst [vmem:[%s245 + $0x3c] sm:$0xf] %v276
                %v278 = vld [vmem:[%s244 + $0x80] sm:$0xf]
                %279 = vst [vmem:[%s245 + $0x40] sm:$0xf] %v278
                %v280 = vld [vmem:[%s244 + $0x84] sm:$0xf]
                %281 = vst [vmem:[%s245 + $0x44] sm:$0xf] %v280
                %v282 = vld [vmem:[%s244 + $0x88] sm:$0xf]
                %283 = vst [vmem:[%s245 + $0x48] sm:$0xf] %v282
                %v284 = vld [vmem:[%s244 + $0x8c] sm:$0xf]
                %285 = vst [vmem:[%s245 + $0x4c] sm:$0xf] %v284
                %v286 = vld [vmem:[%s244 + $0x90] sm:$0xf]
                %287 = vst [vmem:[%s245 + $0x50] sm:$0xf] %v286
                %v288 = vld [vmem:[%s244 + $0x94] sm:$0xf]
                %289 = vst [vmem:[%s245 + $0x54] sm:$0xf] %v288
                %v290 = vld [vmem:[%s244 + $0x98] sm:$0xf]
                %291 = vst [vmem:[%s245 + $0x58] sm:$0xf] %v290
                %v292 = vld [vmem:[%s244 + $0x9c] sm:$0xf]
                %293 = vst [vmem:[%s245 + $0x5c] sm:$0xf] %v292
                %v294 = vld [vmem:[%s244 + $0xa0] sm:$0xf]
                %295 = vst [vmem:[%s245 + $0x60] sm:$0xf] %v294
                %v296 = vld [vmem:[%s244 + $0xa4] sm:$0xf]
                %297 = vst [vmem:[%s245 + $0x64] sm:$0xf] %v296
                %v298 = vld [vmem:[%s244 + $0xa8] sm:$0xf]
                %299 = vst [vmem:[%s245 + $0x68] sm:$0xf] %v298
                %v300 = vld [vmem:[%s244 + $0xac] sm:$0xf]
                %301 = vst [vmem:[%s245 + $0x6c] sm:$0xf] %v300
                %v302 = vld [vmem:[%s244 + $0xb0] sm:$0xf]
                %303 = vst [vmem:[%s245 + $0x70] sm:$0xf] %v302
                %v304 = vld [vmem:[%s244 + $0xb4] sm:$0xf]
                %305 = vst [vmem:[%s245 + $0x74] sm:$0xf] %v304
                %v306 = vld [vmem:[%s244 + $0xb8] sm:$0xf]
                %307 = vst [vmem:[%s245 + $0x78] sm:$0xf] %v306
                %v308 = vld [vmem:[%s244 + $0xbc] sm:$0xf]
                %309 = vst [vmem:[%s245 + $0x7c] sm:$0xf] %v308
                %v310 = vld [vmem:[%s244 + $0x100] sm:$0xf]
                %311 = vst [vmem:[%s245 + $0x80] sm:$0xf] %v310
                %v312 = vld [vmem:[%s244 + $0x104] sm:$0xf]
                %313 = vst [vmem:[%s245 + $0x84] sm:$0xf] %v312
                %v314 = vld [vmem:[%s244 + $0x108] sm:$0xf]
                %315 = vst [vmem:[%s245 + $0x88] sm:$0xf] %v314
                %v316 = vld [vmem:[%s244 + $0x10c] sm:$0xf]
                %317 = vst [vmem:[%s245 + $0x8c] sm:$0xf] %v316
                %v318 = vld [vmem:[%s244 + $0x110] sm:$0xf]
                %319 = vst [vmem:[%s245 + $0x90] sm:$0xf] %v318
                %v320 = vld [vmem:[%s244 + $0x114] sm:$0xf]
                %321 = vst [vmem:[%s245 + $0x94] sm:$0xf] %v320
                %v322 = vld [vmem:[%s244 + $0x118] sm:$0xf]
                %323 = vst [vmem:[%s245 + $0x98] sm:$0xf] %v322
                %v324 = vld [vmem:[%s244 + $0x11c] sm:$0xf]
                %325 = vst [vmem:[%s245 + $0x9c] sm:$0xf] %v324
                %v326 = vld [vmem:[%s244 + $0x120] sm:$0xf]
                %327 = vst [vmem:[%s245 + $0xa0] sm:$0xf] %v326
                %v328 = vld [vmem:[%s244 + $0x124] sm:$0xf]
                %329 = vst [vmem:[%s245 + $0xa4] sm:$0xf] %v328
                %v330 = vld [vmem:[%s244 + $0x128] sm:$0xf]
                %331 = vst [vmem:[%s245 + $0xa8] sm:$0xf] %v330
                %v332 = vld [vmem:[%s244 + $0x12c] sm:$0xf]
                %333 = vst [vmem:[%s245 + $0xac] sm:$0xf] %v332
                %v334 = vld [vmem:[%s244 + $0x130] sm:$0xf]
                %335 = vst [vmem:[%s245 + $0xb0] sm:$0xf] %v334
                %v336 = vld [vmem:[%s244 + $0x134] sm:$0xf]
                %337 = vst [vmem:[%s245 + $0xb4] sm:$0xf] %v336
                %v338 = vld [vmem:[%s244 + $0x138] sm:$0xf]
                %339 = vst [vmem:[%s245 + $0xb8] sm:$0xf] %v338
                %v340 = vld [vmem:[%s244 + $0x13c] sm:$0xf]
                %341 = vst [vmem:[%s245 + $0xbc] sm:$0xf] %v340
                %v342 = vld [vmem:[%s244 + $0x180] sm:$0xf]
                %343 = vst [vmem:[%s245 + $0xc0] sm:$0xf] %v342
                %v344 = vld [vmem:[%s244 + $0x184] sm:$0xf]
                %345 = vst [vmem:[%s245 + $0xc4] sm:$0xf] %v344
                %v346 = vld [vmem:[%s244 + $0x188] sm:$0xf]
                %347 = vst [vmem:[%s245 + $0xc8] sm:$0xf] %v346
                %v348 = vld [vmem:[%s244 + $0x18c] sm:$0xf]
                %349 = vst [vmem:[%s245 + $0xcc] sm:$0xf] %v348
                %v350 = vld [vmem:[%s244 + $0x190] sm:$0xf]
                %351 = vst [vmem:[%s245 + $0xd0] sm:$0xf] %v350
                %v352 = vld [vmem:[%s244 + $0x194] sm:$0xf]
                %353 = vst [vmem:[%s245 + $0xd4] sm:$0xf] %v352
                %v354 = vld [vmem:[%s244 + $0x198] sm:$0xf]
                %355 = vst [vmem:[%s245 + $0xd8] sm:$0xf] %v354
                %v356 = vld [vmem:[%s244 + $0x19c] sm:$0xf]
                %357 = vst [vmem:[%s245 + $0xdc] sm:$0xf] %v356
                %v358 = vld [vmem:[%s244 + $0x1a0] sm:$0xf]
                %359 = vst [vmem:[%s245 + $0xe0] sm:$0xf] %v358
                %v360 = vld [vmem:[%s244 + $0x1a4] sm:$0xf]
                %361 = vst [vmem:[%s245 + $0xe4] sm:$0xf] %v360
                %v362 = vld [vmem:[%s244 + $0x1a8] sm:$0xf]
                %363 = vst [vmem:[%s245 + $0xe8] sm:$0xf] %v362
                %v364 = vld [vmem:[%s244 + $0x1ac] sm:$0xf]
                %365 = vst [vmem:[%s245 + $0xec] sm:$0xf] %v364
                %v366 = vld [vmem:[%s244 + $0x1b0] sm:$0xf]
                %367 = vst [vmem:[%s245 + $0xf0] sm:$0xf] %v366
                %v368 = vld [vmem:[%s244 + $0x1b4] sm:$0xf]
                %369 = vst [vmem:[%s245 + $0xf4] sm:$0xf] %v368
                %v370 = vld [vmem:[%s244 + $0x1b8] sm:$0xf]
                %371 = vst [vmem:[%s245 + $0xf8] sm:$0xf] %v370
                %v372 = vld [vmem:[%s244 + $0x1bc] sm:$0xf]
                %373 = vst [vmem:[%s245 + $0xfc] sm:$0xf] %v372
              $region37: #{tpu_custom_call.1} parent=31 // loop_footer
                %s243 = sadd.s32 1, %s239
              $region38: #{tpu_custom_call.1} parent=31 // loop_footer_branch
                %238 = sbr.rel target = $region34
              $region39: #{tpu_custom_call.1} parent=31 // loop_exit
                _
            $region32: #{tpu_custom_call.1} parent=23 // pred_fallthru
              _
          $region24: #{tpu_custom_call.1} parent=19 // pred_fallthru
            _
          %521 = vnop
        $region20: #{tpu_custom_call.1} parent=15 // pred_fallthru
          _
        // Predicated region
        $region58: #{tpu_custom_call.1} parent=15 // pred_check
          %p522 = pneg %p80
        $region59: #{tpu_custom_call.1} parent=15 // pred_check_branch
          %524 = sbr.rel (%p522) target = $region61
        $region60: #{tpu_custom_call.1} parent=15 // pred_region
          %s525 = sand.u32 %s70, 1
          %s526 = sand.u32 %s70, 1
          %s527 = smul.addr %s526, 256
          %s528 = scalar_lea.vmem [#allocation6], %s527
          %s529 = smul.u32 16, %s20
          %s530 = smul.addr %s18, 128
          %s531 = sadd.s32 %s529, %s530
          %s532 = smul.addr %s531, 4
          %s533 = scalar_lea.vmem %s1, %s532
          // Predicated region
          $region62: #{tpu_custom_call.1} parent=60 // pred_check
            _
          $region63: #{tpu_custom_call.1} parent=60 // pred_check_branch
            %535 = sbr.rel (0) target = $region65
          $region64: #{tpu_custom_call.1} parent=60 // pred_region
            // Predicated region
            $region66: #{tpu_custom_call.1} parent=64 // pred_check
              _
            $region67: #{tpu_custom_call.1} parent=64 // pred_check_branch
              %537 = sbr.rel target = $region69
            $region68: #{tpu_custom_call.1} parent=64 // pred_region
              // Predicated region
              $region81: #{tpu_custom_call.1} parent=68 // pred_check
                _
              $region82: #{tpu_custom_call.1} parent=68 // pred_check_branch
                %678 = sbr.rel (0) target = $region84
              $region83: #{tpu_custom_call.1} parent=68 // pred_region
                loop: start=0, step=1, limit=1
                $region85: #{tpu_custom_call.1} parent=83 // loop_pre_header
                  _
                $region86: #{tpu_custom_call.1} parent=83 // loop_header
                  %s680 = sphi 0, %s684
                  %p681 = scmp.ge.s32.totalorder %s680, 1
                  %s685 = sphi %s533, %s533
                  %s686 = sphi %s528, %s528
                $region87: #{tpu_custom_call.1} parent=83 // loop_header_branch
                  %683 = sbr.rel (%p681) target = $region91
                $region88: #{tpu_custom_call.1} parent=83 // loop_body
                  _
                $region89: #{tpu_custom_call.1} parent=83 // loop_footer
                  %s684 = sadd.s32 1, %s680
                $region90: #{tpu_custom_call.1} parent=83 // loop_footer_branch
                  %679 = sbr.rel target = $region86
                $region91: #{tpu_custom_call.1} parent=83 // loop_exit
                  _
                loop: start=0, step=1, limit=1
                $region92: #{tpu_custom_call.1} parent=83 // loop_pre_header
                  _
                $region93: #{tpu_custom_call.1} parent=83 // loop_header
                  %s689 = sphi 0, %s693
                  %p690 = scmp.ge.s32.totalorder %s689, 1
                  %s694 = sphi %s533, %s533
                  %s695 = sphi %s528, %s528
                $region94: #{tpu_custom_call.1} parent=83 // loop_header_branch
                  %692 = sbr.rel (%p690) target = $region98
                $region95: #{tpu_custom_call.1} parent=83 // loop_body
                  %v696 = vld [vmem:[%s694] sm:$0xf]
                  %697 = vst [vmem:[%s695] sm:$0xf] %v696
                  %v698 = vld [vmem:[%s694 + $0x4] sm:$0xf]
                  %699 = vst [vmem:[%s695 + $0x4] sm:$0xf] %v698
                  %v700 = vld [vmem:[%s694 + $0x8] sm:$0xf]
                  %701 = vst [vmem:[%s695 + $0x8] sm:$0xf] %v700
                  %v702 = vld [vmem:[%s694 + $0xc] sm:$0xf]
                  %703 = vst [vmem:[%s695 + $0xc] sm:$0xf] %v702
                  %v704 = vld [vmem:[%s694 + $0x10] sm:$0xf]
                  %705 = vst [vmem:[%s695 + $0x10] sm:$0xf] %v704
                  %v706 = vld [vmem:[%s694 + $0x14] sm:$0xf]
                  %707 = vst [vmem:[%s695 + $0x14] sm:$0xf] %v706
                  %v708 = vld [vmem:[%s694 + $0x18] sm:$0xf]
                  %709 = vst [vmem:[%s695 + $0x18] sm:$0xf] %v708
                  %v710 = vld [vmem:[%s694 + $0x1c] sm:$0xf]
                  %711 = vst [vmem:[%s695 + $0x1c] sm:$0xf] %v710
                  %v712 = vld [vmem:[%s694 + $0x20] sm:$0xf]
                  %713 = vst [vmem:[%s695 + $0x20] sm:$0xf] %v712
                  %v714 = vld [vmem:[%s694 + $0x24] sm:$0xf]
                  %715 = vst [vmem:[%s695 + $0x24] sm:$0xf] %v714
                  %v716 = vld [vmem:[%s694 + $0x28] sm:$0xf]
                  %717 = vst [vmem:[%s695 + $0x28] sm:$0xf] %v716
                  %v718 = vld [vmem:[%s694 + $0x2c] sm:$0xf]
                  %719 = vst [vmem:[%s695 + $0x2c] sm:$0xf] %v718
                  %v720 = vld [vmem:[%s694 + $0x30] sm:$0xf]
                  %721 = vst [vmem:[%s695 + $0x30] sm:$0xf] %v720
                  %v722 = vld [vmem:[%s694 + $0x34] sm:$0xf]
                  %723 = vst [vmem:[%s695 + $0x34] sm:$0xf] %v722
                  %v724 = vld [vmem:[%s694 + $0x38] sm:$0xf]
                  %725 = vst [vmem:[%s695 + $0x38] sm:$0xf] %v724
                  %v726 = vld [vmem:[%s694 + $0x3c] sm:$0xf]
                  %727 = vst [vmem:[%s695 + $0x3c] sm:$0xf] %v726
                  %v728 = vld [vmem:[%s694 + $0x80] sm:$0xf]
                  %729 = vst [vmem:[%s695 + $0x40] sm:$0xf] %v728
                  %v730 = vld [vmem:[%s694 + $0x84] sm:$0xf]
                  %731 = vst [vmem:[%s695 + $0x44] sm:$0xf] %v730
                  %v732 = vld [vmem:[%s694 + $0x88] sm:$0xf]
                  %733 = vst [vmem:[%s695 + $0x48] sm:$0xf] %v732
                  %v734 = vld [vmem:[%s694 + $0x8c] sm:$0xf]
                  %735 = vst [vmem:[%s695 + $0x4c] sm:$0xf] %v734
                  %v736 = vld [vmem:[%s694 + $0x90] sm:$0xf]
                  %737 = vst [vmem:[%s695 + $0x50] sm:$0xf] %v736
                  %v738 = vld [vmem:[%s694 + $0x94] sm:$0xf]
                  %739 = vst [vmem:[%s695 + $0x54] sm:$0xf] %v738
                  %v740 = vld [vmem:[%s694 + $0x98] sm:$0xf]
                  %741 = vst [vmem:[%s695 + $0x58] sm:$0xf] %v740
                  %v742 = vld [vmem:[%s694 + $0x9c] sm:$0xf]
                  %743 = vst [vmem:[%s695 + $0x5c] sm:$0xf] %v742
                  %v744 = vld [vmem:[%s694 + $0xa0] sm:$0xf]
                  %745 = vst [vmem:[%s695 + $0x60] sm:$0xf] %v744
                  %v746 = vld [vmem:[%s694 + $0xa4] sm:$0xf]
                  %747 = vst [vmem:[%s695 + $0x64] sm:$0xf] %v746
                  %v748 = vld [vmem:[%s694 + $0xa8] sm:$0xf]
                  %749 = vst [vmem:[%s695 + $0x68] sm:$0xf] %v748
                  %v750 = vld [vmem:[%s694 + $0xac] sm:$0xf]
                  %751 = vst [vmem:[%s695 + $0x6c] sm:$0xf] %v750
                  %v752 = vld [vmem:[%s694 + $0xb0] sm:$0xf]
                  %753 = vst [vmem:[%s695 + $0x70] sm:$0xf] %v752
                  %v754 = vld [vmem:[%s694 + $0xb4] sm:$0xf]
                  %755 = vst [vmem:[%s695 + $0x74] sm:$0xf] %v754
                  %v756 = vld [vmem:[%s694 + $0xb8] sm:$0xf]
                  %757 = vst [vmem:[%s695 + $0x78] sm:$0xf] %v756
                  %v758 = vld [vmem:[%s694 + $0xbc] sm:$0xf]
                  %759 = vst [vmem:[%s695 + $0x7c] sm:$0xf] %v758
                  %v760 = vld [vmem:[%s694 + $0x100] sm:$0xf]
                  %761 = vst [vmem:[%s695 + $0x80] sm:$0xf] %v760
                  %v762 = vld [vmem:[%s694 + $0x104] sm:$0xf]
                  %763 = vst [vmem:[%s695 + $0x84] sm:$0xf] %v762
                  %v764 = vld [vmem:[%s694 + $0x108] sm:$0xf]
                  %765 = vst [vmem:[%s695 + $0x88] sm:$0xf] %v764
                  %v766 = vld [vmem:[%s694 + $0x10c] sm:$0xf]
                  %767 = vst [vmem:[%s695 + $0x8c] sm:$0xf] %v766
                  %v768 = vld [vmem:[%s694 + $0x110] sm:$0xf]
                  %769 = vst [vmem:[%s695 + $0x90] sm:$0xf] %v768
                  %v770 = vld [vmem:[%s694 + $0x114] sm:$0xf]
                  %771 = vst [vmem:[%s695 + $0x94] sm:$0xf] %v770
                  %v772 = vld [vmem:[%s694 + $0x118] sm:$0xf]
                  %773 = vst [vmem:[%s695 + $0x98] sm:$0xf] %v772
                  %v774 = vld [vmem:[%s694 + $0x11c] sm:$0xf]
                  %775 = vst [vmem:[%s695 + $0x9c] sm:$0xf] %v774
                  %v776 = vld [vmem:[%s694 + $0x120] sm:$0xf]
                  %777 = vst [vmem:[%s695 + $0xa0] sm:$0xf] %v776
                  %v778 = vld [vmem:[%s694 + $0x124] sm:$0xf]
                  %779 = vst [vmem:[%s695 + $0xa4] sm:$0xf] %v778
                  %v780 = vld [vmem:[%s694 + $0x128] sm:$0xf]
                  %781 = vst [vmem:[%s695 + $0xa8] sm:$0xf] %v780
                  %v782 = vld [vmem:[%s694 + $0x12c] sm:$0xf]
                  %783 = vst [vmem:[%s695 + $0xac] sm:$0xf] %v782
                  %v784 = vld [vmem:[%s694 + $0x130] sm:$0xf]
                  %785 = vst [vmem:[%s695 + $0xb0] sm:$0xf] %v784
                  %v786 = vld [vmem:[%s694 + $0x134] sm:$0xf]
                  %787 = vst [vmem:[%s695 + $0xb4] sm:$0xf] %v786
                  %v788 = vld [vmem:[%s694 + $0x138] sm:$0xf]
                  %789 = vst [vmem:[%s695 + $0xb8] sm:$0xf] %v788
                  %v790 = vld [vmem:[%s694 + $0x13c] sm:$0xf]
                  %791 = vst [vmem:[%s695 + $0xbc] sm:$0xf] %v790
                  %v792 = vld [vmem:[%s694 + $0x180] sm:$0xf]
                  %793 = vst [vmem:[%s695 + $0xc0] sm:$0xf] %v792
                  %v794 = vld [vmem:[%s694 + $0x184] sm:$0xf]
                  %795 = vst [vmem:[%s695 + $0xc4] sm:$0xf] %v794
                  %v796 = vld [vmem:[%s694 + $0x188] sm:$0xf]
                  %797 = vst [vmem:[%s695 + $0xc8] sm:$0xf] %v796
                  %v798 = vld [vmem:[%s694 + $0x18c] sm:$0xf]
                  %799 = vst [vmem:[%s695 + $0xcc] sm:$0xf] %v798
                  %v800 = vld [vmem:[%s694 + $0x190] sm:$0xf]
                  %801 = vst [vmem:[%s695 + $0xd0] sm:$0xf] %v800
                  %v802 = vld [vmem:[%s694 + $0x194] sm:$0xf]
                  %803 = vst [vmem:[%s695 + $0xd4] sm:$0xf] %v802
                  %v804 = vld [vmem:[%s694 + $0x198] sm:$0xf]
                  %805 = vst [vmem:[%s695 + $0xd8] sm:$0xf] %v804
                  %v806 = vld [vmem:[%s694 + $0x19c] sm:$0xf]
                  %807 = vst [vmem:[%s695 + $0xdc] sm:$0xf] %v806
                  %v808 = vld [vmem:[%s694 + $0x1a0] sm:$0xf]
                  %809 = vst [vmem:[%s695 + $0xe0] sm:$0xf] %v808
                  %v810 = vld [vmem:[%s694 + $0x1a4] sm:$0xf]
                  %811 = vst [vmem:[%s695 + $0xe4] sm:$0xf] %v810
                  %v812 = vld [vmem:[%s694 + $0x1a8] sm:$0xf]
                  %813 = vst [vmem:[%s695 + $0xe8] sm:$0xf] %v812
                  %v814 = vld [vmem:[%s694 + $0x1ac] sm:$0xf]
                  %815 = vst [vmem:[%s695 + $0xec] sm:$0xf] %v814
                  %v816 = vld [vmem:[%s694 + $0x1b0] sm:$0xf]
                  %817 = vst [vmem:[%s695 + $0xf0] sm:$0xf] %v816
                  %v818 = vld [vmem:[%s694 + $0x1b4] sm:$0xf]
                  %819 = vst [vmem:[%s695 + $0xf4] sm:$0xf] %v818
                  %v820 = vld [vmem:[%s694 + $0x1b8] sm:$0xf]
                  %821 = vst [vmem:[%s695 + $0xf8] sm:$0xf] %v820
                  %v822 = vld [vmem:[%s694 + $0x1bc] sm:$0xf]
                  %823 = vst [vmem:[%s695 + $0xfc] sm:$0xf] %v822
                $region96: #{tpu_custom_call.1} parent=83 // loop_footer
                  %s693 = sadd.s32 1, %s689
                $region97: #{tpu_custom_call.1} parent=83 // loop_footer_branch
                  %688 = sbr.rel target = $region93
                $region98: #{tpu_custom_call.1} parent=83 // loop_exit
                  _
              $region84: #{tpu_custom_call.1} parent=68 // pred_fallthru
                _
            $region69: #{tpu_custom_call.1} parent=64 // pred_fallthru
              _
            // Predicated region
            $region70: #{tpu_custom_call.1} parent=64 // pred_check
              _
            $region71: #{tpu_custom_call.1} parent=64 // pred_check_branch
              %539 = sbr.rel (0) target = $region73
            $region72: #{tpu_custom_call.1} parent=64 // pred_region
              loop: start=0, step=1, limit=1
              $region74: #{tpu_custom_call.1} parent=72 // loop_pre_header
                _
              $region75: #{tpu_custom_call.1} parent=72 // loop_header
                %s542 = sphi 0, %s546
                %p543 = scmp.ge.s32.totalorder %s542, 1
                %s547 = sphi %s533, %s533
                %s548 = sphi %s528, %s528
              $region76: #{tpu_custom_call.1} parent=72 // loop_header_branch
                %545 = sbr.rel (%p543) target = $region80
              $region77: #{tpu_custom_call.1} parent=72 // loop_body
                %v549 = vld [vmem:[%s547] sm:$0xf]
                %550 = vst [vmem:[%s548] sm:$0xf] %v549
                %v551 = vld [vmem:[%s547 + $0x4] sm:$0xf]
                %552 = vst [vmem:[%s548 + $0x4] sm:$0xf] %v551
                %v553 = vld [vmem:[%s547 + $0x8] sm:$0xf]
                %554 = vst [vmem:[%s548 + $0x8] sm:$0xf] %v553
                %v555 = vld [vmem:[%s547 + $0xc] sm:$0xf]
                %556 = vst [vmem:[%s548 + $0xc] sm:$0xf] %v555
                %v557 = vld [vmem:[%s547 + $0x10] sm:$0xf]
                %558 = vst [vmem:[%s548 + $0x10] sm:$0xf] %v557
                %v559 = vld [vmem:[%s547 + $0x14] sm:$0xf]
                %560 = vst [vmem:[%s548 + $0x14] sm:$0xf] %v559
                %v561 = vld [vmem:[%s547 + $0x18] sm:$0xf]
                %562 = vst [vmem:[%s548 + $0x18] sm:$0xf] %v561
                %v563 = vld [vmem:[%s547 + $0x1c] sm:$0xf]
                %564 = vst [vmem:[%s548 + $0x1c] sm:$0xf] %v563
                %v565 = vld [vmem:[%s547 + $0x20] sm:$0xf]
                %566 = vst [vmem:[%s548 + $0x20] sm:$0xf] %v565
                %v567 = vld [vmem:[%s547 + $0x24] sm:$0xf]
                %568 = vst [vmem:[%s548 + $0x24] sm:$0xf] %v567
                %v569 = vld [vmem:[%s547 + $0x28] sm:$0xf]
                %570 = vst [vmem:[%s548 + $0x28] sm:$0xf] %v569
                %v571 = vld [vmem:[%s547 + $0x2c] sm:$0xf]
                %572 = vst [vmem:[%s548 + $0x2c] sm:$0xf] %v571
                %v573 = vld [vmem:[%s547 + $0x30] sm:$0xf]
                %574 = vst [vmem:[%s548 + $0x30] sm:$0xf] %v573
                %v575 = vld [vmem:[%s547 + $0x34] sm:$0xf]
                %576 = vst [vmem:[%s548 + $0x34] sm:$0xf] %v575
                %v577 = vld [vmem:[%s547 + $0x38] sm:$0xf]
                %578 = vst [vmem:[%s548 + $0x38] sm:$0xf] %v577
                %v579 = vld [vmem:[%s547 + $0x3c] sm:$0xf]
                %580 = vst [vmem:[%s548 + $0x3c] sm:$0xf] %v579
                %v581 = vld [vmem:[%s547 + $0x80] sm:$0xf]
                %582 = vst [vmem:[%s548 + $0x40] sm:$0xf] %v581
                %v583 = vld [vmem:[%s547 + $0x84] sm:$0xf]
                %584 = vst [vmem:[%s548 + $0x44] sm:$0xf] %v583
                %v585 = vld [vmem:[%s547 + $0x88] sm:$0xf]
                %586 = vst [vmem:[%s548 + $0x48] sm:$0xf] %v585
                %v587 = vld [vmem:[%s547 + $0x8c] sm:$0xf]
                %588 = vst [vmem:[%s548 + $0x4c] sm:$0xf] %v587
                %v589 = vld [vmem:[%s547 + $0x90] sm:$0xf]
                %590 = vst [vmem:[%s548 + $0x50] sm:$0xf] %v589
                %v591 = vld [vmem:[%s547 + $0x94] sm:$0xf]
                %592 = vst [vmem:[%s548 + $0x54] sm:$0xf] %v591
                %v593 = vld [vmem:[%s547 + $0x98] sm:$0xf]
                %594 = vst [vmem:[%s548 + $0x58] sm:$0xf] %v593
                %v595 = vld [vmem:[%s547 + $0x9c] sm:$0xf]
                %596 = vst [vmem:[%s548 + $0x5c] sm:$0xf] %v595
                %v597 = vld [vmem:[%s547 + $0xa0] sm:$0xf]
                %598 = vst [vmem:[%s548 + $0x60] sm:$0xf] %v597
                %v599 = vld [vmem:[%s547 + $0xa4] sm:$0xf]
                %600 = vst [vmem:[%s548 + $0x64] sm:$0xf] %v599
                %v601 = vld [vmem:[%s547 + $0xa8] sm:$0xf]
                %602 = vst [vmem:[%s548 + $0x68] sm:$0xf] %v601
                %v603 = vld [vmem:[%s547 + $0xac] sm:$0xf]
                %604 = vst [vmem:[%s548 + $0x6c] sm:$0xf] %v603
                %v605 = vld [vmem:[%s547 + $0xb0] sm:$0xf]
                %606 = vst [vmem:[%s548 + $0x70] sm:$0xf] %v605
                %v607 = vld [vmem:[%s547 + $0xb4] sm:$0xf]
                %608 = vst [vmem:[%s548 + $0x74] sm:$0xf] %v607
                %v609 = vld [vmem:[%s547 + $0xb8] sm:$0xf]
                %610 = vst [vmem:[%s548 + $0x78] sm:$0xf] %v609
                %v611 = vld [vmem:[%s547 + $0xbc] sm:$0xf]
                %612 = vst [vmem:[%s548 + $0x7c] sm:$0xf] %v611
                %v613 = vld [vmem:[%s547 + $0x100] sm:$0xf]
                %614 = vst [vmem:[%s548 + $0x80] sm:$0xf] %v613
                %v615 = vld [vmem:[%s547 + $0x104] sm:$0xf]
                %616 = vst [vmem:[%s548 + $0x84] sm:$0xf] %v615
                %v617 = vld [vmem:[%s547 + $0x108] sm:$0xf]
                %618 = vst [vmem:[%s548 + $0x88] sm:$0xf] %v617
                %v619 = vld [vmem:[%s547 + $0x10c] sm:$0xf]
                %620 = vst [vmem:[%s548 + $0x8c] sm:$0xf] %v619
                %v621 = vld [vmem:[%s547 + $0x110] sm:$0xf]
                %622 = vst [vmem:[%s548 + $0x90] sm:$0xf] %v621
                %v623 = vld [vmem:[%s547 + $0x114] sm:$0xf]
                %624 = vst [vmem:[%s548 + $0x94] sm:$0xf] %v623
                %v625 = vld [vmem:[%s547 + $0x118] sm:$0xf]
                %626 = vst [vmem:[%s548 + $0x98] sm:$0xf] %v625
                %v627 = vld [vmem:[%s547 + $0x11c] sm:$0xf]
                %628 = vst [vmem:[%s548 + $0x9c] sm:$0xf] %v627
                %v629 = vld [vmem:[%s547 + $0x120] sm:$0xf]
                %630 = vst [vmem:[%s548 + $0xa0] sm:$0xf] %v629
                %v631 = vld [vmem:[%s547 + $0x124] sm:$0xf]
                %632 = vst [vmem:[%s548 + $0xa4] sm:$0xf] %v631
                %v633 = vld [vmem:[%s547 + $0x128] sm:$0xf]
                %634 = vst [vmem:[%s548 + $0xa8] sm:$0xf] %v633
                %v635 = vld [vmem:[%s547 + $0x12c] sm:$0xf]
                %636 = vst [vmem:[%s548 + $0xac] sm:$0xf] %v635
                %v637 = vld [vmem:[%s547 + $0x130] sm:$0xf]
                %638 = vst [vmem:[%s548 + $0xb0] sm:$0xf] %v637
                %v639 = vld [vmem:[%s547 + $0x134] sm:$0xf]
                %640 = vst [vmem:[%s548 + $0xb4] sm:$0xf] %v639
                %v641 = vld [vmem:[%s547 + $0x138] sm:$0xf]
                %642 = vst [vmem:[%s548 + $0xb8] sm:$0xf] %v641
                %v643 = vld [vmem:[%s547 + $0x13c] sm:$0xf]
                %644 = vst [vmem:[%s548 + $0xbc] sm:$0xf] %v643
                %v645 = vld [vmem:[%s547 + $0x180] sm:$0xf]
                %646 = vst [vmem:[%s548 + $0xc0] sm:$0xf] %v645
                %v647 = vld [vmem:[%s547 + $0x184] sm:$0xf]
                %648 = vst [vmem:[%s548 + $0xc4] sm:$0xf] %v647
                %v649 = vld [vmem:[%s547 + $0x188] sm:$0xf]
                %650 = vst [vmem:[%s548 + $0xc8] sm:$0xf] %v649
                %v651 = vld [vmem:[%s547 + $0x18c] sm:$0xf]
                %652 = vst [vmem:[%s548 + $0xcc] sm:$0xf] %v651
                %v653 = vld [vmem:[%s547 + $0x190] sm:$0xf]
                %654 = vst [vmem:[%s548 + $0xd0] sm:$0xf] %v653
                %v655 = vld [vmem:[%s547 + $0x194] sm:$0xf]
                %656 = vst [vmem:[%s548 + $0xd4] sm:$0xf] %v655
                %v657 = vld [vmem:[%s547 + $0x198] sm:$0xf]
                %658 = vst [vmem:[%s548 + $0xd8] sm:$0xf] %v657
                %v659 = vld [vmem:[%s547 + $0x19c] sm:$0xf]
                %660 = vst [vmem:[%s548 + $0xdc] sm:$0xf] %v659
                %v661 = vld [vmem:[%s547 + $0x1a0] sm:$0xf]
                %662 = vst [vmem:[%s548 + $0xe0] sm:$0xf] %v661
                %v663 = vld [vmem:[%s547 + $0x1a4] sm:$0xf]
                %664 = vst [vmem:[%s548 + $0xe4] sm:$0xf] %v663
                %v665 = vld [vmem:[%s547 + $0x1a8] sm:$0xf]
                %666 = vst [vmem:[%s548 + $0xe8] sm:$0xf] %v665
                %v667 = vld [vmem:[%s547 + $0x1ac] sm:$0xf]
                %668 = vst [vmem:[%s548 + $0xec] sm:$0xf] %v667
                %v669 = vld [vmem:[%s547 + $0x1b0] sm:$0xf]
                %670 = vst [vmem:[%s548 + $0xf0] sm:$0xf] %v669
                %v671 = vld [vmem:[%s547 + $0x1b4] sm:$0xf]
                %672 = vst [vmem:[%s548 + $0xf4] sm:$0xf] %v671
                %v673 = vld [vmem:[%s547 + $0x1b8] sm:$0xf]
                %674 = vst [vmem:[%s548 + $0xf8] sm:$0xf] %v673
                %v675 = vld [vmem:[%s547 + $0x1bc] sm:$0xf]
                %676 = vst [vmem:[%s548 + $0xfc] sm:$0xf] %v675
              $region78: #{tpu_custom_call.1} parent=72 // loop_footer
                %s546 = sadd.s32 1, %s542
              $region79: #{tpu_custom_call.1} parent=72 // loop_footer_branch
                %541 = sbr.rel target = $region75
              $region80: #{tpu_custom_call.1} parent=72 // loop_exit
                _
            $region73: #{tpu_custom_call.1} parent=64 // pred_fallthru
              _
          $region65: #{tpu_custom_call.1} parent=60 // pred_fallthru
            _
          %824 = vnop
        $region61: #{tpu_custom_call.1} parent=15 // pred_fallthru
          _
        // Predicated region
        $region99: #{tpu_custom_call.1} parent=15 // pred_check
          %p825 = pneg %p108
        $region100: #{tpu_custom_call.1} parent=15 // pred_check_branch
          %827 = sbr.rel (%p825) target = $region102
        $region101: #{tpu_custom_call.1} parent=15 // pred_region
          %s828 = sand.u32 %s98, 1
          %s829 = sand.u32 %s98, 1
          %s830 = smul.addr %s829, 256
          %s831 = scalar_lea.vmem [#allocation7], %s830
          %s832 = smul.u32 16, %s20
          %s833 = smul.addr %s18, 128
          %s834 = sadd.s32 %s832, %s833
          %s835 = smul.addr %s834, 4
          %s836 = scalar_lea.vmem %s2, %s835
          // Predicated region
          $region103: #{tpu_custom_call.1} parent=101 // pred_check
            _
          $region104: #{tpu_custom_call.1} parent=101 // pred_check_branch
            %838 = sbr.rel (0) target = $region106
          $region105: #{tpu_custom_call.1} parent=101 // pred_region
            // Predicated region
            $region107: #{tpu_custom_call.1} parent=105 // pred_check
              _
            $region108: #{tpu_custom_call.1} parent=105 // pred_check_branch
              %840 = sbr.rel target = $region110
            $region109: #{tpu_custom_call.1} parent=105 // pred_region
              // Predicated region
              $region122: #{tpu_custom_call.1} parent=109 // pred_check
                _
              $region123: #{tpu_custom_call.1} parent=109 // pred_check_branch
                %981 = sbr.rel (0) target = $region125
              $region124: #{tpu_custom_call.1} parent=109 // pred_region
                loop: start=0, step=1, limit=1
                $region126: #{tpu_custom_call.1} parent=124 // loop_pre_header
                  _
                $region127: #{tpu_custom_call.1} parent=124 // loop_header
                  %s983 = sphi 0, %s987
                  %p984 = scmp.ge.s32.totalorder %s983, 1
                  %s988 = sphi %s836, %s836
                  %s989 = sphi %s831, %s831
                $region128: #{tpu_custom_call.1} parent=124 // loop_header_branch
                  %986 = sbr.rel (%p984) target = $region132
                $region129: #{tpu_custom_call.1} parent=124 // loop_body
                  _
                $region130: #{tpu_custom_call.1} parent=124 // loop_footer
                  %s987 = sadd.s32 1, %s983
                $region131: #{tpu_custom_call.1} parent=124 // loop_footer_branch
                  %982 = sbr.rel target = $region127
                $region132: #{tpu_custom_call.1} parent=124 // loop_exit
                  _
                loop: start=0, step=1, limit=1
                $region133: #{tpu_custom_call.1} parent=124 // loop_pre_header
                  _
                $region134: #{tpu_custom_call.1} parent=124 // loop_header
                  %s992 = sphi 0, %s996
                  %p993 = scmp.ge.s32.totalorder %s992, 1
                  %s997 = sphi %s836, %s836
                  %s998 = sphi %s831, %s831
                $region135: #{tpu_custom_call.1} parent=124 // loop_header_branch
                  %995 = sbr.rel (%p993) target = $region139
                $region136: #{tpu_custom_call.1} parent=124 // loop_body
                  %v999 = vld [vmem:[%s997] sm:$0xf]
                  %1000 = vst [vmem:[%s998] sm:$0xf] %v999
                  %v1001 = vld [vmem:[%s997 + $0x4] sm:$0xf]
                  %1002 = vst [vmem:[%s998 + $0x4] sm:$0xf] %v1001
                  %v1003 = vld [vmem:[%s997 + $0x8] sm:$0xf]
                  %1004 = vst [vmem:[%s998 + $0x8] sm:$0xf] %v1003
                  %v1005 = vld [vmem:[%s997 + $0xc] sm:$0xf]
                  %1006 = vst [vmem:[%s998 + $0xc] sm:$0xf] %v1005
                  %v1007 = vld [vmem:[%s997 + $0x10] sm:$0xf]
                  %1008 = vst [vmem:[%s998 + $0x10] sm:$0xf] %v1007
                  %v1009 = vld [vmem:[%s997 + $0x14] sm:$0xf]
                  %1010 = vst [vmem:[%s998 + $0x14] sm:$0xf] %v1009
                  %v1011 = vld [vmem:[%s997 + $0x18] sm:$0xf]
                  %1012 = vst [vmem:[%s998 + $0x18] sm:$0xf] %v1011
                  %v1013 = vld [vmem:[%s997 + $0x1c] sm:$0xf]
                  %1014 = vst [vmem:[%s998 + $0x1c] sm:$0xf] %v1013
                  %v1015 = vld [vmem:[%s997 + $0x20] sm:$0xf]
                  %1016 = vst [vmem:[%s998 + $0x20] sm:$0xf] %v1015
                  %v1017 = vld [vmem:[%s997 + $0x24] sm:$0xf]
                  %1018 = vst [vmem:[%s998 + $0x24] sm:$0xf] %v1017
                  %v1019 = vld [vmem:[%s997 + $0x28] sm:$0xf]
                  %1020 = vst [vmem:[%s998 + $0x28] sm:$0xf] %v1019
                  %v1021 = vld [vmem:[%s997 + $0x2c] sm:$0xf]
                  %1022 = vst [vmem:[%s998 + $0x2c] sm:$0xf] %v1021
                  %v1023 = vld [vmem:[%s997 + $0x30] sm:$0xf]
                  %1024 = vst [vmem:[%s998 + $0x30] sm:$0xf] %v1023
                  %v1025 = vld [vmem:[%s997 + $0x34] sm:$0xf]
                  %1026 = vst [vmem:[%s998 + $0x34] sm:$0xf] %v1025
                  %v1027 = vld [vmem:[%s997 + $0x38] sm:$0xf]
                  %1028 = vst [vmem:[%s998 + $0x38] sm:$0xf] %v1027
                  %v1029 = vld [vmem:[%s997 + $0x3c] sm:$0xf]
                  %1030 = vst [vmem:[%s998 + $0x3c] sm:$0xf] %v1029
                  %v1031 = vld [vmem:[%s997 + $0x80] sm:$0xf]
                  %1032 = vst [vmem:[%s998 + $0x40] sm:$0xf] %v1031
                  %v1033 = vld [vmem:[%s997 + $0x84] sm:$0xf]
                  %1034 = vst [vmem:[%s998 + $0x44] sm:$0xf] %v1033
                  %v1035 = vld [vmem:[%s997 + $0x88] sm:$0xf]
                  %1036 = vst [vmem:[%s998 + $0x48] sm:$0xf] %v1035
                  %v1037 = vld [vmem:[%s997 + $0x8c] sm:$0xf]
                  %1038 = vst [vmem:[%s998 + $0x4c] sm:$0xf] %v1037
                  %v1039 = vld [vmem:[%s997 + $0x90] sm:$0xf]
                  %1040 = vst [vmem:[%s998 + $0x50] sm:$0xf] %v1039
                  %v1041 = vld [vmem:[%s997 + $0x94] sm:$0xf]
                  %1042 = vst [vmem:[%s998 + $0x54] sm:$0xf] %v1041
                  %v1043 = vld [vmem:[%s997 + $0x98] sm:$0xf]
                  %1044 = vst [vmem:[%s998 + $0x58] sm:$0xf] %v1043
                  %v1045 = vld [vmem:[%s997 + $0x9c] sm:$0xf]
                  %1046 = vst [vmem:[%s998 + $0x5c] sm:$0xf] %v1045
                  %v1047 = vld [vmem:[%s997 + $0xa0] sm:$0xf]
                  %1048 = vst [vmem:[%s998 + $0x60] sm:$0xf] %v1047
                  %v1049 = vld [vmem:[%s997 + $0xa4] sm:$0xf]
                  %1050 = vst [vmem:[%s998 + $0x64] sm:$0xf] %v1049
                  %v1051 = vld [vmem:[%s997 + $0xa8] sm:$0xf]
                  %1052 = vst [vmem:[%s998 + $0x68] sm:$0xf] %v1051
                  %v1053 = vld [vmem:[%s997 + $0xac] sm:$0xf]
                  %1054 = vst [vmem:[%s998 + $0x6c] sm:$0xf] %v1053
                  %v1055 = vld [vmem:[%s997 + $0xb0] sm:$0xf]
                  %1056 = vst [vmem:[%s998 + $0x70] sm:$0xf] %v1055
                  %v1057 = vld [vmem:[%s997 + $0xb4] sm:$0xf]
                  %1058 = vst [vmem:[%s998 + $0x74] sm:$0xf] %v1057
                  %v1059 = vld [vmem:[%s997 + $0xb8] sm:$0xf]
                  %1060 = vst [vmem:[%s998 + $0x78] sm:$0xf] %v1059
                  %v1061 = vld [vmem:[%s997 + $0xbc] sm:$0xf]
                  %1062 = vst [vmem:[%s998 + $0x7c] sm:$0xf] %v1061
                  %v1063 = vld [vmem:[%s997 + $0x100] sm:$0xf]
                  %1064 = vst [vmem:[%s998 + $0x80] sm:$0xf] %v1063
                  %v1065 = vld [vmem:[%s997 + $0x104] sm:$0xf]
                  %1066 = vst [vmem:[%s998 + $0x84] sm:$0xf] %v1065
                  %v1067 = vld [vmem:[%s997 + $0x108] sm:$0xf]
                  %1068 = vst [vmem:[%s998 + $0x88] sm:$0xf] %v1067
                  %v1069 = vld [vmem:[%s997 + $0x10c] sm:$0xf]
                  %1070 = vst [vmem:[%s998 + $0x8c] sm:$0xf] %v1069
                  %v1071 = vld [vmem:[%s997 + $0x110] sm:$0xf]
                  %1072 = vst [vmem:[%s998 + $0x90] sm:$0xf] %v1071
                  %v1073 = vld [vmem:[%s997 + $0x114] sm:$0xf]
                  %1074 = vst [vmem:[%s998 + $0x94] sm:$0xf] %v1073
                  %v1075 = vld [vmem:[%s997 + $0x118] sm:$0xf]
                  %1076 = vst [vmem:[%s998 + $0x98] sm:$0xf] %v1075
                  %v1077 = vld [vmem:[%s997 + $0x11c] sm:$0xf]
                  %1078 = vst [vmem:[%s998 + $0x9c] sm:$0xf] %v1077
                  %v1079 = vld [vmem:[%s997 + $0x120] sm:$0xf]
                  %1080 = vst [vmem:[%s998 + $0xa0] sm:$0xf] %v1079
                  %v1081 = vld [vmem:[%s997 + $0x124] sm:$0xf]
                  %1082 = vst [vmem:[%s998 + $0xa4] sm:$0xf] %v1081
                  %v1083 = vld [vmem:[%s997 + $0x128] sm:$0xf]
                  %1084 = vst [vmem:[%s998 + $0xa8] sm:$0xf] %v1083
                  %v1085 = vld [vmem:[%s997 + $0x12c] sm:$0xf]
                  %1086 = vst [vmem:[%s998 + $0xac] sm:$0xf] %v1085
                  %v1087 = vld [vmem:[%s997 + $0x130] sm:$0xf]
                  %1088 = vst [vmem:[%s998 + $0xb0] sm:$0xf] %v1087
                  %v1089 = vld [vmem:[%s997 + $0x134] sm:$0xf]
                  %1090 = vst [vmem:[%s998 + $0xb4] sm:$0xf] %v1089
                  %v1091 = vld [vmem:[%s997 + $0x138] sm:$0xf]
                  %1092 = vst [vmem:[%s998 + $0xb8] sm:$0xf] %v1091
                  %v1093 = vld [vmem:[%s997 + $0x13c] sm:$0xf]
                  %1094 = vst [vmem:[%s998 + $0xbc] sm:$0xf] %v1093
                  %v1095 = vld [vmem:[%s997 + $0x180] sm:$0xf]
                  %1096 = vst [vmem:[%s998 + $0xc0] sm:$0xf] %v1095
                  %v1097 = vld [vmem:[%s997 + $0x184] sm:$0xf]
                  %1098 = vst [vmem:[%s998 + $0xc4] sm:$0xf] %v1097
                  %v1099 = vld [vmem:[%s997 + $0x188] sm:$0xf]
                  %1100 = vst [vmem:[%s998 + $0xc8] sm:$0xf] %v1099
                  %v1101 = vld [vmem:[%s997 + $0x18c] sm:$0xf]
                  %1102 = vst [vmem:[%s998 + $0xcc] sm:$0xf] %v1101
                  %v1103 = vld [vmem:[%s997 + $0x190] sm:$0xf]
                  %1104 = vst [vmem:[%s998 + $0xd0] sm:$0xf] %v1103
                  %v1105 = vld [vmem:[%s997 + $0x194] sm:$0xf]
                  %1106 = vst [vmem:[%s998 + $0xd4] sm:$0xf] %v1105
                  %v1107 = vld [vmem:[%s997 + $0x198] sm:$0xf]
                  %1108 = vst [vmem:[%s998 + $0xd8] sm:$0xf] %v1107
                  %v1109 = vld [vmem:[%s997 + $0x19c] sm:$0xf]
                  %1110 = vst [vmem:[%s998 + $0xdc] sm:$0xf] %v1109
                  %v1111 = vld [vmem:[%s997 + $0x1a0] sm:$0xf]
                  %1112 = vst [vmem:[%s998 + $0xe0] sm:$0xf] %v1111
                  %v1113 = vld [vmem:[%s997 + $0x1a4] sm:$0xf]
                  %1114 = vst [vmem:[%s998 + $0xe4] sm:$0xf] %v1113
                  %v1115 = vld [vmem:[%s997 + $0x1a8] sm:$0xf]
                  %1116 = vst [vmem:[%s998 + $0xe8] sm:$0xf] %v1115
                  %v1117 = vld [vmem:[%s997 + $0x1ac] sm:$0xf]
                  %1118 = vst [vmem:[%s998 + $0xec] sm:$0xf] %v1117
                  %v1119 = vld [vmem:[%s997 + $0x1b0] sm:$0xf]
                  %1120 = vst [vmem:[%s998 + $0xf0] sm:$0xf] %v1119
                  %v1121 = vld [vmem:[%s997 + $0x1b4] sm:$0xf]
                  %1122 = vst [vmem:[%s998 + $0xf4] sm:$0xf] %v1121
                  %v1123 = vld [vmem:[%s997 + $0x1b8] sm:$0xf]
                  %1124 = vst [vmem:[%s998 + $0xf8] sm:$0xf] %v1123
                  %v1125 = vld [vmem:[%s997 + $0x1bc] sm:$0xf]
                  %1126 = vst [vmem:[%s998 + $0xfc] sm:$0xf] %v1125
                $region137: #{tpu_custom_call.1} parent=124 // loop_footer
                  %s996 = sadd.s32 1, %s992
                $region138: #{tpu_custom_call.1} parent=124 // loop_footer_branch
                  %991 = sbr.rel target = $region134
                $region139: #{tpu_custom_call.1} parent=124 // loop_exit
                  _
              $region125: #{tpu_custom_call.1} parent=109 // pred_fallthru
                _
            $region110: #{tpu_custom_call.1} parent=105 // pred_fallthru
              _
            // Predicated region
            $region111: #{tpu_custom_call.1} parent=105 // pred_check
              _
            $region112: #{tpu_custom_call.1} parent=105 // pred_check_branch
              %842 = sbr.rel (0) target = $region114
            $region113: #{tpu_custom_call.1} parent=105 // pred_region
              loop: start=0, step=1, limit=1
              $region115: #{tpu_custom_call.1} parent=113 // loop_pre_header
                _
              $region116: #{tpu_custom_call.1} parent=113 // loop_header
                %s845 = sphi 0, %s849
                %p846 = scmp.ge.s32.totalorder %s845, 1
                %s850 = sphi %s836, %s836
                %s851 = sphi %s831, %s831
              $region117: #{tpu_custom_call.1} parent=113 // loop_header_branch
                %848 = sbr.rel (%p846) target = $region121
              $region118: #{tpu_custom_call.1} parent=113 // loop_body
                %v852 = vld [vmem:[%s850] sm:$0xf]
                %853 = vst [vmem:[%s851] sm:$0xf] %v852
                %v854 = vld [vmem:[%s850 + $0x4] sm:$0xf]
                %855 = vst [vmem:[%s851 + $0x4] sm:$0xf] %v854
                %v856 = vld [vmem:[%s850 + $0x8] sm:$0xf]
                %857 = vst [vmem:[%s851 + $0x8] sm:$0xf] %v856
                %v858 = vld [vmem:[%s850 + $0xc] sm:$0xf]
                %859 = vst [vmem:[%s851 + $0xc] sm:$0xf] %v858
                %v860 = vld [vmem:[%s850 + $0x10] sm:$0xf]
                %861 = vst [vmem:[%s851 + $0x10] sm:$0xf] %v860
                %v862 = vld [vmem:[%s850 + $0x14] sm:$0xf]
                %863 = vst [vmem:[%s851 + $0x14] sm:$0xf] %v862
                %v864 = vld [vmem:[%s850 + $0x18] sm:$0xf]
                %865 = vst [vmem:[%s851 + $0x18] sm:$0xf] %v864
                %v866 = vld [vmem:[%s850 + $0x1c] sm:$0xf]
                %867 = vst [vmem:[%s851 + $0x1c] sm:$0xf] %v866
                %v868 = vld [vmem:[%s850 + $0x20] sm:$0xf]
                %869 = vst [vmem:[%s851 + $0x20] sm:$0xf] %v868
                %v870 = vld [vmem:[%s850 + $0x24] sm:$0xf]
                %871 = vst [vmem:[%s851 + $0x24] sm:$0xf] %v870
                %v872 = vld [vmem:[%s850 + $0x28] sm:$0xf]
                %873 = vst [vmem:[%s851 + $0x28] sm:$0xf] %v872
                %v874 = vld [vmem:[%s850 + $0x2c] sm:$0xf]
                %875 = vst [vmem:[%s851 + $0x2c] sm:$0xf] %v874
                %v876 = vld [vmem:[%s850 + $0x30] sm:$0xf]
                %877 = vst [vmem:[%s851 + $0x30] sm:$0xf] %v876
                %v878 = vld [vmem:[%s850 + $0x34] sm:$0xf]
                %879 = vst [vmem:[%s851 + $0x34] sm:$0xf] %v878
                %v880 = vld [vmem:[%s850 + $0x38] sm:$0xf]
                %881 = vst [vmem:[%s851 + $0x38] sm:$0xf] %v880
                %v882 = vld [vmem:[%s850 + $0x3c] sm:$0xf]
                %883 = vst [vmem:[%s851 + $0x3c] sm:$0xf] %v882
                %v884 = vld [vmem:[%s850 + $0x80] sm:$0xf]
                %885 = vst [vmem:[%s851 + $0x40] sm:$0xf] %v884
                %v886 = vld [vmem:[%s850 + $0x84] sm:$0xf]
                %887 = vst [vmem:[%s851 + $0x44] sm:$0xf] %v886
                %v888 = vld [vmem:[%s850 + $0x88] sm:$0xf]
                %889 = vst [vmem:[%s851 + $0x48] sm:$0xf] %v888
                %v890 = vld [vmem:[%s850 + $0x8c] sm:$0xf]
                %891 = vst [vmem:[%s851 + $0x4c] sm:$0xf] %v890
                %v892 = vld [vmem:[%s850 + $0x90] sm:$0xf]
                %893 = vst [vmem:[%s851 + $0x50] sm:$0xf] %v892
                %v894 = vld [vmem:[%s850 + $0x94] sm:$0xf]
                %895 = vst [vmem:[%s851 + $0x54] sm:$0xf] %v894
                %v896 = vld [vmem:[%s850 + $0x98] sm:$0xf]
                %897 = vst [vmem:[%s851 + $0x58] sm:$0xf] %v896
                %v898 = vld [vmem:[%s850 + $0x9c] sm:$0xf]
                %899 = vst [vmem:[%s851 + $0x5c] sm:$0xf] %v898
                %v900 = vld [vmem:[%s850 + $0xa0] sm:$0xf]
                %901 = vst [vmem:[%s851 + $0x60] sm:$0xf] %v900
                %v902 = vld [vmem:[%s850 + $0xa4] sm:$0xf]
                %903 = vst [vmem:[%s851 + $0x64] sm:$0xf] %v902
                %v904 = vld [vmem:[%s850 + $0xa8] sm:$0xf]
                %905 = vst [vmem:[%s851 + $0x68] sm:$0xf] %v904
                %v906 = vld [vmem:[%s850 + $0xac] sm:$0xf]
                %907 = vst [vmem:[%s851 + $0x6c] sm:$0xf] %v906
                %v908 = vld [vmem:[%s850 + $0xb0] sm:$0xf]
                %909 = vst [vmem:[%s851 + $0x70] sm:$0xf] %v908
                %v910 = vld [vmem:[%s850 + $0xb4] sm:$0xf]
                %911 = vst [vmem:[%s851 + $0x74] sm:$0xf] %v910
                %v912 = vld [vmem:[%s850 + $0xb8] sm:$0xf]
                %913 = vst [vmem:[%s851 + $0x78] sm:$0xf] %v912
                %v914 = vld [vmem:[%s850 + $0xbc] sm:$0xf]
                %915 = vst [vmem:[%s851 + $0x7c] sm:$0xf] %v914
                %v916 = vld [vmem:[%s850 + $0x100] sm:$0xf]
                %917 = vst [vmem:[%s851 + $0x80] sm:$0xf] %v916
                %v918 = vld [vmem:[%s850 + $0x104] sm:$0xf]
                %919 = vst [vmem:[%s851 + $0x84] sm:$0xf] %v918
                %v920 = vld [vmem:[%s850 + $0x108] sm:$0xf]
                %921 = vst [vmem:[%s851 + $0x88] sm:$0xf] %v920
                %v922 = vld [vmem:[%s850 + $0x10c] sm:$0xf]
                %923 = vst [vmem:[%s851 + $0x8c] sm:$0xf] %v922
                %v924 = vld [vmem:[%s850 + $0x110] sm:$0xf]
                %925 = vst [vmem:[%s851 + $0x90] sm:$0xf] %v924
                %v926 = vld [vmem:[%s850 + $0x114] sm:$0xf]
                %927 = vst [vmem:[%s851 + $0x94] sm:$0xf] %v926
                %v928 = vld [vmem:[%s850 + $0x118] sm:$0xf]
                %929 = vst [vmem:[%s851 + $0x98] sm:$0xf] %v928
                %v930 = vld [vmem:[%s850 + $0x11c] sm:$0xf]
                %931 = vst [vmem:[%s851 + $0x9c] sm:$0xf] %v930
                %v932 = vld [vmem:[%s850 + $0x120] sm:$0xf]
                %933 = vst [vmem:[%s851 + $0xa0] sm:$0xf] %v932
                %v934 = vld [vmem:[%s850 + $0x124] sm:$0xf]
                %935 = vst [vmem:[%s851 + $0xa4] sm:$0xf] %v934
                %v936 = vld [vmem:[%s850 + $0x128] sm:$0xf]
                %937 = vst [vmem:[%s851 + $0xa8] sm:$0xf] %v936
                %v938 = vld [vmem:[%s850 + $0x12c] sm:$0xf]
                %939 = vst [vmem:[%s851 + $0xac] sm:$0xf] %v938
                %v940 = vld [vmem:[%s850 + $0x130] sm:$0xf]
                %941 = vst [vmem:[%s851 + $0xb0] sm:$0xf] %v940
                %v942 = vld [vmem:[%s850 + $0x134] sm:$0xf]
                %943 = vst [vmem:[%s851 + $0xb4] sm:$0xf] %v942
                %v944 = vld [vmem:[%s850 + $0x138] sm:$0xf]
                %945 = vst [vmem:[%s851 + $0xb8] sm:$0xf] %v944
                %v946 = vld [vmem:[%s850 + $0x13c] sm:$0xf]
                %947 = vst [vmem:[%s851 + $0xbc] sm:$0xf] %v946
                %v948 = vld [vmem:[%s850 + $0x180] sm:$0xf]
                %949 = vst [vmem:[%s851 + $0xc0] sm:$0xf] %v948
                %v950 = vld [vmem:[%s850 + $0x184] sm:$0xf]
                %951 = vst [vmem:[%s851 + $0xc4] sm:$0xf] %v950
                %v952 = vld [vmem:[%s850 + $0x188] sm:$0xf]
                %953 = vst [vmem:[%s851 + $0xc8] sm:$0xf] %v952
                %v954 = vld [vmem:[%s850 + $0x18c] sm:$0xf]
                %955 = vst [vmem:[%s851 + $0xcc] sm:$0xf] %v954
                %v956 = vld [vmem:[%s850 + $0x190] sm:$0xf]
                %957 = vst [vmem:[%s851 + $0xd0] sm:$0xf] %v956
                %v958 = vld [vmem:[%s850 + $0x194] sm:$0xf]
                %959 = vst [vmem:[%s851 + $0xd4] sm:$0xf] %v958
                %v960 = vld [vmem:[%s850 + $0x198] sm:$0xf]
                %961 = vst [vmem:[%s851 + $0xd8] sm:$0xf] %v960
                %v962 = vld [vmem:[%s850 + $0x19c] sm:$0xf]
                %963 = vst [vmem:[%s851 + $0xdc] sm:$0xf] %v962
                %v964 = vld [vmem:[%s850 + $0x1a0] sm:$0xf]
                %965 = vst [vmem:[%s851 + $0xe0] sm:$0xf] %v964
                %v966 = vld [vmem:[%s850 + $0x1a4] sm:$0xf]
                %967 = vst [vmem:[%s851 + $0xe4] sm:$0xf] %v966
                %v968 = vld [vmem:[%s850 + $0x1a8] sm:$0xf]
                %969 = vst [vmem:[%s851 + $0xe8] sm:$0xf] %v968
                %v970 = vld [vmem:[%s850 + $0x1ac] sm:$0xf]
                %971 = vst [vmem:[%s851 + $0xec] sm:$0xf] %v970
                %v972 = vld [vmem:[%s850 + $0x1b0] sm:$0xf]
                %973 = vst [vmem:[%s851 + $0xf0] sm:$0xf] %v972
                %v974 = vld [vmem:[%s850 + $0x1b4] sm:$0xf]
                %975 = vst [vmem:[%s851 + $0xf4] sm:$0xf] %v974
                %v976 = vld [vmem:[%s850 + $0x1b8] sm:$0xf]
                %977 = vst [vmem:[%s851 + $0xf8] sm:$0xf] %v976
                %v978 = vld [vmem:[%s850 + $0x1bc] sm:$0xf]
                %979 = vst [vmem:[%s851 + $0xfc] sm:$0xf] %v978
              $region119: #{tpu_custom_call.1} parent=113 // loop_footer
                %s849 = sadd.s32 1, %s845
              $region120: #{tpu_custom_call.1} parent=113 // loop_footer_branch
                %844 = sbr.rel target = $region116
              $region121: #{tpu_custom_call.1} parent=113 // loop_exit
                _
            $region114: #{tpu_custom_call.1} parent=105 // pred_fallthru
              _
          $region106: #{tpu_custom_call.1} parent=101 // pred_fallthru
            _
          %1127 = vnop
        $region102: #{tpu_custom_call.1} parent=15 // pred_fallthru
          _
        // Predicated region
        $region140: #{tpu_custom_call.1} parent=15 // pred_check
          %p1128 = pneg %p136
        $region141: #{tpu_custom_call.1} parent=15 // pred_check_branch
          %1130 = sbr.rel (%p1128) target = $region143
        $region142: #{tpu_custom_call.1} parent=15 // pred_region
          %s1131 = sand.u32 %s126, 1
          %s1132 = sand.u32 %s126, 1
          %s1133 = smul.addr %s1132, 128
          %s1134 = scalar_lea.vmem [#allocation8], %s1133
          %s1135 = smul.u32 16, %s19
          %s1136 = smul.addr %s1135, 2
          %s1137 = sadd.s32 %s20, %s1136
          %s1138 = smul.addr %s1137, 8
          %s1139 = scalar_lea.vmem %s3, %s1138
          // Predicated region
          $region144: #{tpu_custom_call.1} parent=142 // pred_check
            _
          $region145: #{tpu_custom_call.1} parent=142 // pred_check_branch
            %1141 = sbr.rel (0) target = $region147
          $region146: #{tpu_custom_call.1} parent=142 // pred_region
            // Predicated region
            $region148: #{tpu_custom_call.1} parent=146 // pred_check
              _
            $region149: #{tpu_custom_call.1} parent=146 // pred_check_branch
              %1143 = sbr.rel (0) target = $region151
            $region150: #{tpu_custom_call.1} parent=146 // pred_region
              // Predicated region
              $region163: #{tpu_custom_call.1} parent=150 // pred_check
                _
              $region164: #{tpu_custom_call.1} parent=150 // pred_check_branch
                %1188 = sbr.rel (0) target = $region166
              $region165: #{tpu_custom_call.1} parent=150 // pred_region
                loop: start=0, step=1, limit=1
                $region167: #{tpu_custom_call.1} parent=165 // loop_pre_header
                  _
                $region168: #{tpu_custom_call.1} parent=165 // loop_header
                  %s1190 = sphi 0, %s1194
                  %p1191 = scmp.ge.s32.totalorder %s1190, 1
                  %s1195 = sphi %s1139, %s1139
                  %s1196 = sphi %s1134, %s1134
                $region169: #{tpu_custom_call.1} parent=165 // loop_header_branch
                  %1193 = sbr.rel (%p1191) target = $region173
                $region170: #{tpu_custom_call.1} parent=165 // loop_body
                  %v1197 = vld [vmem:[%s1195] sm:$0xff]
                  %1198 = vst [vmem:[%s1196] sm:$0xff] %v1197
                  %v1199 = vld [vmem:[%s1195 + $0x10] sm:$0xff]
                  %1200 = vst [vmem:[%s1196 + $0x8] sm:$0xff] %v1199
                  %v1201 = vld [vmem:[%s1195 + $0x20] sm:$0xff]
                  %1202 = vst [vmem:[%s1196 + $0x10] sm:$0xff] %v1201
                  %v1203 = vld [vmem:[%s1195 + $0x30] sm:$0xff]
                  %1204 = vst [vmem:[%s1196 + $0x18] sm:$0xff] %v1203
                  %v1205 = vld [vmem:[%s1195 + $0x40] sm:$0xff]
                  %1206 = vst [vmem:[%s1196 + $0x20] sm:$0xff] %v1205
                  %v1207 = vld [vmem:[%s1195 + $0x50] sm:$0xff]
                  %1208 = vst [vmem:[%s1196 + $0x28] sm:$0xff] %v1207
                  %v1209 = vld [vmem:[%s1195 + $0x60] sm:$0xff]
                  %1210 = vst [vmem:[%s1196 + $0x30] sm:$0xff] %v1209
                  %v1211 = vld [vmem:[%s1195 + $0x70] sm:$0xff]
                  %1212 = vst [vmem:[%s1196 + $0x38] sm:$0xff] %v1211
                  %v1213 = vld [vmem:[%s1195 + $0x80] sm:$0xff]
                  %1214 = vst [vmem:[%s1196 + $0x40] sm:$0xff] %v1213
                  %v1215 = vld [vmem:[%s1195 + $0x90] sm:$0xff]
                  %1216 = vst [vmem:[%s1196 + $0x48] sm:$0xff] %v1215
                  %v1217 = vld [vmem:[%s1195 + $0xa0] sm:$0xff]
                  %1218 = vst [vmem:[%s1196 + $0x50] sm:$0xff] %v1217
                  %v1219 = vld [vmem:[%s1195 + $0xb0] sm:$0xff]
                  %1220 = vst [vmem:[%s1196 + $0x58] sm:$0xff] %v1219
                  %v1221 = vld [vmem:[%s1195 + $0xc0] sm:$0xff]
                  %1222 = vst [vmem:[%s1196 + $0x60] sm:$0xff] %v1221
                  %v1223 = vld [vmem:[%s1195 + $0xd0] sm:$0xff]
                  %1224 = vst [vmem:[%s1196 + $0x68] sm:$0xff] %v1223
                  %v1225 = vld [vmem:[%s1195 + $0xe0] sm:$0xff]
                  %1226 = vst [vmem:[%s1196 + $0x70] sm:$0xff] %v1225
                  %v1227 = vld [vmem:[%s1195 + $0xf0] sm:$0xff]
                  %1228 = vst [vmem:[%s1196 + $0x78] sm:$0xff] %v1227
                $region171: #{tpu_custom_call.1} parent=165 // loop_footer
                  %s1194 = sadd.s32 1, %s1190
                $region172: #{tpu_custom_call.1} parent=165 // loop_footer_branch
                  %1189 = sbr.rel target = $region168
                $region173: #{tpu_custom_call.1} parent=165 // loop_exit
                  _
              $region166: #{tpu_custom_call.1} parent=150 // pred_fallthru
                _
              // Predicated region
              $region174: #{tpu_custom_call.1} parent=150 // pred_check
                _
              $region175: #{tpu_custom_call.1} parent=150 // pred_check_branch
                %1230 = sbr.rel target = $region177
              $region176: #{tpu_custom_call.1} parent=150 // pred_region
                _
              $region177: #{tpu_custom_call.1} parent=150 // pred_fallthru
                _
            $region151: #{tpu_custom_call.1} parent=146 // pred_fallthru
              _
            // Predicated region
            $region152: #{tpu_custom_call.1} parent=146 // pred_check
              _
            $region153: #{tpu_custom_call.1} parent=146 // pred_check_branch
              %1145 = sbr.rel target = $region155
            $region154: #{tpu_custom_call.1} parent=146 // pred_region
              loop: start=0, step=1, limit=1
              $region156: #{tpu_custom_call.1} parent=154 // loop_pre_header
                _
              $region157: #{tpu_custom_call.1} parent=154 // loop_header
                %s1148 = sphi 0, %s1152
                %p1149 = scmp.ge.s32.totalorder %s1148, 1
                %s1153 = sphi %s1139, %s1139
                %s1154 = sphi %s1134, %s1134
              $region158: #{tpu_custom_call.1} parent=154 // loop_header_branch
                %1151 = sbr.rel (%p1149) target = $region162
              $region159: #{tpu_custom_call.1} parent=154 // loop_body
                %v1155 = vld [vmem:[%s1153] sm:$0xff]
                %1156 = vst [vmem:[%s1154] sm:$0xff] %v1155
                %v1157 = vld [vmem:[%s1153 + $0x10] sm:$0xff]
                %1158 = vst [vmem:[%s1154 + $0x8] sm:$0xff] %v1157
                %v1159 = vld [vmem:[%s1153 + $0x20] sm:$0xff]
                %1160 = vst [vmem:[%s1154 + $0x10] sm:$0xff] %v1159
                %v1161 = vld [vmem:[%s1153 + $0x30] sm:$0xff]
                %1162 = vst [vmem:[%s1154 + $0x18] sm:$0xff] %v1161
                %v1163 = vld [vmem:[%s1153 + $0x40] sm:$0xff]
                %1164 = vst [vmem:[%s1154 + $0x20] sm:$0xff] %v1163
                %v1165 = vld [vmem:[%s1153 + $0x50] sm:$0xff]
                %1166 = vst [vmem:[%s1154 + $0x28] sm:$0xff] %v1165
                %v1167 = vld [vmem:[%s1153 + $0x60] sm:$0xff]
                %1168 = vst [vmem:[%s1154 + $0x30] sm:$0xff] %v1167
                %v1169 = vld [vmem:[%s1153 + $0x70] sm:$0xff]
                %1170 = vst [vmem:[%s1154 + $0x38] sm:$0xff] %v1169
                %v1171 = vld [vmem:[%s1153 + $0x80] sm:$0xff]
                %1172 = vst [vmem:[%s1154 + $0x40] sm:$0xff] %v1171
                %v1173 = vld [vmem:[%s1153 + $0x90] sm:$0xff]
                %1174 = vst [vmem:[%s1154 + $0x48] sm:$0xff] %v1173
                %v1175 = vld [vmem:[%s1153 + $0xa0] sm:$0xff]
                %1176 = vst [vmem:[%s1154 + $0x50] sm:$0xff] %v1175
                %v1177 = vld [vmem:[%s1153 + $0xb0] sm:$0xff]
                %1178 = vst [vmem:[%s1154 + $0x58] sm:$0xff] %v1177
                %v1179 = vld [vmem:[%s1153 + $0xc0] sm:$0xff]
                %1180 = vst [vmem:[%s1154 + $0x60] sm:$0xff] %v1179
                %v1181 = vld [vmem:[%s1153 + $0xd0] sm:$0xff]
                %1182 = vst [vmem:[%s1154 + $0x68] sm:$0xff] %v1181
                %v1183 = vld [vmem:[%s1153 + $0xe0] sm:$0xff]
                %1184 = vst [vmem:[%s1154 + $0x70] sm:$0xff] %v1183
                %v1185 = vld [vmem:[%s1153 + $0xf0] sm:$0xff]
                %1186 = vst [vmem:[%s1154 + $0x78] sm:$0xff] %v1185
              $region160: #{tpu_custom_call.1} parent=154 // loop_footer
                %s1152 = sadd.s32 1, %s1148
              $region161: #{tpu_custom_call.1} parent=154 // loop_footer_branch
                %1147 = sbr.rel target = $region157
              $region162: #{tpu_custom_call.1} parent=154 // loop_exit
                _
            $region155: #{tpu_custom_call.1} parent=146 // pred_fallthru
              _
          $region147: #{tpu_custom_call.1} parent=142 // pred_fallthru
            _
          %1231 = vnop
        $region143: #{tpu_custom_call.1} parent=15 // pred_fallthru
          _
        // Predicated region
        $region178: #{tpu_custom_call.1} parent=15 // pred_check
          %p1232 = pneg %p166
        $region179: #{tpu_custom_call.1} parent=15 // pred_check_branch
          %1234 = sbr.rel (%p1232) target = $region181
        $region180: #{tpu_custom_call.1} parent=15 // pred_region
          %s1235 = sand.u32 %s156, 1
          %s1236 = sand.u32 %s156, 1
          %s1237 = smul.addr %s1236, 256
          %s1238 = scalar_lea.vmem [#allocation9], %s1237
          %s1239 = smul.u32 16, %s19
          %s1240 = smul.addr %s1239, 2
          %s1241 = sadd.s32 %s20, %s1240
          %s1242 = smul.addr %s18, 256
          %s1243 = sadd.s32 %s1241, %s1242
          %s1244 = smul.addr %s1243, 4
          %s1245 = scalar_lea.vmem %s4, %s1244
          // Predicated region
          $region182: #{tpu_custom_call.1} parent=180 // pred_check
            _
          $region183: #{tpu_custom_call.1} parent=180 // pred_check_branch
            %1247 = sbr.rel (0) target = $region185
          $region184: #{tpu_custom_call.1} parent=180 // pred_region
            // Predicated region
            $region186: #{tpu_custom_call.1} parent=184 // pred_check
              _
            $region187: #{tpu_custom_call.1} parent=184 // pred_check_branch
              %1249 = sbr.rel target = $region189
            $region188: #{tpu_custom_call.1} parent=184 // pred_region
              // Predicated region
              $region201: #{tpu_custom_call.1} parent=188 // pred_check
                _
              $region202: #{tpu_custom_call.1} parent=188 // pred_check_branch
                %1390 = sbr.rel (0) target = $region204
              $region203: #{tpu_custom_call.1} parent=188 // pred_region
                loop: start=0, step=1, limit=1
                $region205: #{tpu_custom_call.1} parent=203 // loop_pre_header
                  _
                $region206: #{tpu_custom_call.1} parent=203 // loop_header
                  %s1392 = sphi 0, %s1396
                  %p1393 = scmp.ge.s32.totalorder %s1392, 1
                  %s1397 = sphi %s1245, %s1245
                  %s1398 = sphi %s1238, %s1238
                $region207: #{tpu_custom_call.1} parent=203 // loop_header_branch
                  %1395 = sbr.rel (%p1393) target = $region211
                $region208: #{tpu_custom_call.1} parent=203 // loop_body
                  _
                $region209: #{tpu_custom_call.1} parent=203 // loop_footer
                  %s1396 = sadd.s32 1, %s1392
                $region210: #{tpu_custom_call.1} parent=203 // loop_footer_branch
                  %1391 = sbr.rel target = $region206
                $region211: #{tpu_custom_call.1} parent=203 // loop_exit
                  _
                loop: start=0, step=1, limit=1
                $region212: #{tpu_custom_call.1} parent=203 // loop_pre_header
                  _
                $region213: #{tpu_custom_call.1} parent=203 // loop_header
                  %s1401 = sphi 0, %s1405
                  %p1402 = scmp.ge.s32.totalorder %s1401, 1
                  %s1406 = sphi %s1245, %s1245
                  %s1407 = sphi %s1238, %s1238
                $region214: #{tpu_custom_call.1} parent=203 // loop_header_branch
                  %1404 = sbr.rel (%p1402) target = $region218
                $region215: #{tpu_custom_call.1} parent=203 // loop_body
                  %v1408 = vld [vmem:[%s1406] sm:$0xf]
                  %1409 = vst [vmem:[%s1407] sm:$0xf] %v1408
                  %v1410 = vld [vmem:[%s1406 + $0x8] sm:$0xf]
                  %1411 = vst [vmem:[%s1407 + $0x4] sm:$0xf] %v1410
                  %v1412 = vld [vmem:[%s1406 + $0x10] sm:$0xf]
                  %1413 = vst [vmem:[%s1407 + $0x8] sm:$0xf] %v1412
                  %v1414 = vld [vmem:[%s1406 + $0x18] sm:$0xf]
                  %1415 = vst [vmem:[%s1407 + $0xc] sm:$0xf] %v1414
                  %v1416 = vld [vmem:[%s1406 + $0x20] sm:$0xf]
                  %1417 = vst [vmem:[%s1407 + $0x10] sm:$0xf] %v1416
                  %v1418 = vld [vmem:[%s1406 + $0x28] sm:$0xf]
                  %1419 = vst [vmem:[%s1407 + $0x14] sm:$0xf] %v1418
                  %v1420 = vld [vmem:[%s1406 + $0x30] sm:$0xf]
                  %1421 = vst [vmem:[%s1407 + $0x18] sm:$0xf] %v1420
                  %v1422 = vld [vmem:[%s1406 + $0x38] sm:$0xf]
                  %1423 = vst [vmem:[%s1407 + $0x1c] sm:$0xf] %v1422
                  %v1424 = vld [vmem:[%s1406 + $0x40] sm:$0xf]
                  %1425 = vst [vmem:[%s1407 + $0x20] sm:$0xf] %v1424
                  %v1426 = vld [vmem:[%s1406 + $0x48] sm:$0xf]
                  %1427 = vst [vmem:[%s1407 + $0x24] sm:$0xf] %v1426
                  %v1428 = vld [vmem:[%s1406 + $0x50] sm:$0xf]
                  %1429 = vst [vmem:[%s1407 + $0x28] sm:$0xf] %v1428
                  %v1430 = vld [vmem:[%s1406 + $0x58] sm:$0xf]
                  %1431 = vst [vmem:[%s1407 + $0x2c] sm:$0xf] %v1430
                  %v1432 = vld [vmem:[%s1406 + $0x60] sm:$0xf]
                  %1433 = vst [vmem:[%s1407 + $0x30] sm:$0xf] %v1432
                  %v1434 = vld [vmem:[%s1406 + $0x68] sm:$0xf]
                  %1435 = vst [vmem:[%s1407 + $0x34] sm:$0xf] %v1434
                  %v1436 = vld [vmem:[%s1406 + $0x70] sm:$0xf]
                  %1437 = vst [vmem:[%s1407 + $0x38] sm:$0xf] %v1436
                  %v1438 = vld [vmem:[%s1406 + $0x78] sm:$0xf]
                  %1439 = vst [vmem:[%s1407 + $0x3c] sm:$0xf] %v1438
                  %v1440 = vld [vmem:[%s1406 + $0x100] sm:$0xf]
                  %1441 = vst [vmem:[%s1407 + $0x40] sm:$0xf] %v1440
                  %v1442 = vld [vmem:[%s1406 + $0x108] sm:$0xf]
                  %1443 = vst [vmem:[%s1407 + $0x44] sm:$0xf] %v1442
                  %v1444 = vld [vmem:[%s1406 + $0x110] sm:$0xf]
                  %1445 = vst [vmem:[%s1407 + $0x48] sm:$0xf] %v1444
                  %v1446 = vld [vmem:[%s1406 + $0x118] sm:$0xf]
                  %1447 = vst [vmem:[%s1407 + $0x4c] sm:$0xf] %v1446
                  %v1448 = vld [vmem:[%s1406 + $0x120] sm:$0xf]
                  %1449 = vst [vmem:[%s1407 + $0x50] sm:$0xf] %v1448
                  %v1450 = vld [vmem:[%s1406 + $0x128] sm:$0xf]
                  %1451 = vst [vmem:[%s1407 + $0x54] sm:$0xf] %v1450
                  %v1452 = vld [vmem:[%s1406 + $0x130] sm:$0xf]
                  %1453 = vst [vmem:[%s1407 + $0x58] sm:$0xf] %v1452
                  %v1454 = vld [vmem:[%s1406 + $0x138] sm:$0xf]
                  %1455 = vst [vmem:[%s1407 + $0x5c] sm:$0xf] %v1454
                  %v1456 = vld [vmem:[%s1406 + $0x140] sm:$0xf]
                  %1457 = vst [vmem:[%s1407 + $0x60] sm:$0xf] %v1456
                  %v1458 = vld [vmem:[%s1406 + $0x148] sm:$0xf]
                  %1459 = vst [vmem:[%s1407 + $0x64] sm:$0xf] %v1458
                  %v1460 = vld [vmem:[%s1406 + $0x150] sm:$0xf]
                  %1461 = vst [vmem:[%s1407 + $0x68] sm:$0xf] %v1460
                  %v1462 = vld [vmem:[%s1406 + $0x158] sm:$0xf]
                  %1463 = vst [vmem:[%s1407 + $0x6c] sm:$0xf] %v1462
                  %v1464 = vld [vmem:[%s1406 + $0x160] sm:$0xf]
                  %1465 = vst [vmem:[%s1407 + $0x70] sm:$0xf] %v1464
                  %v1466 = vld [vmem:[%s1406 + $0x168] sm:$0xf]
                  %1467 = vst [vmem:[%s1407 + $0x74] sm:$0xf] %v1466
                  %v1468 = vld [vmem:[%s1406 + $0x170] sm:$0xf]
                  %1469 = vst [vmem:[%s1407 + $0x78] sm:$0xf] %v1468
                  %v1470 = vld [vmem:[%s1406 + $0x178] sm:$0xf]
                  %1471 = vst [vmem:[%s1407 + $0x7c] sm:$0xf] %v1470
                  %v1472 = vld [vmem:[%s1406 + $0x200] sm:$0xf]
                  %1473 = vst [vmem:[%s1407 + $0x80] sm:$0xf] %v1472
                  %v1474 = vld [vmem:[%s1406 + $0x208] sm:$0xf]
                  %1475 = vst [vmem:[%s1407 + $0x84] sm:$0xf] %v1474
                  %v1476 = vld [vmem:[%s1406 + $0x210] sm:$0xf]
                  %1477 = vst [vmem:[%s1407 + $0x88] sm:$0xf] %v1476
                  %v1478 = vld [vmem:[%s1406 + $0x218] sm:$0xf]
                  %1479 = vst [vmem:[%s1407 + $0x8c] sm:$0xf] %v1478
                  %v1480 = vld [vmem:[%s1406 + $0x220] sm:$0xf]
                  %1481 = vst [vmem:[%s1407 + $0x90] sm:$0xf] %v1480
                  %v1482 = vld [vmem:[%s1406 + $0x228] sm:$0xf]
                  %1483 = vst [vmem:[%s1407 + $0x94] sm:$0xf] %v1482
                  %v1484 = vld [vmem:[%s1406 + $0x230] sm:$0xf]
                  %1485 = vst [vmem:[%s1407 + $0x98] sm:$0xf] %v1484
                  %v1486 = vld [vmem:[%s1406 + $0x238] sm:$0xf]
                  %1487 = vst [vmem:[%s1407 + $0x9c] sm:$0xf] %v1486
                  %v1488 = vld [vmem:[%s1406 + $0x240] sm:$0xf]
                  %1489 = vst [vmem:[%s1407 + $0xa0] sm:$0xf] %v1488
                  %v1490 = vld [vmem:[%s1406 + $0x248] sm:$0xf]
                  %1491 = vst [vmem:[%s1407 + $0xa4] sm:$0xf] %v1490
                  %v1492 = vld [vmem:[%s1406 + $0x250] sm:$0xf]
                  %1493 = vst [vmem:[%s1407 + $0xa8] sm:$0xf] %v1492
                  %v1494 = vld [vmem:[%s1406 + $0x258] sm:$0xf]
                  %1495 = vst [vmem:[%s1407 + $0xac] sm:$0xf] %v1494
                  %v1496 = vld [vmem:[%s1406 + $0x260] sm:$0xf]
                  %1497 = vst [vmem:[%s1407 + $0xb0] sm:$0xf] %v1496
                  %v1498 = vld [vmem:[%s1406 + $0x268] sm:$0xf]
                  %1499 = vst [vmem:[%s1407 + $0xb4] sm:$0xf] %v1498
                  %v1500 = vld [vmem:[%s1406 + $0x270] sm:$0xf]
                  %1501 = vst [vmem:[%s1407 + $0xb8] sm:$0xf] %v1500
                  %v1502 = vld [vmem:[%s1406 + $0x278] sm:$0xf]
                  %1503 = vst [vmem:[%s1407 + $0xbc] sm:$0xf] %v1502
                  %v1504 = vld [vmem:[%s1406 + $0x300] sm:$0xf]
                  %1505 = vst [vmem:[%s1407 + $0xc0] sm:$0xf] %v1504
                  %v1506 = vld [vmem:[%s1406 + $0x308] sm:$0xf]
                  %1507 = vst [vmem:[%s1407 + $0xc4] sm:$0xf] %v1506
                  %v1508 = vld [vmem:[%s1406 + $0x310] sm:$0xf]
                  %1509 = vst [vmem:[%s1407 + $0xc8] sm:$0xf] %v1508
                  %v1510 = vld [vmem:[%s1406 + $0x318] sm:$0xf]
                  %1511 = vst [vmem:[%s1407 + $0xcc] sm:$0xf] %v1510
                  %v1512 = vld [vmem:[%s1406 + $0x320] sm:$0xf]
                  %1513 = vst [vmem:[%s1407 + $0xd0] sm:$0xf] %v1512
                  %v1514 = vld [vmem:[%s1406 + $0x328] sm:$0xf]
                  %1515 = vst [vmem:[%s1407 + $0xd4] sm:$0xf] %v1514
                  %v1516 = vld [vmem:[%s1406 + $0x330] sm:$0xf]
                  %1517 = vst [vmem:[%s1407 + $0xd8] sm:$0xf] %v1516
                  %v1518 = vld [vmem:[%s1406 + $0x338] sm:$0xf]
                  %1519 = vst [vmem:[%s1407 + $0xdc] sm:$0xf] %v1518
                  %v1520 = vld [vmem:[%s1406 + $0x340] sm:$0xf]
                  %1521 = vst [vmem:[%s1407 + $0xe0] sm:$0xf] %v1520
                  %v1522 = vld [vmem:[%s1406 + $0x348] sm:$0xf]
                  %1523 = vst [vmem:[%s1407 + $0xe4] sm:$0xf] %v1522
                  %v1524 = vld [vmem:[%s1406 + $0x350] sm:$0xf]
                  %1525 = vst [vmem:[%s1407 + $0xe8] sm:$0xf] %v1524
                  %v1526 = vld [vmem:[%s1406 + $0x358] sm:$0xf]
                  %1527 = vst [vmem:[%s1407 + $0xec] sm:$0xf] %v1526
                  %v1528 = vld [vmem:[%s1406 + $0x360] sm:$0xf]
                  %1529 = vst [vmem:[%s1407 + $0xf0] sm:$0xf] %v1528
                  %v1530 = vld [vmem:[%s1406 + $0x368] sm:$0xf]
                  %1531 = vst [vmem:[%s1407 + $0xf4] sm:$0xf] %v1530
                  %v1532 = vld [vmem:[%s1406 + $0x370] sm:$0xf]
                  %1533 = vst [vmem:[%s1407 + $0xf8] sm:$0xf] %v1532
                  %v1534 = vld [vmem:[%s1406 + $0x378] sm:$0xf]
                  %1535 = vst [vmem:[%s1407 + $0xfc] sm:$0xf] %v1534
                $region216: #{tpu_custom_call.1} parent=203 // loop_footer
                  %s1405 = sadd.s32 1, %s1401
                $region217: #{tpu_custom_call.1} parent=203 // loop_footer_branch
                  %1400 = sbr.rel target = $region213
                $region218: #{tpu_custom_call.1} parent=203 // loop_exit
                  _
              $region204: #{tpu_custom_call.1} parent=188 // pred_fallthru
                _
            $region189: #{tpu_custom_call.1} parent=184 // pred_fallthru
              _
            // Predicated region
            $region190: #{tpu_custom_call.1} parent=184 // pred_check
              _
            $region191: #{tpu_custom_call.1} parent=184 // pred_check_branch
              %1251 = sbr.rel (0) target = $region193
            $region192: #{tpu_custom_call.1} parent=184 // pred_region
              loop: start=0, step=1, limit=1
              $region194: #{tpu_custom_call.1} parent=192 // loop_pre_header
                _
              $region195: #{tpu_custom_call.1} parent=192 // loop_header
                %s1254 = sphi 0, %s1258
                %p1255 = scmp.ge.s32.totalorder %s1254, 1
                %s1259 = sphi %s1245, %s1245
                %s1260 = sphi %s1238, %s1238
              $region196: #{tpu_custom_call.1} parent=192 // loop_header_branch
                %1257 = sbr.rel (%p1255) target = $region200
              $region197: #{tpu_custom_call.1} parent=192 // loop_body
                %v1261 = vld [vmem:[%s1259] sm:$0xf]
                %1262 = vst [vmem:[%s1260] sm:$0xf] %v1261
                %v1263 = vld [vmem:[%s1259 + $0x8] sm:$0xf]
                %1264 = vst [vmem:[%s1260 + $0x4] sm:$0xf] %v1263
                %v1265 = vld [vmem:[%s1259 + $0x10] sm:$0xf]
                %1266 = vst [vmem:[%s1260 + $0x8] sm:$0xf] %v1265
                %v1267 = vld [vmem:[%s1259 + $0x18] sm:$0xf]
                %1268 = vst [vmem:[%s1260 + $0xc] sm:$0xf] %v1267
                %v1269 = vld [vmem:[%s1259 + $0x20] sm:$0xf]
                %1270 = vst [vmem:[%s1260 + $0x10] sm:$0xf] %v1269
                %v1271 = vld [vmem:[%s1259 + $0x28] sm:$0xf]
                %1272 = vst [vmem:[%s1260 + $0x14] sm:$0xf] %v1271
                %v1273 = vld [vmem:[%s1259 + $0x30] sm:$0xf]
                %1274 = vst [vmem:[%s1260 + $0x18] sm:$0xf] %v1273
                %v1275 = vld [vmem:[%s1259 + $0x38] sm:$0xf]
                %1276 = vst [vmem:[%s1260 + $0x1c] sm:$0xf] %v1275
                %v1277 = vld [vmem:[%s1259 + $0x40] sm:$0xf]
                %1278 = vst [vmem:[%s1260 + $0x20] sm:$0xf] %v1277
                %v1279 = vld [vmem:[%s1259 + $0x48] sm:$0xf]
                %1280 = vst [vmem:[%s1260 + $0x24] sm:$0xf] %v1279
                %v1281 = vld [vmem:[%s1259 + $0x50] sm:$0xf]
                %1282 = vst [vmem:[%s1260 + $0x28] sm:$0xf] %v1281
                %v1283 = vld [vmem:[%s1259 + $0x58] sm:$0xf]
                %1284 = vst [vmem:[%s1260 + $0x2c] sm:$0xf] %v1283
                %v1285 = vld [vmem:[%s1259 + $0x60] sm:$0xf]
                %1286 = vst [vmem:[%s1260 + $0x30] sm:$0xf] %v1285
                %v1287 = vld [vmem:[%s1259 + $0x68] sm:$0xf]
                %1288 = vst [vmem:[%s1260 + $0x34] sm:$0xf] %v1287
                %v1289 = vld [vmem:[%s1259 + $0x70] sm:$0xf]
                %1290 = vst [vmem:[%s1260 + $0x38] sm:$0xf] %v1289
                %v1291 = vld [vmem:[%s1259 + $0x78] sm:$0xf]
                %1292 = vst [vmem:[%s1260 + $0x3c] sm:$0xf] %v1291
                %v1293 = vld [vmem:[%s1259 + $0x100] sm:$0xf]
                %1294 = vst [vmem:[%s1260 + $0x40] sm:$0xf] %v1293
                %v1295 = vld [vmem:[%s1259 + $0x108] sm:$0xf]
                %1296 = vst [vmem:[%s1260 + $0x44] sm:$0xf] %v1295
                %v1297 = vld [vmem:[%s1259 + $0x110] sm:$0xf]
                %1298 = vst [vmem:[%s1260 + $0x48] sm:$0xf] %v1297
                %v1299 = vld [vmem:[%s1259 + $0x118] sm:$0xf]
                %1300 = vst [vmem:[%s1260 + $0x4c] sm:$0xf] %v1299
                %v1301 = vld [vmem:[%s1259 + $0x120] sm:$0xf]
                %1302 = vst [vmem:[%s1260 + $0x50] sm:$0xf] %v1301
                %v1303 = vld [vmem:[%s1259 + $0x128] sm:$0xf]
                %1304 = vst [vmem:[%s1260 + $0x54] sm:$0xf] %v1303
                %v1305 = vld [vmem:[%s1259 + $0x130] sm:$0xf]
                %1306 = vst [vmem:[%s1260 + $0x58] sm:$0xf] %v1305
                %v1307 = vld [vmem:[%s1259 + $0x138] sm:$0xf]
                %1308 = vst [vmem:[%s1260 + $0x5c] sm:$0xf] %v1307
                %v1309 = vld [vmem:[%s1259 + $0x140] sm:$0xf]
                %1310 = vst [vmem:[%s1260 + $0x60] sm:$0xf] %v1309
                %v1311 = vld [vmem:[%s1259 + $0x148] sm:$0xf]
                %1312 = vst [vmem:[%s1260 + $0x64] sm:$0xf] %v1311
                %v1313 = vld [vmem:[%s1259 + $0x150] sm:$0xf]
                %1314 = vst [vmem:[%s1260 + $0x68] sm:$0xf] %v1313
                %v1315 = vld [vmem:[%s1259 + $0x158] sm:$0xf]
                %1316 = vst [vmem:[%s1260 + $0x6c] sm:$0xf] %v1315
                %v1317 = vld [vmem:[%s1259 + $0x160] sm:$0xf]
                %1318 = vst [vmem:[%s1260 + $0x70] sm:$0xf] %v1317
                %v1319 = vld [vmem:[%s1259 + $0x168] sm:$0xf]
                %1320 = vst [vmem:[%s1260 + $0x74] sm:$0xf] %v1319
                %v1321 = vld [vmem:[%s1259 + $0x170] sm:$0xf]
                %1322 = vst [vmem:[%s1260 + $0x78] sm:$0xf] %v1321
                %v1323 = vld [vmem:[%s1259 + $0x178] sm:$0xf]
                %1324 = vst [vmem:[%s1260 + $0x7c] sm:$0xf] %v1323
                %v1325 = vld [vmem:[%s1259 + $0x200] sm:$0xf]
                %1326 = vst [vmem:[%s1260 + $0x80] sm:$0xf] %v1325
                %v1327 = vld [vmem:[%s1259 + $0x208] sm:$0xf]
                %1328 = vst [vmem:[%s1260 + $0x84] sm:$0xf] %v1327
                %v1329 = vld [vmem:[%s1259 + $0x210] sm:$0xf]
                %1330 = vst [vmem:[%s1260 + $0x88] sm:$0xf] %v1329
                %v1331 = vld [vmem:[%s1259 + $0x218] sm:$0xf]
                %1332 = vst [vmem:[%s1260 + $0x8c] sm:$0xf] %v1331
                %v1333 = vld [vmem:[%s1259 + $0x220] sm:$0xf]
                %1334 = vst [vmem:[%s1260 + $0x90] sm:$0xf] %v1333
                %v1335 = vld [vmem:[%s1259 + $0x228] sm:$0xf]
                %1336 = vst [vmem:[%s1260 + $0x94] sm:$0xf] %v1335
                %v1337 = vld [vmem:[%s1259 + $0x230] sm:$0xf]
                %1338 = vst [vmem:[%s1260 + $0x98] sm:$0xf] %v1337
                %v1339 = vld [vmem:[%s1259 + $0x238] sm:$0xf]
                %1340 = vst [vmem:[%s1260 + $0x9c] sm:$0xf] %v1339
                %v1341 = vld [vmem:[%s1259 + $0x240] sm:$0xf]
                %1342 = vst [vmem:[%s1260 + $0xa0] sm:$0xf] %v1341
                %v1343 = vld [vmem:[%s1259 + $0x248] sm:$0xf]
                %1344 = vst [vmem:[%s1260 + $0xa4] sm:$0xf] %v1343
                %v1345 = vld [vmem:[%s1259 + $0x250] sm:$0xf]
                %1346 = vst [vmem:[%s1260 + $0xa8] sm:$0xf] %v1345
                %v1347 = vld [vmem:[%s1259 + $0x258] sm:$0xf]
                %1348 = vst [vmem:[%s1260 + $0xac] sm:$0xf] %v1347
                %v1349 = vld [vmem:[%s1259 + $0x260] sm:$0xf]
                %1350 = vst [vmem:[%s1260 + $0xb0] sm:$0xf] %v1349
                %v1351 = vld [vmem:[%s1259 + $0x268] sm:$0xf]
                %1352 = vst [vmem:[%s1260 + $0xb4] sm:$0xf] %v1351
                %v1353 = vld [vmem:[%s1259 + $0x270] sm:$0xf]
                %1354 = vst [vmem:[%s1260 + $0xb8] sm:$0xf] %v1353
                %v1355 = vld [vmem:[%s1259 + $0x278] sm:$0xf]
                %1356 = vst [vmem:[%s1260 + $0xbc] sm:$0xf] %v1355
                %v1357 = vld [vmem:[%s1259 + $0x300] sm:$0xf]
                %1358 = vst [vmem:[%s1260 + $0xc0] sm:$0xf] %v1357
                %v1359 = vld [vmem:[%s1259 + $0x308] sm:$0xf]
                %1360 = vst [vmem:[%s1260 + $0xc4] sm:$0xf] %v1359
                %v1361 = vld [vmem:[%s1259 + $0x310] sm:$0xf]
                %1362 = vst [vmem:[%s1260 + $0xc8] sm:$0xf] %v1361
                %v1363 = vld [vmem:[%s1259 + $0x318] sm:$0xf]
                %1364 = vst [vmem:[%s1260 + $0xcc] sm:$0xf] %v1363
                %v1365 = vld [vmem:[%s1259 + $0x320] sm:$0xf]
                %1366 = vst [vmem:[%s1260 + $0xd0] sm:$0xf] %v1365
                %v1367 = vld [vmem:[%s1259 + $0x328] sm:$0xf]
                %1368 = vst [vmem:[%s1260 + $0xd4] sm:$0xf] %v1367
                %v1369 = vld [vmem:[%s1259 + $0x330] sm:$0xf]
                %1370 = vst [vmem:[%s1260 + $0xd8] sm:$0xf] %v1369
                %v1371 = vld [vmem:[%s1259 + $0x338] sm:$0xf]
                %1372 = vst [vmem:[%s1260 + $0xdc] sm:$0xf] %v1371
                %v1373 = vld [vmem:[%s1259 + $0x340] sm:$0xf]
                %1374 = vst [vmem:[%s1260 + $0xe0] sm:$0xf] %v1373
                %v1375 = vld [vmem:[%s1259 + $0x348] sm:$0xf]
                %1376 = vst [vmem:[%s1260 + $0xe4] sm:$0xf] %v1375
                %v1377 = vld [vmem:[%s1259 + $0x350] sm:$0xf]
                %1378 = vst [vmem:[%s1260 + $0xe8] sm:$0xf] %v1377
                %v1379 = vld [vmem:[%s1259 + $0x358] sm:$0xf]
                %1380 = vst [vmem:[%s1260 + $0xec] sm:$0xf] %v1379
                %v1381 = vld [vmem:[%s1259 + $0x360] sm:$0xf]
                %1382 = vst [vmem:[%s1260 + $0xf0] sm:$0xf] %v1381
                %v1383 = vld [vmem:[%s1259 + $0x368] sm:$0xf]
                %1384 = vst [vmem:[%s1260 + $0xf4] sm:$0xf] %v1383
                %v1385 = vld [vmem:[%s1259 + $0x370] sm:$0xf]
                %1386 = vst [vmem:[%s1260 + $0xf8] sm:$0xf] %v1385
                %v1387 = vld [vmem:[%s1259 + $0x378] sm:$0xf]
                %1388 = vst [vmem:[%s1260 + $0xfc] sm:$0xf] %v1387
              $region198: #{tpu_custom_call.1} parent=192 // loop_footer
                %s1258 = sadd.s32 1, %s1254
              $region199: #{tpu_custom_call.1} parent=192 // loop_footer_branch
                %1253 = sbr.rel target = $region195
              $region200: #{tpu_custom_call.1} parent=192 // loop_exit
                _
            $region193: #{tpu_custom_call.1} parent=184 // pred_fallthru
              _
          $region185: #{tpu_custom_call.1} parent=180 // pred_fallthru
            _
          %1536 = vnop
        $region181: #{tpu_custom_call.1} parent=15 // pred_fallthru
          _
      $region16: #{tpu_custom_call.1} parent=5 // pred_fallthru
        _
      %p1537 = scmp.le.s32.totalorder 1, %s11
      %p1538 = scmp.lt.s32.totalorder %s11, 5
      %p1539 = pnand %p1537, %p1538
      %p1540 = pneg %p1539
      // Predicated region
      $region219: #{tpu_custom_call.1} parent=5 // pred_check
        _
      $region220: #{tpu_custom_call.1} parent=5 // pred_check_branch
        %1542 = sbr.rel (%p1539) target = $region222
      $region221: #{tpu_custom_call.1} parent=5 // pred_region
        %s1543 = ssub.s32 %s11, 1
        %s1544 = sand.u32 %s45, 1
        %s1545 = sand.u32 %s45, 1
        %s1546 = smul.addr %s1545, 256
        %s1547 = scalar_lea.vmem [#allocation5], %s1546
        // Predicated region
        $region223: #{tpu_custom_call.1} parent=221 // pred_check
          %p1548 = pneg %p58
        $region224: #{tpu_custom_call.1} parent=221 // pred_check_branch
          %1550 = sbr.rel (%p1548) target = $region226
        $region225: #{tpu_custom_call.1} parent=221 // pred_region
          _
        $region226: #{tpu_custom_call.1} parent=221 // pred_fallthru
          _
        %s1551 = sand.u32 %s73, 1
        %s1552 = sand.u32 %s73, 1
        %s1553 = smul.addr %s1552, 256
        %s1554 = scalar_lea.vmem [#allocation6], %s1553
        // Predicated region
        $region227: #{tpu_custom_call.1} parent=221 // pred_check
          %p1555 = pneg %p86
        $region228: #{tpu_custom_call.1} parent=221 // pred_check_branch
          %1557 = sbr.rel (%p1555) target = $region230
        $region229: #{tpu_custom_call.1} parent=221 // pred_region
          _
        $region230: #{tpu_custom_call.1} parent=221 // pred_fallthru
          _
        %s1558 = sand.u32 %s101, 1
        %s1559 = sand.u32 %s101, 1
        %s1560 = smul.addr %s1559, 256
        %s1561 = scalar_lea.vmem [#allocation7], %s1560
        // Predicated region
        $region231: #{tpu_custom_call.1} parent=221 // pred_check
          %p1562 = pneg %p114
        $region232: #{tpu_custom_call.1} parent=221 // pred_check_branch
          %1564 = sbr.rel (%p1562) target = $region234
        $region233: #{tpu_custom_call.1} parent=221 // pred_region
          _
        $region234: #{tpu_custom_call.1} parent=221 // pred_fallthru
          _
        %s1565 = sand.u32 %s129, 1
        %s1566 = sand.u32 %s129, 1
        %s1567 = smul.addr %s1566, 128
        %s1568 = scalar_lea.vmem [#allocation8], %s1567
        // Predicated region
        $region235: #{tpu_custom_call.1} parent=221 // pred_check
          %p1569 = pneg %p142
        $region236: #{tpu_custom_call.1} parent=221 // pred_check_branch
          %1571 = sbr.rel (%p1569) target = $region238
        $region237: #{tpu_custom_call.1} parent=221 // pred_region
          _
        $region238: #{tpu_custom_call.1} parent=221 // pred_fallthru
          _
        %s1572 = sand.u32 %s159, 1
        %s1573 = sand.u32 %s159, 1
        %s1574 = smul.addr %s1573, 256
        %s1575 = scalar_lea.vmem [#allocation9], %s1574
        // Predicated region
        $region239: #{tpu_custom_call.1} parent=221 // pred_check
          %p1576 = pneg %p172
        $region240: #{tpu_custom_call.1} parent=221 // pred_check_branch
          %1578 = sbr.rel (%p1576) target = $region242
        $region241: #{tpu_custom_call.1} parent=221 // pred_region
          _
        $region242: #{tpu_custom_call.1} parent=221 // pred_fallthru
          _
        %s1579 = sand.u32 %s45, 1
        %s1580 = sand.u32 %s45, 1
        %s1581 = smul.addr %s1580, 256
        %s1582 = scalar_lea.vmem [#allocation5], %s1581
        %p1583 = pneg %p58
        %p1584 = pneg %p55
        %s1585 = sand.u32 %s73, 1
        %s1586 = sand.u32 %s73, 1
        %s1587 = smul.addr %s1586, 256
        %s1588 = scalar_lea.vmem [#allocation6], %s1587
        %p1589 = pneg %p86
        %p1590 = pneg %p83
        %s1591 = sand.u32 %s101, 1
        %s1592 = sand.u32 %s101, 1
        %s1593 = smul.addr %s1592, 256
        %s1594 = scalar_lea.vmem [#allocation7], %s1593
        %p1595 = pneg %p114
        %p1596 = pneg %p111
        %s1597 = sand.u32 %s129, 1
        %s1598 = sand.u32 %s129, 1
        %s1599 = smul.addr %s1598, 128
        %s1600 = scalar_lea.vmem [#allocation8], %s1599
        %p1601 = pneg %p142
        %p1602 = pneg %p139
        %s1603 = sand.u32 %s159, 1
        %s1604 = sand.u32 %s159, 1
        %s1605 = smul.addr %s1604, 256
        %s1606 = scalar_lea.vmem [#allocation9], %s1605
        %p1607 = pneg %p172
        %p1608 = pneg %p169
        %p1609 = pneg %p200
        %p1610 = pneg %p197
        %s1611 = sand.u32 %s187, 1
        %s1612 = sand.u32 %s187, 1
        %s1613 = smul.addr %s1612, 512
        %s1614 = scalar_lea.vmem [#allocation10], %s1613
        %s1615 = smul.u32 16, %s22
        %s1616 = smul.u32 16, %s23
        %s1617 = smul.u32 16, %s23
        %s1618 = smul.u32 16, %s22
        %s1619 = smul.u32 16, %s22
        %s1620 = smul.u32 16, %s22
        %p1622 = scmp.eq.s32.totalorder %s23, 0
        // Predicated region
        $region243: #{tpu_custom_call.1} parent=221 // pred_check
          %p1623 = pneg %p1622
        $region244: #{tpu_custom_call.1} parent=221 // pred_check_branch
          %1625 = sbr.rel (%p1623) target = $region246
        $region245: #{tpu_custom_call.1} parent=221 // pred_region
          %vm1626 = vcmask 7168
          %1627 = vst.msk [vmem:[#allocation2] sm:$0xff] %vm1626, -inf
          %1628 = vst.msk [vmem:[#allocation2 + $0x8] sm:$0xff] %vm1626, -inf
          %1629 = vst.msk [vmem:[#allocation2 + $0x10] sm:$0xff] %vm1626, -inf
          %1630 = vst.msk [vmem:[#allocation2 + $0x18] sm:$0xff] %vm1626, -inf
          %1631 = vst.msk [vmem:[#allocation2 + $0x20] sm:$0xff] %vm1626, -inf
          %1632 = vst.msk [vmem:[#allocation2 + $0x28] sm:$0xff] %vm1626, -inf
          %1633 = vst.msk [vmem:[#allocation2 + $0x30] sm:$0xff] %vm1626, -inf
          %1634 = vst.msk [vmem:[#allocation2 + $0x38] sm:$0xff] %vm1626, -inf
          %1635 = vst.msk [vmem:[#allocation2 + $0x40] sm:$0xff] %vm1626, -inf
          %1636 = vst.msk [vmem:[#allocation2 + $0x48] sm:$0xff] %vm1626, -inf
          %1637 = vst.msk [vmem:[#allocation2 + $0x50] sm:$0xff] %vm1626, -inf
          %1638 = vst.msk [vmem:[#allocation2 + $0x58] sm:$0xff] %vm1626, -inf
          %1639 = vst.msk [vmem:[#allocation2 + $0x60] sm:$0xff] %vm1626, -inf
          %1640 = vst.msk [vmem:[#allocation2 + $0x68] sm:$0xff] %vm1626, -inf
          %1641 = vst.msk [vmem:[#allocation2 + $0x70] sm:$0xff] %vm1626, -inf
          %1642 = vst.msk [vmem:[#allocation2 + $0x78] sm:$0xff] %vm1626, -inf
          %1643 = vst.msk [vmem:[#allocation2 + $0x80] sm:$0xff] %vm1626, -inf
          %1644 = vst.msk [vmem:[#allocation2 + $0x88] sm:$0xff] %vm1626, -inf
          %1645 = vst.msk [vmem:[#allocation2 + $0x90] sm:$0xff] %vm1626, -inf
          %1646 = vst.msk [vmem:[#allocation2 + $0x98] sm:$0xff] %vm1626, -inf
          %1647 = vst.msk [vmem:[#allocation2 + $0xa0] sm:$0xff] %vm1626, -inf
          %1648 = vst.msk [vmem:[#allocation2 + $0xa8] sm:$0xff] %vm1626, -inf
          %1649 = vst.msk [vmem:[#allocation2 + $0xb0] sm:$0xff] %vm1626, -inf
          %1650 = vst.msk [vmem:[#allocation2 + $0xb8] sm:$0xff] %vm1626, -inf
          %1651 = vst.msk [vmem:[#allocation2 + $0xc0] sm:$0xff] %vm1626, -inf
          %1652 = vst.msk [vmem:[#allocation2 + $0xc8] sm:$0xff] %vm1626, -inf
          %1653 = vst.msk [vmem:[#allocation2 + $0xd0] sm:$0xff] %vm1626, -inf
          %1654 = vst.msk [vmem:[#allocation2 + $0xd8] sm:$0xff] %vm1626, -inf
          %1655 = vst.msk [vmem:[#allocation2 + $0xe0] sm:$0xff] %vm1626, -inf
          %1656 = vst.msk [vmem:[#allocation2 + $0xe8] sm:$0xff] %vm1626, -inf
          %1657 = vst.msk [vmem:[#allocation2 + $0xf0] sm:$0xff] %vm1626, -inf
          %1658 = vst.msk [vmem:[#allocation2 + $0xf8] sm:$0xff] %vm1626, -inf
          %1659 = vst.msk [vmem:[#allocation2 + $0x100] sm:$0xff] %vm1626, -inf
          %1660 = vst.msk [vmem:[#allocation2 + $0x108] sm:$0xff] %vm1626, -inf
          %1661 = vst.msk [vmem:[#allocation2 + $0x110] sm:$0xff] %vm1626, -inf
          %1662 = vst.msk [vmem:[#allocation2 + $0x118] sm:$0xff] %vm1626, -inf
          %1663 = vst.msk [vmem:[#allocation2 + $0x120] sm:$0xff] %vm1626, -inf
          %1664 = vst.msk [vmem:[#allocation2 + $0x128] sm:$0xff] %vm1626, -inf
          %1665 = vst.msk [vmem:[#allocation2 + $0x130] sm:$0xff] %vm1626, -inf
          %1666 = vst.msk [vmem:[#allocation2 + $0x138] sm:$0xff] %vm1626, -inf
          %1667 = vst.msk [vmem:[#allocation2 + $0x140] sm:$0xff] %vm1626, -inf
          %1668 = vst.msk [vmem:[#allocation2 + $0x148] sm:$0xff] %vm1626, -inf
          %1669 = vst.msk [vmem:[#allocation2 + $0x150] sm:$0xff] %vm1626, -inf
          %1670 = vst.msk [vmem:[#allocation2 + $0x158] sm:$0xff] %vm1626, -inf
          %1671 = vst.msk [vmem:[#allocation2 + $0x160] sm:$0xff] %vm1626, -inf
          %1672 = vst.msk [vmem:[#allocation2 + $0x168] sm:$0xff] %vm1626, -inf
          %1673 = vst.msk [vmem:[#allocation2 + $0x170] sm:$0xff] %vm1626, -inf
          %1674 = vst.msk [vmem:[#allocation2 + $0x178] sm:$0xff] %vm1626, -inf
          %1675 = vst.msk [vmem:[#allocation2 + $0x180] sm:$0xff] %vm1626, -inf
          %1676 = vst.msk [vmem:[#allocation2 + $0x188] sm:$0xff] %vm1626, -inf
          %1677 = vst.msk [vmem:[#allocation2 + $0x190] sm:$0xff] %vm1626, -inf
          %1678 = vst.msk [vmem:[#allocation2 + $0x198] sm:$0xff] %vm1626, -inf
          %1679 = vst.msk [vmem:[#allocation2 + $0x1a0] sm:$0xff] %vm1626, -inf
          %1680 = vst.msk [vmem:[#allocation2 + $0x1a8] sm:$0xff] %vm1626, -inf
          %1681 = vst.msk [vmem:[#allocation2 + $0x1b0] sm:$0xff] %vm1626, -inf
          %1682 = vst.msk [vmem:[#allocation2 + $0x1b8] sm:$0xff] %vm1626, -inf
          %1683 = vst.msk [vmem:[#allocation2 + $0x1c0] sm:$0xff] %vm1626, -inf
          %1684 = vst.msk [vmem:[#allocation2 + $0x1c8] sm:$0xff] %vm1626, -inf
          %1685 = vst.msk [vmem:[#allocation2 + $0x1d0] sm:$0xff] %vm1626, -inf
          %1686 = vst.msk [vmem:[#allocation2 + $0x1d8] sm:$0xff] %vm1626, -inf
          %1687 = vst.msk [vmem:[#allocation2 + $0x1e0] sm:$0xff] %vm1626, -inf
          %1688 = vst.msk [vmem:[#allocation2 + $0x1e8] sm:$0xff] %vm1626, -inf
          %1689 = vst.msk [vmem:[#allocation2 + $0x1f0] sm:$0xff] %vm1626, -inf
          %1690 = vst.msk [vmem:[#allocation2 + $0x1f8] sm:$0xff] %vm1626, -inf
          %1691 = vst.msk [vmem:[#allocation3] sm:$0xff] %vm1626, 0.0
          %1692 = vst.msk [vmem:[#allocation3 + $0x8] sm:$0xff] %vm1626, 0.0
          %1693 = vst.msk [vmem:[#allocation3 + $0x10] sm:$0xff] %vm1626, 0.0
          %1694 = vst.msk [vmem:[#allocation3 + $0x18] sm:$0xff] %vm1626, 0.0
          %1695 = vst.msk [vmem:[#allocation3 + $0x20] sm:$0xff] %vm1626, 0.0
          %1696 = vst.msk [vmem:[#allocation3 + $0x28] sm:$0xff] %vm1626, 0.0
          %1697 = vst.msk [vmem:[#allocation3 + $0x30] sm:$0xff] %vm1626, 0.0
          %1698 = vst.msk [vmem:[#allocation3 + $0x38] sm:$0xff] %vm1626, 0.0
          %1699 = vst.msk [vmem:[#allocation3 + $0x40] sm:$0xff] %vm1626, 0.0
          %1700 = vst.msk [vmem:[#allocation3 + $0x48] sm:$0xff] %vm1626, 0.0
          %1701 = vst.msk [vmem:[#allocation3 + $0x50] sm:$0xff] %vm1626, 0.0
          %1702 = vst.msk [vmem:[#allocation3 + $0x58] sm:$0xff] %vm1626, 0.0
          %1703 = vst.msk [vmem:[#allocation3 + $0x60] sm:$0xff] %vm1626, 0.0
          %1704 = vst.msk [vmem:[#allocation3 + $0x68] sm:$0xff] %vm1626, 0.0
          %1705 = vst.msk [vmem:[#allocation3 + $0x70] sm:$0xff] %vm1626, 0.0
          %1706 = vst.msk [vmem:[#allocation3 + $0x78] sm:$0xff] %vm1626, 0.0
          %1707 = vst.msk [vmem:[#allocation3 + $0x80] sm:$0xff] %vm1626, 0.0
          %1708 = vst.msk [vmem:[#allocation3 + $0x88] sm:$0xff] %vm1626, 0.0
          %1709 = vst.msk [vmem:[#allocation3 + $0x90] sm:$0xff] %vm1626, 0.0
          %1710 = vst.msk [vmem:[#allocation3 + $0x98] sm:$0xff] %vm1626, 0.0
          %1711 = vst.msk [vmem:[#allocation3 + $0xa0] sm:$0xff] %vm1626, 0.0
          %1712 = vst.msk [vmem:[#allocation3 + $0xa8] sm:$0xff] %vm1626, 0.0
          %1713 = vst.msk [vmem:[#allocation3 + $0xb0] sm:$0xff] %vm1626, 0.0
          %1714 = vst.msk [vmem:[#allocation3 + $0xb8] sm:$0xff] %vm1626, 0.0
          %1715 = vst.msk [vmem:[#allocation3 + $0xc0] sm:$0xff] %vm1626, 0.0
          %1716 = vst.msk [vmem:[#allocation3 + $0xc8] sm:$0xff] %vm1626, 0.0
          %1717 = vst.msk [vmem:[#allocation3 + $0xd0] sm:$0xff] %vm1626, 0.0
          %1718 = vst.msk [vmem:[#allocation3 + $0xd8] sm:$0xff] %vm1626, 0.0
          %1719 = vst.msk [vmem:[#allocation3 + $0xe0] sm:$0xff] %vm1626, 0.0
          %1720 = vst.msk [vmem:[#allocation3 + $0xe8] sm:$0xff] %vm1626, 0.0
          %1721 = vst.msk [vmem:[#allocation3 + $0xf0] sm:$0xff] %vm1626, 0.0
          %1722 = vst.msk [vmem:[#allocation3 + $0xf8] sm:$0xff] %vm1626, 0.0
          %1723 = vst.msk [vmem:[#allocation3 + $0x100] sm:$0xff] %vm1626, 0.0
          %1724 = vst.msk [vmem:[#allocation3 + $0x108] sm:$0xff] %vm1626, 0.0
          %1725 = vst.msk [vmem:[#allocation3 + $0x110] sm:$0xff] %vm1626, 0.0
          %1726 = vst.msk [vmem:[#allocation3 + $0x118] sm:$0xff] %vm1626, 0.0
          %1727 = vst.msk [vmem:[#allocation3 + $0x120] sm:$0xff] %vm1626, 0.0
          %1728 = vst.msk [vmem:[#allocation3 + $0x128] sm:$0xff] %vm1626, 0.0
          %1729 = vst.msk [vmem:[#allocation3 + $0x130] sm:$0xff] %vm1626, 0.0
          %1730 = vst.msk [vmem:[#allocation3 + $0x138] sm:$0xff] %vm1626, 0.0
          %1731 = vst.msk [vmem:[#allocation3 + $0x140] sm:$0xff] %vm1626, 0.0
          %1732 = vst.msk [vmem:[#allocation3 + $0x148] sm:$0xff] %vm1626, 0.0
          %1733 = vst.msk [vmem:[#allocation3 + $0x150] sm:$0xff] %vm1626, 0.0
          %1734 = vst.msk [vmem:[#allocation3 + $0x158] sm:$0xff] %vm1626, 0.0
          %1735 = vst.msk [vmem:[#allocation3 + $0x160] sm:$0xff] %vm1626, 0.0
          %1736 = vst.msk [vmem:[#allocation3 + $0x168] sm:$0xff] %vm1626, 0.0
          %1737 = vst.msk [vmem:[#allocation3 + $0x170] sm:$0xff] %vm1626, 0.0
          %1738 = vst.msk [vmem:[#allocation3 + $0x178] sm:$0xff] %vm1626, 0.0
          %1739 = vst.msk [vmem:[#allocation3 + $0x180] sm:$0xff] %vm1626, 0.0
          %1740 = vst.msk [vmem:[#allocation3 + $0x188] sm:$0xff] %vm1626, 0.0
          %1741 = vst.msk [vmem:[#allocation3 + $0x190] sm:$0xff] %vm1626, 0.0
          %1742 = vst.msk [vmem:[#allocation3 + $0x198] sm:$0xff] %vm1626, 0.0
          %1743 = vst.msk [vmem:[#allocation3 + $0x1a0] sm:$0xff] %vm1626, 0.0
          %1744 = vst.msk [vmem:[#allocation3 + $0x1a8] sm:$0xff] %vm1626, 0.0
          %1745 = vst.msk [vmem:[#allocation3 + $0x1b0] sm:$0xff] %vm1626, 0.0
          %1746 = vst.msk [vmem:[#allocation3 + $0x1b8] sm:$0xff] %vm1626, 0.0
          %1747 = vst.msk [vmem:[#allocation3 + $0x1c0] sm:$0xff] %vm1626, 0.0
          %1748 = vst.msk [vmem:[#allocation3 + $0x1c8] sm:$0xff] %vm1626, 0.0
          %1749 = vst.msk [vmem:[#allocation3 + $0x1d0] sm:$0xff] %vm1626, 0.0
          %1750 = vst.msk [vmem:[#allocation3 + $0x1d8] sm:$0xff] %vm1626, 0.0
          %1751 = vst.msk [vmem:[#allocation3 + $0x1e0] sm:$0xff] %vm1626, 0.0
          %1752 = vst.msk [vmem:[#allocation3 + $0x1e8] sm:$0xff] %vm1626, 0.0
          %1753 = vst.msk [vmem:[#allocation3 + $0x1f0] sm:$0xff] %vm1626, 0.0
          %1754 = vst.msk [vmem:[#allocation3 + $0x1f8] sm:$0xff] %vm1626, 0.0
          %vm1755 = vcmask 261120
          %1756 = vst.msk [vmem:[#allocation4] sm:$0xff] %vm1755, 0.0
          %1757 = vst.msk [vmem:[#allocation4 + $0x8] sm:$0xff] %vm1755, 0.0
          %1758 = vst.msk [vmem:[#allocation4 + $0x10] sm:$0xff] %vm1755, 0.0
          %1759 = vst.msk [vmem:[#allocation4 + $0x18] sm:$0xff] %vm1755, 0.0
          %1760 = vst.msk [vmem:[#allocation4 + $0x20] sm:$0xff] %vm1755, 0.0
          %1761 = vst.msk [vmem:[#allocation4 + $0x28] sm:$0xff] %vm1755, 0.0
          %1762 = vst.msk [vmem:[#allocation4 + $0x30] sm:$0xff] %vm1755, 0.0
          %1763 = vst.msk [vmem:[#allocation4 + $0x38] sm:$0xff] %vm1755, 0.0
          %1764 = vst.msk [vmem:[#allocation4 + $0x40] sm:$0xff] %vm1755, 0.0
          %1765 = vst.msk [vmem:[#allocation4 + $0x48] sm:$0xff] %vm1755, 0.0
          %1766 = vst.msk [vmem:[#allocation4 + $0x50] sm:$0xff] %vm1755, 0.0
          %1767 = vst.msk [vmem:[#allocation4 + $0x58] sm:$0xff] %vm1755, 0.0
          %1768 = vst.msk [vmem:[#allocation4 + $0x60] sm:$0xff] %vm1755, 0.0
          %1769 = vst.msk [vmem:[#allocation4 + $0x68] sm:$0xff] %vm1755, 0.0
          %1770 = vst.msk [vmem:[#allocation4 + $0x70] sm:$0xff] %vm1755, 0.0
          %1771 = vst.msk [vmem:[#allocation4 + $0x78] sm:$0xff] %vm1755, 0.0
          %1772 = vst.msk [vmem:[#allocation4 + $0x80] sm:$0xff] %vm1755, 0.0
          %1773 = vst.msk [vmem:[#allocation4 + $0x88] sm:$0xff] %vm1755, 0.0
          %1774 = vst.msk [vmem:[#allocation4 + $0x90] sm:$0xff] %vm1755, 0.0
          %1775 = vst.msk [vmem:[#allocation4 + $0x98] sm:$0xff] %vm1755, 0.0
          %1776 = vst.msk [vmem:[#allocation4 + $0xa0] sm:$0xff] %vm1755, 0.0
          %1777 = vst.msk [vmem:[#allocation4 + $0xa8] sm:$0xff] %vm1755, 0.0
          %1778 = vst.msk [vmem:[#allocation4 + $0xb0] sm:$0xff] %vm1755, 0.0
          %1779 = vst.msk [vmem:[#allocation4 + $0xb8] sm:$0xff] %vm1755, 0.0
          %1780 = vst.msk [vmem:[#allocation4 + $0xc0] sm:$0xff] %vm1755, 0.0
          %1781 = vst.msk [vmem:[#allocation4 + $0xc8] sm:$0xff] %vm1755, 0.0
          %1782 = vst.msk [vmem:[#allocation4 + $0xd0] sm:$0xff] %vm1755, 0.0
          %1783 = vst.msk [vmem:[#allocation4 + $0xd8] sm:$0xff] %vm1755, 0.0
          %1784 = vst.msk [vmem:[#allocation4 + $0xe0] sm:$0xff] %vm1755, 0.0
          %1785 = vst.msk [vmem:[#allocation4 + $0xe8] sm:$0xff] %vm1755, 0.0
          %1786 = vst.msk [vmem:[#allocation4 + $0xf0] sm:$0xff] %vm1755, 0.0
          %1787 = vst.msk [vmem:[#allocation4 + $0xf8] sm:$0xff] %vm1755, 0.0
          %1788 = vst.msk [vmem:[#allocation4 + $0x100] sm:$0xff] %vm1755, 0.0
          %1789 = vst.msk [vmem:[#allocation4 + $0x108] sm:$0xff] %vm1755, 0.0
          %1790 = vst.msk [vmem:[#allocation4 + $0x110] sm:$0xff] %vm1755, 0.0
          %1791 = vst.msk [vmem:[#allocation4 + $0x118] sm:$0xff] %vm1755, 0.0
          %1792 = vst.msk [vmem:[#allocation4 + $0x120] sm:$0xff] %vm1755, 0.0
          %1793 = vst.msk [vmem:[#allocation4 + $0x128] sm:$0xff] %vm1755, 0.0
          %1794 = vst.msk [vmem:[#allocation4 + $0x130] sm:$0xff] %vm1755, 0.0
          %1795 = vst.msk [vmem:[#allocation4 + $0x138] sm:$0xff] %vm1755, 0.0
          %1796 = vst.msk [vmem:[#allocation4 + $0x140] sm:$0xff] %vm1755, 0.0
          %1797 = vst.msk [vmem:[#allocation4 + $0x148] sm:$0xff] %vm1755, 0.0
          %1798 = vst.msk [vmem:[#allocation4 + $0x150] sm:$0xff] %vm1755, 0.0
          %1799 = vst.msk [vmem:[#allocation4 + $0x158] sm:$0xff] %vm1755, 0.0
          %1800 = vst.msk [vmem:[#allocation4 + $0x160] sm:$0xff] %vm1755, 0.0
          %1801 = vst.msk [vmem:[#allocation4 + $0x168] sm:$0xff] %vm1755, 0.0
          %1802 = vst.msk [vmem:[#allocation4 + $0x170] sm:$0xff] %vm1755, 0.0
          %1803 = vst.msk [vmem:[#allocation4 + $0x178] sm:$0xff] %vm1755, 0.0
          %1804 = vst.msk [vmem:[#allocation4 + $0x180] sm:$0xff] %vm1755, 0.0
          %1805 = vst.msk [vmem:[#allocation4 + $0x188] sm:$0xff] %vm1755, 0.0
          %1806 = vst.msk [vmem:[#allocation4 + $0x190] sm:$0xff] %vm1755, 0.0
          %1807 = vst.msk [vmem:[#allocation4 + $0x198] sm:$0xff] %vm1755, 0.0
          %1808 = vst.msk [vmem:[#allocation4 + $0x1a0] sm:$0xff] %vm1755, 0.0
          %1809 = vst.msk [vmem:[#allocation4 + $0x1a8] sm:$0xff] %vm1755, 0.0
          %1810 = vst.msk [vmem:[#allocation4 + $0x1b0] sm:$0xff] %vm1755, 0.0
          %1811 = vst.msk [vmem:[#allocation4 + $0x1b8] sm:$0xff] %vm1755, 0.0
          %1812 = vst.msk [vmem:[#allocation4 + $0x1c0] sm:$0xff] %vm1755, 0.0
          %1813 = vst.msk [vmem:[#allocation4 + $0x1c8] sm:$0xff] %vm1755, 0.0
          %1814 = vst.msk [vmem:[#allocation4 + $0x1d0] sm:$0xff] %vm1755, 0.0
          %1815 = vst.msk [vmem:[#allocation4 + $0x1d8] sm:$0xff] %vm1755, 0.0
          %1816 = vst.msk [vmem:[#allocation4 + $0x1e0] sm:$0xff] %vm1755, 0.0
          %1817 = vst.msk [vmem:[#allocation4 + $0x1e8] sm:$0xff] %vm1755, 0.0
          %1818 = vst.msk [vmem:[#allocation4 + $0x1f0] sm:$0xff] %vm1755, 0.0
          %1819 = vst.msk [vmem:[#allocation4 + $0x1f8] sm:$0xff] %vm1755, 0.0
        $region246: #{tpu_custom_call.1} parent=221 // pred_fallthru
          _
        %v1820 = vld [vmem:[%s1547] sm:$0xf]
        %v1821 = vld [vmem:[%s1547 + $0x4] sm:$0xf]
        %v1822 = vld [vmem:[%s1547 + $0x8] sm:$0xf]
        %v1823 = vld [vmem:[%s1547 + $0xc] sm:$0xf]
        %v1824 = vld [vmem:[%s1547 + $0x10] sm:$0xf]
        %v1825 = vld [vmem:[%s1547 + $0x14] sm:$0xf]
        %v1826 = vld [vmem:[%s1547 + $0x18] sm:$0xf]
        %v1827 = vld [vmem:[%s1547 + $0x1c] sm:$0xf]
        %v1828 = vld [vmem:[%s1547 + $0x20] sm:$0xf]
        %v1829 = vld [vmem:[%s1547 + $0x24] sm:$0xf]
        %v1830 = vld [vmem:[%s1547 + $0x28] sm:$0xf]
        %v1831 = vld [vmem:[%s1547 + $0x2c] sm:$0xf]
        %v1832 = vld [vmem:[%s1547 + $0x30] sm:$0xf]
        %v1833 = vld [vmem:[%s1547 + $0x34] sm:$0xf]
        %v1834 = vld [vmem:[%s1547 + $0x38] sm:$0xf]
        %v1835 = vld [vmem:[%s1547 + $0x3c] sm:$0xf]
        %v1836 = vld [vmem:[%s1547 + $0x40] sm:$0xf]
        %v1837 = vld [vmem:[%s1547 + $0x44] sm:$0xf]
        %v1838 = vld [vmem:[%s1547 + $0x48] sm:$0xf]
        %v1839 = vld [vmem:[%s1547 + $0x4c] sm:$0xf]
        %v1840 = vld [vmem:[%s1547 + $0x50] sm:$0xf]
        %v1841 = vld [vmem:[%s1547 + $0x54] sm:$0xf]
        %v1842 = vld [vmem:[%s1547 + $0x58] sm:$0xf]
        %v1843 = vld [vmem:[%s1547 + $0x5c] sm:$0xf]
        %v1844 = vld [vmem:[%s1547 + $0x60] sm:$0xf]
        %v1845 = vld [vmem:[%s1547 + $0x64] sm:$0xf]
        %v1846 = vld [vmem:[%s1547 + $0x68] sm:$0xf]
        %v1847 = vld [vmem:[%s1547 + $0x6c] sm:$0xf]
        %v1848 = vld [vmem:[%s1547 + $0x70] sm:$0xf]
        %v1849 = vld [vmem:[%s1547 + $0x74] sm:$0xf]
        %v1850 = vld [vmem:[%s1547 + $0x78] sm:$0xf]
        %v1851 = vld [vmem:[%s1547 + $0x7c] sm:$0xf]
        %v1852 = vld [vmem:[%s1547 + $0x80] sm:$0xf]
        %v1853 = vld [vmem:[%s1547 + $0x84] sm:$0xf]
        %v1854 = vld [vmem:[%s1547 + $0x88] sm:$0xf]
        %v1855 = vld [vmem:[%s1547 + $0x8c] sm:$0xf]
        %v1856 = vld [vmem:[%s1547 + $0x90] sm:$0xf]
        %v1857 = vld [vmem:[%s1547 + $0x94] sm:$0xf]
        %v1858 = vld [vmem:[%s1547 + $0x98] sm:$0xf]
        %v1859 = vld [vmem:[%s1547 + $0x9c] sm:$0xf]
        %v1860 = vld [vmem:[%s1547 + $0xa0] sm:$0xf]
        %v1861 = vld [vmem:[%s1547 + $0xa4] sm:$0xf]
        %v1862 = vld [vmem:[%s1547 + $0xa8] sm:$0xf]
        %v1863 = vld [vmem:[%s1547 + $0xac] sm:$0xf]
        %v1864 = vld [vmem:[%s1547 + $0xb0] sm:$0xf]
        %v1865 = vld [vmem:[%s1547 + $0xb4] sm:$0xf]
        %v1866 = vld [vmem:[%s1547 + $0xb8] sm:$0xf]
        %v1867 = vld [vmem:[%s1547 + $0xbc] sm:$0xf]
        %v1868 = vld [vmem:[%s1547 + $0xc0] sm:$0xf]
        %v1869 = vld [vmem:[%s1547 + $0xc4] sm:$0xf]
        %v1870 = vld [vmem:[%s1547 + $0xc8] sm:$0xf]
        %v1871 = vld [vmem:[%s1547 + $0xcc] sm:$0xf]
        %v1872 = vld [vmem:[%s1547 + $0xd0] sm:$0xf]
        %v1873 = vld [vmem:[%s1547 + $0xd4] sm:$0xf]
        %v1874 = vld [vmem:[%s1547 + $0xd8] sm:$0xf]
        %v1875 = vld [vmem:[%s1547 + $0xdc] sm:$0xf]
        %v1876 = vld [vmem:[%s1547 + $0xe0] sm:$0xf]
        %v1877 = vld [vmem:[%s1547 + $0xe4] sm:$0xf]
        %v1878 = vld [vmem:[%s1547 + $0xe8] sm:$0xf]
        %v1879 = vld [vmem:[%s1547 + $0xec] sm:$0xf]
        %v1880 = vld [vmem:[%s1547 + $0xf0] sm:$0xf]
        %v1881 = vld [vmem:[%s1547 + $0xf4] sm:$0xf]
        %v1882 = vld [vmem:[%s1547 + $0xf8] sm:$0xf]
        %v1883 = vld [vmem:[%s1547 + $0xfc] sm:$0xf]
        %v1884 = vld [vmem:[%s1554] sm:$0xf]
        %v1885 = vld [vmem:[%s1554 + $0x4] sm:$0xf]
        %v1886 = vld [vmem:[%s1554 + $0x8] sm:$0xf]
        %v1887 = vld [vmem:[%s1554 + $0xc] sm:$0xf]
        %v1888 = vld [vmem:[%s1554 + $0x10] sm:$0xf]
        %v1889 = vld [vmem:[%s1554 + $0x14] sm:$0xf]
        %v1890 = vld [vmem:[%s1554 + $0x18] sm:$0xf]
        %v1891 = vld [vmem:[%s1554 + $0x1c] sm:$0xf]
        %v1892 = vld [vmem:[%s1554 + $0x20] sm:$0xf]
        %v1893 = vld [vmem:[%s1554 + $0x24] sm:$0xf]
        %v1894 = vld [vmem:[%s1554 + $0x28] sm:$0xf]
        %v1895 = vld [vmem:[%s1554 + $0x2c] sm:$0xf]
        %v1896 = vld [vmem:[%s1554 + $0x30] sm:$0xf]
        %v1897 = vld [vmem:[%s1554 + $0x34] sm:$0xf]
        %v1898 = vld [vmem:[%s1554 + $0x38] sm:$0xf]
        %v1899 = vld [vmem:[%s1554 + $0x3c] sm:$0xf]
        %v1900 = vld [vmem:[%s1554 + $0x40] sm:$0xf]
        %v1901 = vld [vmem:[%s1554 + $0x44] sm:$0xf]
        %v1902 = vld [vmem:[%s1554 + $0x48] sm:$0xf]
        %v1903 = vld [vmem:[%s1554 + $0x4c] sm:$0xf]
        %v1904 = vld [vmem:[%s1554 + $0x50] sm:$0xf]
        %v1905 = vld [vmem:[%s1554 + $0x54] sm:$0xf]
        %v1906 = vld [vmem:[%s1554 + $0x58] sm:$0xf]
        %v1907 = vld [vmem:[%s1554 + $0x5c] sm:$0xf]
        %v1908 = vld [vmem:[%s1554 + $0x60] sm:$0xf]
        %v1909 = vld [vmem:[%s1554 + $0x64] sm:$0xf]
        %v1910 = vld [vmem:[%s1554 + $0x68] sm:$0xf]
        %v1911 = vld [vmem:[%s1554 + $0x6c] sm:$0xf]
        %v1912 = vld [vmem:[%s1554 + $0x70] sm:$0xf]
        %v1913 = vld [vmem:[%s1554 + $0x74] sm:$0xf]
        %v1914 = vld [vmem:[%s1554 + $0x78] sm:$0xf]
        %v1915 = vld [vmem:[%s1554 + $0x7c] sm:$0xf]
        %v1916 = vld [vmem:[%s1554 + $0x80] sm:$0xf]
        %v1917 = vld [vmem:[%s1554 + $0x84] sm:$0xf]
        %v1918 = vld [vmem:[%s1554 + $0x88] sm:$0xf]
        %v1919 = vld [vmem:[%s1554 + $0x8c] sm:$0xf]
        %v1920 = vld [vmem:[%s1554 + $0x90] sm:$0xf]
        %v1921 = vld [vmem:[%s1554 + $0x94] sm:$0xf]
        %v1922 = vld [vmem:[%s1554 + $0x98] sm:$0xf]
        %v1923 = vld [vmem:[%s1554 + $0x9c] sm:$0xf]
        %v1924 = vld [vmem:[%s1554 + $0xa0] sm:$0xf]
        %v1925 = vld [vmem:[%s1554 + $0xa4] sm:$0xf]
        %v1926 = vld [vmem:[%s1554 + $0xa8] sm:$0xf]
        %v1927 = vld [vmem:[%s1554 + $0xac] sm:$0xf]
        %v1928 = vld [vmem:[%s1554 + $0xb0] sm:$0xf]
        %v1929 = vld [vmem:[%s1554 + $0xb4] sm:$0xf]
        %v1930 = vld [vmem:[%s1554 + $0xb8] sm:$0xf]
        %v1931 = vld [vmem:[%s1554 + $0xbc] sm:$0xf]
        %v1932 = vld [vmem:[%s1554 + $0xc0] sm:$0xf]
        %v1933 = vld [vmem:[%s1554 + $0xc4] sm:$0xf]
        %v1934 = vld [vmem:[%s1554 + $0xc8] sm:$0xf]
        %v1935 = vld [vmem:[%s1554 + $0xcc] sm:$0xf]
        %v1936 = vld [vmem:[%s1554 + $0xd0] sm:$0xf]
        %v1937 = vld [vmem:[%s1554 + $0xd4] sm:$0xf]
        %v1938 = vld [vmem:[%s1554 + $0xd8] sm:$0xf]
        %v1939 = vld [vmem:[%s1554 + $0xdc] sm:$0xf]
        %v1940 = vld [vmem:[%s1554 + $0xe0] sm:$0xf]
        %v1941 = vld [vmem:[%s1554 + $0xe4] sm:$0xf]
        %v1942 = vld [vmem:[%s1554 + $0xe8] sm:$0xf]
        %v1943 = vld [vmem:[%s1554 + $0xec] sm:$0xf]
        %v1944 = vld [vmem:[%s1554 + $0xf0] sm:$0xf]
        %v1945 = vld [vmem:[%s1554 + $0xf4] sm:$0xf]
        %v1946 = vld [vmem:[%s1554 + $0xf8] sm:$0xf]
        %v1947 = vld [vmem:[%s1554 + $0xfc] sm:$0xf]
        %v1948 = vld [vmem:[%s1561] sm:$0xf]
        %v1949 = vld [vmem:[%s1561 + $0x4] sm:$0xf]
        %v1950 = vld [vmem:[%s1561 + $0x8] sm:$0xf]
        %v1951 = vld [vmem:[%s1561 + $0xc] sm:$0xf]
        %v1952 = vld [vmem:[%s1561 + $0x10] sm:$0xf]
        %v1953 = vld [vmem:[%s1561 + $0x14] sm:$0xf]
        %v1954 = vld [vmem:[%s1561 + $0x18] sm:$0xf]
        %v1955 = vld [vmem:[%s1561 + $0x1c] sm:$0xf]
        %v1956 = vld [vmem:[%s1561 + $0x20] sm:$0xf]
        %v1957 = vld [vmem:[%s1561 + $0x24] sm:$0xf]
        %v1958 = vld [vmem:[%s1561 + $0x28] sm:$0xf]
        %v1959 = vld [vmem:[%s1561 + $0x2c] sm:$0xf]
        %v1960 = vld [vmem:[%s1561 + $0x30] sm:$0xf]
        %v1961 = vld [vmem:[%s1561 + $0x34] sm:$0xf]
        %v1962 = vld [vmem:[%s1561 + $0x38] sm:$0xf]
        %v1963 = vld [vmem:[%s1561 + $0x3c] sm:$0xf]
        %v1964 = vld [vmem:[%s1561 + $0x40] sm:$0xf]
        %v1965 = vld [vmem:[%s1561 + $0x44] sm:$0xf]
        %v1966 = vld [vmem:[%s1561 + $0x48] sm:$0xf]
        %v1967 = vld [vmem:[%s1561 + $0x4c] sm:$0xf]
        %v1968 = vld [vmem:[%s1561 + $0x50] sm:$0xf]
        %v1969 = vld [vmem:[%s1561 + $0x54] sm:$0xf]
        %v1970 = vld [vmem:[%s1561 + $0x58] sm:$0xf]
        %v1971 = vld [vmem:[%s1561 + $0x5c] sm:$0xf]
        %v1972 = vld [vmem:[%s1561 + $0x60] sm:$0xf]
        %v1973 = vld [vmem:[%s1561 + $0x64] sm:$0xf]
        %v1974 = vld [vmem:[%s1561 + $0x68] sm:$0xf]
        %v1975 = vld [vmem:[%s1561 + $0x6c] sm:$0xf]
        %v1976 = vld [vmem:[%s1561 + $0x70] sm:$0xf]
        %v1977 = vld [vmem:[%s1561 + $0x74] sm:$0xf]
        %v1978 = vld [vmem:[%s1561 + $0x78] sm:$0xf]
        %v1979 = vld [vmem:[%s1561 + $0x7c] sm:$0xf]
        %v1980 = vld [vmem:[%s1561 + $0x80] sm:$0xf]
        %v1981 = vld [vmem:[%s1561 + $0x84] sm:$0xf]
        %v1982 = vld [vmem:[%s1561 + $0x88] sm:$0xf]
        %v1983 = vld [vmem:[%s1561 + $0x8c] sm:$0xf]
        %v1984 = vld [vmem:[%s1561 + $0x90] sm:$0xf]
        %v1985 = vld [vmem:[%s1561 + $0x94] sm:$0xf]
        %v1986 = vld [vmem:[%s1561 + $0x98] sm:$0xf]
        %v1987 = vld [vmem:[%s1561 + $0x9c] sm:$0xf]
        %v1988 = vld [vmem:[%s1561 + $0xa0] sm:$0xf]
        %v1989 = vld [vmem:[%s1561 + $0xa4] sm:$0xf]
        %v1990 = vld [vmem:[%s1561 + $0xa8] sm:$0xf]
        %v1991 = vld [vmem:[%s1561 + $0xac] sm:$0xf]
        %v1992 = vld [vmem:[%s1561 + $0xb0] sm:$0xf]
        %v1993 = vld [vmem:[%s1561 + $0xb4] sm:$0xf]
        %v1994 = vld [vmem:[%s1561 + $0xb8] sm:$0xf]
        %v1995 = vld [vmem:[%s1561 + $0xbc] sm:$0xf]
        %v1996 = vld [vmem:[%s1561 + $0xc0] sm:$0xf]
        %v1997 = vld [vmem:[%s1561 + $0xc4] sm:$0xf]
        %v1998 = vld [vmem:[%s1561 + $0xc8] sm:$0xf]
        %v1999 = vld [vmem:[%s1561 + $0xcc] sm:$0xf]
        %v2000 = vld [vmem:[%s1561 + $0xd0] sm:$0xf]
        %v2001 = vld [vmem:[%s1561 + $0xd4] sm:$0xf]
        %v2002 = vld [vmem:[%s1561 + $0xd8] sm:$0xf]
        %v2003 = vld [vmem:[%s1561 + $0xdc] sm:$0xf]
        %v2004 = vld [vmem:[%s1561 + $0xe0] sm:$0xf]
        %v2005 = vld [vmem:[%s1561 + $0xe4] sm:$0xf]
        %v2006 = vld [vmem:[%s1561 + $0xe8] sm:$0xf]
        %v2007 = vld [vmem:[%s1561 + $0xec] sm:$0xf]
        %v2008 = vld [vmem:[%s1561 + $0xf0] sm:$0xf]
        %v2009 = vld [vmem:[%s1561 + $0xf4] sm:$0xf]
        %v2010 = vld [vmem:[%s1561 + $0xf8] sm:$0xf]
        %v2011 = vld [vmem:[%s1561 + $0xfc] sm:$0xf]
        %v2012 = vld [vmem:[%s1568] sm:$0xff]
        %v2013 = vld [vmem:[%s1568 + $0x8] sm:$0xff]
        %v2014 = vld [vmem:[%s1568 + $0x10] sm:$0xff]
        %v2015 = vld [vmem:[%s1568 + $0x18] sm:$0xff]
        %v2016 = vld [vmem:[%s1568 + $0x20] sm:$0xff]
        %v2017 = vld [vmem:[%s1568 + $0x28] sm:$0xff]
        %v2018 = vld [vmem:[%s1568 + $0x30] sm:$0xff]
        %v2019 = vld [vmem:[%s1568 + $0x38] sm:$0xff]
        %v2020 = vld [vmem:[%s1568 + $0x40] sm:$0xff]
        %v2021 = vld [vmem:[%s1568 + $0x48] sm:$0xff]
        %v2022 = vld [vmem:[%s1568 + $0x50] sm:$0xff]
        %v2023 = vld [vmem:[%s1568 + $0x58] sm:$0xff]
        %v2024 = vld [vmem:[%s1568 + $0x60] sm:$0xff]
        %v2025 = vld [vmem:[%s1568 + $0x68] sm:$0xff]
        %v2026 = vld [vmem:[%s1568 + $0x70] sm:$0xff]
        %v2027 = vld [vmem:[%s1568 + $0x78] sm:$0xff]
        %v2028 = vld [vmem:[%s1575] sm:$0xf]
        %v2029 = vld [vmem:[%s1575 + $0x4] sm:$0xf]
        %v2030 = vld [vmem:[%s1575 + $0x8] sm:$0xf]
        %v2031 = vld [vmem:[%s1575 + $0xc] sm:$0xf]
        %v2032 = vld [vmem:[%s1575 + $0x10] sm:$0xf]
        %v2033 = vld [vmem:[%s1575 + $0x14] sm:$0xf]
        %v2034 = vld [vmem:[%s1575 + $0x18] sm:$0xf]
        %v2035 = vld [vmem:[%s1575 + $0x1c] sm:$0xf]
        %v2036 = vld [vmem:[%s1575 + $0x20] sm:$0xf]
        %v2037 = vld [vmem:[%s1575 + $0x24] sm:$0xf]
        %v2038 = vld [vmem:[%s1575 + $0x28] sm:$0xf]
        %v2039 = vld [vmem:[%s1575 + $0x2c] sm:$0xf]
        %v2040 = vld [vmem:[%s1575 + $0x30] sm:$0xf]
        %v2041 = vld [vmem:[%s1575 + $0x34] sm:$0xf]
        %v2042 = vld [vmem:[%s1575 + $0x38] sm:$0xf]
        %v2043 = vld [vmem:[%s1575 + $0x3c] sm:$0xf]
        %v2044 = vld [vmem:[%s1575 + $0x40] sm:$0xf]
        %v2045 = vld [vmem:[%s1575 + $0x44] sm:$0xf]
        %v2046 = vld [vmem:[%s1575 + $0x48] sm:$0xf]
        %v2047 = vld [vmem:[%s1575 + $0x4c] sm:$0xf]
        %v2048 = vld [vmem:[%s1575 + $0x50] sm:$0xf]
        %v2049 = vld [vmem:[%s1575 + $0x54] sm:$0xf]
        %v2050 = vld [vmem:[%s1575 + $0x58] sm:$0xf]
        %v2051 = vld [vmem:[%s1575 + $0x5c] sm:$0xf]
        %v2052 = vld [vmem:[%s1575 + $0x60] sm:$0xf]
        %v2053 = vld [vmem:[%s1575 + $0x64] sm:$0xf]
        %v2054 = vld [vmem:[%s1575 + $0x68] sm:$0xf]
        %v2055 = vld [vmem:[%s1575 + $0x6c] sm:$0xf]
        %v2056 = vld [vmem:[%s1575 + $0x70] sm:$0xf]
        %v2057 = vld [vmem:[%s1575 + $0x74] sm:$0xf]
        %v2058 = vld [vmem:[%s1575 + $0x78] sm:$0xf]
        %v2059 = vld [vmem:[%s1575 + $0x7c] sm:$0xf]
        %v2060 = vld [vmem:[%s1575 + $0x80] sm:$0xf]
        %v2061 = vld [vmem:[%s1575 + $0x84] sm:$0xf]
        %v2062 = vld [vmem:[%s1575 + $0x88] sm:$0xf]
        %v2063 = vld [vmem:[%s1575 + $0x8c] sm:$0xf]
        %v2064 = vld [vmem:[%s1575 + $0x90] sm:$0xf]
        %v2065 = vld [vmem:[%s1575 + $0x94] sm:$0xf]
        %v2066 = vld [vmem:[%s1575 + $0x98] sm:$0xf]
        %v2067 = vld [vmem:[%s1575 + $0x9c] sm:$0xf]
        %v2068 = vld [vmem:[%s1575 + $0xa0] sm:$0xf]
        %v2069 = vld [vmem:[%s1575 + $0xa4] sm:$0xf]
        %v2070 = vld [vmem:[%s1575 + $0xa8] sm:$0xf]
        %v2071 = vld [vmem:[%s1575 + $0xac] sm:$0xf]
        %v2072 = vld [vmem:[%s1575 + $0xb0] sm:$0xf]
        %v2073 = vld [vmem:[%s1575 + $0xb4] sm:$0xf]
        %v2074 = vld [vmem:[%s1575 + $0xb8] sm:$0xf]
        %v2075 = vld [vmem:[%s1575 + $0xbc] sm:$0xf]
        %v2076 = vld [vmem:[%s1575 + $0xc0] sm:$0xf]
        %v2077 = vld [vmem:[%s1575 + $0xc4] sm:$0xf]
        %v2078 = vld [vmem:[%s1575 + $0xc8] sm:$0xf]
        %v2079 = vld [vmem:[%s1575 + $0xcc] sm:$0xf]
        %v2080 = vld [vmem:[%s1575 + $0xd0] sm:$0xf]
        %v2081 = vld [vmem:[%s1575 + $0xd4] sm:$0xf]
        %v2082 = vld [vmem:[%s1575 + $0xd8] sm:$0xf]
        %v2083 = vld [vmem:[%s1575 + $0xdc] sm:$0xf]
        %v2084 = vld [vmem:[%s1575 + $0xe0] sm:$0xf]
        %v2085 = vld [vmem:[%s1575 + $0xe4] sm:$0xf]
        %v2086 = vld [vmem:[%s1575 + $0xe8] sm:$0xf]
        %v2087 = vld [vmem:[%s1575 + $0xec] sm:$0xf]
        %v2088 = vld [vmem:[%s1575 + $0xf0] sm:$0xf]
        %v2089 = vld [vmem:[%s1575 + $0xf4] sm:$0xf]
        %v2090 = vld [vmem:[%s1575 + $0xf8] sm:$0xf]
        %v2091 = vld [vmem:[%s1575 + $0xfc] sm:$0xf]
        %v2108 = vunpack.c.l.b16 %v1820
        %v2109 = vunpack.c.l.b16 %v1821
        %v2110 = vunpack.c.l.b16 %v1822
        %v2111 = vunpack.c.l.b16 %v1823
        %v2112 = vunpack.c.l.b16 %v1824
        %v2113 = vunpack.c.l.b16 %v1825
        %v2114 = vunpack.c.l.b16 %v1826
        %v2115 = vunpack.c.l.b16 %v1827
        %v2116 = vunpack.c.l.b16 %v1828
        %v2117 = vunpack.c.l.b16 %v1829
        %v2118 = vunpack.c.l.b16 %v1830
        %v2119 = vunpack.c.l.b16 %v1831
        %v2120 = vunpack.c.l.b16 %v1832
        %v2121 = vunpack.c.l.b16 %v1833
        %v2122 = vunpack.c.l.b16 %v1834
        %v2123 = vunpack.c.l.b16 %v1835
        %v2124 = vpack.c.b16 %v2109, %v2108
        %v2125 = vpack.c.b16 %v2111, %v2110
        %v2126 = vpack.c.b16 %v2113, %v2112
        %v2127 = vpack.c.b16 %v2115, %v2114
        %v2128 = vpack.c.b16 %v2117, %v2116
        %v2129 = vpack.c.b16 %v2119, %v2118
        %v2130 = vpack.c.b16 %v2121, %v2120
        %v2131 = vpack.c.b16 %v2123, %v2122
        %v2148 = vunpack.c.l.b16 %v1884
        %v2149 = vunpack.c.l.b16 %v1885
        %v2150 = vunpack.c.l.b16 %v1886
        %v2151 = vunpack.c.l.b16 %v1887
        %v2152 = vunpack.c.l.b16 %v1888
        %v2153 = vunpack.c.l.b16 %v1889
        %v2154 = vunpack.c.l.b16 %v1890
        %v2155 = vunpack.c.l.b16 %v1891
        %v2156 = vunpack.c.l.b16 %v1892
        %v2157 = vunpack.c.l.b16 %v1893
        %v2158 = vunpack.c.l.b16 %v1894
        %v2159 = vunpack.c.l.b16 %v1895
        %v2160 = vunpack.c.l.b16 %v1896
        %v2161 = vunpack.c.l.b16 %v1897
        %v2162 = vunpack.c.l.b16 %v1898
        %v2163 = vunpack.c.l.b16 %v1899
        %v2164 = vpack.c.b16 %v2149, %v2148
        %v2165 = vpack.c.b16 %v2151, %v2150
        %v2166 = vpack.c.b16 %v2153, %v2152
        %v2167 = vpack.c.b16 %v2155, %v2154
        %v2168 = vpack.c.b16 %v2157, %v2156
        %v2169 = vpack.c.b16 %v2159, %v2158
        %v2170 = vpack.c.b16 %v2161, %v2160
        %v2171 = vpack.c.b16 %v2163, %v2162
        %vm2172 = vcmask 261120
        %v2174 = vsel %vm2172, %v2124, 0
        %v2177 = vsel %vm2172, %v2125, 0
        %v2180 = vsel %vm2172, %v2126, 0
        %v2183 = vsel %vm2172, %v2127, 0
        %v2186 = vsel %vm2172, %v2128, 0
        %v2189 = vsel %vm2172, %v2129, 0
        %v2192 = vsel %vm2172, %v2130, 0
        %v2195 = vsel %vm2172, %v2131, 0
        %v2198 = vsel %vm2172, %v2164, 0
        %v2201 = vsel %vm2172, %v2165, 0
        %v2204 = vsel %vm2172, %v2166, 0
        %v2207 = vsel %vm2172, %v2167, 0
        %v2210 = vsel %vm2172, %v2168, 0
        %v2213 = vsel %vm2172, %v2169, 0
        %v2216 = vsel %vm2172, %v2170, 0
        %v2219 = vsel %vm2172, %v2171, 0
        %2221 = vmatprep.subr.bf16.mxu0 0
        %2222 = vmatpush1.bf16.xpose.msra.mxu0 %v2198
        %2223 = vmatprep.subr.bf16.mxu0 0
        %2224 = vmatpush1.bf16.xpose.msra.mxu0 %v2201
        %2225 = vmatprep.subr.bf16.mxu0 0
        %2226 = vmatpush1.bf16.xpose.msra.mxu0 %v2204
        %2227 = vmatprep.subr.bf16.mxu0 0
        %2228 = vmatpush1.bf16.xpose.msra.mxu0 %v2207
        %2229 = vmatprep.subr.bf16.mxu0 0
        %2230 = vmatpush1.bf16.xpose.msra.mxu0 %v2210
        %2231 = vmatprep.subr.bf16.mxu0 0
        %2232 = vmatpush1.bf16.xpose.msra.mxu0 %v2213
        %2233 = vmatprep.subr.bf16.mxu0 0
        %2234 = vmatpush1.bf16.xpose.msra.mxu0 %v2216
        %2235 = vmatprep.subr.bf16.mxu0 0
        %2236 = vmatpush1.bf16.xpose.msra.mxu0 %v2219
        %2237 = vmatprep.subr.bf16.mxu0 0
        %2238 = vmatpush1.bf16.xpose.msra.mxu0 0
        %2239 = vmatprep.subr.bf16.mxu0 0
        %2240 = vmatpush1.bf16.xpose.msra.mxu0 0
        %2241 = vmatprep.subr.bf16.mxu0 0
        %2242 = vmatpush1.bf16.xpose.msra.mxu0 0
        %2243 = vmatprep.subr.bf16.mxu0 0
        %2244 = vmatpush1.bf16.xpose.msra.mxu0 0
        %2245 = vmatprep.subr.bf16.mxu0 0
        %2246 = vmatpush1.bf16.xpose.msra.mxu0 0
        %2247 = vmatprep.subr.bf16.mxu0 0
        %2248 = vmatpush1.bf16.xpose.msra.mxu0 0
        %2249 = vmatprep.subr.bf16.mxu0 0
        %2250 = vmatpush1.bf16.xpose.msra.mxu0 0
        %2251 = vmatprep.subr.bf16.mxu0 0
        %2252 = vmatpush1.bf16.xpose.msra.mxu0 0
        %2253 = vmatprep.mubr.bf16.mxu0 0
        %2254 = vmatmul.mubr.bf16.gmra.mrb[0].mxu0 %v2174
        %v2255 = vpop.f32.mrb[0].mxu0
        %v2256 = vadd.f32 0.0, %v2255
        %v2257 = vpop.f32.mrb[0].mxu0
        %v2258 = vpop.f32.mrb[0].mxu0
        %v2259 = vadd.f32 0.0, %v2258
        %v2260 = vpop.f32.mrb[0].mxu0
        %2261 = vmatprep.mubr.bf16.mxu0 0
        %2262 = vmatmul.mubr.bf16.gmra.mrb[0].mxu0 %v2177
        %v2263 = vpop.f32.mrb[0].mxu0
        %v2264 = vadd.f32 0.0, %v2263
        %v2265 = vpop.f32.mrb[0].mxu0
        %v2266 = vpop.f32.mrb[0].mxu0
        %v2267 = vadd.f32 0.0, %v2266
        %v2268 = vpop.f32.mrb[0].mxu0
        %2269 = vmatprep.mubr.bf16.mxu0 0
        %2270 = vmatmul.mubr.bf16.gmra.mrb[0].mxu0 %v2180
        %v2271 = vpop.f32.mrb[0].mxu0
        %v2272 = vadd.f32 0.0, %v2271
        %v2273 = vpop.f32.mrb[0].mxu0
        %v2274 = vpop.f32.mrb[0].mxu0
        %v2275 = vadd.f32 0.0, %v2274
        %v2276 = vpop.f32.mrb[0].mxu0
        %2277 = vmatprep.mubr.bf16.mxu0 0
        %2278 = vmatmul.mubr.bf16.gmra.mrb[0].mxu0 %v2183
        %v2279 = vpop.f32.mrb[0].mxu0
        %v2280 = vadd.f32 0.0, %v2279
        %v2281 = vpop.f32.mrb[0].mxu0
        %v2282 = vpop.f32.mrb[0].mxu0
        %v2283 = vadd.f32 0.0, %v2282
        %v2284 = vpop.f32.mrb[0].mxu0
        %2285 = vmatprep.mubr.bf16.mxu0 0
        %2286 = vmatmul.mubr.bf16.gmra.mrb[0].mxu0 %v2186
        %v2287 = vpop.f32.mrb[0].mxu0
        %v2288 = vadd.f32 0.0, %v2287
        %v2289 = vpop.f32.mrb[0].mxu0
        %v2290 = vpop.f32.mrb[0].mxu0
        %v2291 = vadd.f32 0.0, %v2290
        %v2292 = vpop.f32.mrb[0].mxu0
        %2293 = vmatprep.mubr.bf16.mxu0 0
        %2294 = vmatmul.mubr.bf16.gmra.mrb[0].mxu0 %v2189
        %v2295 = vpop.f32.mrb[0].mxu0
        %v2296 = vadd.f32 0.0, %v2295
        %v2297 = vpop.f32.mrb[0].mxu0
        %v2298 = vpop.f32.mrb[0].mxu0
        %v2299 = vadd.f32 0.0, %v2298
        %v2300 = vpop.f32.mrb[0].mxu0
        %2301 = vmatprep.mubr.bf16.mxu0 0
        %2302 = vmatmul.mubr.bf16.gmra.mrb[0].mxu0 %v2192
        %v2303 = vpop.f32.mrb[0].mxu0
        %v2304 = vadd.f32 0.0, %v2303
        %v2305 = vpop.f32.mrb[0].mxu0
        %v2306 = vpop.f32.mrb[0].mxu0
        %v2307 = vadd.f32 0.0, %v2306
        %v2308 = vpop.f32.mrb[0].mxu0
        %2309 = vmatprep.mubr.bf16.mxu0 0
        %2310 = vmatmul.mubr.bf16.gmra.mrb[0].mxu0 %v2195
        %v2311 = vpop.f32.mrb[0].mxu0
        %v2312 = vadd.f32 0.0, %v2311
        %v2313 = vpop.f32.mrb[0].mxu0
        %v2314 = vpop.f32.mrb[0].mxu0
        %v2315 = vadd.f32 0.0, %v2314
        %v2316 = vpop.f32.mrb[0].mxu0
        %2317 = vdwg.mxu0
        %v2334 = vunpack.c.l.b16 %v1836
        %v2335 = vunpack.c.l.b16 %v1837
        %v2336 = vunpack.c.l.b16 %v1838
        %v2337 = vunpack.c.l.b16 %v1839
        %v2338 = vunpack.c.l.b16 %v1840
        %v2339 = vunpack.c.l.b16 %v1841
        %v2340 = vunpack.c.l.b16 %v1842
        %v2341 = vunpack.c.l.b16 %v1843
        %v2342 = vunpack.c.l.b16 %v1844
        %v2343 = vunpack.c.l.b16 %v1845
        %v2344 = vunpack.c.l.b16 %v1846
        %v2345 = vunpack.c.l.b16 %v1847
        %v2346 = vunpack.c.l.b16 %v1848
        %v2347 = vunpack.c.l.b16 %v1849
        %v2348 = vunpack.c.l.b16 %v1850
        %v2349 = vunpack.c.l.b16 %v1851
        %v2350 = vpack.c.b16 %v2335, %v2334
        %v2351 = vpack.c.b16 %v2337, %v2336
        %v2352 = vpack.c.b16 %v2339, %v2338
        %v2353 = vpack.c.b16 %v2341, %v2340
        %v2354 = vpack.c.b16 %v2343, %v2342
        %v2355 = vpack.c.b16 %v2345, %v2344
        %v2356 = vpack.c.b16 %v2347, %v2346
        %v2357 = vpack.c.b16 %v2349, %v2348
        %v2374 = vunpack.c.l.b16 %v1900
        %v2375 = vunpack.c.l.b16 %v1901
        %v2376 = vunpack.c.l.b16 %v1902
        %v2377 = vunpack.c.l.b16 %v1903
        %v2378 = vunpack.c.l.b16 %v1904
        %v2379 = vunpack.c.l.b16 %v1905
        %v2380 = vunpack.c.l.b16 %v1906
        %v2381 = vunpack.c.l.b16 %v1907
        %v2382 = vunpack.c.l.b16 %v1908
        %v2383 = vunpack.c.l.b16 %v1909
        %v2384 = vunpack.c.l.b16 %v1910
        %v2385 = vunpack.c.l.b16 %v1911
        %v2386 = vunpack.c.l.b16 %v1912
        %v2387 = vunpack.c.l.b16 %v1913
        %v2388 = vunpack.c.l.b16 %v1914
        %v2389 = vunpack.c.l.b16 %v1915
        %v2390 = vpack.c.b16 %v2375, %v2374
        %v2391 = vpack.c.b16 %v2377, %v2376
        %v2392 = vpack.c.b16 %v2379, %v2378
        %v2393 = vpack.c.b16 %v2381, %v2380
        %v2394 = vpack.c.b16 %v2383, %v2382
        %v2395 = vpack.c.b16 %v2385, %v2384
        %v2396 = vpack.c.b16 %v2387, %v2386
        %v2397 = vpack.c.b16 %v2389, %v2388
        %v2399 = vsel %vm2172, %v2350, 0
        %v2402 = vsel %vm2172, %v2351, 0
        %v2405 = vsel %vm2172, %v2352, 0
        %v2408 = vsel %vm2172, %v2353, 0
        %v2411 = vsel %vm2172, %v2354, 0
        %v2414 = vsel %vm2172, %v2355, 0
        %v2417 = vsel %vm2172, %v2356, 0
        %v2420 = vsel %vm2172, %v2357, 0
        %v2423 = vsel %vm2172, %v2390, 0
        %v2426 = vsel %vm2172, %v2391, 0
        %v2429 = vsel %vm2172, %v2392, 0
        %v2432 = vsel %vm2172, %v2393, 0
        %v2435 = vsel %vm2172, %v2394, 0
        %v2438 = vsel %vm2172, %v2395, 0
        %v2441 = vsel %vm2172, %v2396, 0
        %v2444 = vsel %vm2172, %v2397, 0
        %2446 = vmatprep.subr.bf16.mxu0 0
        %2447 = vmatpush1.bf16.xpose.msra.mxu0 %v2423
        %2448 = vmatprep.subr.bf16.mxu0 0
        %2449 = vmatpush1.bf16.xpose.msra.mxu0 %v2426
        %2450 = vmatprep.subr.bf16.mxu0 0
        %2451 = vmatpush1.bf16.xpose.msra.mxu0 %v2429
        %2452 = vmatprep.subr.bf16.mxu0 0
        %2453 = vmatpush1.bf16.xpose.msra.mxu0 %v2432
        %2454 = vmatprep.subr.bf16.mxu0 0
        %2455 = vmatpush1.bf16.xpose.msra.mxu0 %v2435
        %2456 = vmatprep.subr.bf16.mxu0 0
        %2457 = vmatpush1.bf16.xpose.msra.mxu0 %v2438
        %2458 = vmatprep.subr.bf16.mxu0 0
        %2459 = vmatpush1.bf16.xpose.msra.mxu0 %v2441
        %2460 = vmatprep.subr.bf16.mxu0 0
        %2461 = vmatpush1.bf16.xpose.msra.mxu0 %v2444
        %2462 = vmatprep.subr.bf16.mxu0 0
        %2463 = vmatpush1.bf16.xpose.msra.mxu0 0
        %2464 = vmatprep.subr.bf16.mxu0 0
        %2465 = vmatpush1.bf16.xpose.msra.mxu0 0
        %2466 = vmatprep.subr.bf16.mxu0 0
        %2467 = vmatpush1.bf16.xpose.msra.mxu0 0
        %2468 = vmatprep.subr.bf16.mxu0 0
        %2469 = vmatpush1.bf16.xpose.msra.mxu0 0
        %2470 = vmatprep.subr.bf16.mxu0 0
        %2471 = vmatpush1.bf16.xpose.msra.mxu0 0
        %2472 = vmatprep.subr.bf16.mxu0 0
        %2473 = vmatpush1.bf16.xpose.msra.mxu0 0
        %2474 = vmatprep.subr.bf16.mxu0 0
        %2475 = vmatpush1.bf16.xpose.msra.mxu0 0
        %2476 = vmatprep.subr.bf16.mxu0 0
        %2477 = vmatpush1.bf16.xpose.msra.mxu0 0
        %2478 = vmatprep.mubr.bf16.mxu0 0
        %2479 = vmatmul.mubr.bf16.gmra.mrb[0].mxu0 %v2399
        %v2480 = vpop.f32.mrb[0].mxu0
        %v2481 = vadd.f32 0.0, %v2480
        %v2482 = vpop.f32.mrb[0].mxu0
        %v2483 = vpop.f32.mrb[0].mxu0
        %v2484 = vadd.f32 0.0, %v2483
        %v2485 = vpop.f32.mrb[0].mxu0
        %2486 = vmatprep.mubr.bf16.mxu0 0
        %2487 = vmatmul.mubr.bf16.gmra.mrb[0].mxu0 %v2402
        %v2488 = vpop.f32.mrb[0].mxu0
        %v2489 = vadd.f32 0.0, %v2488
        %v2490 = vpop.f32.mrb[0].mxu0
        %v2491 = vpop.f32.mrb[0].mxu0
        %v2492 = vadd.f32 0.0, %v2491
        %v2493 = vpop.f32.mrb[0].mxu0
        %2494 = vmatprep.mubr.bf16.mxu0 0
        %2495 = vmatmul.mubr.bf16.gmra.mrb[0].mxu0 %v2405
        %v2496 = vpop.f32.mrb[0].mxu0
        %v2497 = vadd.f32 0.0, %v2496
        %v2498 = vpop.f32.mrb[0].mxu0
        %v2499 = vpop.f32.mrb[0].mxu0
        %v2500 = vadd.f32 0.0, %v2499
        %v2501 = vpop.f32.mrb[0].mxu0
        %2502 = vmatprep.mubr.bf16.mxu0 0
        %2503 = vmatmul.mubr.bf16.gmra.mrb[0].mxu0 %v2408
        %v2504 = vpop.f32.mrb[0].mxu0
        %v2505 = vadd.f32 0.0, %v2504
        %v2506 = vpop.f32.mrb[0].mxu0
        %v2507 = vpop.f32.mrb[0].mxu0
        %v2508 = vadd.f32 0.0, %v2507
        %v2509 = vpop.f32.mrb[0].mxu0
        %2510 = vmatprep.mubr.bf16.mxu0 0
        %2511 = vmatmul.mubr.bf16.gmra.mrb[0].mxu0 %v2411
        %v2512 = vpop.f32.mrb[0].mxu0
        %v2513 = vadd.f32 0.0, %v2512
        %v2514 = vpop.f32.mrb[0].mxu0
        %v2515 = vpop.f32.mrb[0].mxu0
        %v2516 = vadd.f32 0.0, %v2515
        %v2517 = vpop.f32.mrb[0].mxu0
        %2518 = vmatprep.mubr.bf16.mxu0 0
        %2519 = vmatmul.mubr.bf16.gmra.mrb[0].mxu0 %v2414
        %v2520 = vpop.f32.mrb[0].mxu0
        %v2521 = vadd.f32 0.0, %v2520
        %v2522 = vpop.f32.mrb[0].mxu0
        %v2523 = vpop.f32.mrb[0].mxu0
        %v2524 = vadd.f32 0.0, %v2523
        %v2525 = vpop.f32.mrb[0].mxu0
        %2526 = vmatprep.mubr.bf16.mxu0 0
        %2527 = vmatmul.mubr.bf16.gmra.mrb[0].mxu0 %v2417
        %v2528 = vpop.f32.mrb[0].mxu0
        %v2529 = vadd.f32 0.0, %v2528
        %v2530 = vpop.f32.mrb[0].mxu0
        %v2531 = vpop.f32.mrb[0].mxu0
        %v2532 = vadd.f32 0.0, %v2531
        %v2533 = vpop.f32.mrb[0].mxu0
        %2534 = vmatprep.mubr.bf16.mxu0 0
        %2535 = vmatmul.mubr.bf16.gmra.mrb[0].mxu0 %v2420
        %v2536 = vpop.f32.mrb[0].mxu0
        %v2537 = vadd.f32 0.0, %v2536
        %v2538 = vpop.f32.mrb[0].mxu0
        %v2539 = vpop.f32.mrb[0].mxu0
        %v2540 = vadd.f32 0.0, %v2539
        %v2541 = vpop.f32.mrb[0].mxu0
        %2542 = vdwg.mxu0
        %v2559 = vunpack.c.l.b16 %v1852
        %v2560 = vunpack.c.l.b16 %v1853
        %v2561 = vunpack.c.l.b16 %v1854
        %v2562 = vunpack.c.l.b16 %v1855
        %v2563 = vunpack.c.l.b16 %v1856
        %v2564 = vunpack.c.l.b16 %v1857
        %v2565 = vunpack.c.l.b16 %v1858
        %v2566 = vunpack.c.l.b16 %v1859
        %v2567 = vunpack.c.l.b16 %v1860
        %v2568 = vunpack.c.l.b16 %v1861
        %v2569 = vunpack.c.l.b16 %v1862
        %v2570 = vunpack.c.l.b16 %v1863
        %v2571 = vunpack.c.l.b16 %v1864
        %v2572 = vunpack.c.l.b16 %v1865
        %v2573 = vunpack.c.l.b16 %v1866
        %v2574 = vunpack.c.l.b16 %v1867
        %v2575 = vpack.c.b16 %v2560, %v2559
        %v2576 = vpack.c.b16 %v2562, %v2561
        %v2577 = vpack.c.b16 %v2564, %v2563
        %v2578 = vpack.c.b16 %v2566, %v2565
        %v2579 = vpack.c.b16 %v2568, %v2567
        %v2580 = vpack.c.b16 %v2570, %v2569
        %v2581 = vpack.c.b16 %v2572, %v2571
        %v2582 = vpack.c.b16 %v2574, %v2573
        %v2599 = vunpack.c.l.b16 %v1916
        %v2600 = vunpack.c.l.b16 %v1917
        %v2601 = vunpack.c.l.b16 %v1918
        %v2602 = vunpack.c.l.b16 %v1919
        %v2603 = vunpack.c.l.b16 %v1920
        %v2604 = vunpack.c.l.b16 %v1921
        %v2605 = vunpack.c.l.b16 %v1922
        %v2606 = vunpack.c.l.b16 %v1923
        %v2607 = vunpack.c.l.b16 %v1924
        %v2608 = vunpack.c.l.b16 %v1925
        %v2609 = vunpack.c.l.b16 %v1926
        %v2610 = vunpack.c.l.b16 %v1927
        %v2611 = vunpack.c.l.b16 %v1928
        %v2612 = vunpack.c.l.b16 %v1929
        %v2613 = vunpack.c.l.b16 %v1930
        %v2614 = vunpack.c.l.b16 %v1931
        %v2615 = vpack.c.b16 %v2600, %v2599
        %v2616 = vpack.c.b16 %v2602, %v2601
        %v2617 = vpack.c.b16 %v2604, %v2603
        %v2618 = vpack.c.b16 %v2606, %v2605
        %v2619 = vpack.c.b16 %v2608, %v2607
        %v2620 = vpack.c.b16 %v2610, %v2609
        %v2621 = vpack.c.b16 %v2612, %v2611
        %v2622 = vpack.c.b16 %v2614, %v2613
        %v2624 = vsel %vm2172, %v2575, 0
        %v2627 = vsel %vm2172, %v2576, 0
        %v2630 = vsel %vm2172, %v2577, 0
        %v2633 = vsel %vm2172, %v2578, 0
        %v2636 = vsel %vm2172, %v2579, 0
        %v2639 = vsel %vm2172, %v2580, 0
        %v2642 = vsel %vm2172, %v2581, 0
        %v2645 = vsel %vm2172, %v2582, 0
        %v2648 = vsel %vm2172, %v2615, 0
        %v2651 = vsel %vm2172, %v2616, 0
        %v2654 = vsel %vm2172, %v2617, 0
        %v2657 = vsel %vm2172, %v2618, 0
        %v2660 = vsel %vm2172, %v2619, 0
        %v2663 = vsel %vm2172, %v2620, 0
        %v2666 = vsel %vm2172, %v2621, 0
        %v2669 = vsel %vm2172, %v2622, 0
        %2671 = vmatprep.subr.bf16.mxu0 0
        %2672 = vmatpush1.bf16.xpose.msra.mxu0 %v2648
        %2673 = vmatprep.subr.bf16.mxu0 0
        %2674 = vmatpush1.bf16.xpose.msra.mxu0 %v2651
        %2675 = vmatprep.subr.bf16.mxu0 0
        %2676 = vmatpush1.bf16.xpose.msra.mxu0 %v2654
        %2677 = vmatprep.subr.bf16.mxu0 0
        %2678 = vmatpush1.bf16.xpose.msra.mxu0 %v2657
        %2679 = vmatprep.subr.bf16.mxu0 0
        %2680 = vmatpush1.bf16.xpose.msra.mxu0 %v2660
        %2681 = vmatprep.subr.bf16.mxu0 0
        %2682 = vmatpush1.bf16.xpose.msra.mxu0 %v2663
        %2683 = vmatprep.subr.bf16.mxu0 0
        %2684 = vmatpush1.bf16.xpose.msra.mxu0 %v2666
        %2685 = vmatprep.subr.bf16.mxu0 0
        %2686 = vmatpush1.bf16.xpose.msra.mxu0 %v2669
        %2687 = vmatprep.subr.bf16.mxu0 0
        %2688 = vmatpush1.bf16.xpose.msra.mxu0 0
        %2689 = vmatprep.subr.bf16.mxu0 0
        %2690 = vmatpush1.bf16.xpose.msra.mxu0 0
        %2691 = vmatprep.subr.bf16.mxu0 0
        %2692 = vmatpush1.bf16.xpose.msra.mxu0 0
        %2693 = vmatprep.subr.bf16.mxu0 0
        %2694 = vmatpush1.bf16.xpose.msra.mxu0 0
        %2695 = vmatprep.subr.bf16.mxu0 0
        %2696 = vmatpush1.bf16.xpose.msra.mxu0 0
        %2697 = vmatprep.subr.bf16.mxu0 0
        %2698 = vmatpush1.bf16.xpose.msra.mxu0 0
        %2699 = vmatprep.subr.bf16.mxu0 0
        %2700 = vmatpush1.bf16.xpose.msra.mxu0 0
        %2701 = vmatprep.subr.bf16.mxu0 0
        %2702 = vmatpush1.bf16.xpose.msra.mxu0 0
        %2703 = vmatprep.mubr.bf16.mxu0 0
        %2704 = vmatmul.mubr.bf16.gmra.mrb[0].mxu0 %v2624
        %v2705 = vpop.f32.mrb[0].mxu0
        %v2706 = vadd.f32 0.0, %v2705
        %v2707 = vpop.f32.mrb[0].mxu0
        %v2708 = vpop.f32.mrb[0].mxu0
        %v2709 = vadd.f32 0.0, %v2708
        %v2710 = vpop.f32.mrb[0].mxu0
        %2711 = vmatprep.mubr.bf16.mxu0 0
        %2712 = vmatmul.mubr.bf16.gmra.mrb[0].mxu0 %v2627
        %v2713 = vpop.f32.mrb[0].mxu0
        %v2714 = vadd.f32 0.0, %v2713
        %v2715 = vpop.f32.mrb[0].mxu0
        %v2716 = vpop.f32.mrb[0].mxu0
        %v2717 = vadd.f32 0.0, %v2716
        %v2718 = vpop.f32.mrb[0].mxu0
        %2719 = vmatprep.mubr.bf16.mxu0 0
        %2720 = vmatmul.mubr.bf16.gmra.mrb[0].mxu0 %v2630
        %v2721 = vpop.f32.mrb[0].mxu0
        %v2722 = vadd.f32 0.0, %v2721
        %v2723 = vpop.f32.mrb[0].mxu0
        %v2724 = vpop.f32.mrb[0].mxu0
        %v2725 = vadd.f32 0.0, %v2724
        %v2726 = vpop.f32.mrb[0].mxu0
        %2727 = vmatprep.mubr.bf16.mxu0 0
        %2728 = vmatmul.mubr.bf16.gmra.mrb[0].mxu0 %v2633
        %v2729 = vpop.f32.mrb[0].mxu0
        %v2730 = vadd.f32 0.0, %v2729
        %v2731 = vpop.f32.mrb[0].mxu0
        %v2732 = vpop.f32.mrb[0].mxu0
        %v2733 = vadd.f32 0.0, %v2732
        %v2734 = vpop.f32.mrb[0].mxu0
        %2735 = vmatprep.mubr.bf16.mxu0 0
        %2736 = vmatmul.mubr.bf16.gmra.mrb[0].mxu0 %v2636
        %v2737 = vpop.f32.mrb[0].mxu0
        %v2738 = vadd.f32 0.0, %v2737
        %v2739 = vpop.f32.mrb[0].mxu0
        %v2740 = vpop.f32.mrb[0].mxu0
        %v2741 = vadd.f32 0.0, %v2740
        %v2742 = vpop.f32.mrb[0].mxu0
        %2743 = vmatprep.mubr.bf16.mxu0 0
        %2744 = vmatmul.mubr.bf16.gmra.mrb[0].mxu0 %v2639
        %v2745 = vpop.f32.mrb[0].mxu0
        %v2746 = vadd.f32 0.0, %v2745
        %v2747 = vpop.f32.mrb[0].mxu0
        %v2748 = vpop.f32.mrb[0].mxu0
        %v2749 = vadd.f32 0.0, %v2748
        %v2750 = vpop.f32.mrb[0].mxu0
        %2751 = vmatprep.mubr.bf16.mxu0 0
        %2752 = vmatmul.mubr.bf16.gmra.mrb[0].mxu0 %v2642
        %v2753 = vpop.f32.mrb[0].mxu0
        %v2754 = vadd.f32 0.0, %v2753
        %v2755 = vpop.f32.mrb[0].mxu0
        %v2756 = vpop.f32.mrb[0].mxu0
        %v2757 = vadd.f32 0.0, %v2756
        %v2758 = vpop.f32.mrb[0].mxu0
        %2759 = vmatprep.mubr.bf16.mxu0 0
        %2760 = vmatmul.mubr.bf16.gmra.mrb[0].mxu0 %v2645
        %v2761 = vpop.f32.mrb[0].mxu0
        %v2762 = vadd.f32 0.0, %v2761
        %v2763 = vpop.f32.mrb[0].mxu0
        %v2764 = vpop.f32.mrb[0].mxu0
        %v2765 = vadd.f32 0.0, %v2764
        %v2766 = vpop.f32.mrb[0].mxu0
        %2767 = vdwg.mxu0
        %v2784 = vunpack.c.l.b16 %v1868
        %v2785 = vunpack.c.l.b16 %v1869
        %v2786 = vunpack.c.l.b16 %v1870
        %v2787 = vunpack.c.l.b16 %v1871
        %v2788 = vunpack.c.l.b16 %v1872
        %v2789 = vunpack.c.l.b16 %v1873
        %v2790 = vunpack.c.l.b16 %v1874
        %v2791 = vunpack.c.l.b16 %v1875
        %v2792 = vunpack.c.l.b16 %v1876
        %v2793 = vunpack.c.l.b16 %v1877
        %v2794 = vunpack.c.l.b16 %v1878
        %v2795 = vunpack.c.l.b16 %v1879
        %v2796 = vunpack.c.l.b16 %v1880
        %v2797 = vunpack.c.l.b16 %v1881
        %v2798 = vunpack.c.l.b16 %v1882
        %v2799 = vunpack.c.l.b16 %v1883
        %v2800 = vpack.c.b16 %v2785, %v2784
        %v2801 = vpack.c.b16 %v2787, %v2786
        %v2802 = vpack.c.b16 %v2789, %v2788
        %v2803 = vpack.c.b16 %v2791, %v2790
        %v2804 = vpack.c.b16 %v2793, %v2792
        %v2805 = vpack.c.b16 %v2795, %v2794
        %v2806 = vpack.c.b16 %v2797, %v2796
        %v2807 = vpack.c.b16 %v2799, %v2798
        %v2824 = vunpack.c.l.b16 %v1932
        %v2825 = vunpack.c.l.b16 %v1933
        %v2826 = vunpack.c.l.b16 %v1934
        %v2827 = vunpack.c.l.b16 %v1935
        %v2828 = vunpack.c.l.b16 %v1936
        %v2829 = vunpack.c.l.b16 %v1937
        %v2830 = vunpack.c.l.b16 %v1938
        %v2831 = vunpack.c.l.b16 %v1939
        %v2832 = vunpack.c.l.b16 %v1940
        %v2833 = vunpack.c.l.b16 %v1941
        %v2834 = vunpack.c.l.b16 %v1942
        %v2835 = vunpack.c.l.b16 %v1943
        %v2836 = vunpack.c.l.b16 %v1944
        %v2837 = vunpack.c.l.b16 %v1945
        %v2838 = vunpack.c.l.b16 %v1946
        %v2839 = vunpack.c.l.b16 %v1947
        %v2840 = vpack.c.b16 %v2825, %v2824
        %v2841 = vpack.c.b16 %v2827, %v2826
        %v2842 = vpack.c.b16 %v2829, %v2828
        %v2843 = vpack.c.b16 %v2831, %v2830
        %v2844 = vpack.c.b16 %v2833, %v2832
        %v2845 = vpack.c.b16 %v2835, %v2834
        %v2846 = vpack.c.b16 %v2837, %v2836
        %v2847 = vpack.c.b16 %v2839, %v2838
        %v2849 = vsel %vm2172, %v2800, 0
        %v2852 = vsel %vm2172, %v2801, 0
        %v2855 = vsel %vm2172, %v2802, 0
        %v2858 = vsel %vm2172, %v2803, 0
        %v2861 = vsel %vm2172, %v2804, 0
        %v2864 = vsel %vm2172, %v2805, 0
        %v2867 = vsel %vm2172, %v2806, 0
        %v2870 = vsel %vm2172, %v2807, 0
        %v2873 = vsel %vm2172, %v2840, 0
        %v2876 = vsel %vm2172, %v2841, 0
        %v2879 = vsel %vm2172, %v2842, 0
        %v2882 = vsel %vm2172, %v2843, 0
        %v2885 = vsel %vm2172, %v2844, 0
        %v2888 = vsel %vm2172, %v2845, 0
        %v2891 = vsel %vm2172, %v2846, 0
        %v2894 = vsel %vm2172, %v2847, 0
        %2896 = vmatprep.subr.bf16.mxu0 0
        %2897 = vmatpush1.bf16.xpose.msra.mxu0 %v2873
        %2898 = vmatprep.subr.bf16.mxu0 0
        %2899 = vmatpush1.bf16.xpose.msra.mxu0 %v2876
        %2900 = vmatprep.subr.bf16.mxu0 0
        %2901 = vmatpush1.bf16.xpose.msra.mxu0 %v2879
        %2902 = vmatprep.subr.bf16.mxu0 0
        %2903 = vmatpush1.bf16.xpose.msra.mxu0 %v2882
        %2904 = vmatprep.subr.bf16.mxu0 0
        %2905 = vmatpush1.bf16.xpose.msra.mxu0 %v2885
        %2906 = vmatprep.subr.bf16.mxu0 0
        %2907 = vmatpush1.bf16.xpose.msra.mxu0 %v2888
        %2908 = vmatprep.subr.bf16.mxu0 0
        %2909 = vmatpush1.bf16.xpose.msra.mxu0 %v2891
        %2910 = vmatprep.subr.bf16.mxu0 0
        %2911 = vmatpush1.bf16.xpose.msra.mxu0 %v2894
        %2912 = vmatprep.subr.bf16.mxu0 0
        %2913 = vmatpush1.bf16.xpose.msra.mxu0 0
        %2914 = vmatprep.subr.bf16.mxu0 0
        %2915 = vmatpush1.bf16.xpose.msra.mxu0 0
        %2916 = vmatprep.subr.bf16.mxu0 0
        %2917 = vmatpush1.bf16.xpose.msra.mxu0 0
        %2918 = vmatprep.subr.bf16.mxu0 0
        %2919 = vmatpush1.bf16.xpose.msra.mxu0 0
        %2920 = vmatprep.subr.bf16.mxu0 0
        %2921 = vmatpush1.bf16.xpose.msra.mxu0 0
        %2922 = vmatprep.subr.bf16.mxu0 0
        %2923 = vmatpush1.bf16.xpose.msra.mxu0 0
        %2924 = vmatprep.subr.bf16.mxu0 0
        %2925 = vmatpush1.bf16.xpose.msra.mxu0 0
        %2926 = vmatprep.subr.bf16.mxu0 0
        %2927 = vmatpush1.bf16.xpose.msra.mxu0 0
        %2928 = vmatprep.mubr.bf16.mxu0 0
        %2929 = vmatmul.mubr.bf16.gmra.mrb[0].mxu0 %v2849
        %v2930 = vpop.f32.mrb[0].mxu0
        %v2931 = vadd.f32 0.0, %v2930
        %v2932 = vpop.f32.mrb[0].mxu0
        %v2933 = vpop.f32.mrb[0].mxu0
        %v2934 = vadd.f32 0.0, %v2933
        %v2935 = vpop.f32.mrb[0].mxu0
        %2936 = vmatprep.mubr.bf16.mxu0 0
        %2937 = vmatmul.mubr.bf16.gmra.mrb[0].mxu0 %v2852
        %v2938 = vpop.f32.mrb[0].mxu0
        %v2939 = vadd.f32 0.0, %v2938
        %v2940 = vpop.f32.mrb[0].mxu0
        %v2941 = vpop.f32.mrb[0].mxu0
        %v2942 = vadd.f32 0.0, %v2941
        %v2943 = vpop.f32.mrb[0].mxu0
        %2944 = vmatprep.mubr.bf16.mxu0 0
        %2945 = vmatmul.mubr.bf16.gmra.mrb[0].mxu0 %v2855
        %v2946 = vpop.f32.mrb[0].mxu0
        %v2947 = vadd.f32 0.0, %v2946
        %v2948 = vpop.f32.mrb[0].mxu0
        %v2949 = vpop.f32.mrb[0].mxu0
        %v2950 = vadd.f32 0.0, %v2949
        %v2951 = vpop.f32.mrb[0].mxu0
        %2952 = vmatprep.mubr.bf16.mxu0 0
        %2953 = vmatmul.mubr.bf16.gmra.mrb[0].mxu0 %v2858
        %v2954 = vpop.f32.mrb[0].mxu0
        %v2955 = vadd.f32 0.0, %v2954
        %v2956 = vpop.f32.mrb[0].mxu0
        %v2957 = vpop.f32.mrb[0].mxu0
        %v2958 = vadd.f32 0.0, %v2957
        %v2959 = vpop.f32.mrb[0].mxu0
        %2960 = vmatprep.mubr.bf16.mxu0 0
        %2961 = vmatmul.mubr.bf16.gmra.mrb[0].mxu0 %v2861
        %v2962 = vpop.f32.mrb[0].mxu0
        %v2963 = vadd.f32 0.0, %v2962
        %v2964 = vpop.f32.mrb[0].mxu0
        %v2965 = vpop.f32.mrb[0].mxu0
        %v2966 = vadd.f32 0.0, %v2965
        %v2967 = vpop.f32.mrb[0].mxu0
        %2968 = vmatprep.mubr.bf16.mxu0 0
        %2969 = vmatmul.mubr.bf16.gmra.mrb[0].mxu0 %v2864
        %v2970 = vpop.f32.mrb[0].mxu0
        %v2971 = vadd.f32 0.0, %v2970
        %v2972 = vpop.f32.mrb[0].mxu0
        %v2973 = vpop.f32.mrb[0].mxu0
        %v2974 = vadd.f32 0.0, %v2973
        %v2975 = vpop.f32.mrb[0].mxu0
        %2976 = vmatprep.mubr.bf16.mxu0 0
        %2977 = vmatmul.mubr.bf16.gmra.mrb[0].mxu0 %v2867
        %v2978 = vpop.f32.mrb[0].mxu0
        %v2979 = vadd.f32 0.0, %v2978
        %v2980 = vpop.f32.mrb[0].mxu0
        %v2981 = vpop.f32.mrb[0].mxu0
        %v2982 = vadd.f32 0.0, %v2981
        %v2983 = vpop.f32.mrb[0].mxu0
        %2984 = vmatprep.mubr.bf16.mxu0 0
        %2985 = vmatmul.mubr.bf16.gmra.mrb[0].mxu0 %v2870
        %v2986 = vpop.f32.mrb[0].mxu0
        %v2987 = vadd.f32 0.0, %v2986
        %v2988 = vpop.f32.mrb[0].mxu0
        %v2989 = vpop.f32.mrb[0].mxu0
        %v2990 = vadd.f32 0.0, %v2989
        %v2991 = vpop.f32.mrb[0].mxu0
        %2992 = vdwg.mxu0
        %v2993 = vmul.f32 %v2256, 0.17677669
        %v2994 = vmul.f32 %v2259, 0.17677669
        %v2995 = vmul.f32 %v2264, 0.17677669
        %v2996 = vmul.f32 %v2267, 0.17677669
        %v2997 = vmul.f32 %v2272, 0.17677669
        %v2998 = vmul.f32 %v2275, 0.17677669
        %v2999 = vmul.f32 %v2280, 0.17677669
        %v3000 = vmul.f32 %v2283, 0.17677669
        %v3001 = vmul.f32 %v2288, 0.17677669
        %v3002 = vmul.f32 %v2291, 0.17677669
        %v3003 = vmul.f32 %v2296, 0.17677669
        %v3004 = vmul.f32 %v2299, 0.17677669
        %v3005 = vmul.f32 %v2304, 0.17677669
        %v3006 = vmul.f32 %v2307, 0.17677669
        %v3007 = vmul.f32 %v2312, 0.17677669
        %v3008 = vmul.f32 %v2315, 0.17677669
        %v3009 = vmul.f32 %v2481, 0.17677669
        %v3010 = vmul.f32 %v2484, 0.17677669
        %v3011 = vmul.f32 %v2489, 0.17677669
        %v3012 = vmul.f32 %v2492, 0.17677669
        %v3013 = vmul.f32 %v2497, 0.17677669
        %v3014 = vmul.f32 %v2500, 0.17677669
        %v3015 = vmul.f32 %v2505, 0.17677669
        %v3016 = vmul.f32 %v2508, 0.17677669
        %v3017 = vmul.f32 %v2513, 0.17677669
        %v3018 = vmul.f32 %v2516, 0.17677669
        %v3019 = vmul.f32 %v2521, 0.17677669
        %v3020 = vmul.f32 %v2524, 0.17677669
        %v3021 = vmul.f32 %v2529, 0.17677669
        %v3022 = vmul.f32 %v2532, 0.17677669
        %v3023 = vmul.f32 %v2537, 0.17677669
        %v3024 = vmul.f32 %v2540, 0.17677669
        %v3025 = vmul.f32 %v2706, 0.17677669
        %v3026 = vmul.f32 %v2709, 0.17677669
        %v3027 = vmul.f32 %v2714, 0.17677669
        %v3028 = vmul.f32 %v2717, 0.17677669
        %v3029 = vmul.f32 %v2722, 0.17677669
        %v3030 = vmul.f32 %v2725, 0.17677669
        %v3031 = vmul.f32 %v2730, 0.17677669
        %v3032 = vmul.f32 %v2733, 0.17677669
        %v3033 = vmul.f32 %v2738, 0.17677669
        %v3034 = vmul.f32 %v2741, 0.17677669
        %v3035 = vmul.f32 %v2746, 0.17677669
        %v3036 = vmul.f32 %v2749, 0.17677669
        %v3037 = vmul.f32 %v2754, 0.17677669
        %v3038 = vmul.f32 %v2757, 0.17677669
        %v3039 = vmul.f32 %v2762, 0.17677669
        %v3040 = vmul.f32 %v2765, 0.17677669
        %v3041 = vmul.f32 %v2931, 0.17677669
        %v3042 = vmul.f32 %v2934, 0.17677669
        %v3043 = vmul.f32 %v2939, 0.17677669
        %v3044 = vmul.f32 %v2942, 0.17677669
        %v3045 = vmul.f32 %v2947, 0.17677669
        %v3046 = vmul.f32 %v2950, 0.17677669
        %v3047 = vmul.f32 %v2955, 0.17677669
        %v3048 = vmul.f32 %v2958, 0.17677669
        %v3049 = vmul.f32 %v2963, 0.17677669
        %v3050 = vmul.f32 %v2966, 0.17677669
        %v3051 = vmul.f32 %v2971, 0.17677669
        %v3052 = vmul.f32 %v2974, 0.17677669
        %v3053 = vmul.f32 %v2979, 0.17677669
        %v3054 = vmul.f32 %v2982, 0.17677669
        %v3055 = vmul.f32 %v2987, 0.17677669
        %v3056 = vmul.f32 %v2990, 0.17677669
        %v3057 = vadd.f32 %v2993, %v2012
        %v3058 = vadd.f32 %v2994, %v2013
        %v3059 = vadd.f32 %v2995, %v2014
        %v3060 = vadd.f32 %v2996, %v2015
        %v3061 = vadd.f32 %v2997, %v2016
        %v3062 = vadd.f32 %v2998, %v2017
        %v3063 = vadd.f32 %v2999, %v2018
        %v3064 = vadd.f32 %v3000, %v2019
        %v3065 = vadd.f32 %v3001, %v2020
        %v3066 = vadd.f32 %v3002, %v2021
        %v3067 = vadd.f32 %v3003, %v2022
        %v3068 = vadd.f32 %v3004, %v2023
        %v3069 = vadd.f32 %v3005, %v2024
        %v3070 = vadd.f32 %v3006, %v2025
        %v3071 = vadd.f32 %v3007, %v2026
        %v3072 = vadd.f32 %v3008, %v2027
        %v3073 = vadd.f32 %v3009, %v2012
        %v3074 = vadd.f32 %v3010, %v2013
        %v3075 = vadd.f32 %v3011, %v2014
        %v3076 = vadd.f32 %v3012, %v2015
        %v3077 = vadd.f32 %v3013, %v2016
        %v3078 = vadd.f32 %v3014, %v2017
        %v3079 = vadd.f32 %v3015, %v2018
        %v3080 = vadd.f32 %v3016, %v2019
        %v3081 = vadd.f32 %v3017, %v2020
        %v3082 = vadd.f32 %v3018, %v2021
        %v3083 = vadd.f32 %v3019, %v2022
        %v3084 = vadd.f32 %v3020, %v2023
        %v3085 = vadd.f32 %v3021, %v2024
        %v3086 = vadd.f32 %v3022, %v2025
        %v3087 = vadd.f32 %v3023, %v2026
        %v3088 = vadd.f32 %v3024, %v2027
        %v3089 = vadd.f32 %v3025, %v2012
        %v3090 = vadd.f32 %v3026, %v2013
        %v3091 = vadd.f32 %v3027, %v2014
        %v3092 = vadd.f32 %v3028, %v2015
        %v3093 = vadd.f32 %v3029, %v2016
        %v3094 = vadd.f32 %v3030, %v2017
        %v3095 = vadd.f32 %v3031, %v2018
        %v3096 = vadd.f32 %v3032, %v2019
        %v3097 = vadd.f32 %v3033, %v2020
        %v3098 = vadd.f32 %v3034, %v2021
        %v3099 = vadd.f32 %v3035, %v2022
        %v3100 = vadd.f32 %v3036, %v2023
        %v3101 = vadd.f32 %v3037, %v2024
        %v3102 = vadd.f32 %v3038, %v2025
        %v3103 = vadd.f32 %v3039, %v2026
        %v3104 = vadd.f32 %v3040, %v2027
        %v3105 = vadd.f32 %v3041, %v2012
        %v3106 = vadd.f32 %v3042, %v2013
        %v3107 = vadd.f32 %v3043, %v2014
        %v3108 = vadd.f32 %v3044, %v2015
        %v3109 = vadd.f32 %v3045, %v2016
        %v3110 = vadd.f32 %v3046, %v2017
        %v3111 = vadd.f32 %v3047, %v2018
        %v3112 = vadd.f32 %v3048, %v2019
        %v3113 = vadd.f32 %v3049, %v2020
        %v3114 = vadd.f32 %v3050, %v2021
        %v3115 = vadd.f32 %v3051, %v2022
        %v3116 = vadd.f32 %v3052, %v2023
        %v3117 = vadd.f32 %v3053, %v2024
        %v3118 = vadd.f32 %v3054, %v2025
        %v3119 = vadd.f32 %v3055, %v2026
        %v3120 = vadd.f32 %v3056, %v2027
        %v3121 = vld [vmem:[#allocation2] sm:$0xff]
        %v3122 = vld [vmem:[#allocation2 + $0x8] sm:$0xff]
        %v3123 = vld [vmem:[#allocation2 + $0x10] sm:$0xff]
        %v3124 = vld [vmem:[#allocation2 + $0x18] sm:$0xff]
        %v3125 = vld [vmem:[#allocation2 + $0x20] sm:$0xff]
        %v3126 = vld [vmem:[#allocation2 + $0x28] sm:$0xff]
        %v3127 = vld [vmem:[#allocation2 + $0x30] sm:$0xff]
        %v3128 = vld [vmem:[#allocation2 + $0x38] sm:$0xff]
        %v3129 = vld [vmem:[#allocation2 + $0x40] sm:$0xff]
        %v3130 = vld [vmem:[#allocation2 + $0x48] sm:$0xff]
        %v3131 = vld [vmem:[#allocation2 + $0x50] sm:$0xff]
        %v3132 = vld [vmem:[#allocation2 + $0x58] sm:$0xff]
        %v3133 = vld [vmem:[#allocation2 + $0x60] sm:$0xff]
        %v3134 = vld [vmem:[#allocation2 + $0x68] sm:$0xff]
        %v3135 = vld [vmem:[#allocation2 + $0x70] sm:$0xff]
        %v3136 = vld [vmem:[#allocation2 + $0x78] sm:$0xff]
        %v3137 = vld [vmem:[#allocation2 + $0x80] sm:$0xff]
        %v3138 = vld [vmem:[#allocation2 + $0x88] sm:$0xff]
        %v3139 = vld [vmem:[#allocation2 + $0x90] sm:$0xff]
        %v3140 = vld [vmem:[#allocation2 + $0x98] sm:$0xff]
        %v3141 = vld [vmem:[#allocation2 + $0xa0] sm:$0xff]
        %v3142 = vld [vmem:[#allocation2 + $0xa8] sm:$0xff]
        %v3143 = vld [vmem:[#allocation2 + $0xb0] sm:$0xff]
        %v3144 = vld [vmem:[#allocation2 + $0xb8] sm:$0xff]
        %v3145 = vld [vmem:[#allocation2 + $0xc0] sm:$0xff]
        %v3146 = vld [vmem:[#allocation2 + $0xc8] sm:$0xff]
        %v3147 = vld [vmem:[#allocation2 + $0xd0] sm:$0xff]
        %v3148 = vld [vmem:[#allocation2 + $0xd8] sm:$0xff]
        %v3149 = vld [vmem:[#allocation2 + $0xe0] sm:$0xff]
        %v3150 = vld [vmem:[#allocation2 + $0xe8] sm:$0xff]
        %v3151 = vld [vmem:[#allocation2 + $0xf0] sm:$0xff]
        %v3152 = vld [vmem:[#allocation2 + $0xf8] sm:$0xff]
        %v3153 = vld [vmem:[#allocation2 + $0x100] sm:$0xff]
        %v3154 = vld [vmem:[#allocation2 + $0x108] sm:$0xff]
        %v3155 = vld [vmem:[#allocation2 + $0x110] sm:$0xff]
        %v3156 = vld [vmem:[#allocation2 + $0x118] sm:$0xff]
        %v3157 = vld [vmem:[#allocation2 + $0x120] sm:$0xff]
        %v3158 = vld [vmem:[#allocation2 + $0x128] sm:$0xff]
        %v3159 = vld [vmem:[#allocation2 + $0x130] sm:$0xff]
        %v3160 = vld [vmem:[#allocation2 + $0x138] sm:$0xff]
        %v3161 = vld [vmem:[#allocation2 + $0x140] sm:$0xff]
        %v3162 = vld [vmem:[#allocation2 + $0x148] sm:$0xff]
        %v3163 = vld [vmem:[#allocation2 + $0x150] sm:$0xff]
        %v3164 = vld [vmem:[#allocation2 + $0x158] sm:$0xff]
        %v3165 = vld [vmem:[#allocation2 + $0x160] sm:$0xff]
        %v3166 = vld [vmem:[#allocation2 + $0x168] sm:$0xff]
        %v3167 = vld [vmem:[#allocation2 + $0x170] sm:$0xff]
        %v3168 = vld [vmem:[#allocation2 + $0x178] sm:$0xff]
        %v3169 = vld [vmem:[#allocation2 + $0x180] sm:$0xff]
        %v3170 = vld [vmem:[#allocation2 + $0x188] sm:$0xff]
        %v3171 = vld [vmem:[#allocation2 + $0x190] sm:$0xff]
        %v3172 = vld [vmem:[#allocation2 + $0x198] sm:$0xff]
        %v3173 = vld [vmem:[#allocation2 + $0x1a0] sm:$0xff]
        %v3174 = vld [vmem:[#allocation2 + $0x1a8] sm:$0xff]
        %v3175 = vld [vmem:[#allocation2 + $0x1b0] sm:$0xff]
        %v3176 = vld [vmem:[#allocation2 + $0x1b8] sm:$0xff]
        %v3177 = vld [vmem:[#allocation2 + $0x1c0] sm:$0xff]
        %v3178 = vld [vmem:[#allocation2 + $0x1c8] sm:$0xff]
        %v3179 = vld [vmem:[#allocation2 + $0x1d0] sm:$0xff]
        %v3180 = vld [vmem:[#allocation2 + $0x1d8] sm:$0xff]
        %v3181 = vld [vmem:[#allocation2 + $0x1e0] sm:$0xff]
        %v3182 = vld [vmem:[#allocation2 + $0x1e8] sm:$0xff]
        %v3183 = vld [vmem:[#allocation2 + $0x1f0] sm:$0xff]
        %v3184 = vld [vmem:[#allocation2 + $0x1f8] sm:$0xff]
        %3185 = vmax.xlane.f32.xlu0 %v3057
        %v3186 = vpop.xlane.xlu0 %3185
        %3187 = vmax.xlane.f32.xlu0 %v3058
        %v3188 = vpop.xlane.xlu0 %3187
        %3189 = vmax.xlane.f32.xlu0 %v3059
        %v3190 = vpop.xlane.xlu0 %3189
        %3191 = vmax.xlane.f32.xlu0 %v3060
        %v3192 = vpop.xlane.xlu0 %3191
        %3193 = vmax.xlane.f32.xlu0 %v3061
        %v3194 = vpop.xlane.xlu0 %3193
        %3195 = vmax.xlane.f32.xlu0 %v3062
        %v3196 = vpop.xlane.xlu0 %3195
        %3197 = vmax.xlane.f32.xlu0 %v3063
        %v3198 = vpop.xlane.xlu0 %3197
        %3199 = vmax.xlane.f32.xlu0 %v3064
        %v3200 = vpop.xlane.xlu0 %3199
        %3201 = vmax.xlane.f32.xlu0 %v3065
        %v3202 = vpop.xlane.xlu0 %3201
        %3203 = vmax.xlane.f32.xlu0 %v3066
        %v3204 = vpop.xlane.xlu0 %3203
        %3205 = vmax.xlane.f32.xlu0 %v3067
        %v3206 = vpop.xlane.xlu0 %3205
        %3207 = vmax.xlane.f32.xlu0 %v3068
        %v3208 = vpop.xlane.xlu0 %3207
        %3209 = vmax.xlane.f32.xlu0 %v3069
        %v3210 = vpop.xlane.xlu0 %3209
        %3211 = vmax.xlane.f32.xlu0 %v3070
        %v3212 = vpop.xlane.xlu0 %3211
        %3213 = vmax.xlane.f32.xlu0 %v3071
        %v3214 = vpop.xlane.xlu0 %3213
        %3215 = vmax.xlane.f32.xlu0 %v3072
        %v3216 = vpop.xlane.xlu0 %3215
        %3217 = vmax.xlane.f32.xlu0 %v3073
        %v3218 = vpop.xlane.xlu0 %3217
        %3219 = vmax.xlane.f32.xlu0 %v3074
        %v3220 = vpop.xlane.xlu0 %3219
        %3221 = vmax.xlane.f32.xlu0 %v3075
        %v3222 = vpop.xlane.xlu0 %3221
        %3223 = vmax.xlane.f32.xlu0 %v3076
        %v3224 = vpop.xlane.xlu0 %3223
        %3225 = vmax.xlane.f32.xlu0 %v3077
        %v3226 = vpop.xlane.xlu0 %3225
        %3227 = vmax.xlane.f32.xlu0 %v3078
        %v3228 = vpop.xlane.xlu0 %3227
        %3229 = vmax.xlane.f32.xlu0 %v3079
        %v3230 = vpop.xlane.xlu0 %3229
        %3231 = vmax.xlane.f32.xlu0 %v3080
        %v3232 = vpop.xlane.xlu0 %3231
        %3233 = vmax.xlane.f32.xlu0 %v3081
        %v3234 = vpop.xlane.xlu0 %3233
        %3235 = vmax.xlane.f32.xlu0 %v3082
        %v3236 = vpop.xlane.xlu0 %3235
        %3237 = vmax.xlane.f32.xlu0 %v3083
        %v3238 = vpop.xlane.xlu0 %3237
        %3239 = vmax.xlane.f32.xlu0 %v3084
        %v3240 = vpop.xlane.xlu0 %3239
        %3241 = vmax.xlane.f32.xlu0 %v3085
        %v3242 = vpop.xlane.xlu0 %3241
        %3243 = vmax.xlane.f32.xlu0 %v3086
        %v3244 = vpop.xlane.xlu0 %3243
        %3245 = vmax.xlane.f32.xlu0 %v3087
        %v3246 = vpop.xlane.xlu0 %3245
        %3247 = vmax.xlane.f32.xlu0 %v3088
        %v3248 = vpop.xlane.xlu0 %3247
        %3249 = vmax.xlane.f32.xlu0 %v3089
        %v3250 = vpop.xlane.xlu0 %3249
        %3251 = vmax.xlane.f32.xlu0 %v3090
        %v3252 = vpop.xlane.xlu0 %3251
        %3253 = vmax.xlane.f32.xlu0 %v3091
        %v3254 = vpop.xlane.xlu0 %3253
        %3255 = vmax.xlane.f32.xlu0 %v3092
        %v3256 = vpop.xlane.xlu0 %3255
        %3257 = vmax.xlane.f32.xlu0 %v3093
        %v3258 = vpop.xlane.xlu0 %3257
        %3259 = vmax.xlane.f32.xlu0 %v3094
        %v3260 = vpop.xlane.xlu0 %3259
        %3261 = vmax.xlane.f32.xlu0 %v3095
        %v3262 = vpop.xlane.xlu0 %3261
        %3263 = vmax.xlane.f32.xlu0 %v3096
        %v3264 = vpop.xlane.xlu0 %3263
        %3265 = vmax.xlane.f32.xlu0 %v3097
        %v3266 = vpop.xlane.xlu0 %3265
        %3267 = vmax.xlane.f32.xlu0 %v3098
        %v3268 = vpop.xlane.xlu0 %3267
        %3269 = vmax.xlane.f32.xlu0 %v3099
        %v3270 = vpop.xlane.xlu0 %3269
        %3271 = vmax.xlane.f32.xlu0 %v3100
        %v3272 = vpop.xlane.xlu0 %3271
        %3273 = vmax.xlane.f32.xlu0 %v3101
        %v3274 = vpop.xlane.xlu0 %3273
        %3275 = vmax.xlane.f32.xlu0 %v3102
        %v3276 = vpop.xlane.xlu0 %3275
        %3277 = vmax.xlane.f32.xlu0 %v3103
        %v3278 = vpop.xlane.xlu0 %3277
        %3279 = vmax.xlane.f32.xlu0 %v3104
        %v3280 = vpop.xlane.xlu0 %3279
        %3281 = vmax.xlane.f32.xlu0 %v3105
        %v3282 = vpop.xlane.xlu0 %3281
        %3283 = vmax.xlane.f32.xlu0 %v3106
        %v3284 = vpop.xlane.xlu0 %3283
        %3285 = vmax.xlane.f32.xlu0 %v3107
        %v3286 = vpop.xlane.xlu0 %3285
        %3287 = vmax.xlane.f32.xlu0 %v3108
        %v3288 = vpop.xlane.xlu0 %3287
        %3289 = vmax.xlane.f32.xlu0 %v3109
        %v3290 = vpop.xlane.xlu0 %3289
        %3291 = vmax.xlane.f32.xlu0 %v3110
        %v3292 = vpop.xlane.xlu0 %3291
        %3293 = vmax.xlane.f32.xlu0 %v3111
        %v3294 = vpop.xlane.xlu0 %3293
        %3295 = vmax.xlane.f32.xlu0 %v3112
        %v3296 = vpop.xlane.xlu0 %3295
        %3297 = vmax.xlane.f32.xlu0 %v3113
        %v3298 = vpop.xlane.xlu0 %3297
        %3299 = vmax.xlane.f32.xlu0 %v3114
        %v3300 = vpop.xlane.xlu0 %3299
        %3301 = vmax.xlane.f32.xlu0 %v3115
        %v3302 = vpop.xlane.xlu0 %3301
        %3303 = vmax.xlane.f32.xlu0 %v3116
        %v3304 = vpop.xlane.xlu0 %3303
        %3305 = vmax.xlane.f32.xlu0 %v3117
        %v3306 = vpop.xlane.xlu0 %3305
        %3307 = vmax.xlane.f32.xlu0 %v3118
        %v3308 = vpop.xlane.xlu0 %3307
        %3309 = vmax.xlane.f32.xlu0 %v3119
        %v3310 = vpop.xlane.xlu0 %3309
        %3311 = vmax.xlane.f32.xlu0 %v3120
        %v3312 = vpop.xlane.xlu0 %3311
        %v3313 = vmax.f32 %v3121, %v3186
        %v3314 = vmax.f32 %v3122, %v3188
        %v3315 = vmax.f32 %v3123, %v3190
        %v3316 = vmax.f32 %v3124, %v3192
        %v3317 = vmax.f32 %v3125, %v3194
        %v3318 = vmax.f32 %v3126, %v3196
        %v3319 = vmax.f32 %v3127, %v3198
        %v3320 = vmax.f32 %v3128, %v3200
        %v3321 = vmax.f32 %v3129, %v3202
        %v3322 = vmax.f32 %v3130, %v3204
        %v3323 = vmax.f32 %v3131, %v3206
        %v3324 = vmax.f32 %v3132, %v3208
        %v3325 = vmax.f32 %v3133, %v3210
        %v3326 = vmax.f32 %v3134, %v3212
        %v3327 = vmax.f32 %v3135, %v3214
        %v3328 = vmax.f32 %v3136, %v3216
        %v3329 = vmax.f32 %v3137, %v3218
        %v3330 = vmax.f32 %v3138, %v3220
        %v3331 = vmax.f32 %v3139, %v3222
        %v3332 = vmax.f32 %v3140, %v3224
        %v3333 = vmax.f32 %v3141, %v3226
        %v3334 = vmax.f32 %v3142, %v3228
        %v3335 = vmax.f32 %v3143, %v3230
        %v3336 = vmax.f32 %v3144, %v3232
        %v3337 = vmax.f32 %v3145, %v3234
        %v3338 = vmax.f32 %v3146, %v3236
        %v3339 = vmax.f32 %v3147, %v3238
        %v3340 = vmax.f32 %v3148, %v3240
        %v3341 = vmax.f32 %v3149, %v3242
        %v3342 = vmax.f32 %v3150, %v3244
        %v3343 = vmax.f32 %v3151, %v3246
        %v3344 = vmax.f32 %v3152, %v3248
        %v3345 = vmax.f32 %v3153, %v3250
        %v3346 = vmax.f32 %v3154, %v3252
        %v3347 = vmax.f32 %v3155, %v3254
        %v3348 = vmax.f32 %v3156, %v3256
        %v3349 = vmax.f32 %v3157, %v3258
        %v3350 = vmax.f32 %v3158, %v3260
        %v3351 = vmax.f32 %v3159, %v3262
        %v3352 = vmax.f32 %v3160, %v3264
        %v3353 = vmax.f32 %v3161, %v3266
        %v3354 = vmax.f32 %v3162, %v3268
        %v3355 = vmax.f32 %v3163, %v3270
        %v3356 = vmax.f32 %v3164, %v3272
        %v3357 = vmax.f32 %v3165, %v3274
        %v3358 = vmax.f32 %v3166, %v3276
        %v3359 = vmax.f32 %v3167, %v3278
        %v3360 = vmax.f32 %v3168, %v3280
        %v3361 = vmax.f32 %v3169, %v3282
        %v3362 = vmax.f32 %v3170, %v3284
        %v3363 = vmax.f32 %v3171, %v3286
        %v3364 = vmax.f32 %v3172, %v3288
        %v3365 = vmax.f32 %v3173, %v3290
        %v3366 = vmax.f32 %v3174, %v3292
        %v3367 = vmax.f32 %v3175, %v3294
        %v3368 = vmax.f32 %v3176, %v3296
        %v3369 = vmax.f32 %v3177, %v3298
        %v3370 = vmax.f32 %v3178, %v3300
        %v3371 = vmax.f32 %v3179, %v3302
        %v3372 = vmax.f32 %v3180, %v3304
        %v3373 = vmax.f32 %v3181, %v3306
        %v3374 = vmax.f32 %v3182, %v3308
        %v3375 = vmax.f32 %v3183, %v3310
        %v3376 = vmax.f32 %v3184, %v3312
        %v3377 = vsub.f32 %v3121, %v3313
        %v3378 = vsub.f32 %v3122, %v3314
        %v3379 = vsub.f32 %v3123, %v3315
        %v3380 = vsub.f32 %v3124, %v3316
        %v3381 = vsub.f32 %v3125, %v3317
        %v3382 = vsub.f32 %v3126, %v3318
        %v3383 = vsub.f32 %v3127, %v3319
        %v3384 = vsub.f32 %v3128, %v3320
        %v3385 = vsub.f32 %v3129, %v3321
        %v3386 = vsub.f32 %v3130, %v3322
        %v3387 = vsub.f32 %v3131, %v3323
        %v3388 = vsub.f32 %v3132, %v3324
        %v3389 = vsub.f32 %v3133, %v3325
        %v3390 = vsub.f32 %v3134, %v3326
        %v3391 = vsub.f32 %v3135, %v3327
        %v3392 = vsub.f32 %v3136, %v3328
        %v3393 = vsub.f32 %v3137, %v3329
        %v3394 = vsub.f32 %v3138, %v3330
        %v3395 = vsub.f32 %v3139, %v3331
        %v3396 = vsub.f32 %v3140, %v3332
        %v3397 = vsub.f32 %v3141, %v3333
        %v3398 = vsub.f32 %v3142, %v3334
        %v3399 = vsub.f32 %v3143, %v3335
        %v3400 = vsub.f32 %v3144, %v3336
        %v3401 = vsub.f32 %v3145, %v3337
        %v3402 = vsub.f32 %v3146, %v3338
        %v3403 = vsub.f32 %v3147, %v3339
        %v3404 = vsub.f32 %v3148, %v3340
        %v3405 = vsub.f32 %v3149, %v3341
        %v3406 = vsub.f32 %v3150, %v3342
        %v3407 = vsub.f32 %v3151, %v3343
        %v3408 = vsub.f32 %v3152, %v3344
        %v3409 = vsub.f32 %v3153, %v3345
        %v3410 = vsub.f32 %v3154, %v3346
        %v3411 = vsub.f32 %v3155, %v3347
        %v3412 = vsub.f32 %v3156, %v3348
        %v3413 = vsub.f32 %v3157, %v3349
        %v3414 = vsub.f32 %v3158, %v3350
        %v3415 = vsub.f32 %v3159, %v3351
        %v3416 = vsub.f32 %v3160, %v3352
        %v3417 = vsub.f32 %v3161, %v3353
        %v3418 = vsub.f32 %v3162, %v3354
        %v3419 = vsub.f32 %v3163, %v3355
        %v3420 = vsub.f32 %v3164, %v3356
        %v3421 = vsub.f32 %v3165, %v3357
        %v3422 = vsub.f32 %v3166, %v3358
        %v3423 = vsub.f32 %v3167, %v3359
        %v3424 = vsub.f32 %v3168, %v3360
        %v3425 = vsub.f32 %v3169, %v3361
        %v3426 = vsub.f32 %v3170, %v3362
        %v3427 = vsub.f32 %v3171, %v3363
        %v3428 = vsub.f32 %v3172, %v3364
        %v3429 = vsub.f32 %v3173, %v3365
        %v3430 = vsub.f32 %v3174, %v3366
        %v3431 = vsub.f32 %v3175, %v3367
        %v3432 = vsub.f32 %v3176, %v3368
        %v3433 = vsub.f32 %v3177, %v3369
        %v3434 = vsub.f32 %v3178, %v3370
        %v3435 = vsub.f32 %v3179, %v3371
        %v3436 = vsub.f32 %v3180, %v3372
        %v3437 = vsub.f32 %v3181, %v3373
        %v3438 = vsub.f32 %v3182, %v3374
        %v3439 = vsub.f32 %v3183, %v3375
        %v3440 = vsub.f32 %v3184, %v3376
        %v3441 = vmul.f32 %v3377, 1.442695
        %v3442 = vpow.pop %v3441
        %v3443 = vmul.f32 %v3378, 1.442695
        %v3444 = vpow.pop %v3443
        %v3445 = vmul.f32 %v3379, 1.442695
        %v3446 = vpow.pop %v3445
        %v3447 = vmul.f32 %v3380, 1.442695
        %v3448 = vpow.pop %v3447
        %v3449 = vmul.f32 %v3381, 1.442695
        %v3450 = vpow.pop %v3449
        %v3451 = vmul.f32 %v3382, 1.442695
        %v3452 = vpow.pop %v3451
        %v3453 = vmul.f32 %v3383, 1.442695
        %v3454 = vpow.pop %v3453
        %v3455 = vmul.f32 %v3384, 1.442695
        %v3456 = vpow.pop %v3455
        %v3457 = vmul.f32 %v3385, 1.442695
        %v3458 = vpow.pop %v3457
        %v3459 = vmul.f32 %v3386, 1.442695
        %v3460 = vpow.pop %v3459
        %v3461 = vmul.f32 %v3387, 1.442695
        %v3462 = vpow.pop %v3461
        %v3463 = vmul.f32 %v3388, 1.442695
        %v3464 = vpow.pop %v3463
        %v3465 = vmul.f32 %v3389, 1.442695
        %v3466 = vpow.pop %v3465
        %v3467 = vmul.f32 %v3390, 1.442695
        %v3468 = vpow.pop %v3467
        %v3469 = vmul.f32 %v3391, 1.442695
        %v3470 = vpow.pop %v3469
        %v3471 = vmul.f32 %v3392, 1.442695
        %v3472 = vpow.pop %v3471
        %v3473 = vmul.f32 %v3393, 1.442695
        %v3474 = vpow.pop %v3473
        %v3475 = vmul.f32 %v3394, 1.442695
        %v3476 = vpow.pop %v3475
        %v3477 = vmul.f32 %v3395, 1.442695
        %v3478 = vpow.pop %v3477
        %v3479 = vmul.f32 %v3396, 1.442695
        %v3480 = vpow.pop %v3479
        %v3481 = vmul.f32 %v3397, 1.442695
        %v3482 = vpow.pop %v3481
        %v3483 = vmul.f32 %v3398, 1.442695
        %v3484 = vpow.pop %v3483
        %v3485 = vmul.f32 %v3399, 1.442695
        %v3486 = vpow.pop %v3485
        %v3487 = vmul.f32 %v3400, 1.442695
        %v3488 = vpow.pop %v3487
        %v3489 = vmul.f32 %v3401, 1.442695
        %v3490 = vpow.pop %v3489
        %v3491 = vmul.f32 %v3402, 1.442695
        %v3492 = vpow.pop %v3491
        %v3493 = vmul.f32 %v3403, 1.442695
        %v3494 = vpow.pop %v3493
        %v3495 = vmul.f32 %v3404, 1.442695
        %v3496 = vpow.pop %v3495
        %v3497 = vmul.f32 %v3405, 1.442695
        %v3498 = vpow.pop %v3497
        %v3499 = vmul.f32 %v3406, 1.442695
        %v3500 = vpow.pop %v3499
        %v3501 = vmul.f32 %v3407, 1.442695
        %v3502 = vpow.pop %v3501
        %v3503 = vmul.f32 %v3408, 1.442695
        %v3504 = vpow.pop %v3503
        %v3505 = vmul.f32 %v3409, 1.442695
        %v3506 = vpow.pop %v3505
        %v3507 = vmul.f32 %v3410, 1.442695
        %v3508 = vpow.pop %v3507
        %v3509 = vmul.f32 %v3411, 1.442695
        %v3510 = vpow.pop %v3509
        %v3511 = vmul.f32 %v3412, 1.442695
        %v3512 = vpow.pop %v3511
        %v3513 = vmul.f32 %v3413, 1.442695
        %v3514 = vpow.pop %v3513
        %v3515 = vmul.f32 %v3414, 1.442695
        %v3516 = vpow.pop %v3515
        %v3517 = vmul.f32 %v3415, 1.442695
        %v3518 = vpow.pop %v3517
        %v3519 = vmul.f32 %v3416, 1.442695
        %v3520 = vpow.pop %v3519
        %v3521 = vmul.f32 %v3417, 1.442695
        %v3522 = vpow.pop %v3521
        %v3523 = vmul.f32 %v3418, 1.442695
        %v3524 = vpow.pop %v3523
        %v3525 = vmul.f32 %v3419, 1.442695
        %v3526 = vpow.pop %v3525
        %v3527 = vmul.f32 %v3420, 1.442695
        %v3528 = vpow.pop %v3527
        %v3529 = vmul.f32 %v3421, 1.442695
        %v3530 = vpow.pop %v3529
        %v3531 = vmul.f32 %v3422, 1.442695
        %v3532 = vpow.pop %v3531
        %v3533 = vmul.f32 %v3423, 1.442695
        %v3534 = vpow.pop %v3533
        %v3535 = vmul.f32 %v3424, 1.442695
        %v3536 = vpow.pop %v3535
        %v3537 = vmul.f32 %v3425, 1.442695
        %v3538 = vpow.pop %v3537
        %v3539 = vmul.f32 %v3426, 1.442695
        %v3540 = vpow.pop %v3539
        %v3541 = vmul.f32 %v3427, 1.442695
        %v3542 = vpow.pop %v3541
        %v3543 = vmul.f32 %v3428, 1.442695
        %v3544 = vpow.pop %v3543
        %v3545 = vmul.f32 %v3429, 1.442695
        %v3546 = vpow.pop %v3545
        %v3547 = vmul.f32 %v3430, 1.442695
        %v3548 = vpow.pop %v3547
        %v3549 = vmul.f32 %v3431, 1.442695
        %v3550 = vpow.pop %v3549
        %v3551 = vmul.f32 %v3432, 1.442695
        %v3552 = vpow.pop %v3551
        %v3553 = vmul.f32 %v3433, 1.442695
        %v3554 = vpow.pop %v3553
        %v3555 = vmul.f32 %v3434, 1.442695
        %v3556 = vpow.pop %v3555
        %v3557 = vmul.f32 %v3435, 1.442695
        %v3558 = vpow.pop %v3557
        %v3559 = vmul.f32 %v3436, 1.442695
        %v3560 = vpow.pop %v3559
        %v3561 = vmul.f32 %v3437, 1.442695
        %v3562 = vpow.pop %v3561
        %v3563 = vmul.f32 %v3438, 1.442695
        %v3564 = vpow.pop %v3563
        %v3565 = vmul.f32 %v3439, 1.442695
        %v3566 = vpow.pop %v3565
        %v3567 = vmul.f32 %v3440, 1.442695
        %v3568 = vpow.pop %v3567
        %3570 = vset.pattern.permute.xlu0 0
        %3571 = vperm.xlu0 %3570, %v3313
        %v3572 = vpop.permute.xlu0 %3571
        %3575 = vset.pattern.permute.xlu0 0
        %3576 = vperm.xlu0 %3575, %v3314
        %v3577 = vpop.permute.xlu0 %3576
        %3580 = vset.pattern.permute.xlu0 0
        %3581 = vperm.xlu0 %3580, %v3315
        %v3582 = vpop.permute.xlu0 %3581
        %3585 = vset.pattern.permute.xlu0 0
        %3586 = vperm.xlu0 %3585, %v3316
        %v3587 = vpop.permute.xlu0 %3586
        %3590 = vset.pattern.permute.xlu0 0
        %3591 = vperm.xlu0 %3590, %v3317
        %v3592 = vpop.permute.xlu0 %3591
        %3595 = vset.pattern.permute.xlu0 0
        %3596 = vperm.xlu0 %3595, %v3318
        %v3597 = vpop.permute.xlu0 %3596
        %3600 = vset.pattern.permute.xlu0 0
        %3601 = vperm.xlu0 %3600, %v3319
        %v3602 = vpop.permute.xlu0 %3601
        %3605 = vset.pattern.permute.xlu0 0
        %3606 = vperm.xlu0 %3605, %v3320
        %v3607 = vpop.permute.xlu0 %3606
        %3610 = vset.pattern.permute.xlu0 0
        %3611 = vperm.xlu0 %3610, %v3321
        %v3612 = vpop.permute.xlu0 %3611
        %3615 = vset.pattern.permute.xlu0 0
        %3616 = vperm.xlu0 %3615, %v3322
        %v3617 = vpop.permute.xlu0 %3616
        %3620 = vset.pattern.permute.xlu0 0
        %3621 = vperm.xlu0 %3620, %v3323
        %v3622 = vpop.permute.xlu0 %3621
        %3625 = vset.pattern.permute.xlu0 0
        %3626 = vperm.xlu0 %3625, %v3324
        %v3627 = vpop.permute.xlu0 %3626
        %3630 = vset.pattern.permute.xlu0 0
        %3631 = vperm.xlu0 %3630, %v3325
        %v3632 = vpop.permute.xlu0 %3631
        %3635 = vset.pattern.permute.xlu0 0
        %3636 = vperm.xlu0 %3635, %v3326
        %v3637 = vpop.permute.xlu0 %3636
        %3640 = vset.pattern.permute.xlu0 0
        %3641 = vperm.xlu0 %3640, %v3327
        %v3642 = vpop.permute.xlu0 %3641
        %3645 = vset.pattern.permute.xlu0 0
        %3646 = vperm.xlu0 %3645, %v3328
        %v3647 = vpop.permute.xlu0 %3646
        %3650 = vset.pattern.permute.xlu0 0
        %3651 = vperm.xlu0 %3650, %v3329
        %v3652 = vpop.permute.xlu0 %3651
        %3655 = vset.pattern.permute.xlu0 0
        %3656 = vperm.xlu0 %3655, %v3330
        %v3657 = vpop.permute.xlu0 %3656
        %3660 = vset.pattern.permute.xlu0 0
        %3661 = vperm.xlu0 %3660, %v3331
        %v3662 = vpop.permute.xlu0 %3661
        %3665 = vset.pattern.permute.xlu0 0
        %3666 = vperm.xlu0 %3665, %v3332
        %v3667 = vpop.permute.xlu0 %3666
        %3670 = vset.pattern.permute.xlu0 0
        %3671 = vperm.xlu0 %3670, %v3333
        %v3672 = vpop.permute.xlu0 %3671
        %3675 = vset.pattern.permute.xlu0 0
        %3676 = vperm.xlu0 %3675, %v3334
        %v3677 = vpop.permute.xlu0 %3676
        %3680 = vset.pattern.permute.xlu0 0
        %3681 = vperm.xlu0 %3680, %v3335
        %v3682 = vpop.permute.xlu0 %3681
        %3685 = vset.pattern.permute.xlu0 0
        %3686 = vperm.xlu0 %3685, %v3336
        %v3687 = vpop.permute.xlu0 %3686
        %3690 = vset.pattern.permute.xlu0 0
        %3691 = vperm.xlu0 %3690, %v3337
        %v3692 = vpop.permute.xlu0 %3691
        %3695 = vset.pattern.permute.xlu0 0
        %3696 = vperm.xlu0 %3695, %v3338
        %v3697 = vpop.permute.xlu0 %3696
        %3700 = vset.pattern.permute.xlu0 0
        %3701 = vperm.xlu0 %3700, %v3339
        %v3702 = vpop.permute.xlu0 %3701
        %3705 = vset.pattern.permute.xlu0 0
        %3706 = vperm.xlu0 %3705, %v3340
        %v3707 = vpop.permute.xlu0 %3706
        %3710 = vset.pattern.permute.xlu0 0
        %3711 = vperm.xlu0 %3710, %v3341
        %v3712 = vpop.permute.xlu0 %3711
        %3715 = vset.pattern.permute.xlu0 0
        %3716 = vperm.xlu0 %3715, %v3342
        %v3717 = vpop.permute.xlu0 %3716
        %3720 = vset.pattern.permute.xlu0 0
        %3721 = vperm.xlu0 %3720, %v3343
        %v3722 = vpop.permute.xlu0 %3721
        %3725 = vset.pattern.permute.xlu0 0
        %3726 = vperm.xlu0 %3725, %v3344
        %v3727 = vpop.permute.xlu0 %3726
        %3730 = vset.pattern.permute.xlu0 0
        %3731 = vperm.xlu0 %3730, %v3345
        %v3732 = vpop.permute.xlu0 %3731
        %3735 = vset.pattern.permute.xlu0 0
        %3736 = vperm.xlu0 %3735, %v3346
        %v3737 = vpop.permute.xlu0 %3736
        %3740 = vset.pattern.permute.xlu0 0
        %3741 = vperm.xlu0 %3740, %v3347
        %v3742 = vpop.permute.xlu0 %3741
        %3745 = vset.pattern.permute.xlu0 0
        %3746 = vperm.xlu0 %3745, %v3348
        %v3747 = vpop.permute.xlu0 %3746
        %3750 = vset.pattern.permute.xlu0 0
        %3751 = vperm.xlu0 %3750, %v3349
        %v3752 = vpop.permute.xlu0 %3751
        %3755 = vset.pattern.permute.xlu0 0
        %3756 = vperm.xlu0 %3755, %v3350
        %v3757 = vpop.permute.xlu0 %3756
        %3760 = vset.pattern.permute.xlu0 0
        %3761 = vperm.xlu0 %3760, %v3351
        %v3762 = vpop.permute.xlu0 %3761
        %3765 = vset.pattern.permute.xlu0 0
        %3766 = vperm.xlu0 %3765, %v3352
        %v3767 = vpop.permute.xlu0 %3766
        %3770 = vset.pattern.permute.xlu0 0
        %3771 = vperm.xlu0 %3770, %v3353
        %v3772 = vpop.permute.xlu0 %3771
        %3775 = vset.pattern.permute.xlu0 0
        %3776 = vperm.xlu0 %3775, %v3354
        %v3777 = vpop.permute.xlu0 %3776
        %3780 = vset.pattern.permute.xlu0 0
        %3781 = vperm.xlu0 %3780, %v3355
        %v3782 = vpop.permute.xlu0 %3781
        %3785 = vset.pattern.permute.xlu0 0
        %3786 = vperm.xlu0 %3785, %v3356
        %v3787 = vpop.permute.xlu0 %3786
        %3790 = vset.pattern.permute.xlu0 0
        %3791 = vperm.xlu0 %3790, %v3357
        %v3792 = vpop.permute.xlu0 %3791
        %3795 = vset.pattern.permute.xlu0 0
        %3796 = vperm.xlu0 %3795, %v3358
        %v3797 = vpop.permute.xlu0 %3796
        %3800 = vset.pattern.permute.xlu0 0
        %3801 = vperm.xlu0 %3800, %v3359
        %v3802 = vpop.permute.xlu0 %3801
        %3805 = vset.pattern.permute.xlu0 0
        %3806 = vperm.xlu0 %3805, %v3360
        %v3807 = vpop.permute.xlu0 %3806
        %3810 = vset.pattern.permute.xlu0 0
        %3811 = vperm.xlu0 %3810, %v3361
        %v3812 = vpop.permute.xlu0 %3811
        %3815 = vset.pattern.permute.xlu0 0
        %3816 = vperm.xlu0 %3815, %v3362
        %v3817 = vpop.permute.xlu0 %3816
        %3820 = vset.pattern.permute.xlu0 0
        %3821 = vperm.xlu0 %3820, %v3363
        %v3822 = vpop.permute.xlu0 %3821
        %3825 = vset.pattern.permute.xlu0 0
        %3826 = vperm.xlu0 %3825, %v3364
        %v3827 = vpop.permute.xlu0 %3826
        %3830 = vset.pattern.permute.xlu0 0
        %3831 = vperm.xlu0 %3830, %v3365
        %v3832 = vpop.permute.xlu0 %3831
        %3835 = vset.pattern.permute.xlu0 0
        %3836 = vperm.xlu0 %3835, %v3366
        %v3837 = vpop.permute.xlu0 %3836
        %3840 = vset.pattern.permute.xlu0 0
        %3841 = vperm.xlu0 %3840, %v3367
        %v3842 = vpop.permute.xlu0 %3841
        %3845 = vset.pattern.permute.xlu0 0
        %3846 = vperm.xlu0 %3845, %v3368
        %v3847 = vpop.permute.xlu0 %3846
        %3850 = vset.pattern.permute.xlu0 0
        %3851 = vperm.xlu0 %3850, %v3369
        %v3852 = vpop.permute.xlu0 %3851
        %3855 = vset.pattern.permute.xlu0 0
        %3856 = vperm.xlu0 %3855, %v3370
        %v3857 = vpop.permute.xlu0 %3856
        %3860 = vset.pattern.permute.xlu0 0
        %3861 = vperm.xlu0 %3860, %v3371
        %v3862 = vpop.permute.xlu0 %3861
        %3865 = vset.pattern.permute.xlu0 0
        %3866 = vperm.xlu0 %3865, %v3372
        %v3867 = vpop.permute.xlu0 %3866
        %3870 = vset.pattern.permute.xlu0 0
        %3871 = vperm.xlu0 %3870, %v3373
        %v3872 = vpop.permute.xlu0 %3871
        %3875 = vset.pattern.permute.xlu0 0
        %3876 = vperm.xlu0 %3875, %v3374
        %v3877 = vpop.permute.xlu0 %3876
        %3880 = vset.pattern.permute.xlu0 0
        %3881 = vperm.xlu0 %3880, %v3375
        %v3882 = vpop.permute.xlu0 %3881
        %3885 = vset.pattern.permute.xlu0 0
        %3886 = vperm.xlu0 %3885, %v3376
        %v3887 = vpop.permute.xlu0 %3886
        %v3889 = vsub.f32 %v3057, %v3572
        %v3890 = vsub.f32 %v3058, %v3577
        %v3891 = vsub.f32 %v3059, %v3582
        %v3892 = vsub.f32 %v3060, %v3587
        %v3893 = vsub.f32 %v3061, %v3592
        %v3894 = vsub.f32 %v3062, %v3597
        %v3895 = vsub.f32 %v3063, %v3602
        %v3896 = vsub.f32 %v3064, %v3607
        %v3897 = vsub.f32 %v3065, %v3612
        %v3898 = vsub.f32 %v3066, %v3617
        %v3899 = vsub.f32 %v3067, %v3622
        %v3900 = vsub.f32 %v3068, %v3627
        %v3901 = vsub.f32 %v3069, %v3632
        %v3902 = vsub.f32 %v3070, %v3637
        %v3903 = vsub.f32 %v3071, %v3642
        %v3904 = vsub.f32 %v3072, %v3647
        %v3905 = vsub.f32 %v3073, %v3652
        %v3906 = vsub.f32 %v3074, %v3657
        %v3907 = vsub.f32 %v3075, %v3662
        %v3908 = vsub.f32 %v3076, %v3667
        %v3909 = vsub.f32 %v3077, %v3672
        %v3910 = vsub.f32 %v3078, %v3677
        %v3911 = vsub.f32 %v3079, %v3682
        %v3912 = vsub.f32 %v3080, %v3687
        %v3913 = vsub.f32 %v3081, %v3692
        %v3914 = vsub.f32 %v3082, %v3697
        %v3915 = vsub.f32 %v3083, %v3702
        %v3916 = vsub.f32 %v3084, %v3707
        %v3917 = vsub.f32 %v3085, %v3712
        %v3918 = vsub.f32 %v3086, %v3717
        %v3919 = vsub.f32 %v3087, %v3722
        %v3920 = vsub.f32 %v3088, %v3727
        %v3921 = vsub.f32 %v3089, %v3732
        %v3922 = vsub.f32 %v3090, %v3737
        %v3923 = vsub.f32 %v3091, %v3742
        %v3924 = vsub.f32 %v3092, %v3747
        %v3925 = vsub.f32 %v3093, %v3752
        %v3926 = vsub.f32 %v3094, %v3757
        %v3927 = vsub.f32 %v3095, %v3762
        %v3928 = vsub.f32 %v3096, %v3767
        %v3929 = vsub.f32 %v3097, %v3772
        %v3930 = vsub.f32 %v3098, %v3777
        %v3931 = vsub.f32 %v3099, %v3782
        %v3932 = vsub.f32 %v3100, %v3787
        %v3933 = vsub.f32 %v3101, %v3792
        %v3934 = vsub.f32 %v3102, %v3797
        %v3935 = vsub.f32 %v3103, %v3802
        %v3936 = vsub.f32 %v3104, %v3807
        %v3937 = vsub.f32 %v3105, %v3812
        %v3938 = vsub.f32 %v3106, %v3817
        %v3939 = vsub.f32 %v3107, %v3822
        %v3940 = vsub.f32 %v3108, %v3827
        %v3941 = vsub.f32 %v3109, %v3832
        %v3942 = vsub.f32 %v3110, %v3837
        %v3943 = vsub.f32 %v3111, %v3842
        %v3944 = vsub.f32 %v3112, %v3847
        %v3945 = vsub.f32 %v3113, %v3852
        %v3946 = vsub.f32 %v3114, %v3857
        %v3947 = vsub.f32 %v3115, %v3862
        %v3948 = vsub.f32 %v3116, %v3867
        %v3949 = vsub.f32 %v3117, %v3872
        %v3950 = vsub.f32 %v3118, %v3877
        %v3951 = vsub.f32 %v3119, %v3882
        %v3952 = vsub.f32 %v3120, %v3887
        %v3953 = vmul.f32 %v3889, 1.442695
        %v3954 = vpow.pop %v3953
        %v3955 = vmul.f32 %v3890, 1.442695
        %v3956 = vpow.pop %v3955
        %v3957 = vmul.f32 %v3891, 1.442695
        %v3958 = vpow.pop %v3957
        %v3959 = vmul.f32 %v3892, 1.442695
        %v3960 = vpow.pop %v3959
        %v3961 = vmul.f32 %v3893, 1.442695
        %v3962 = vpow.pop %v3961
        %v3963 = vmul.f32 %v3894, 1.442695
        %v3964 = vpow.pop %v3963
        %v3965 = vmul.f32 %v3895, 1.442695
        %v3966 = vpow.pop %v3965
        %v3967 = vmul.f32 %v3896, 1.442695
        %v3968 = vpow.pop %v3967
        %v3969 = vmul.f32 %v3897, 1.442695
        %v3970 = vpow.pop %v3969
        %v3971 = vmul.f32 %v3898, 1.442695
        %v3972 = vpow.pop %v3971
        %v3973 = vmul.f32 %v3899, 1.442695
        %v3974 = vpow.pop %v3973
        %v3975 = vmul.f32 %v3900, 1.442695
        %v3976 = vpow.pop %v3975
        %v3977 = vmul.f32 %v3901, 1.442695
        %v3978 = vpow.pop %v3977
        %v3979 = vmul.f32 %v3902, 1.442695
        %v3980 = vpow.pop %v3979
        %v3981 = vmul.f32 %v3903, 1.442695
        %v3982 = vpow.pop %v3981
        %v3983 = vmul.f32 %v3904, 1.442695
        %v3984 = vpow.pop %v3983
        %v3985 = vmul.f32 %v3905, 1.442695
        %v3986 = vpow.pop %v3985
        %v3987 = vmul.f32 %v3906, 1.442695
        %v3988 = vpow.pop %v3987
        %v3989 = vmul.f32 %v3907, 1.442695
        %v3990 = vpow.pop %v3989
        %v3991 = vmul.f32 %v3908, 1.442695
        %v3992 = vpow.pop %v3991
        %v3993 = vmul.f32 %v3909, 1.442695
        %v3994 = vpow.pop %v3993
        %v3995 = vmul.f32 %v3910, 1.442695
        %v3996 = vpow.pop %v3995
        %v3997 = vmul.f32 %v3911, 1.442695
        %v3998 = vpow.pop %v3997
        %v3999 = vmul.f32 %v3912, 1.442695
        %v4000 = vpow.pop %v3999
        %v4001 = vmul.f32 %v3913, 1.442695
        %v4002 = vpow.pop %v4001
        %v4003 = vmul.f32 %v3914, 1.442695
        %v4004 = vpow.pop %v4003
        %v4005 = vmul.f32 %v3915, 1.442695
        %v4006 = vpow.pop %v4005
        %v4007 = vmul.f32 %v3916, 1.442695
        %v4008 = vpow.pop %v4007
        %v4009 = vmul.f32 %v3917, 1.442695
        %v4010 = vpow.pop %v4009
        %v4011 = vmul.f32 %v3918, 1.442695
        %v4012 = vpow.pop %v4011
        %v4013 = vmul.f32 %v3919, 1.442695
        %v4014 = vpow.pop %v4013
        %v4015 = vmul.f32 %v3920, 1.442695
        %v4016 = vpow.pop %v4015
        %v4017 = vmul.f32 %v3921, 1.442695
        %v4018 = vpow.pop %v4017
        %v4019 = vmul.f32 %v3922, 1.442695
        %v4020 = vpow.pop %v4019
        %v4021 = vmul.f32 %v3923, 1.442695
        %v4022 = vpow.pop %v4021
        %v4023 = vmul.f32 %v3924, 1.442695
        %v4024 = vpow.pop %v4023
        %v4025 = vmul.f32 %v3925, 1.442695
        %v4026 = vpow.pop %v4025
        %v4027 = vmul.f32 %v3926, 1.442695
        %v4028 = vpow.pop %v4027
        %v4029 = vmul.f32 %v3927, 1.442695
        %v4030 = vpow.pop %v4029
        %v4031 = vmul.f32 %v3928, 1.442695
        %v4032 = vpow.pop %v4031
        %v4033 = vmul.f32 %v3929, 1.442695
        %v4034 = vpow.pop %v4033
        %v4035 = vmul.f32 %v3930, 1.442695
        %v4036 = vpow.pop %v4035
        %v4037 = vmul.f32 %v3931, 1.442695
        %v4038 = vpow.pop %v4037
        %v4039 = vmul.f32 %v3932, 1.442695
        %v4040 = vpow.pop %v4039
        %v4041 = vmul.f32 %v3933, 1.442695
        %v4042 = vpow.pop %v4041
        %v4043 = vmul.f32 %v3934, 1.442695
        %v4044 = vpow.pop %v4043
        %v4045 = vmul.f32 %v3935, 1.442695
        %v4046 = vpow.pop %v4045
        %v4047 = vmul.f32 %v3936, 1.442695
        %v4048 = vpow.pop %v4047
        %v4049 = vmul.f32 %v3937, 1.442695
        %v4050 = vpow.pop %v4049
        %v4051 = vmul.f32 %v3938, 1.442695
        %v4052 = vpow.pop %v4051
        %v4053 = vmul.f32 %v3939, 1.442695
        %v4054 = vpow.pop %v4053
        %v4055 = vmul.f32 %v3940, 1.442695
        %v4056 = vpow.pop %v4055
        %v4057 = vmul.f32 %v3941, 1.442695
        %v4058 = vpow.pop %v4057
        %v4059 = vmul.f32 %v3942, 1.442695
        %v4060 = vpow.pop %v4059
        %v4061 = vmul.f32 %v3943, 1.442695
        %v4062 = vpow.pop %v4061
        %v4063 = vmul.f32 %v3944, 1.442695
        %v4064 = vpow.pop %v4063
        %v4065 = vmul.f32 %v3945, 1.442695
        %v4066 = vpow.pop %v4065
        %v4067 = vmul.f32 %v3946, 1.442695
        %v4068 = vpow.pop %v4067
        %v4069 = vmul.f32 %v3947, 1.442695
        %v4070 = vpow.pop %v4069
        %v4071 = vmul.f32 %v3948, 1.442695
        %v4072 = vpow.pop %v4071
        %v4073 = vmul.f32 %v3949, 1.442695
        %v4074 = vpow.pop %v4073
        %v4075 = vmul.f32 %v3950, 1.442695
        %v4076 = vpow.pop %v4075
        %v4077 = vmul.f32 %v3951, 1.442695
        %v4078 = vpow.pop %v4077
        %v4079 = vmul.f32 %v3952, 1.442695
        %v4080 = vpow.pop %v4079
        %v4081 = vld [vmem:[#allocation3] sm:$0xff]
        %v4082 = vld [vmem:[#allocation3 + $0x8] sm:$0xff]
        %v4083 = vld [vmem:[#allocation3 + $0x10] sm:$0xff]
        %v4084 = vld [vmem:[#allocation3 + $0x18] sm:$0xff]
        %v4085 = vld [vmem:[#allocation3 + $0x20] sm:$0xff]
        %v4086 = vld [vmem:[#allocation3 + $0x28] sm:$0xff]
        %v4087 = vld [vmem:[#allocation3 + $0x30] sm:$0xff]
        %v4088 = vld [vmem:[#allocation3 + $0x38] sm:$0xff]
        %v4089 = vld [vmem:[#allocation3 + $0x40] sm:$0xff]
        %v4090 = vld [vmem:[#allocation3 + $0x48] sm:$0xff]
        %v4091 = vld [vmem:[#allocation3 + $0x50] sm:$0xff]
        %v4092 = vld [vmem:[#allocation3 + $0x58] sm:$0xff]
        %v4093 = vld [vmem:[#allocation3 + $0x60] sm:$0xff]
        %v4094 = vld [vmem:[#allocation3 + $0x68] sm:$0xff]
        %v4095 = vld [vmem:[#allocation3 + $0x70] sm:$0xff]
        %v4096 = vld [vmem:[#allocation3 + $0x78] sm:$0xff]
        %v4097 = vld [vmem:[#allocation3 + $0x80] sm:$0xff]
        %v4098 = vld [vmem:[#allocation3 + $0x88] sm:$0xff]
        %v4099 = vld [vmem:[#allocation3 + $0x90] sm:$0xff]
        %v4100 = vld [vmem:[#allocation3 + $0x98] sm:$0xff]
        %v4101 = vld [vmem:[#allocation3 + $0xa0] sm:$0xff]
        %v4102 = vld [vmem:[#allocation3 + $0xa8] sm:$0xff]
        %v4103 = vld [vmem:[#allocation3 + $0xb0] sm:$0xff]
        %v4104 = vld [vmem:[#allocation3 + $0xb8] sm:$0xff]
        %v4105 = vld [vmem:[#allocation3 + $0xc0] sm:$0xff]
        %v4106 = vld [vmem:[#allocation3 + $0xc8] sm:$0xff]
        %v4107 = vld [vmem:[#allocation3 + $0xd0] sm:$0xff]
        %v4108 = vld [vmem:[#allocation3 + $0xd8] sm:$0xff]
        %v4109 = vld [vmem:[#allocation3 + $0xe0] sm:$0xff]
        %v4110 = vld [vmem:[#allocation3 + $0xe8] sm:$0xff]
        %v4111 = vld [vmem:[#allocation3 + $0xf0] sm:$0xff]
        %v4112 = vld [vmem:[#allocation3 + $0xf8] sm:$0xff]
        %v4113 = vld [vmem:[#allocation3 + $0x100] sm:$0xff]
        %v4114 = vld [vmem:[#allocation3 + $0x108] sm:$0xff]
        %v4115 = vld [vmem:[#allocation3 + $0x110] sm:$0xff]
        %v4116 = vld [vmem:[#allocation3 + $0x118] sm:$0xff]
        %v4117 = vld [vmem:[#allocation3 + $0x120] sm:$0xff]
        %v4118 = vld [vmem:[#allocation3 + $0x128] sm:$0xff]
        %v4119 = vld [vmem:[#allocation3 + $0x130] sm:$0xff]
        %v4120 = vld [vmem:[#allocation3 + $0x138] sm:$0xff]
        %v4121 = vld [vmem:[#allocation3 + $0x140] sm:$0xff]
        %v4122 = vld [vmem:[#allocation3 + $0x148] sm:$0xff]
        %v4123 = vld [vmem:[#allocation3 + $0x150] sm:$0xff]
        %v4124 = vld [vmem:[#allocation3 + $0x158] sm:$0xff]
        %v4125 = vld [vmem:[#allocation3 + $0x160] sm:$0xff]
        %v4126 = vld [vmem:[#allocation3 + $0x168] sm:$0xff]
        %v4127 = vld [vmem:[#allocation3 + $0x170] sm:$0xff]
        %v4128 = vld [vmem:[#allocation3 + $0x178] sm:$0xff]
        %v4129 = vld [vmem:[#allocation3 + $0x180] sm:$0xff]
        %v4130 = vld [vmem:[#allocation3 + $0x188] sm:$0xff]
        %v4131 = vld [vmem:[#allocation3 + $0x190] sm:$0xff]
        %v4132 = vld [vmem:[#allocation3 + $0x198] sm:$0xff]
        %v4133 = vld [vmem:[#allocation3 + $0x1a0] sm:$0xff]
        %v4134 = vld [vmem:[#allocation3 + $0x1a8] sm:$0xff]
        %v4135 = vld [vmem:[#allocation3 + $0x1b0] sm:$0xff]
        %v4136 = vld [vmem:[#allocation3 + $0x1b8] sm:$0xff]
        %v4137 = vld [vmem:[#allocation3 + $0x1c0] sm:$0xff]
        %v4138 = vld [vmem:[#allocation3 + $0x1c8] sm:$0xff]
        %v4139 = vld [vmem:[#allocation3 + $0x1d0] sm:$0xff]
        %v4140 = vld [vmem:[#allocation3 + $0x1d8] sm:$0xff]
        %v4141 = vld [vmem:[#allocation3 + $0x1e0] sm:$0xff]
        %v4142 = vld [vmem:[#allocation3 + $0x1e8] sm:$0xff]
        %v4143 = vld [vmem:[#allocation3 + $0x1f0] sm:$0xff]
        %v4144 = vld [vmem:[#allocation3 + $0x1f8] sm:$0xff]
        %v4145 = vmul.f32 %v3442, %v4081
        %v4146 = vmul.f32 %v3444, %v4082
        %v4147 = vmul.f32 %v3446, %v4083
        %v4148 = vmul.f32 %v3448, %v4084
        %v4149 = vmul.f32 %v3450, %v4085
        %v4150 = vmul.f32 %v3452, %v4086
        %v4151 = vmul.f32 %v3454, %v4087
        %v4152 = vmul.f32 %v3456, %v4088
        %v4153 = vmul.f32 %v3458, %v4089
        %v4154 = vmul.f32 %v3460, %v4090
        %v4155 = vmul.f32 %v3462, %v4091
        %v4156 = vmul.f32 %v3464, %v4092
        %v4157 = vmul.f32 %v3466, %v4093
        %v4158 = vmul.f32 %v3468, %v4094
        %v4159 = vmul.f32 %v3470, %v4095
        %v4160 = vmul.f32 %v3472, %v4096
        %v4161 = vmul.f32 %v3474, %v4097
        %v4162 = vmul.f32 %v3476, %v4098
        %v4163 = vmul.f32 %v3478, %v4099
        %v4164 = vmul.f32 %v3480, %v4100
        %v4165 = vmul.f32 %v3482, %v4101
        %v4166 = vmul.f32 %v3484, %v4102
        %v4167 = vmul.f32 %v3486, %v4103
        %v4168 = vmul.f32 %v3488, %v4104
        %v4169 = vmul.f32 %v3490, %v4105
        %v4170 = vmul.f32 %v3492, %v4106
        %v4171 = vmul.f32 %v3494, %v4107
        %v4172 = vmul.f32 %v3496, %v4108
        %v4173 = vmul.f32 %v3498, %v4109
        %v4174 = vmul.f32 %v3500, %v4110
        %v4175 = vmul.f32 %v3502, %v4111
        %v4176 = vmul.f32 %v3504, %v4112
        %v4177 = vmul.f32 %v3506, %v4113
        %v4178 = vmul.f32 %v3508, %v4114
        %v4179 = vmul.f32 %v3510, %v4115
        %v4180 = vmul.f32 %v3512, %v4116
        %v4181 = vmul.f32 %v3514, %v4117
        %v4182 = vmul.f32 %v3516, %v4118
        %v4183 = vmul.f32 %v3518, %v4119
        %v4184 = vmul.f32 %v3520, %v4120
        %v4185 = vmul.f32 %v3522, %v4121
        %v4186 = vmul.f32 %v3524, %v4122
        %v4187 = vmul.f32 %v3526, %v4123
        %v4188 = vmul.f32 %v3528, %v4124
        %v4189 = vmul.f32 %v3530, %v4125
        %v4190 = vmul.f32 %v3532, %v4126
        %v4191 = vmul.f32 %v3534, %v4127
        %v4192 = vmul.f32 %v3536, %v4128
        %v4193 = vmul.f32 %v3538, %v4129
        %v4194 = vmul.f32 %v3540, %v4130
        %v4195 = vmul.f32 %v3542, %v4131
        %v4196 = vmul.f32 %v3544, %v4132
        %v4197 = vmul.f32 %v3546, %v4133
        %v4198 = vmul.f32 %v3548, %v4134
        %v4199 = vmul.f32 %v3550, %v4135
        %v4200 = vmul.f32 %v3552, %v4136
        %v4201 = vmul.f32 %v3554, %v4137
        %v4202 = vmul.f32 %v3556, %v4138
        %v4203 = vmul.f32 %v3558, %v4139
        %v4204 = vmul.f32 %v3560, %v4140
        %v4205 = vmul.f32 %v3562, %v4141
        %v4206 = vmul.f32 %v3564, %v4142
        %v4207 = vmul.f32 %v3566, %v4143
        %v4208 = vmul.f32 %v3568, %v4144
        %4209 = vadd.xlane.f32.xlu0 %v3954
        %v4210 = vpop.xlane.xlu0 %4209
        %4211 = vadd.xlane.f32.xlu0 %v3956
        %v4212 = vpop.xlane.xlu0 %4211
        %4213 = vadd.xlane.f32.xlu0 %v3958
        %v4214 = vpop.xlane.xlu0 %4213
        %4215 = vadd.xlane.f32.xlu0 %v3960
        %v4216 = vpop.xlane.xlu0 %4215
        %4217 = vadd.xlane.f32.xlu0 %v3962
        %v4218 = vpop.xlane.xlu0 %4217
        %4219 = vadd.xlane.f32.xlu0 %v3964
        %v4220 = vpop.xlane.xlu0 %4219
        %4221 = vadd.xlane.f32.xlu0 %v3966
        %v4222 = vpop.xlane.xlu0 %4221
        %4223 = vadd.xlane.f32.xlu0 %v3968
        %v4224 = vpop.xlane.xlu0 %4223
        %4225 = vadd.xlane.f32.xlu0 %v3970
        %v4226 = vpop.xlane.xlu0 %4225
        %4227 = vadd.xlane.f32.xlu0 %v3972
        %v4228 = vpop.xlane.xlu0 %4227
        %4229 = vadd.xlane.f32.xlu0 %v3974
        %v4230 = vpop.xlane.xlu0 %4229
        %4231 = vadd.xlane.f32.xlu0 %v3976
        %v4232 = vpop.xlane.xlu0 %4231
        %4233 = vadd.xlane.f32.xlu0 %v3978
        %v4234 = vpop.xlane.xlu0 %4233
        %4235 = vadd.xlane.f32.xlu0 %v3980
        %v4236 = vpop.xlane.xlu0 %4235
        %4237 = vadd.xlane.f32.xlu0 %v3982
        %v4238 = vpop.xlane.xlu0 %4237
        %4239 = vadd.xlane.f32.xlu0 %v3984
        %v4240 = vpop.xlane.xlu0 %4239
        %4241 = vadd.xlane.f32.xlu0 %v3986
        %v4242 = vpop.xlane.xlu0 %4241
        %4243 = vadd.xlane.f32.xlu0 %v3988
        %v4244 = vpop.xlane.xlu0 %4243
        %4245 = vadd.xlane.f32.xlu0 %v3990
        %v4246 = vpop.xlane.xlu0 %4245
        %4247 = vadd.xlane.f32.xlu0 %v3992
        %v4248 = vpop.xlane.xlu0 %4247
        %4249 = vadd.xlane.f32.xlu0 %v3994
        %v4250 = vpop.xlane.xlu0 %4249
        %4251 = vadd.xlane.f32.xlu0 %v3996
        %v4252 = vpop.xlane.xlu0 %4251
        %4253 = vadd.xlane.f32.xlu0 %v3998
        %v4254 = vpop.xlane.xlu0 %4253
        %4255 = vadd.xlane.f32.xlu0 %v4000
        %v4256 = vpop.xlane.xlu0 %4255
        %4257 = vadd.xlane.f32.xlu0 %v4002
        %v4258 = vpop.xlane.xlu0 %4257
        %4259 = vadd.xlane.f32.xlu0 %v4004
        %v4260 = vpop.xlane.xlu0 %4259
        %4261 = vadd.xlane.f32.xlu0 %v4006
        %v4262 = vpop.xlane.xlu0 %4261
        %4263 = vadd.xlane.f32.xlu0 %v4008
        %v4264 = vpop.xlane.xlu0 %4263
        %4265 = vadd.xlane.f32.xlu0 %v4010
        %v4266 = vpop.xlane.xlu0 %4265
        %4267 = vadd.xlane.f32.xlu0 %v4012
        %v4268 = vpop.xlane.xlu0 %4267
        %4269 = vadd.xlane.f32.xlu0 %v4014
        %v4270 = vpop.xlane.xlu0 %4269
        %4271 = vadd.xlane.f32.xlu0 %v4016
        %v4272 = vpop.xlane.xlu0 %4271
        %4273 = vadd.xlane.f32.xlu0 %v4018
        %v4274 = vpop.xlane.xlu0 %4273
        %4275 = vadd.xlane.f32.xlu0 %v4020
        %v4276 = vpop.xlane.xlu0 %4275
        %4277 = vadd.xlane.f32.xlu0 %v4022
        %v4278 = vpop.xlane.xlu0 %4277
        %4279 = vadd.xlane.f32.xlu0 %v4024
        %v4280 = vpop.xlane.xlu0 %4279
        %4281 = vadd.xlane.f32.xlu0 %v4026
        %v4282 = vpop.xlane.xlu0 %4281
        %4283 = vadd.xlane.f32.xlu0 %v4028
        %v4284 = vpop.xlane.xlu0 %4283
        %4285 = vadd.xlane.f32.xlu0 %v4030
        %v4286 = vpop.xlane.xlu0 %4285
        %4287 = vadd.xlane.f32.xlu0 %v4032
        %v4288 = vpop.xlane.xlu0 %4287
        %4289 = vadd.xlane.f32.xlu0 %v4034
        %v4290 = vpop.xlane.xlu0 %4289
        %4291 = vadd.xlane.f32.xlu0 %v4036
        %v4292 = vpop.xlane.xlu0 %4291
        %4293 = vadd.xlane.f32.xlu0 %v4038
        %v4294 = vpop.xlane.xlu0 %4293
        %4295 = vadd.xlane.f32.xlu0 %v4040
        %v4296 = vpop.xlane.xlu0 %4295
        %4297 = vadd.xlane.f32.xlu0 %v4042
        %v4298 = vpop.xlane.xlu0 %4297
        %4299 = vadd.xlane.f32.xlu0 %v4044
        %v4300 = vpop.xlane.xlu0 %4299
        %4301 = vadd.xlane.f32.xlu0 %v4046
        %v4302 = vpop.xlane.xlu0 %4301
        %4303 = vadd.xlane.f32.xlu0 %v4048
        %v4304 = vpop.xlane.xlu0 %4303
        %4305 = vadd.xlane.f32.xlu0 %v4050
        %v4306 = vpop.xlane.xlu0 %4305
        %4307 = vadd.xlane.f32.xlu0 %v4052
        %v4308 = vpop.xlane.xlu0 %4307
        %4309 = vadd.xlane.f32.xlu0 %v4054
        %v4310 = vpop.xlane.xlu0 %4309
        %4311 = vadd.xlane.f32.xlu0 %v4056
        %v4312 = vpop.xlane.xlu0 %4311
        %4313 = vadd.xlane.f32.xlu0 %v4058
        %v4314 = vpop.xlane.xlu0 %4313
        %4315 = vadd.xlane.f32.xlu0 %v4060
        %v4316 = vpop.xlane.xlu0 %4315
        %4317 = vadd.xlane.f32.xlu0 %v4062
        %v4318 = vpop.xlane.xlu0 %4317
        %4319 = vadd.xlane.f32.xlu0 %v4064
        %v4320 = vpop.xlane.xlu0 %4319
        %4321 = vadd.xlane.f32.xlu0 %v4066
        %v4322 = vpop.xlane.xlu0 %4321
        %4323 = vadd.xlane.f32.xlu0 %v4068
        %v4324 = vpop.xlane.xlu0 %4323
        %4325 = vadd.xlane.f32.xlu0 %v4070
        %v4326 = vpop.xlane.xlu0 %4325
        %4327 = vadd.xlane.f32.xlu0 %v4072
        %v4328 = vpop.xlane.xlu0 %4327
        %4329 = vadd.xlane.f32.xlu0 %v4074
        %v4330 = vpop.xlane.xlu0 %4329
        %4331 = vadd.xlane.f32.xlu0 %v4076
        %v4332 = vpop.xlane.xlu0 %4331
        %4333 = vadd.xlane.f32.xlu0 %v4078
        %v4334 = vpop.xlane.xlu0 %4333
        %4335 = vadd.xlane.f32.xlu0 %v4080
        %v4336 = vpop.xlane.xlu0 %4335
        %v4337 = vadd.f32 %v4145, %v4210
        %v4338 = vadd.f32 %v4146, %v4212
        %v4339 = vadd.f32 %v4147, %v4214
        %v4340 = vadd.f32 %v4148, %v4216
        %v4341 = vadd.f32 %v4149, %v4218
        %v4342 = vadd.f32 %v4150, %v4220
        %v4343 = vadd.f32 %v4151, %v4222
        %v4344 = vadd.f32 %v4152, %v4224
        %v4345 = vadd.f32 %v4153, %v4226
        %v4346 = vadd.f32 %v4154, %v4228
        %v4347 = vadd.f32 %v4155, %v4230
        %v4348 = vadd.f32 %v4156, %v4232
        %v4349 = vadd.f32 %v4157, %v4234
        %v4350 = vadd.f32 %v4158, %v4236
        %v4351 = vadd.f32 %v4159, %v4238
        %v4352 = vadd.f32 %v4160, %v4240
        %v4353 = vadd.f32 %v4161, %v4242
        %v4354 = vadd.f32 %v4162, %v4244
        %v4355 = vadd.f32 %v4163, %v4246
        %v4356 = vadd.f32 %v4164, %v4248
        %v4357 = vadd.f32 %v4165, %v4250
        %v4358 = vadd.f32 %v4166, %v4252
        %v4359 = vadd.f32 %v4167, %v4254
        %v4360 = vadd.f32 %v4168, %v4256
        %v4361 = vadd.f32 %v4169, %v4258
        %v4362 = vadd.f32 %v4170, %v4260
        %v4363 = vadd.f32 %v4171, %v4262
        %v4364 = vadd.f32 %v4172, %v4264
        %v4365 = vadd.f32 %v4173, %v4266
        %v4366 = vadd.f32 %v4174, %v4268
        %v4367 = vadd.f32 %v4175, %v4270
        %v4368 = vadd.f32 %v4176, %v4272
        %v4369 = vadd.f32 %v4177, %v4274
        %v4370 = vadd.f32 %v4178, %v4276
        %v4371 = vadd.f32 %v4179, %v4278
        %v4372 = vadd.f32 %v4180, %v4280
        %v4373 = vadd.f32 %v4181, %v4282
        %v4374 = vadd.f32 %v4182, %v4284
        %v4375 = vadd.f32 %v4183, %v4286
        %v4376 = vadd.f32 %v4184, %v4288
        %v4377 = vadd.f32 %v4185, %v4290
        %v4378 = vadd.f32 %v4186, %v4292
        %v4379 = vadd.f32 %v4187, %v4294
        %v4380 = vadd.f32 %v4188, %v4296
        %v4381 = vadd.f32 %v4189, %v4298
        %v4382 = vadd.f32 %v4190, %v4300
        %v4383 = vadd.f32 %v4191, %v4302
        %v4384 = vadd.f32 %v4192, %v4304
        %v4385 = vadd.f32 %v4193, %v4306
        %v4386 = vadd.f32 %v4194, %v4308
        %v4387 = vadd.f32 %v4195, %v4310
        %v4388 = vadd.f32 %v4196, %v4312
        %v4389 = vadd.f32 %v4197, %v4314
        %v4390 = vadd.f32 %v4198, %v4316
        %v4391 = vadd.f32 %v4199, %v4318
        %v4392 = vadd.f32 %v4200, %v4320
        %v4393 = vadd.f32 %v4201, %v4322
        %v4394 = vadd.f32 %v4202, %v4324
        %v4395 = vadd.f32 %v4203, %v4326
        %v4396 = vadd.f32 %v4204, %v4328
        %v4397 = vadd.f32 %v4205, %v4330
        %v4398 = vadd.f32 %v4206, %v4332
        %v4399 = vadd.f32 %v4207, %v4334
        %v4400 = vadd.f32 %v4208, %v4336
        %vm4401 = vcmask 7168
        %4402 = vst.msk [vmem:[#allocation3] sm:$0xff] %vm4401, %v4337
        %4403 = vst.msk [vmem:[#allocation3 + $0x8] sm:$0xff] %vm4401, %v4338
        %4404 = vst.msk [vmem:[#allocation3 + $0x10] sm:$0xff] %vm4401, %v4339
        %4405 = vst.msk [vmem:[#allocation3 + $0x18] sm:$0xff] %vm4401, %v4340
        %4406 = vst.msk [vmem:[#allocation3 + $0x20] sm:$0xff] %vm4401, %v4341
        %4407 = vst.msk [vmem:[#allocation3 + $0x28] sm:$0xff] %vm4401, %v4342
        %4408 = vst.msk [vmem:[#allocation3 + $0x30] sm:$0xff] %vm4401, %v4343
        %4409 = vst.msk [vmem:[#allocation3 + $0x38] sm:$0xff] %vm4401, %v4344
        %4410 = vst.msk [vmem:[#allocation3 + $0x40] sm:$0xff] %vm4401, %v4345
        %4411 = vst.msk [vmem:[#allocation3 + $0x48] sm:$0xff] %vm4401, %v4346
        %4412 = vst.msk [vmem:[#allocation3 + $0x50] sm:$0xff] %vm4401, %v4347
        %4413 = vst.msk [vmem:[#allocation3 + $0x58] sm:$0xff] %vm4401, %v4348
        %4414 = vst.msk [vmem:[#allocation3 + $0x60] sm:$0xff] %vm4401, %v4349
        %4415 = vst.msk [vmem:[#allocation3 + $0x68] sm:$0xff] %vm4401, %v4350
        %4416 = vst.msk [vmem:[#allocation3 + $0x70] sm:$0xff] %vm4401, %v4351
        %4417 = vst.msk [vmem:[#allocation3 + $0x78] sm:$0xff] %vm4401, %v4352
        %4418 = vst.msk [vmem:[#allocation3 + $0x80] sm:$0xff] %vm4401, %v4353
        %4419 = vst.msk [vmem:[#allocation3 + $0x88] sm:$0xff] %vm4401, %v4354
        %4420 = vst.msk [vmem:[#allocation3 + $0x90] sm:$0xff] %vm4401, %v4355
        %4421 = vst.msk [vmem:[#allocation3 + $0x98] sm:$0xff] %vm4401, %v4356
        %4422 = vst.msk [vmem:[#allocation3 + $0xa0] sm:$0xff] %vm4401, %v4357
        %4423 = vst.msk [vmem:[#allocation3 + $0xa8] sm:$0xff] %vm4401, %v4358
        %4424 = vst.msk [vmem:[#allocation3 + $0xb0] sm:$0xff] %vm4401, %v4359
        %4425 = vst.msk [vmem:[#allocation3 + $0xb8] sm:$0xff] %vm4401, %v4360
        %4426 = vst.msk [vmem:[#allocation3 + $0xc0] sm:$0xff] %vm4401, %v4361
        %4427 = vst.msk [vmem:[#allocation3 + $0xc8] sm:$0xff] %vm4401, %v4362
        %4428 = vst.msk [vmem:[#allocation3 + $0xd0] sm:$0xff] %vm4401, %v4363
        %4429 = vst.msk [vmem:[#allocation3 + $0xd8] sm:$0xff] %vm4401, %v4364
        %4430 = vst.msk [vmem:[#allocation3 + $0xe0] sm:$0xff] %vm4401, %v4365
        %4431 = vst.msk [vmem:[#allocation3 + $0xe8] sm:$0xff] %vm4401, %v4366
        %4432 = vst.msk [vmem:[#allocation3 + $0xf0] sm:$0xff] %vm4401, %v4367
        %4433 = vst.msk [vmem:[#allocation3 + $0xf8] sm:$0xff] %vm4401, %v4368
        %4434 = vst.msk [vmem:[#allocation3 + $0x100] sm:$0xff] %vm4401, %v4369
        %4435 = vst.msk [vmem:[#allocation3 + $0x108] sm:$0xff] %vm4401, %v4370
        %4436 = vst.msk [vmem:[#allocation3 + $0x110] sm:$0xff] %vm4401, %v4371
        %4437 = vst.msk [vmem:[#allocation3 + $0x118] sm:$0xff] %vm4401, %v4372
        %4438 = vst.msk [vmem:[#allocation3 + $0x120] sm:$0xff] %vm4401, %v4373
        %4439 = vst.msk [vmem:[#allocation3 + $0x128] sm:$0xff] %vm4401, %v4374
        %4440 = vst.msk [vmem:[#allocation3 + $0x130] sm:$0xff] %vm4401, %v4375
        %4441 = vst.msk [vmem:[#allocation3 + $0x138] sm:$0xff] %vm4401, %v4376
        %4442 = vst.msk [vmem:[#allocation3 + $0x140] sm:$0xff] %vm4401, %v4377
        %4443 = vst.msk [vmem:[#allocation3 + $0x148] sm:$0xff] %vm4401, %v4378
        %4444 = vst.msk [vmem:[#allocation3 + $0x150] sm:$0xff] %vm4401, %v4379
        %4445 = vst.msk [vmem:[#allocation3 + $0x158] sm:$0xff] %vm4401, %v4380
        %4446 = vst.msk [vmem:[#allocation3 + $0x160] sm:$0xff] %vm4401, %v4381
        %4447 = vst.msk [vmem:[#allocation3 + $0x168] sm:$0xff] %vm4401, %v4382
        %4448 = vst.msk [vmem:[#allocation3 + $0x170] sm:$0xff] %vm4401, %v4383
        %4449 = vst.msk [vmem:[#allocation3 + $0x178] sm:$0xff] %vm4401, %v4384
        %4450 = vst.msk [vmem:[#allocation3 + $0x180] sm:$0xff] %vm4401, %v4385
        %4451 = vst.msk [vmem:[#allocation3 + $0x188] sm:$0xff] %vm4401, %v4386
        %4452 = vst.msk [vmem:[#allocation3 + $0x190] sm:$0xff] %vm4401, %v4387
        %4453 = vst.msk [vmem:[#allocation3 + $0x198] sm:$0xff] %vm4401, %v4388
        %4454 = vst.msk [vmem:[#allocation3 + $0x1a0] sm:$0xff] %vm4401, %v4389
        %4455 = vst.msk [vmem:[#allocation3 + $0x1a8] sm:$0xff] %vm4401, %v4390
        %4456 = vst.msk [vmem:[#allocation3 + $0x1b0] sm:$0xff] %vm4401, %v4391
        %4457 = vst.msk [vmem:[#allocation3 + $0x1b8] sm:$0xff] %vm4401, %v4392
        %4458 = vst.msk [vmem:[#allocation3 + $0x1c0] sm:$0xff] %vm4401, %v4393
        %4459 = vst.msk [vmem:[#allocation3 + $0x1c8] sm:$0xff] %vm4401, %v4394
        %4460 = vst.msk [vmem:[#allocation3 + $0x1d0] sm:$0xff] %vm4401, %v4395
        %4461 = vst.msk [vmem:[#allocation3 + $0x1d8] sm:$0xff] %vm4401, %v4396
        %4462 = vst.msk [vmem:[#allocation3 + $0x1e0] sm:$0xff] %vm4401, %v4397
        %4463 = vst.msk [vmem:[#allocation3 + $0x1e8] sm:$0xff] %vm4401, %v4398
        %4464 = vst.msk [vmem:[#allocation3 + $0x1f0] sm:$0xff] %vm4401, %v4399
        %4465 = vst.msk [vmem:[#allocation3 + $0x1f8] sm:$0xff] %vm4401, %v4400
        %v4466 = vunpack.c.l.bf16 %v2028
        %v4467 = vunpack.c.l.bf16 %v2029
        %v4468 = vunpack.c.l.bf16 %v2030
        %v4469 = vunpack.c.l.bf16 %v2031
        %v4470 = vunpack.c.l.bf16 %v2032
        %v4471 = vunpack.c.l.bf16 %v2033
        %v4472 = vunpack.c.l.bf16 %v2034
        %v4473 = vunpack.c.l.bf16 %v2035
        %v4474 = vunpack.c.l.bf16 %v2036
        %v4475 = vunpack.c.l.bf16 %v2037
        %v4476 = vunpack.c.l.bf16 %v2038
        %v4477 = vunpack.c.l.bf16 %v2039
        %v4478 = vunpack.c.l.bf16 %v2040
        %v4479 = vunpack.c.l.bf16 %v2041
        %v4480 = vunpack.c.l.bf16 %v2042
        %v4481 = vunpack.c.l.bf16 %v2043
        %v4482 = vunpack.c.l.bf16 %v2044
        %v4483 = vunpack.c.l.bf16 %v2045
        %v4484 = vunpack.c.l.bf16 %v2046
        %v4485 = vunpack.c.l.bf16 %v2047
        %v4486 = vunpack.c.l.bf16 %v2048
        %v4487 = vunpack.c.l.bf16 %v2049
        %v4488 = vunpack.c.l.bf16 %v2050
        %v4489 = vunpack.c.l.bf16 %v2051
        %v4490 = vunpack.c.l.bf16 %v2052
        %v4491 = vunpack.c.l.bf16 %v2053
        %v4492 = vunpack.c.l.bf16 %v2054
        %v4493 = vunpack.c.l.bf16 %v2055
        %v4494 = vunpack.c.l.bf16 %v2056
        %v4495 = vunpack.c.l.bf16 %v2057
        %v4496 = vunpack.c.l.bf16 %v2058
        %v4497 = vunpack.c.l.bf16 %v2059
        %v4498 = vunpack.c.l.bf16 %v2060
        %v4499 = vunpack.c.l.bf16 %v2061
        %v4500 = vunpack.c.l.bf16 %v2062
        %v4501 = vunpack.c.l.bf16 %v2063
        %v4502 = vunpack.c.l.bf16 %v2064
        %v4503 = vunpack.c.l.bf16 %v2065
        %v4504 = vunpack.c.l.bf16 %v2066
        %v4505 = vunpack.c.l.bf16 %v2067
        %v4506 = vunpack.c.l.bf16 %v2068
        %v4507 = vunpack.c.l.bf16 %v2069
        %v4508 = vunpack.c.l.bf16 %v2070
        %v4509 = vunpack.c.l.bf16 %v2071
        %v4510 = vunpack.c.l.bf16 %v2072
        %v4511 = vunpack.c.l.bf16 %v2073
        %v4512 = vunpack.c.l.bf16 %v2074
        %v4513 = vunpack.c.l.bf16 %v2075
        %v4514 = vunpack.c.l.bf16 %v2076
        %v4515 = vunpack.c.l.bf16 %v2077
        %v4516 = vunpack.c.l.bf16 %v2078
        %v4517 = vunpack.c.l.bf16 %v2079
        %v4518 = vunpack.c.l.bf16 %v2080
        %v4519 = vunpack.c.l.bf16 %v2081
        %v4520 = vunpack.c.l.bf16 %v2082
        %v4521 = vunpack.c.l.bf16 %v2083
        %v4522 = vunpack.c.l.bf16 %v2084
        %v4523 = vunpack.c.l.bf16 %v2085
        %v4524 = vunpack.c.l.bf16 %v2086
        %v4525 = vunpack.c.l.bf16 %v2087
        %v4526 = vunpack.c.l.bf16 %v2088
        %v4527 = vunpack.c.l.bf16 %v2089
        %v4528 = vunpack.c.l.bf16 %v2090
        %v4529 = vunpack.c.l.bf16 %v2091
        %v4530 = vmul.f32 %v3954, %v4466
        %v4531 = vmul.f32 %v3956, %v4467
        %v4532 = vmul.f32 %v3958, %v4468
        %v4533 = vmul.f32 %v3960, %v4469
        %v4534 = vmul.f32 %v3962, %v4470
        %v4535 = vmul.f32 %v3964, %v4471
        %v4536 = vmul.f32 %v3966, %v4472
        %v4537 = vmul.f32 %v3968, %v4473
        %v4538 = vmul.f32 %v3970, %v4474
        %v4539 = vmul.f32 %v3972, %v4475
        %v4540 = vmul.f32 %v3974, %v4476
        %v4541 = vmul.f32 %v3976, %v4477
        %v4542 = vmul.f32 %v3978, %v4478
        %v4543 = vmul.f32 %v3980, %v4479
        %v4544 = vmul.f32 %v3982, %v4480
        %v4545 = vmul.f32 %v3984, %v4481
        %v4546 = vmul.f32 %v3986, %v4482
        %v4547 = vmul.f32 %v3988, %v4483
        %v4548 = vmul.f32 %v3990, %v4484
        %v4549 = vmul.f32 %v3992, %v4485
        %v4550 = vmul.f32 %v3994, %v4486
        %v4551 = vmul.f32 %v3996, %v4487
        %v4552 = vmul.f32 %v3998, %v4488
        %v4553 = vmul.f32 %v4000, %v4489
        %v4554 = vmul.f32 %v4002, %v4490
        %v4555 = vmul.f32 %v4004, %v4491
        %v4556 = vmul.f32 %v4006, %v4492
        %v4557 = vmul.f32 %v4008, %v4493
        %v4558 = vmul.f32 %v4010, %v4494
        %v4559 = vmul.f32 %v4012, %v4495
        %v4560 = vmul.f32 %v4014, %v4496
        %v4561 = vmul.f32 %v4016, %v4497
        %v4562 = vmul.f32 %v4018, %v4498
        %v4563 = vmul.f32 %v4020, %v4499
        %v4564 = vmul.f32 %v4022, %v4500
        %v4565 = vmul.f32 %v4024, %v4501
        %v4566 = vmul.f32 %v4026, %v4502
        %v4567 = vmul.f32 %v4028, %v4503
        %v4568 = vmul.f32 %v4030, %v4504
        %v4569 = vmul.f32 %v4032, %v4505
        %v4570 = vmul.f32 %v4034, %v4506
        %v4571 = vmul.f32 %v4036, %v4507
        %v4572 = vmul.f32 %v4038, %v4508
        %v4573 = vmul.f32 %v4040, %v4509
        %v4574 = vmul.f32 %v4042, %v4510
        %v4575 = vmul.f32 %v4044, %v4511
        %v4576 = vmul.f32 %v4046, %v4512
        %v4577 = vmul.f32 %v4048, %v4513
        %v4578 = vmul.f32 %v4050, %v4514
        %v4579 = vmul.f32 %v4052, %v4515
        %v4580 = vmul.f32 %v4054, %v4516
        %v4581 = vmul.f32 %v4056, %v4517
        %v4582 = vmul.f32 %v4058, %v4518
        %v4583 = vmul.f32 %v4060, %v4519
        %v4584 = vmul.f32 %v4062, %v4520
        %v4585 = vmul.f32 %v4064, %v4521
        %v4586 = vmul.f32 %v4066, %v4522
        %v4587 = vmul.f32 %v4068, %v4523
        %v4588 = vmul.f32 %v4070, %v4524
        %v4589 = vmul.f32 %v4072, %v4525
        %v4590 = vmul.f32 %v4074, %v4526
        %v4591 = vmul.f32 %v4076, %v4527
        %v4592 = vmul.f32 %v4078, %v4528
        %v4593 = vmul.f32 %v4080, %v4529
        %v4594 = vpack.c.bf16 %v4531, %v4530
        %v4595 = vpack.c.bf16 %v4533, %v4532
        %v4596 = vpack.c.bf16 %v4535, %v4534
        %v4597 = vpack.c.bf16 %v4537, %v4536
        %v4598 = vpack.c.bf16 %v4539, %v4538
        %v4599 = vpack.c.bf16 %v4541, %v4540
        %v4600 = vpack.c.bf16 %v4543, %v4542
        %v4601 = vpack.c.bf16 %v4545, %v4544
        %v4602 = vpack.c.bf16 %v4547, %v4546
        %v4603 = vpack.c.bf16 %v4549, %v4548
        %v4604 = vpack.c.bf16 %v4551, %v4550
        %v4605 = vpack.c.bf16 %v4553, %v4552
        %v4606 = vpack.c.bf16 %v4555, %v4554
        %v4607 = vpack.c.bf16 %v4557, %v4556
        %v4608 = vpack.c.bf16 %v4559, %v4558
        %v4609 = vpack.c.bf16 %v4561, %v4560
        %v4610 = vpack.c.bf16 %v4563, %v4562
        %v4611 = vpack.c.bf16 %v4565, %v4564
        %v4612 = vpack.c.bf16 %v4567, %v4566
        %v4613 = vpack.c.bf16 %v4569, %v4568
        %v4614 = vpack.c.bf16 %v4571, %v4570
        %v4615 = vpack.c.bf16 %v4573, %v4572
        %v4616 = vpack.c.bf16 %v4575, %v4574
        %v4617 = vpack.c.bf16 %v4577, %v4576
        %v4618 = vpack.c.bf16 %v4579, %v4578
        %v4619 = vpack.c.bf16 %v4581, %v4580
        %v4620 = vpack.c.bf16 %v4583, %v4582
        %v4621 = vpack.c.bf16 %v4585, %v4584
        %v4622 = vpack.c.bf16 %v4587, %v4586
        %v4623 = vpack.c.bf16 %v4589, %v4588
        %v4624 = vpack.c.bf16 %v4591, %v4590
        %v4625 = vpack.c.bf16 %v4593, %v4592
        %v4626 = vld [vmem:[#allocation4] sm:$0xff]
        %v4627 = vld [vmem:[#allocation4 + $0x8] sm:$0xff]
        %v4628 = vld [vmem:[#allocation4 + $0x10] sm:$0xff]
        %v4629 = vld [vmem:[#allocation4 + $0x18] sm:$0xff]
        %v4630 = vld [vmem:[#allocation4 + $0x20] sm:$0xff]
        %v4631 = vld [vmem:[#allocation4 + $0x28] sm:$0xff]
        %v4632 = vld [vmem:[#allocation4 + $0x30] sm:$0xff]
        %v4633 = vld [vmem:[#allocation4 + $0x38] sm:$0xff]
        %v4634 = vld [vmem:[#allocation4 + $0x40] sm:$0xff]
        %v4635 = vld [vmem:[#allocation4 + $0x48] sm:$0xff]
        %v4636 = vld [vmem:[#allocation4 + $0x50] sm:$0xff]
        %v4637 = vld [vmem:[#allocation4 + $0x58] sm:$0xff]
        %v4638 = vld [vmem:[#allocation4 + $0x60] sm:$0xff]
        %v4639 = vld [vmem:[#allocation4 + $0x68] sm:$0xff]
        %v4640 = vld [vmem:[#allocation4 + $0x70] sm:$0xff]
        %v4641 = vld [vmem:[#allocation4 + $0x78] sm:$0xff]
        %v4642 = vld [vmem:[#allocation4 + $0x80] sm:$0xff]
        %v4643 = vld [vmem:[#allocation4 + $0x88] sm:$0xff]
        %v4644 = vld [vmem:[#allocation4 + $0x90] sm:$0xff]
        %v4645 = vld [vmem:[#allocation4 + $0x98] sm:$0xff]
        %v4646 = vld [vmem:[#allocation4 + $0xa0] sm:$0xff]
        %v4647 = vld [vmem:[#allocation4 + $0xa8] sm:$0xff]
        %v4648 = vld [vmem:[#allocation4 + $0xb0] sm:$0xff]
        %v4649 = vld [vmem:[#allocation4 + $0xb8] sm:$0xff]
        %v4650 = vld [vmem:[#allocation4 + $0xc0] sm:$0xff]
        %v4651 = vld [vmem:[#allocation4 + $0xc8] sm:$0xff]
        %v4652 = vld [vmem:[#allocation4 + $0xd0] sm:$0xff]
        %v4653 = vld [vmem:[#allocation4 + $0xd8] sm:$0xff]
        %v4654 = vld [vmem:[#allocation4 + $0xe0] sm:$0xff]
        %v4655 = vld [vmem:[#allocation4 + $0xe8] sm:$0xff]
        %v4656 = vld [vmem:[#allocation4 + $0xf0] sm:$0xff]
        %v4657 = vld [vmem:[#allocation4 + $0xf8] sm:$0xff]
        %v4658 = vld [vmem:[#allocation4 + $0x100] sm:$0xff]
        %v4659 = vld [vmem:[#allocation4 + $0x108] sm:$0xff]
        %v4660 = vld [vmem:[#allocation4 + $0x110] sm:$0xff]
        %v4661 = vld [vmem:[#allocation4 + $0x118] sm:$0xff]
        %v4662 = vld [vmem:[#allocation4 + $0x120] sm:$0xff]
        %v4663 = vld [vmem:[#allocation4 + $0x128] sm:$0xff]
        %v4664 = vld [vmem:[#allocation4 + $0x130] sm:$0xff]
        %v4665 = vld [vmem:[#allocation4 + $0x138] sm:$0xff]
        %v4666 = vld [vmem:[#allocation4 + $0x140] sm:$0xff]
        %v4667 = vld [vmem:[#allocation4 + $0x148] sm:$0xff]
        %v4668 = vld [vmem:[#allocation4 + $0x150] sm:$0xff]
        %v4669 = vld [vmem:[#allocation4 + $0x158] sm:$0xff]
        %v4670 = vld [vmem:[#allocation4 + $0x160] sm:$0xff]
        %v4671 = vld [vmem:[#allocation4 + $0x168] sm:$0xff]
        %v4672 = vld [vmem:[#allocation4 + $0x170] sm:$0xff]
        %v4673 = vld [vmem:[#allocation4 + $0x178] sm:$0xff]
        %v4674 = vld [vmem:[#allocation4 + $0x180] sm:$0xff]
        %v4675 = vld [vmem:[#allocation4 + $0x188] sm:$0xff]
        %v4676 = vld [vmem:[#allocation4 + $0x190] sm:$0xff]
        %v4677 = vld [vmem:[#allocation4 + $0x198] sm:$0xff]
        %v4678 = vld [vmem:[#allocation4 + $0x1a0] sm:$0xff]
        %v4679 = vld [vmem:[#allocation4 + $0x1a8] sm:$0xff]
        %v4680 = vld [vmem:[#allocation4 + $0x1b0] sm:$0xff]
        %v4681 = vld [vmem:[#allocation4 + $0x1b8] sm:$0xff]
        %v4682 = vld [vmem:[#allocation4 + $0x1c0] sm:$0xff]
        %v4683 = vld [vmem:[#allocation4 + $0x1c8] sm:$0xff]
        %v4684 = vld [vmem:[#allocation4 + $0x1d0] sm:$0xff]
        %v4685 = vld [vmem:[#allocation4 + $0x1d8] sm:$0xff]
        %v4686 = vld [vmem:[#allocation4 + $0x1e0] sm:$0xff]
        %v4687 = vld [vmem:[#allocation4 + $0x1e8] sm:$0xff]
        %v4688 = vld [vmem:[#allocation4 + $0x1f0] sm:$0xff]
        %v4689 = vld [vmem:[#allocation4 + $0x1f8] sm:$0xff]
        %4691 = vset.pattern.permute.xlu0 0
        %4692 = vperm.xlu0 %4691, %v3442
        %v4693 = vpop.permute.xlu0 %4692
        %4696 = vset.pattern.permute.xlu0 0
        %4697 = vperm.xlu0 %4696, %v3444
        %v4698 = vpop.permute.xlu0 %4697
        %4701 = vset.pattern.permute.xlu0 0
        %4702 = vperm.xlu0 %4701, %v3446
        %v4703 = vpop.permute.xlu0 %4702
        %4706 = vset.pattern.permute.xlu0 0
        %4707 = vperm.xlu0 %4706, %v3448
        %v4708 = vpop.permute.xlu0 %4707
        %4711 = vset.pattern.permute.xlu0 0
        %4712 = vperm.xlu0 %4711, %v3450
        %v4713 = vpop.permute.xlu0 %4712
        %4716 = vset.pattern.permute.xlu0 0
        %4717 = vperm.xlu0 %4716, %v3452
        %v4718 = vpop.permute.xlu0 %4717
        %4721 = vset.pattern.permute.xlu0 0
        %4722 = vperm.xlu0 %4721, %v3454
        %v4723 = vpop.permute.xlu0 %4722
        %4726 = vset.pattern.permute.xlu0 0
        %4727 = vperm.xlu0 %4726, %v3456
        %v4728 = vpop.permute.xlu0 %4727
        %4731 = vset.pattern.permute.xlu0 0
        %4732 = vperm.xlu0 %4731, %v3458
        %v4733 = vpop.permute.xlu0 %4732
        %4736 = vset.pattern.permute.xlu0 0
        %4737 = vperm.xlu0 %4736, %v3460
        %v4738 = vpop.permute.xlu0 %4737
        %4741 = vset.pattern.permute.xlu0 0
        %4742 = vperm.xlu0 %4741, %v3462
        %v4743 = vpop.permute.xlu0 %4742
        %4746 = vset.pattern.permute.xlu0 0
        %4747 = vperm.xlu0 %4746, %v3464
        %v4748 = vpop.permute.xlu0 %4747
        %4751 = vset.pattern.permute.xlu0 0
        %4752 = vperm.xlu0 %4751, %v3466
        %v4753 = vpop.permute.xlu0 %4752
        %4756 = vset.pattern.permute.xlu0 0
        %4757 = vperm.xlu0 %4756, %v3468
        %v4758 = vpop.permute.xlu0 %4757
        %4761 = vset.pattern.permute.xlu0 0
        %4762 = vperm.xlu0 %4761, %v3470
        %v4763 = vpop.permute.xlu0 %4762
        %4766 = vset.pattern.permute.xlu0 0
        %4767 = vperm.xlu0 %4766, %v3472
        %v4768 = vpop.permute.xlu0 %4767
        %4771 = vset.pattern.permute.xlu0 0
        %4772 = vperm.xlu0 %4771, %v3474
        %v4773 = vpop.permute.xlu0 %4772
        %4776 = vset.pattern.permute.xlu0 0
        %4777 = vperm.xlu0 %4776, %v3476
        %v4778 = vpop.permute.xlu0 %4777
        %4781 = vset.pattern.permute.xlu0 0
        %4782 = vperm.xlu0 %4781, %v3478
        %v4783 = vpop.permute.xlu0 %4782
        %4786 = vset.pattern.permute.xlu0 0
        %4787 = vperm.xlu0 %4786, %v3480
        %v4788 = vpop.permute.xlu0 %4787
        %4791 = vset.pattern.permute.xlu0 0
        %4792 = vperm.xlu0 %4791, %v3482
        %v4793 = vpop.permute.xlu0 %4792
        %4796 = vset.pattern.permute.xlu0 0
        %4797 = vperm.xlu0 %4796, %v3484
        %v4798 = vpop.permute.xlu0 %4797
        %4801 = vset.pattern.permute.xlu0 0
        %4802 = vperm.xlu0 %4801, %v3486
        %v4803 = vpop.permute.xlu0 %4802
        %4806 = vset.pattern.permute.xlu0 0
        %4807 = vperm.xlu0 %4806, %v3488
        %v4808 = vpop.permute.xlu0 %4807
        %4811 = vset.pattern.permute.xlu0 0
        %4812 = vperm.xlu0 %4811, %v3490
        %v4813 = vpop.permute.xlu0 %4812
        %4816 = vset.pattern.permute.xlu0 0
        %4817 = vperm.xlu0 %4816, %v3492
        %v4818 = vpop.permute.xlu0 %4817
        %4821 = vset.pattern.permute.xlu0 0
        %4822 = vperm.xlu0 %4821, %v3494
        %v4823 = vpop.permute.xlu0 %4822
        %4826 = vset.pattern.permute.xlu0 0
        %4827 = vperm.xlu0 %4826, %v3496
        %v4828 = vpop.permute.xlu0 %4827
        %4831 = vset.pattern.permute.xlu0 0
        %4832 = vperm.xlu0 %4831, %v3498
        %v4833 = vpop.permute.xlu0 %4832
        %4836 = vset.pattern.permute.xlu0 0
        %4837 = vperm.xlu0 %4836, %v3500
        %v4838 = vpop.permute.xlu0 %4837
        %4841 = vset.pattern.permute.xlu0 0
        %4842 = vperm.xlu0 %4841, %v3502
        %v4843 = vpop.permute.xlu0 %4842
        %4846 = vset.pattern.permute.xlu0 0
        %4847 = vperm.xlu0 %4846, %v3504
        %v4848 = vpop.permute.xlu0 %4847
        %4851 = vset.pattern.permute.xlu0 0
        %4852 = vperm.xlu0 %4851, %v3506
        %v4853 = vpop.permute.xlu0 %4852
        %4856 = vset.pattern.permute.xlu0 0
        %4857 = vperm.xlu0 %4856, %v3508
        %v4858 = vpop.permute.xlu0 %4857
        %4861 = vset.pattern.permute.xlu0 0
        %4862 = vperm.xlu0 %4861, %v3510
        %v4863 = vpop.permute.xlu0 %4862
        %4866 = vset.pattern.permute.xlu0 0
        %4867 = vperm.xlu0 %4866, %v3512
        %v4868 = vpop.permute.xlu0 %4867
        %4871 = vset.pattern.permute.xlu0 0
        %4872 = vperm.xlu0 %4871, %v3514
        %v4873 = vpop.permute.xlu0 %4872
        %4876 = vset.pattern.permute.xlu0 0
        %4877 = vperm.xlu0 %4876, %v3516
        %v4878 = vpop.permute.xlu0 %4877
        %4881 = vset.pattern.permute.xlu0 0
        %4882 = vperm.xlu0 %4881, %v3518
        %v4883 = vpop.permute.xlu0 %4882
        %4886 = vset.pattern.permute.xlu0 0
        %4887 = vperm.xlu0 %4886, %v3520
        %v4888 = vpop.permute.xlu0 %4887
        %4891 = vset.pattern.permute.xlu0 0
        %4892 = vperm.xlu0 %4891, %v3522
        %v4893 = vpop.permute.xlu0 %4892
        %4896 = vset.pattern.permute.xlu0 0
        %4897 = vperm.xlu0 %4896, %v3524
        %v4898 = vpop.permute.xlu0 %4897
        %4901 = vset.pattern.permute.xlu0 0
        %4902 = vperm.xlu0 %4901, %v3526
        %v4903 = vpop.permute.xlu0 %4902
        %4906 = vset.pattern.permute.xlu0 0
        %4907 = vperm.xlu0 %4906, %v3528
        %v4908 = vpop.permute.xlu0 %4907
        %4911 = vset.pattern.permute.xlu0 0
        %4912 = vperm.xlu0 %4911, %v3530
        %v4913 = vpop.permute.xlu0 %4912
        %4916 = vset.pattern.permute.xlu0 0
        %4917 = vperm.xlu0 %4916, %v3532
        %v4918 = vpop.permute.xlu0 %4917
        %4921 = vset.pattern.permute.xlu0 0
        %4922 = vperm.xlu0 %4921, %v3534
        %v4923 = vpop.permute.xlu0 %4922
        %4926 = vset.pattern.permute.xlu0 0
        %4927 = vperm.xlu0 %4926, %v3536
        %v4928 = vpop.permute.xlu0 %4927
        %4931 = vset.pattern.permute.xlu0 0
        %4932 = vperm.xlu0 %4931, %v3538
        %v4933 = vpop.permute.xlu0 %4932
        %4936 = vset.pattern.permute.xlu0 0
        %4937 = vperm.xlu0 %4936, %v3540
        %v4938 = vpop.permute.xlu0 %4937
        %4941 = vset.pattern.permute.xlu0 0
        %4942 = vperm.xlu0 %4941, %v3542
        %v4943 = vpop.permute.xlu0 %4942
        %4946 = vset.pattern.permute.xlu0 0
        %4947 = vperm.xlu0 %4946, %v3544
        %v4948 = vpop.permute.xlu0 %4947
        %4951 = vset.pattern.permute.xlu0 0
        %4952 = vperm.xlu0 %4951, %v3546
        %v4953 = vpop.permute.xlu0 %4952
        %4956 = vset.pattern.permute.xlu0 0
        %4957 = vperm.xlu0 %4956, %v3548
        %v4958 = vpop.permute.xlu0 %4957
        %4961 = vset.pattern.permute.xlu0 0
        %4962 = vperm.xlu0 %4961, %v3550
        %v4963 = vpop.permute.xlu0 %4962
        %4966 = vset.pattern.permute.xlu0 0
        %4967 = vperm.xlu0 %4966, %v3552
        %v4968 = vpop.permute.xlu0 %4967
        %4971 = vset.pattern.permute.xlu0 0
        %4972 = vperm.xlu0 %4971, %v3554
        %v4973 = vpop.permute.xlu0 %4972
        %4976 = vset.pattern.permute.xlu0 0
        %4977 = vperm.xlu0 %4976, %v3556
        %v4978 = vpop.permute.xlu0 %4977
        %4981 = vset.pattern.permute.xlu0 0
        %4982 = vperm.xlu0 %4981, %v3558
        %v4983 = vpop.permute.xlu0 %4982
        %4986 = vset.pattern.permute.xlu0 0
        %4987 = vperm.xlu0 %4986, %v3560
        %v4988 = vpop.permute.xlu0 %4987
        %4991 = vset.pattern.permute.xlu0 0
        %4992 = vperm.xlu0 %4991, %v3562
        %v4993 = vpop.permute.xlu0 %4992
        %4996 = vset.pattern.permute.xlu0 0
        %4997 = vperm.xlu0 %4996, %v3564
        %v4998 = vpop.permute.xlu0 %4997
        %5001 = vset.pattern.permute.xlu0 0
        %5002 = vperm.xlu0 %5001, %v3566
        %v5003 = vpop.permute.xlu0 %5002
        %5006 = vset.pattern.permute.xlu0 0
        %5007 = vperm.xlu0 %5006, %v3568
        %v5008 = vpop.permute.xlu0 %5007
        %v5010 = vmul.f32 %v4693, %v4626
        %v5011 = vmul.f32 %v4698, %v4627
        %v5012 = vmul.f32 %v4703, %v4628
        %v5013 = vmul.f32 %v4708, %v4629
        %v5014 = vmul.f32 %v4713, %v4630
        %v5015 = vmul.f32 %v4718, %v4631
        %v5016 = vmul.f32 %v4723, %v4632
        %v5017 = vmul.f32 %v4728, %v4633
        %v5018 = vmul.f32 %v4733, %v4634
        %v5019 = vmul.f32 %v4738, %v4635
        %v5020 = vmul.f32 %v4743, %v4636
        %v5021 = vmul.f32 %v4748, %v4637
        %v5022 = vmul.f32 %v4753, %v4638
        %v5023 = vmul.f32 %v4758, %v4639
        %v5024 = vmul.f32 %v4763, %v4640
        %v5025 = vmul.f32 %v4768, %v4641
        %v5026 = vmul.f32 %v4773, %v4642
        %v5027 = vmul.f32 %v4778, %v4643
        %v5028 = vmul.f32 %v4783, %v4644
        %v5029 = vmul.f32 %v4788, %v4645
        %v5030 = vmul.f32 %v4793, %v4646
        %v5031 = vmul.f32 %v4798, %v4647
        %v5032 = vmul.f32 %v4803, %v4648
        %v5033 = vmul.f32 %v4808, %v4649
        %v5034 = vmul.f32 %v4813, %v4650
        %v5035 = vmul.f32 %v4818, %v4651
        %v5036 = vmul.f32 %v4823, %v4652
        %v5037 = vmul.f32 %v4828, %v4653
        %v5038 = vmul.f32 %v4833, %v4654
        %v5039 = vmul.f32 %v4838, %v4655
        %v5040 = vmul.f32 %v4843, %v4656
        %v5041 = vmul.f32 %v4848, %v4657
        %v5042 = vmul.f32 %v4853, %v4658
        %v5043 = vmul.f32 %v4858, %v4659
        %v5044 = vmul.f32 %v4863, %v4660
        %v5045 = vmul.f32 %v4868, %v4661
        %v5046 = vmul.f32 %v4873, %v4662
        %v5047 = vmul.f32 %v4878, %v4663
        %v5048 = vmul.f32 %v4883, %v4664
        %v5049 = vmul.f32 %v4888, %v4665
        %v5050 = vmul.f32 %v4893, %v4666
        %v5051 = vmul.f32 %v4898, %v4667
        %v5052 = vmul.f32 %v4903, %v4668
        %v5053 = vmul.f32 %v4908, %v4669
        %v5054 = vmul.f32 %v4913, %v4670
        %v5055 = vmul.f32 %v4918, %v4671
        %v5056 = vmul.f32 %v4923, %v4672
        %v5057 = vmul.f32 %v4928, %v4673
        %v5058 = vmul.f32 %v4933, %v4674
        %v5059 = vmul.f32 %v4938, %v4675
        %v5060 = vmul.f32 %v4943, %v4676
        %v5061 = vmul.f32 %v4948, %v4677
        %v5062 = vmul.f32 %v4953, %v4678
        %v5063 = vmul.f32 %v4958, %v4679
        %v5064 = vmul.f32 %v4963, %v4680
        %v5065 = vmul.f32 %v4968, %v4681
        %v5066 = vmul.f32 %v4973, %v4682
        %v5067 = vmul.f32 %v4978, %v4683
        %v5068 = vmul.f32 %v4983, %v4684
        %v5069 = vmul.f32 %v4988, %v4685
        %v5070 = vmul.f32 %v4993, %v4686
        %v5071 = vmul.f32 %v4998, %v4687
        %v5072 = vmul.f32 %v5003, %v4688
        %v5073 = vmul.f32 %v5008, %v4689
        %v5090 = vunpack.c.l.b16 %v1948
        %v5091 = vunpack.c.l.b16 %v1949
        %v5092 = vunpack.c.l.b16 %v1950
        %v5093 = vunpack.c.l.b16 %v1951
        %v5094 = vunpack.c.l.b16 %v1952
        %v5095 = vunpack.c.l.b16 %v1953
        %v5096 = vunpack.c.l.b16 %v1954
        %v5097 = vunpack.c.l.b16 %v1955
        %v5098 = vunpack.c.l.b16 %v1956
        %v5099 = vunpack.c.l.b16 %v1957
        %v5100 = vunpack.c.l.b16 %v1958
        %v5101 = vunpack.c.l.b16 %v1959
        %v5102 = vunpack.c.l.b16 %v1960
        %v5103 = vunpack.c.l.b16 %v1961
        %v5104 = vunpack.c.l.b16 %v1962
        %v5105 = vunpack.c.l.b16 %v1963
        %v5106 = vpack.c.b16 %v5091, %v5090
        %v5107 = vpack.c.b16 %v5093, %v5092
        %v5108 = vpack.c.b16 %v5095, %v5094
        %v5109 = vpack.c.b16 %v5097, %v5096
        %v5110 = vpack.c.b16 %v5099, %v5098
        %v5111 = vpack.c.b16 %v5101, %v5100
        %v5112 = vpack.c.b16 %v5103, %v5102
        %v5113 = vpack.c.b16 %v5105, %v5104
        %5122 = vmatprep.subr.bf16.mxu0 0
        %5123 = vmatpush1.bf16.msra.mxu0 %v5106
        %5124 = vmatprep.subr.bf16.mxu0 0
        %5125 = vmatpush1.bf16.msra.mxu0 %v5107
        %5126 = vmatprep.subr.bf16.mxu0 0
        %5127 = vmatpush1.bf16.msra.mxu0 %v5108
        %5128 = vmatprep.subr.bf16.mxu0 0
        %5129 = vmatpush1.bf16.msra.mxu0 %v5109
        %5130 = vmatprep.subr.bf16.mxu0 0
        %5131 = vmatpush1.bf16.msra.mxu0 %v5110
        %5132 = vmatprep.subr.bf16.mxu0 0
        %5133 = vmatpush1.bf16.msra.mxu0 %v5111
        %5134 = vmatprep.subr.bf16.mxu0 0
        %5135 = vmatpush1.bf16.msra.mxu0 %v5112
        %5136 = vmatprep.subr.bf16.mxu0 0
        %5137 = vmatpush1.bf16.msra.mxu0 %v5113
        %5138 = vmatprep.subr.bf16.mxu0 0
        %5139 = vmatpush1.bf16.msra.mxu0 0
        %5140 = vmatprep.subr.bf16.mxu0 0
        %5141 = vmatpush1.bf16.msra.mxu0 0
        %5142 = vmatprep.subr.bf16.mxu0 0
        %5143 = vmatpush1.bf16.msra.mxu0 0
        %5144 = vmatprep.subr.bf16.mxu0 0
        %5145 = vmatpush1.bf16.msra.mxu0 0
        %5146 = vmatprep.subr.bf16.mxu0 0
        %5147 = vmatpush1.bf16.msra.mxu0 0
        %5148 = vmatprep.subr.bf16.mxu0 0
        %5149 = vmatpush1.bf16.msra.mxu0 0
        %5150 = vmatprep.subr.bf16.mxu0 0
        %5151 = vmatpush1.bf16.msra.mxu0 0
        %5152 = vmatprep.subr.bf16.mxu0 0
        %5153 = vmatpush1.bf16.msra.mxu0 0
        %5154 = vmatprep.mubr.bf16.mxu0 0
        %5155 = vmatmul.mubr.bf16.gmra.mrb[0].mxu0 %v4594
        %v5156 = vpop.f32.mrb[0].mxu0
        %v5157 = vadd.f32 0.0, %v5156
        %v5158 = vpop.f32.mrb[0].mxu0
        %v5159 = vpop.f32.mrb[0].mxu0
        %v5160 = vadd.f32 0.0, %v5159
        %v5161 = vpop.f32.mrb[0].mxu0
        %5162 = vmatprep.mubr.bf16.mxu0 0
        %5163 = vmatmul.mubr.bf16.gmra.mrb[0].mxu0 %v4595
        %v5164 = vpop.f32.mrb[0].mxu0
        %v5165 = vadd.f32 0.0, %v5164
        %v5166 = vpop.f32.mrb[0].mxu0
        %v5167 = vpop.f32.mrb[0].mxu0
        %v5168 = vadd.f32 0.0, %v5167
        %v5169 = vpop.f32.mrb[0].mxu0
        %5170 = vmatprep.mubr.bf16.mxu0 0
        %5171 = vmatmul.mubr.bf16.gmra.mrb[0].mxu0 %v4596
        %v5172 = vpop.f32.mrb[0].mxu0
        %v5173 = vadd.f32 0.0, %v5172
        %v5174 = vpop.f32.mrb[0].mxu0
        %v5175 = vpop.f32.mrb[0].mxu0
        %v5176 = vadd.f32 0.0, %v5175
        %v5177 = vpop.f32.mrb[0].mxu0
        %5178 = vmatprep.mubr.bf16.mxu0 0
        %5179 = vmatmul.mubr.bf16.gmra.mrb[0].mxu0 %v4597
        %v5180 = vpop.f32.mrb[0].mxu0
        %v5181 = vadd.f32 0.0, %v5180
        %v5182 = vpop.f32.mrb[0].mxu0
        %v5183 = vpop.f32.mrb[0].mxu0
        %v5184 = vadd.f32 0.0, %v5183
        %v5185 = vpop.f32.mrb[0].mxu0
        %5186 = vmatprep.mubr.bf16.mxu0 0
        %5187 = vmatmul.mubr.bf16.gmra.mrb[0].mxu0 %v4598
        %v5188 = vpop.f32.mrb[0].mxu0
        %v5189 = vadd.f32 0.0, %v5188
        %v5190 = vpop.f32.mrb[0].mxu0
        %v5191 = vpop.f32.mrb[0].mxu0
        %v5192 = vadd.f32 0.0, %v5191
        %v5193 = vpop.f32.mrb[0].mxu0
        %5194 = vmatprep.mubr.bf16.mxu0 0
        %5195 = vmatmul.mubr.bf16.gmra.mrb[0].mxu0 %v4599
        %v5196 = vpop.f32.mrb[0].mxu0
        %v5197 = vadd.f32 0.0, %v5196
        %v5198 = vpop.f32.mrb[0].mxu0
        %v5199 = vpop.f32.mrb[0].mxu0
        %v5200 = vadd.f32 0.0, %v5199
        %v5201 = vpop.f32.mrb[0].mxu0
        %5202 = vmatprep.mubr.bf16.mxu0 0
        %5203 = vmatmul.mubr.bf16.gmra.mrb[0].mxu0 %v4600
        %v5204 = vpop.f32.mrb[0].mxu0
        %v5205 = vadd.f32 0.0, %v5204
        %v5206 = vpop.f32.mrb[0].mxu0
        %v5207 = vpop.f32.mrb[0].mxu0
        %v5208 = vadd.f32 0.0, %v5207
        %v5209 = vpop.f32.mrb[0].mxu0
        %5210 = vmatprep.mubr.bf16.mxu0 0
        %5211 = vmatmul.mubr.bf16.gmra.mrb[0].mxu0 %v4601
        %v5212 = vpop.f32.mrb[0].mxu0
        %v5213 = vadd.f32 0.0, %v5212
        %v5214 = vpop.f32.mrb[0].mxu0
        %v5215 = vpop.f32.mrb[0].mxu0
        %v5216 = vadd.f32 0.0, %v5215
        %v5217 = vpop.f32.mrb[0].mxu0
        %5218 = vdwg.mxu0
        %v5235 = vunpack.c.l.b16 %v1964
        %v5236 = vunpack.c.l.b16 %v1965
        %v5237 = vunpack.c.l.b16 %v1966
        %v5238 = vunpack.c.l.b16 %v1967
        %v5239 = vunpack.c.l.b16 %v1968
        %v5240 = vunpack.c.l.b16 %v1969
        %v5241 = vunpack.c.l.b16 %v1970
        %v5242 = vunpack.c.l.b16 %v1971
        %v5243 = vunpack.c.l.b16 %v1972
        %v5244 = vunpack.c.l.b16 %v1973
        %v5245 = vunpack.c.l.b16 %v1974
        %v5246 = vunpack.c.l.b16 %v1975
        %v5247 = vunpack.c.l.b16 %v1976
        %v5248 = vunpack.c.l.b16 %v1977
        %v5249 = vunpack.c.l.b16 %v1978
        %v5250 = vunpack.c.l.b16 %v1979
        %v5251 = vpack.c.b16 %v5236, %v5235
        %v5252 = vpack.c.b16 %v5238, %v5237
        %v5253 = vpack.c.b16 %v5240, %v5239
        %v5254 = vpack.c.b16 %v5242, %v5241
        %v5255 = vpack.c.b16 %v5244, %v5243
        %v5256 = vpack.c.b16 %v5246, %v5245
        %v5257 = vpack.c.b16 %v5248, %v5247
        %v5258 = vpack.c.b16 %v5250, %v5249
        %5267 = vmatprep.subr.bf16.mxu0 0
        %5268 = vmatpush1.bf16.msra.mxu0 %v5251
        %5269 = vmatprep.subr.bf16.mxu0 0
        %5270 = vmatpush1.bf16.msra.mxu0 %v5252
        %5271 = vmatprep.subr.bf16.mxu0 0
        %5272 = vmatpush1.bf16.msra.mxu0 %v5253
        %5273 = vmatprep.subr.bf16.mxu0 0
        %5274 = vmatpush1.bf16.msra.mxu0 %v5254
        %5275 = vmatprep.subr.bf16.mxu0 0
        %5276 = vmatpush1.bf16.msra.mxu0 %v5255
        %5277 = vmatprep.subr.bf16.mxu0 0
        %5278 = vmatpush1.bf16.msra.mxu0 %v5256
        %5279 = vmatprep.subr.bf16.mxu0 0
        %5280 = vmatpush1.bf16.msra.mxu0 %v5257
        %5281 = vmatprep.subr.bf16.mxu0 0
        %5282 = vmatpush1.bf16.msra.mxu0 %v5258
        %5283 = vmatprep.subr.bf16.mxu0 0
        %5284 = vmatpush1.bf16.msra.mxu0 0
        %5285 = vmatprep.subr.bf16.mxu0 0
        %5286 = vmatpush1.bf16.msra.mxu0 0
        %5287 = vmatprep.subr.bf16.mxu0 0
        %5288 = vmatpush1.bf16.msra.mxu0 0
        %5289 = vmatprep.subr.bf16.mxu0 0
        %5290 = vmatpush1.bf16.msra.mxu0 0
        %5291 = vmatprep.subr.bf16.mxu0 0
        %5292 = vmatpush1.bf16.msra.mxu0 0
        %5293 = vmatprep.subr.bf16.mxu0 0
        %5294 = vmatpush1.bf16.msra.mxu0 0
        %5295 = vmatprep.subr.bf16.mxu0 0
        %5296 = vmatpush1.bf16.msra.mxu0 0
        %5297 = vmatprep.subr.bf16.mxu0 0
        %5298 = vmatpush1.bf16.msra.mxu0 0
        %5299 = vmatprep.mubr.bf16.mxu0 0
        %5300 = vmatmul.mubr.bf16.gmra.mrb[0].mxu0 %v4602
        %v5301 = vpop.f32.mrb[0].mxu0
        %v5302 = vadd.f32 0.0, %v5301
        %v5303 = vpop.f32.mrb[0].mxu0
        %v5304 = vpop.f32.mrb[0].mxu0
        %v5305 = vadd.f32 0.0, %v5304
        %v5306 = vpop.f32.mrb[0].mxu0
        %5307 = vmatprep.mubr.bf16.mxu0 0
        %5308 = vmatmul.mubr.bf16.gmra.mrb[0].mxu0 %v4603
        %v5309 = vpop.f32.mrb[0].mxu0
        %v5310 = vadd.f32 0.0, %v5309
        %v5311 = vpop.f32.mrb[0].mxu0
        %v5312 = vpop.f32.mrb[0].mxu0
        %v5313 = vadd.f32 0.0, %v5312
        %v5314 = vpop.f32.mrb[0].mxu0
        %5315 = vmatprep.mubr.bf16.mxu0 0
        %5316 = vmatmul.mubr.bf16.gmra.mrb[0].mxu0 %v4604
        %v5317 = vpop.f32.mrb[0].mxu0
        %v5318 = vadd.f32 0.0, %v5317
        %v5319 = vpop.f32.mrb[0].mxu0
        %v5320 = vpop.f32.mrb[0].mxu0
        %v5321 = vadd.f32 0.0, %v5320
        %v5322 = vpop.f32.mrb[0].mxu0
        %5323 = vmatprep.mubr.bf16.mxu0 0
        %5324 = vmatmul.mubr.bf16.gmra.mrb[0].mxu0 %v4605
        %v5325 = vpop.f32.mrb[0].mxu0
        %v5326 = vadd.f32 0.0, %v5325
        %v5327 = vpop.f32.mrb[0].mxu0
        %v5328 = vpop.f32.mrb[0].mxu0
        %v5329 = vadd.f32 0.0, %v5328
        %v5330 = vpop.f32.mrb[0].mxu0
        %5331 = vmatprep.mubr.bf16.mxu0 0
        %5332 = vmatmul.mubr.bf16.gmra.mrb[0].mxu0 %v4606
        %v5333 = vpop.f32.mrb[0].mxu0
        %v5334 = vadd.f32 0.0, %v5333
        %v5335 = vpop.f32.mrb[0].mxu0
        %v5336 = vpop.f32.mrb[0].mxu0
        %v5337 = vadd.f32 0.0, %v5336
        %v5338 = vpop.f32.mrb[0].mxu0
        %5339 = vmatprep.mubr.bf16.mxu0 0
        %5340 = vmatmul.mubr.bf16.gmra.mrb[0].mxu0 %v4607
        %v5341 = vpop.f32.mrb[0].mxu0
        %v5342 = vadd.f32 0.0, %v5341
        %v5343 = vpop.f32.mrb[0].mxu0
        %v5344 = vpop.f32.mrb[0].mxu0
        %v5345 = vadd.f32 0.0, %v5344
        %v5346 = vpop.f32.mrb[0].mxu0
        %5347 = vmatprep.mubr.bf16.mxu0 0
        %5348 = vmatmul.mubr.bf16.gmra.mrb[0].mxu0 %v4608
        %v5349 = vpop.f32.mrb[0].mxu0
        %v5350 = vadd.f32 0.0, %v5349
        %v5351 = vpop.f32.mrb[0].mxu0
        %v5352 = vpop.f32.mrb[0].mxu0
        %v5353 = vadd.f32 0.0, %v5352
        %v5354 = vpop.f32.mrb[0].mxu0
        %5355 = vmatprep.mubr.bf16.mxu0 0
        %5356 = vmatmul.mubr.bf16.gmra.mrb[0].mxu0 %v4609
        %v5357 = vpop.f32.mrb[0].mxu0
        %v5358 = vadd.f32 0.0, %v5357
        %v5359 = vpop.f32.mrb[0].mxu0
        %v5360 = vpop.f32.mrb[0].mxu0
        %v5361 = vadd.f32 0.0, %v5360
        %v5362 = vpop.f32.mrb[0].mxu0
        %5363 = vdwg.mxu0
        %v5380 = vunpack.c.l.b16 %v1980
        %v5381 = vunpack.c.l.b16 %v1981
        %v5382 = vunpack.c.l.b16 %v1982
        %v5383 = vunpack.c.l.b16 %v1983
        %v5384 = vunpack.c.l.b16 %v1984
        %v5385 = vunpack.c.l.b16 %v1985
        %v5386 = vunpack.c.l.b16 %v1986
        %v5387 = vunpack.c.l.b16 %v1987
        %v5388 = vunpack.c.l.b16 %v1988
        %v5389 = vunpack.c.l.b16 %v1989
        %v5390 = vunpack.c.l.b16 %v1990
        %v5391 = vunpack.c.l.b16 %v1991
        %v5392 = vunpack.c.l.b16 %v1992
        %v5393 = vunpack.c.l.b16 %v1993
        %v5394 = vunpack.c.l.b16 %v1994
        %v5395 = vunpack.c.l.b16 %v1995
        %v5396 = vpack.c.b16 %v5381, %v5380
        %v5397 = vpack.c.b16 %v5383, %v5382
        %v5398 = vpack.c.b16 %v5385, %v5384
        %v5399 = vpack.c.b16 %v5387, %v5386
        %v5400 = vpack.c.b16 %v5389, %v5388
        %v5401 = vpack.c.b16 %v5391, %v5390
        %v5402 = vpack.c.b16 %v5393, %v5392
        %v5403 = vpack.c.b16 %v5395, %v5394
        %5412 = vmatprep.subr.bf16.mxu0 0
        %5413 = vmatpush1.bf16.msra.mxu0 %v5396
        %5414 = vmatprep.subr.bf16.mxu0 0
        %5415 = vmatpush1.bf16.msra.mxu0 %v5397
        %5416 = vmatprep.subr.bf16.mxu0 0
        %5417 = vmatpush1.bf16.msra.mxu0 %v5398
        %5418 = vmatprep.subr.bf16.mxu0 0
        %5419 = vmatpush1.bf16.msra.mxu0 %v5399
        %5420 = vmatprep.subr.bf16.mxu0 0
        %5421 = vmatpush1.bf16.msra.mxu0 %v5400
        %5422 = vmatprep.subr.bf16.mxu0 0
        %5423 = vmatpush1.bf16.msra.mxu0 %v5401
        %5424 = vmatprep.subr.bf16.mxu0 0
        %5425 = vmatpush1.bf16.msra.mxu0 %v5402
        %5426 = vmatprep.subr.bf16.mxu0 0
        %5427 = vmatpush1.bf16.msra.mxu0 %v5403
        %5428 = vmatprep.subr.bf16.mxu0 0
        %5429 = vmatpush1.bf16.msra.mxu0 0
        %5430 = vmatprep.subr.bf16.mxu0 0
        %5431 = vmatpush1.bf16.msra.mxu0 0
        %5432 = vmatprep.subr.bf16.mxu0 0
        %5433 = vmatpush1.bf16.msra.mxu0 0
        %5434 = vmatprep.subr.bf16.mxu0 0
        %5435 = vmatpush1.bf16.msra.mxu0 0
        %5436 = vmatprep.subr.bf16.mxu0 0
        %5437 = vmatpush1.bf16.msra.mxu0 0
        %5438 = vmatprep.subr.bf16.mxu0 0
        %5439 = vmatpush1.bf16.msra.mxu0 0
        %5440 = vmatprep.subr.bf16.mxu0 0
        %5441 = vmatpush1.bf16.msra.mxu0 0
        %5442 = vmatprep.subr.bf16.mxu0 0
        %5443 = vmatpush1.bf16.msra.mxu0 0
        %5444 = vmatprep.mubr.bf16.mxu0 0
        %5445 = vmatmul.mubr.bf16.gmra.mrb[0].mxu0 %v4610
        %v5446 = vpop.f32.mrb[0].mxu0
        %v5447 = vadd.f32 0.0, %v5446
        %v5448 = vpop.f32.mrb[0].mxu0
        %v5449 = vpop.f32.mrb[0].mxu0
        %v5450 = vadd.f32 0.0, %v5449
        %v5451 = vpop.f32.mrb[0].mxu0
        %5452 = vmatprep.mubr.bf16.mxu0 0
        %5453 = vmatmul.mubr.bf16.gmra.mrb[0].mxu0 %v4611
        %v5454 = vpop.f32.mrb[0].mxu0
        %v5455 = vadd.f32 0.0, %v5454
        %v5456 = vpop.f32.mrb[0].mxu0
        %v5457 = vpop.f32.mrb[0].mxu0
        %v5458 = vadd.f32 0.0, %v5457
        %v5459 = vpop.f32.mrb[0].mxu0
        %5460 = vmatprep.mubr.bf16.mxu0 0
        %5461 = vmatmul.mubr.bf16.gmra.mrb[0].mxu0 %v4612
        %v5462 = vpop.f32.mrb[0].mxu0
        %v5463 = vadd.f32 0.0, %v5462
        %v5464 = vpop.f32.mrb[0].mxu0
        %v5465 = vpop.f32.mrb[0].mxu0
        %v5466 = vadd.f32 0.0, %v5465
        %v5467 = vpop.f32.mrb[0].mxu0
        %5468 = vmatprep.mubr.bf16.mxu0 0
        %5469 = vmatmul.mubr.bf16.gmra.mrb[0].mxu0 %v4613
        %v5470 = vpop.f32.mrb[0].mxu0
        %v5471 = vadd.f32 0.0, %v5470
        %v5472 = vpop.f32.mrb[0].mxu0
        %v5473 = vpop.f32.mrb[0].mxu0
        %v5474 = vadd.f32 0.0, %v5473
        %v5475 = vpop.f32.mrb[0].mxu0
        %5476 = vmatprep.mubr.bf16.mxu0 0
        %5477 = vmatmul.mubr.bf16.gmra.mrb[0].mxu0 %v4614
        %v5478 = vpop.f32.mrb[0].mxu0
        %v5479 = vadd.f32 0.0, %v5478
        %v5480 = vpop.f32.mrb[0].mxu0
        %v5481 = vpop.f32.mrb[0].mxu0
        %v5482 = vadd.f32 0.0, %v5481
        %v5483 = vpop.f32.mrb[0].mxu0
        %5484 = vmatprep.mubr.bf16.mxu0 0
        %5485 = vmatmul.mubr.bf16.gmra.mrb[0].mxu0 %v4615
        %v5486 = vpop.f32.mrb[0].mxu0
        %v5487 = vadd.f32 0.0, %v5486
        %v5488 = vpop.f32.mrb[0].mxu0
        %v5489 = vpop.f32.mrb[0].mxu0
        %v5490 = vadd.f32 0.0, %v5489
        %v5491 = vpop.f32.mrb[0].mxu0
        %5492 = vmatprep.mubr.bf16.mxu0 0
        %5493 = vmatmul.mubr.bf16.gmra.mrb[0].mxu0 %v4616
        %v5494 = vpop.f32.mrb[0].mxu0
        %v5495 = vadd.f32 0.0, %v5494
        %v5496 = vpop.f32.mrb[0].mxu0
        %v5497 = vpop.f32.mrb[0].mxu0
        %v5498 = vadd.f32 0.0, %v5497
        %v5499 = vpop.f32.mrb[0].mxu0
        %5500 = vmatprep.mubr.bf16.mxu0 0
        %5501 = vmatmul.mubr.bf16.gmra.mrb[0].mxu0 %v4617
        %v5502 = vpop.f32.mrb[0].mxu0
        %v5503 = vadd.f32 0.0, %v5502
        %v5504 = vpop.f32.mrb[0].mxu0
        %v5505 = vpop.f32.mrb[0].mxu0
        %v5506 = vadd.f32 0.0, %v5505
        %v5507 = vpop.f32.mrb[0].mxu0
        %5508 = vdwg.mxu0
        %v5525 = vunpack.c.l.b16 %v1996
        %v5526 = vunpack.c.l.b16 %v1997
        %v5527 = vunpack.c.l.b16 %v1998
        %v5528 = vunpack.c.l.b16 %v1999
        %v5529 = vunpack.c.l.b16 %v2000
        %v5530 = vunpack.c.l.b16 %v2001
        %v5531 = vunpack.c.l.b16 %v2002
        %v5532 = vunpack.c.l.b16 %v2003
        %v5533 = vunpack.c.l.b16 %v2004
        %v5534 = vunpack.c.l.b16 %v2005
        %v5535 = vunpack.c.l.b16 %v2006
        %v5536 = vunpack.c.l.b16 %v2007
        %v5537 = vunpack.c.l.b16 %v2008
        %v5538 = vunpack.c.l.b16 %v2009
        %v5539 = vunpack.c.l.b16 %v2010
        %v5540 = vunpack.c.l.b16 %v2011
        %v5541 = vpack.c.b16 %v5526, %v5525
        %v5542 = vpack.c.b16 %v5528, %v5527
        %v5543 = vpack.c.b16 %v5530, %v5529
        %v5544 = vpack.c.b16 %v5532, %v5531
        %v5545 = vpack.c.b16 %v5534, %v5533
        %v5546 = vpack.c.b16 %v5536, %v5535
        %v5547 = vpack.c.b16 %v5538, %v5537
        %v5548 = vpack.c.b16 %v5540, %v5539
        %5557 = vmatprep.subr.bf16.mxu0 0
        %5558 = vmatpush1.bf16.msra.mxu0 %v5541
        %5559 = vmatprep.subr.bf16.mxu0 0
        %5560 = vmatpush1.bf16.msra.mxu0 %v5542
        %5561 = vmatprep.subr.bf16.mxu0 0
        %5562 = vmatpush1.bf16.msra.mxu0 %v5543
        %5563 = vmatprep.subr.bf16.mxu0 0
        %5564 = vmatpush1.bf16.msra.mxu0 %v5544
        %5565 = vmatprep.subr.bf16.mxu0 0
        %5566 = vmatpush1.bf16.msra.mxu0 %v5545
        %5567 = vmatprep.subr.bf16.mxu0 0
        %5568 = vmatpush1.bf16.msra.mxu0 %v5546
        %5569 = vmatprep.subr.bf16.mxu0 0
        %5570 = vmatpush1.bf16.msra.mxu0 %v5547
        %5571 = vmatprep.subr.bf16.mxu0 0
        %5572 = vmatpush1.bf16.msra.mxu0 %v5548
        %5573 = vmatprep.subr.bf16.mxu0 0
        %5574 = vmatpush1.bf16.msra.mxu0 0
        %5575 = vmatprep.subr.bf16.mxu0 0
        %5576 = vmatpush1.bf16.msra.mxu0 0
        %5577 = vmatprep.subr.bf16.mxu0 0
        %5578 = vmatpush1.bf16.msra.mxu0 0
        %5579 = vmatprep.subr.bf16.mxu0 0
        %5580 = vmatpush1.bf16.msra.mxu0 0
        %5581 = vmatprep.subr.bf16.mxu0 0
        %5582 = vmatpush1.bf16.msra.mxu0 0
        %5583 = vmatprep.subr.bf16.mxu0 0
        %5584 = vmatpush1.bf16.msra.mxu0 0
        %5585 = vmatprep.subr.bf16.mxu0 0
        %5586 = vmatpush1.bf16.msra.mxu0 0
        %5587 = vmatprep.subr.bf16.mxu0 0
        %5588 = vmatpush1.bf16.msra.mxu0 0
        %5589 = vmatprep.mubr.bf16.mxu0 0
        %5590 = vmatmul.mubr.bf16.gmra.mrb[0].mxu0 %v4618
        %v5591 = vpop.f32.mrb[0].mxu0
        %v5592 = vadd.f32 0.0, %v5591
        %v5593 = vpop.f32.mrb[0].mxu0
        %v5594 = vpop.f32.mrb[0].mxu0
        %v5595 = vadd.f32 0.0, %v5594
        %v5596 = vpop.f32.mrb[0].mxu0
        %5597 = vmatprep.mubr.bf16.mxu0 0
        %5598 = vmatmul.mubr.bf16.gmra.mrb[0].mxu0 %v4619
        %v5599 = vpop.f32.mrb[0].mxu0
        %v5600 = vadd.f32 0.0, %v5599
        %v5601 = vpop.f32.mrb[0].mxu0
        %v5602 = vpop.f32.mrb[0].mxu0
        %v5603 = vadd.f32 0.0, %v5602
        %v5604 = vpop.f32.mrb[0].mxu0
        %5605 = vmatprep.mubr.bf16.mxu0 0
        %5606 = vmatmul.mubr.bf16.gmra.mrb[0].mxu0 %v4620
        %v5607 = vpop.f32.mrb[0].mxu0
        %v5608 = vadd.f32 0.0, %v5607
        %v5609 = vpop.f32.mrb[0].mxu0
        %v5610 = vpop.f32.mrb[0].mxu0
        %v5611 = vadd.f32 0.0, %v5610
        %v5612 = vpop.f32.mrb[0].mxu0
        %5613 = vmatprep.mubr.bf16.mxu0 0
        %5614 = vmatmul.mubr.bf16.gmra.mrb[0].mxu0 %v4621
        %v5615 = vpop.f32.mrb[0].mxu0
        %v5616 = vadd.f32 0.0, %v5615
        %v5617 = vpop.f32.mrb[0].mxu0
        %v5618 = vpop.f32.mrb[0].mxu0
        %v5619 = vadd.f32 0.0, %v5618
        %v5620 = vpop.f32.mrb[0].mxu0
        %5621 = vmatprep.mubr.bf16.mxu0 0
        %5622 = vmatmul.mubr.bf16.gmra.mrb[0].mxu0 %v4622
        %v5623 = vpop.f32.mrb[0].mxu0
        %v5624 = vadd.f32 0.0, %v5623
        %v5625 = vpop.f32.mrb[0].mxu0
        %v5626 = vpop.f32.mrb[0].mxu0
        %v5627 = vadd.f32 0.0, %v5626
        %v5628 = vpop.f32.mrb[0].mxu0
        %5629 = vmatprep.mubr.bf16.mxu0 0
        %5630 = vmatmul.mubr.bf16.gmra.mrb[0].mxu0 %v4623
        %v5631 = vpop.f32.mrb[0].mxu0
        %v5632 = vadd.f32 0.0, %v5631
        %v5633 = vpop.f32.mrb[0].mxu0
        %v5634 = vpop.f32.mrb[0].mxu0
        %v5635 = vadd.f32 0.0, %v5634
        %v5636 = vpop.f32.mrb[0].mxu0
        %5637 = vmatprep.mubr.bf16.mxu0 0
        %5638 = vmatmul.mubr.bf16.gmra.mrb[0].mxu0 %v4624
        %v5639 = vpop.f32.mrb[0].mxu0
        %v5640 = vadd.f32 0.0, %v5639
        %v5641 = vpop.f32.mrb[0].mxu0
        %v5642 = vpop.f32.mrb[0].mxu0
        %v5643 = vadd.f32 0.0, %v5642
        %v5644 = vpop.f32.mrb[0].mxu0
        %5645 = vmatprep.mubr.bf16.mxu0 0
        %5646 = vmatmul.mubr.bf16.gmra.mrb[0].mxu0 %v4625
        %v5647 = vpop.f32.mrb[0].mxu0
        %v5648 = vadd.f32 0.0, %v5647
        %v5649 = vpop.f32.mrb[0].mxu0
        %v5650 = vpop.f32.mrb[0].mxu0
        %v5651 = vadd.f32 0.0, %v5650
        %v5652 = vpop.f32.mrb[0].mxu0
        %5653 = vdwg.mxu0
        %v5654 = vadd.f32 %v5010, %v5157
        %v5655 = vadd.f32 %v5011, %v5160
        %v5656 = vadd.f32 %v5012, %v5165
        %v5657 = vadd.f32 %v5013, %v5168
        %v5658 = vadd.f32 %v5014, %v5173
        %v5659 = vadd.f32 %v5015, %v5176
        %v5660 = vadd.f32 %v5016, %v5181
        %v5661 = vadd.f32 %v5017, %v5184
        %v5662 = vadd.f32 %v5018, %v5189
        %v5663 = vadd.f32 %v5019, %v5192
        %v5664 = vadd.f32 %v5020, %v5197
        %v5665 = vadd.f32 %v5021, %v5200
        %v5666 = vadd.f32 %v5022, %v5205
        %v5667 = vadd.f32 %v5023, %v5208
        %v5668 = vadd.f32 %v5024, %v5213
        %v5669 = vadd.f32 %v5025, %v5216
        %v5670 = vadd.f32 %v5026, %v5302
        %v5671 = vadd.f32 %v5027, %v5305
        %v5672 = vadd.f32 %v5028, %v5310
        %v5673 = vadd.f32 %v5029, %v5313
        %v5674 = vadd.f32 %v5030, %v5318
        %v5675 = vadd.f32 %v5031, %v5321
        %v5676 = vadd.f32 %v5032, %v5326
        %v5677 = vadd.f32 %v5033, %v5329
        %v5678 = vadd.f32 %v5034, %v5334
        %v5679 = vadd.f32 %v5035, %v5337
        %v5680 = vadd.f32 %v5036, %v5342
        %v5681 = vadd.f32 %v5037, %v5345
        %v5682 = vadd.f32 %v5038, %v5350
        %v5683 = vadd.f32 %v5039, %v5353
        %v5684 = vadd.f32 %v5040, %v5358
        %v5685 = vadd.f32 %v5041, %v5361
        %v5686 = vadd.f32 %v5042, %v5447
        %v5687 = vadd.f32 %v5043, %v5450
        %v5688 = vadd.f32 %v5044, %v5455
        %v5689 = vadd.f32 %v5045, %v5458
        %v5690 = vadd.f32 %v5046, %v5463
        %v5691 = vadd.f32 %v5047, %v5466
        %v5692 = vadd.f32 %v5048, %v5471
        %v5693 = vadd.f32 %v5049, %v5474
        %v5694 = vadd.f32 %v5050, %v5479
        %v5695 = vadd.f32 %v5051, %v5482
        %v5696 = vadd.f32 %v5052, %v5487
        %v5697 = vadd.f32 %v5053, %v5490
        %v5698 = vadd.f32 %v5054, %v5495
        %v5699 = vadd.f32 %v5055, %v5498
        %v5700 = vadd.f32 %v5056, %v5503
        %v5701 = vadd.f32 %v5057, %v5506
        %v5702 = vadd.f32 %v5058, %v5592
        %v5703 = vadd.f32 %v5059, %v5595
        %v5704 = vadd.f32 %v5060, %v5600
        %v5705 = vadd.f32 %v5061, %v5603
        %v5706 = vadd.f32 %v5062, %v5608
        %v5707 = vadd.f32 %v5063, %v5611
        %v5708 = vadd.f32 %v5064, %v5616
        %v5709 = vadd.f32 %v5065, %v5619
        %v5710 = vadd.f32 %v5066, %v5624
        %v5711 = vadd.f32 %v5067, %v5627
        %v5712 = vadd.f32 %v5068, %v5632
        %v5713 = vadd.f32 %v5069, %v5635
        %v5714 = vadd.f32 %v5070, %v5640
        %v5715 = vadd.f32 %v5071, %v5643
        %v5716 = vadd.f32 %v5072, %v5648
        %v5717 = vadd.f32 %v5073, %v5651
        %5718 = vst.msk [vmem:[#allocation4] sm:$0xff] %vm2172, %v5654
        %5719 = vst.msk [vmem:[#allocation4 + $0x8] sm:$0xff] %vm2172, %v5655
        %5720 = vst.msk [vmem:[#allocation4 + $0x10] sm:$0xff] %vm2172, %v5656
        %5721 = vst.msk [vmem:[#allocation4 + $0x18] sm:$0xff] %vm2172, %v5657
        %5722 = vst.msk [vmem:[#allocation4 + $0x20] sm:$0xff] %vm2172, %v5658
        %5723 = vst.msk [vmem:[#allocation4 + $0x28] sm:$0xff] %vm2172, %v5659
        %5724 = vst.msk [vmem:[#allocation4 + $0x30] sm:$0xff] %vm2172, %v5660
        %5725 = vst.msk [vmem:[#allocation4 + $0x38] sm:$0xff] %vm2172, %v5661
        %5726 = vst.msk [vmem:[#allocation4 + $0x40] sm:$0xff] %vm2172, %v5662
        %5727 = vst.msk [vmem:[#allocation4 + $0x48] sm:$0xff] %vm2172, %v5663
        %5728 = vst.msk [vmem:[#allocation4 + $0x50] sm:$0xff] %vm2172, %v5664
        %5729 = vst.msk [vmem:[#allocation4 + $0x58] sm:$0xff] %vm2172, %v5665
        %5730 = vst.msk [vmem:[#allocation4 + $0x60] sm:$0xff] %vm2172, %v5666
        %5731 = vst.msk [vmem:[#allocation4 + $0x68] sm:$0xff] %vm2172, %v5667
        %5732 = vst.msk [vmem:[#allocation4 + $0x70] sm:$0xff] %vm2172, %v5668
        %5733 = vst.msk [vmem:[#allocation4 + $0x78] sm:$0xff] %vm2172, %v5669
        %5734 = vst.msk [vmem:[#allocation4 + $0x80] sm:$0xff] %vm2172, %v5670
        %5735 = vst.msk [vmem:[#allocation4 + $0x88] sm:$0xff] %vm2172, %v5671
        %5736 = vst.msk [vmem:[#allocation4 + $0x90] sm:$0xff] %vm2172, %v5672
        %5737 = vst.msk [vmem:[#allocation4 + $0x98] sm:$0xff] %vm2172, %v5673
        %5738 = vst.msk [vmem:[#allocation4 + $0xa0] sm:$0xff] %vm2172, %v5674
        %5739 = vst.msk [vmem:[#allocation4 + $0xa8] sm:$0xff] %vm2172, %v5675
        %5740 = vst.msk [vmem:[#allocation4 + $0xb0] sm:$0xff] %vm2172, %v5676
        %5741 = vst.msk [vmem:[#allocation4 + $0xb8] sm:$0xff] %vm2172, %v5677
        %5742 = vst.msk [vmem:[#allocation4 + $0xc0] sm:$0xff] %vm2172, %v5678
        %5743 = vst.msk [vmem:[#allocation4 + $0xc8] sm:$0xff] %vm2172, %v5679
        %5744 = vst.msk [vmem:[#allocation4 + $0xd0] sm:$0xff] %vm2172, %v5680
        %5745 = vst.msk [vmem:[#allocation4 + $0xd8] sm:$0xff] %vm2172, %v5681
        %5746 = vst.msk [vmem:[#allocation4 + $0xe0] sm:$0xff] %vm2172, %v5682
        %5747 = vst.msk [vmem:[#allocation4 + $0xe8] sm:$0xff] %vm2172, %v5683
        %5748 = vst.msk [vmem:[#allocation4 + $0xf0] sm:$0xff] %vm2172, %v5684
        %5749 = vst.msk [vmem:[#allocation4 + $0xf8] sm:$0xff] %vm2172, %v5685
        %5750 = vst.msk [vmem:[#allocation4 + $0x100] sm:$0xff] %vm2172, %v5686
        %5751 = vst.msk [vmem:[#allocation4 + $0x108] sm:$0xff] %vm2172, %v5687
        %5752 = vst.msk [vmem:[#allocation4 + $0x110] sm:$0xff] %vm2172, %v5688
        %5753 = vst.msk [vmem:[#allocation4 + $0x118] sm:$0xff] %vm2172, %v5689
        %5754 = vst.msk [vmem:[#allocation4 + $0x120] sm:$0xff] %vm2172, %v5690
        %5755 = vst.msk [vmem:[#allocation4 + $0x128] sm:$0xff] %vm2172, %v5691
        %5756 = vst.msk [vmem:[#allocation4 + $0x130] sm:$0xff] %vm2172, %v5692
        %5757 = vst.msk [vmem:[#allocation4 + $0x138] sm:$0xff] %vm2172, %v5693
        %5758 = vst.msk [vmem:[#allocation4 + $0x140] sm:$0xff] %vm2172, %v5694
        %5759 = vst.msk [vmem:[#allocation4 + $0x148] sm:$0xff] %vm2172, %v5695
        %5760 = vst.msk [vmem:[#allocation4 + $0x150] sm:$0xff] %vm2172, %v5696
        %5761 = vst.msk [vmem:[#allocation4 + $0x158] sm:$0xff] %vm2172, %v5697
        %5762 = vst.msk [vmem:[#allocation4 + $0x160] sm:$0xff] %vm2172, %v5698
        %5763 = vst.msk [vmem:[#allocation4 + $0x168] sm:$0xff] %vm2172, %v5699
        %5764 = vst.msk [vmem:[#allocation4 + $0x170] sm:$0xff] %vm2172, %v5700
        %5765 = vst.msk [vmem:[#allocation4 + $0x178] sm:$0xff] %vm2172, %v5701
        %5766 = vst.msk [vmem:[#allocation4 + $0x180] sm:$0xff] %vm2172, %v5702
        %5767 = vst.msk [vmem:[#allocation4 + $0x188] sm:$0xff] %vm2172, %v5703
        %5768 = vst.msk [vmem:[#allocation4 + $0x190] sm:$0xff] %vm2172, %v5704
        %5769 = vst.msk [vmem:[#allocation4 + $0x198] sm:$0xff] %vm2172, %v5705
        %5770 = vst.msk [vmem:[#allocation4 + $0x1a0] sm:$0xff] %vm2172, %v5706
        %5771 = vst.msk [vmem:[#allocation4 + $0x1a8] sm:$0xff] %vm2172, %v5707
        %5772 = vst.msk [vmem:[#allocation4 + $0x1b0] sm:$0xff] %vm2172, %v5708
        %5773 = vst.msk [vmem:[#allocation4 + $0x1b8] sm:$0xff] %vm2172, %v5709
        %5774 = vst.msk [vmem:[#allocation4 + $0x1c0] sm:$0xff] %vm2172, %v5710
        %5775 = vst.msk [vmem:[#allocation4 + $0x1c8] sm:$0xff] %vm2172, %v5711
        %5776 = vst.msk [vmem:[#allocation4 + $0x1d0] sm:$0xff] %vm2172, %v5712
        %5777 = vst.msk [vmem:[#allocation4 + $0x1d8] sm:$0xff] %vm2172, %v5713
        %5778 = vst.msk [vmem:[#allocation4 + $0x1e0] sm:$0xff] %vm2172, %v5714
        %5779 = vst.msk [vmem:[#allocation4 + $0x1e8] sm:$0xff] %vm2172, %v5715
        %5780 = vst.msk [vmem:[#allocation4 + $0x1f0] sm:$0xff] %vm2172, %v5716
        %5781 = vst.msk [vmem:[#allocation4 + $0x1f8] sm:$0xff] %vm2172, %v5717
        %5782 = vst.msk [vmem:[#allocation2] sm:$0xff] %vm4401, %v3313
        %5783 = vst.msk [vmem:[#allocation2 + $0x8] sm:$0xff] %vm4401, %v3314
        %5784 = vst.msk [vmem:[#allocation2 + $0x10] sm:$0xff] %vm4401, %v3315
        %5785 = vst.msk [vmem:[#allocation2 + $0x18] sm:$0xff] %vm4401, %v3316
        %5786 = vst.msk [vmem:[#allocation2 + $0x20] sm:$0xff] %vm4401, %v3317
        %5787 = vst.msk [vmem:[#allocation2 + $0x28] sm:$0xff] %vm4401, %v3318
        %5788 = vst.msk [vmem:[#allocation2 + $0x30] sm:$0xff] %vm4401, %v3319
        %5789 = vst.msk [vmem:[#allocation2 + $0x38] sm:$0xff] %vm4401, %v3320
        %5790 = vst.msk [vmem:[#allocation2 + $0x40] sm:$0xff] %vm4401, %v3321
        %5791 = vst.msk [vmem:[#allocation2 + $0x48] sm:$0xff] %vm4401, %v3322
        %5792 = vst.msk [vmem:[#allocation2 + $0x50] sm:$0xff] %vm4401, %v3323
        %5793 = vst.msk [vmem:[#allocation2 + $0x58] sm:$0xff] %vm4401, %v3324
        %5794 = vst.msk [vmem:[#allocation2 + $0x60] sm:$0xff] %vm4401, %v3325
        %5795 = vst.msk [vmem:[#allocation2 + $0x68] sm:$0xff] %vm4401, %v3326
        %5796 = vst.msk [vmem:[#allocation2 + $0x70] sm:$0xff] %vm4401, %v3327
        %5797 = vst.msk [vmem:[#allocation2 + $0x78] sm:$0xff] %vm4401, %v3328
        %5798 = vst.msk [vmem:[#allocation2 + $0x80] sm:$0xff] %vm4401, %v3329
        %5799 = vst.msk [vmem:[#allocation2 + $0x88] sm:$0xff] %vm4401, %v3330
        %5800 = vst.msk [vmem:[#allocation2 + $0x90] sm:$0xff] %vm4401, %v3331
        %5801 = vst.msk [vmem:[#allocation2 + $0x98] sm:$0xff] %vm4401, %v3332
        %5802 = vst.msk [vmem:[#allocation2 + $0xa0] sm:$0xff] %vm4401, %v3333
        %5803 = vst.msk [vmem:[#allocation2 + $0xa8] sm:$0xff] %vm4401, %v3334
        %5804 = vst.msk [vmem:[#allocation2 + $0xb0] sm:$0xff] %vm4401, %v3335
        %5805 = vst.msk [vmem:[#allocation2 + $0xb8] sm:$0xff] %vm4401, %v3336
        %5806 = vst.msk [vmem:[#allocation2 + $0xc0] sm:$0xff] %vm4401, %v3337
        %5807 = vst.msk [vmem:[#allocation2 + $0xc8] sm:$0xff] %vm4401, %v3338
        %5808 = vst.msk [vmem:[#allocation2 + $0xd0] sm:$0xff] %vm4401, %v3339
        %5809 = vst.msk [vmem:[#allocation2 + $0xd8] sm:$0xff] %vm4401, %v3340
        %5810 = vst.msk [vmem:[#allocation2 + $0xe0] sm:$0xff] %vm4401, %v3341
        %5811 = vst.msk [vmem:[#allocation2 + $0xe8] sm:$0xff] %vm4401, %v3342
        %5812 = vst.msk [vmem:[#allocation2 + $0xf0] sm:$0xff] %vm4401, %v3343
        %5813 = vst.msk [vmem:[#allocation2 + $0xf8] sm:$0xff] %vm4401, %v3344
        %5814 = vst.msk [vmem:[#allocation2 + $0x100] sm:$0xff] %vm4401, %v3345
        %5815 = vst.msk [vmem:[#allocation2 + $0x108] sm:$0xff] %vm4401, %v3346
        %5816 = vst.msk [vmem:[#allocation2 + $0x110] sm:$0xff] %vm4401, %v3347
        %5817 = vst.msk [vmem:[#allocation2 + $0x118] sm:$0xff] %vm4401, %v3348
        %5818 = vst.msk [vmem:[#allocation2 + $0x120] sm:$0xff] %vm4401, %v3349
        %5819 = vst.msk [vmem:[#allocation2 + $0x128] sm:$0xff] %vm4401, %v3350
        %5820 = vst.msk [vmem:[#allocation2 + $0x130] sm:$0xff] %vm4401, %v3351
        %5821 = vst.msk [vmem:[#allocation2 + $0x138] sm:$0xff] %vm4401, %v3352
        %5822 = vst.msk [vmem:[#allocation2 + $0x140] sm:$0xff] %vm4401, %v3353
        %5823 = vst.msk [vmem:[#allocation2 + $0x148] sm:$0xff] %vm4401, %v3354
        %5824 = vst.msk [vmem:[#allocation2 + $0x150] sm:$0xff] %vm4401, %v3355
        %5825 = vst.msk [vmem:[#allocation2 + $0x158] sm:$0xff] %vm4401, %v3356
        %5826 = vst.msk [vmem:[#allocation2 + $0x160] sm:$0xff] %vm4401, %v3357
        %5827 = vst.msk [vmem:[#allocation2 + $0x168] sm:$0xff] %vm4401, %v3358
        %5828 = vst.msk [vmem:[#allocation2 + $0x170] sm:$0xff] %vm4401, %v3359
        %5829 = vst.msk [vmem:[#allocation2 + $0x178] sm:$0xff] %vm4401, %v3360
        %5830 = vst.msk [vmem:[#allocation2 + $0x180] sm:$0xff] %vm4401, %v3361
        %5831 = vst.msk [vmem:[#allocation2 + $0x188] sm:$0xff] %vm4401, %v3362
        %5832 = vst.msk [vmem:[#allocation2 + $0x190] sm:$0xff] %vm4401, %v3363
        %5833 = vst.msk [vmem:[#allocation2 + $0x198] sm:$0xff] %vm4401, %v3364
        %5834 = vst.msk [vmem:[#allocation2 + $0x1a0] sm:$0xff] %vm4401, %v3365
        %5835 = vst.msk [vmem:[#allocation2 + $0x1a8] sm:$0xff] %vm4401, %v3366
        %5836 = vst.msk [vmem:[#allocation2 + $0x1b0] sm:$0xff] %vm4401, %v3367
        %5837 = vst.msk [vmem:[#allocation2 + $0x1b8] sm:$0xff] %vm4401, %v3368
        %5838 = vst.msk [vmem:[#allocation2 + $0x1c0] sm:$0xff] %vm4401, %v3369
        %5839 = vst.msk [vmem:[#allocation2 + $0x1c8] sm:$0xff] %vm4401, %v3370
        %5840 = vst.msk [vmem:[#allocation2 + $0x1d0] sm:$0xff] %vm4401, %v3371
        %5841 = vst.msk [vmem:[#allocation2 + $0x1d8] sm:$0xff] %vm4401, %v3372
        %5842 = vst.msk [vmem:[#allocation2 + $0x1e0] sm:$0xff] %vm4401, %v3373
        %5843 = vst.msk [vmem:[#allocation2 + $0x1e8] sm:$0xff] %vm4401, %v3374
        %5844 = vst.msk [vmem:[#allocation2 + $0x1f0] sm:$0xff] %vm4401, %v3375
        %5845 = vst.msk [vmem:[#allocation2 + $0x1f8] sm:$0xff] %vm4401, %v3376
        %p5846 = scmp.eq.s32.totalorder %s23, 1
        // Predicated region
        $region247: #{tpu_custom_call.1} parent=221 // pred_check
          %p5847 = pneg %p5846
        $region248: #{tpu_custom_call.1} parent=221 // pred_check_branch
          %5849 = sbr.rel (%p5847) target = $region250
        $region249: #{tpu_custom_call.1} parent=221 // pred_region
          %v5850 = vld [vmem:[#allocation4] sm:$0xff]
          %v5851 = vld [vmem:[#allocation4 + $0x8] sm:$0xff]
          %v5852 = vld [vmem:[#allocation4 + $0x10] sm:$0xff]
          %v5853 = vld [vmem:[#allocation4 + $0x18] sm:$0xff]
          %v5854 = vld [vmem:[#allocation4 + $0x20] sm:$0xff]
          %v5855 = vld [vmem:[#allocation4 + $0x28] sm:$0xff]
          %v5856 = vld [vmem:[#allocation4 + $0x30] sm:$0xff]
          %v5857 = vld [vmem:[#allocation4 + $0x38] sm:$0xff]
          %v5858 = vld [vmem:[#allocation4 + $0x40] sm:$0xff]
          %v5859 = vld [vmem:[#allocation4 + $0x48] sm:$0xff]
          %v5860 = vld [vmem:[#allocation4 + $0x50] sm:$0xff]
          %v5861 = vld [vmem:[#allocation4 + $0x58] sm:$0xff]
          %v5862 = vld [vmem:[#allocation4 + $0x60] sm:$0xff]
          %v5863 = vld [vmem:[#allocation4 + $0x68] sm:$0xff]
          %v5864 = vld [vmem:[#allocation4 + $0x70] sm:$0xff]
          %v5865 = vld [vmem:[#allocation4 + $0x78] sm:$0xff]
          %v5866 = vld [vmem:[#allocation4 + $0x80] sm:$0xff]
          %v5867 = vld [vmem:[#allocation4 + $0x88] sm:$0xff]
          %v5868 = vld [vmem:[#allocation4 + $0x90] sm:$0xff]
          %v5869 = vld [vmem:[#allocation4 + $0x98] sm:$0xff]
          %v5870 = vld [vmem:[#allocation4 + $0xa0] sm:$0xff]
          %v5871 = vld [vmem:[#allocation4 + $0xa8] sm:$0xff]
          %v5872 = vld [vmem:[#allocation4 + $0xb0] sm:$0xff]
          %v5873 = vld [vmem:[#allocation4 + $0xb8] sm:$0xff]
          %v5874 = vld [vmem:[#allocation4 + $0xc0] sm:$0xff]
          %v5875 = vld [vmem:[#allocation4 + $0xc8] sm:$0xff]
          %v5876 = vld [vmem:[#allocation4 + $0xd0] sm:$0xff]
          %v5877 = vld [vmem:[#allocation4 + $0xd8] sm:$0xff]
          %v5878 = vld [vmem:[#allocation4 + $0xe0] sm:$0xff]
          %v5879 = vld [vmem:[#allocation4 + $0xe8] sm:$0xff]
          %v5880 = vld [vmem:[#allocation4 + $0xf0] sm:$0xff]
          %v5881 = vld [vmem:[#allocation4 + $0xf8] sm:$0xff]
          %v5882 = vld [vmem:[#allocation4 + $0x100] sm:$0xff]
          %v5883 = vld [vmem:[#allocation4 + $0x108] sm:$0xff]
          %v5884 = vld [vmem:[#allocation4 + $0x110] sm:$0xff]
          %v5885 = vld [vmem:[#allocation4 + $0x118] sm:$0xff]
          %v5886 = vld [vmem:[#allocation4 + $0x120] sm:$0xff]
          %v5887 = vld [vmem:[#allocation4 + $0x128] sm:$0xff]
          %v5888 = vld [vmem:[#allocation4 + $0x130] sm:$0xff]
          %v5889 = vld [vmem:[#allocation4 + $0x138] sm:$0xff]
          %v5890 = vld [vmem:[#allocation4 + $0x140] sm:$0xff]
          %v5891 = vld [vmem:[#allocation4 + $0x148] sm:$0xff]
          %v5892 = vld [vmem:[#allocation4 + $0x150] sm:$0xff]
          %v5893 = vld [vmem:[#allocation4 + $0x158] sm:$0xff]
          %v5894 = vld [vmem:[#allocation4 + $0x160] sm:$0xff]
          %v5895 = vld [vmem:[#allocation4 + $0x168] sm:$0xff]
          %v5896 = vld [vmem:[#allocation4 + $0x170] sm:$0xff]
          %v5897 = vld [vmem:[#allocation4 + $0x178] sm:$0xff]
          %v5898 = vld [vmem:[#allocation4 + $0x180] sm:$0xff]
          %v5899 = vld [vmem:[#allocation4 + $0x188] sm:$0xff]
          %v5900 = vld [vmem:[#allocation4 + $0x190] sm:$0xff]
          %v5901 = vld [vmem:[#allocation4 + $0x198] sm:$0xff]
          %v5902 = vld [vmem:[#allocation4 + $0x1a0] sm:$0xff]
          %v5903 = vld [vmem:[#allocation4 + $0x1a8] sm:$0xff]
          %v5904 = vld [vmem:[#allocation4 + $0x1b0] sm:$0xff]
          %v5905 = vld [vmem:[#allocation4 + $0x1b8] sm:$0xff]
          %v5906 = vld [vmem:[#allocation4 + $0x1c0] sm:$0xff]
          %v5907 = vld [vmem:[#allocation4 + $0x1c8] sm:$0xff]
          %v5908 = vld [vmem:[#allocation4 + $0x1d0] sm:$0xff]
          %v5909 = vld [vmem:[#allocation4 + $0x1d8] sm:$0xff]
          %v5910 = vld [vmem:[#allocation4 + $0x1e0] sm:$0xff]
          %v5911 = vld [vmem:[#allocation4 + $0x1e8] sm:$0xff]
          %v5912 = vld [vmem:[#allocation4 + $0x1f0] sm:$0xff]
          %v5913 = vld [vmem:[#allocation4 + $0x1f8] sm:$0xff]
          %v5914 = vld [vmem:[#allocation3] sm:$0xff]
          %v5915 = vld [vmem:[#allocation3 + $0x8] sm:$0xff]
          %v5916 = vld [vmem:[#allocation3 + $0x10] sm:$0xff]
          %v5917 = vld [vmem:[#allocation3 + $0x18] sm:$0xff]
          %v5918 = vld [vmem:[#allocation3 + $0x20] sm:$0xff]
          %v5919 = vld [vmem:[#allocation3 + $0x28] sm:$0xff]
          %v5920 = vld [vmem:[#allocation3 + $0x30] sm:$0xff]
          %v5921 = vld [vmem:[#allocation3 + $0x38] sm:$0xff]
          %v5922 = vld [vmem:[#allocation3 + $0x40] sm:$0xff]
          %v5923 = vld [vmem:[#allocation3 + $0x48] sm:$0xff]
          %v5924 = vld [vmem:[#allocation3 + $0x50] sm:$0xff]
          %v5925 = vld [vmem:[#allocation3 + $0x58] sm:$0xff]
          %v5926 = vld [vmem:[#allocation3 + $0x60] sm:$0xff]
          %v5927 = vld [vmem:[#allocation3 + $0x68] sm:$0xff]
          %v5928 = vld [vmem:[#allocation3 + $0x70] sm:$0xff]
          %v5929 = vld [vmem:[#allocation3 + $0x78] sm:$0xff]
          %v5930 = vld [vmem:[#allocation3 + $0x80] sm:$0xff]
          %v5931 = vld [vmem:[#allocation3 + $0x88] sm:$0xff]
          %v5932 = vld [vmem:[#allocation3 + $0x90] sm:$0xff]
          %v5933 = vld [vmem:[#allocation3 + $0x98] sm:$0xff]
          %v5934 = vld [vmem:[#allocation3 + $0xa0] sm:$0xff]
          %v5935 = vld [vmem:[#allocation3 + $0xa8] sm:$0xff]
          %v5936 = vld [vmem:[#allocation3 + $0xb0] sm:$0xff]
          %v5937 = vld [vmem:[#allocation3 + $0xb8] sm:$0xff]
          %v5938 = vld [vmem:[#allocation3 + $0xc0] sm:$0xff]
          %v5939 = vld [vmem:[#allocation3 + $0xc8] sm:$0xff]
          %v5940 = vld [vmem:[#allocation3 + $0xd0] sm:$0xff]
          %v5941 = vld [vmem:[#allocation3 + $0xd8] sm:$0xff]
          %v5942 = vld [vmem:[#allocation3 + $0xe0] sm:$0xff]
          %v5943 = vld [vmem:[#allocation3 + $0xe8] sm:$0xff]
          %v5944 = vld [vmem:[#allocation3 + $0xf0] sm:$0xff]
          %v5945 = vld [vmem:[#allocation3 + $0xf8] sm:$0xff]
          %v5946 = vld [vmem:[#allocation3 + $0x100] sm:$0xff]
          %v5947 = vld [vmem:[#allocation3 + $0x108] sm:$0xff]
          %v5948 = vld [vmem:[#allocation3 + $0x110] sm:$0xff]
          %v5949 = vld [vmem:[#allocation3 + $0x118] sm:$0xff]
          %v5950 = vld [vmem:[#allocation3 + $0x120] sm:$0xff]
          %v5951 = vld [vmem:[#allocation3 + $0x128] sm:$0xff]
          %v5952 = vld [vmem:[#allocation3 + $0x130] sm:$0xff]
          %v5953 = vld [vmem:[#allocation3 + $0x138] sm:$0xff]
          %v5954 = vld [vmem:[#allocation3 + $0x140] sm:$0xff]
          %v5955 = vld [vmem:[#allocation3 + $0x148] sm:$0xff]
          %v5956 = vld [vmem:[#allocation3 + $0x150] sm:$0xff]
          %v5957 = vld [vmem:[#allocation3 + $0x158] sm:$0xff]
          %v5958 = vld [vmem:[#allocation3 + $0x160] sm:$0xff]
          %v5959 = vld [vmem:[#allocation3 + $0x168] sm:$0xff]
          %v5960 = vld [vmem:[#allocation3 + $0x170] sm:$0xff]
          %v5961 = vld [vmem:[#allocation3 + $0x178] sm:$0xff]
          %v5962 = vld [vmem:[#allocation3 + $0x180] sm:$0xff]
          %v5963 = vld [vmem:[#allocation3 + $0x188] sm:$0xff]
          %v5964 = vld [vmem:[#allocation3 + $0x190] sm:$0xff]
          %v5965 = vld [vmem:[#allocation3 + $0x198] sm:$0xff]
          %v5966 = vld [vmem:[#allocation3 + $0x1a0] sm:$0xff]
          %v5967 = vld [vmem:[#allocation3 + $0x1a8] sm:$0xff]
          %v5968 = vld [vmem:[#allocation3 + $0x1b0] sm:$0xff]
          %v5969 = vld [vmem:[#allocation3 + $0x1b8] sm:$0xff]
          %v5970 = vld [vmem:[#allocation3 + $0x1c0] sm:$0xff]
          %v5971 = vld [vmem:[#allocation3 + $0x1c8] sm:$0xff]
          %v5972 = vld [vmem:[#allocation3 + $0x1d0] sm:$0xff]
          %v5973 = vld [vmem:[#allocation3 + $0x1d8] sm:$0xff]
          %v5974 = vld [vmem:[#allocation3 + $0x1e0] sm:$0xff]
          %v5975 = vld [vmem:[#allocation3 + $0x1e8] sm:$0xff]
          %v5976 = vld [vmem:[#allocation3 + $0x1f0] sm:$0xff]
          %v5977 = vld [vmem:[#allocation3 + $0x1f8] sm:$0xff]
          %5979 = vset.pattern.permute.xlu0 0
          %5980 = vperm.xlu0 %5979, %v5914
          %v5981 = vpop.permute.xlu0 %5980
          %5984 = vset.pattern.permute.xlu0 0
          %5985 = vperm.xlu0 %5984, %v5915
          %v5986 = vpop.permute.xlu0 %5985
          %5989 = vset.pattern.permute.xlu0 0
          %5990 = vperm.xlu0 %5989, %v5916
          %v5991 = vpop.permute.xlu0 %5990
          %5994 = vset.pattern.permute.xlu0 0
          %5995 = vperm.xlu0 %5994, %v5917
          %v5996 = vpop.permute.xlu0 %5995
          %5999 = vset.pattern.permute.xlu0 0
          %6000 = vperm.xlu0 %5999, %v5918
          %v6001 = vpop.permute.xlu0 %6000
          %6004 = vset.pattern.permute.xlu0 0
          %6005 = vperm.xlu0 %6004, %v5919
          %v6006 = vpop.permute.xlu0 %6005
          %6009 = vset.pattern.permute.xlu0 0
          %6010 = vperm.xlu0 %6009, %v5920
          %v6011 = vpop.permute.xlu0 %6010
          %6014 = vset.pattern.permute.xlu0 0
          %6015 = vperm.xlu0 %6014, %v5921
          %v6016 = vpop.permute.xlu0 %6015
          %6019 = vset.pattern.permute.xlu0 0
          %6020 = vperm.xlu0 %6019, %v5922
          %v6021 = vpop.permute.xlu0 %6020
          %6024 = vset.pattern.permute.xlu0 0
          %6025 = vperm.xlu0 %6024, %v5923
          %v6026 = vpop.permute.xlu0 %6025
          %6029 = vset.pattern.permute.xlu0 0
          %6030 = vperm.xlu0 %6029, %v5924
          %v6031 = vpop.permute.xlu0 %6030
          %6034 = vset.pattern.permute.xlu0 0
          %6035 = vperm.xlu0 %6034, %v5925
          %v6036 = vpop.permute.xlu0 %6035
          %6039 = vset.pattern.permute.xlu0 0
          %6040 = vperm.xlu0 %6039, %v5926
          %v6041 = vpop.permute.xlu0 %6040
          %6044 = vset.pattern.permute.xlu0 0
          %6045 = vperm.xlu0 %6044, %v5927
          %v6046 = vpop.permute.xlu0 %6045
          %6049 = vset.pattern.permute.xlu0 0
          %6050 = vperm.xlu0 %6049, %v5928
          %v6051 = vpop.permute.xlu0 %6050
          %6054 = vset.pattern.permute.xlu0 0
          %6055 = vperm.xlu0 %6054, %v5929
          %v6056 = vpop.permute.xlu0 %6055
          %6059 = vset.pattern.permute.xlu0 0
          %6060 = vperm.xlu0 %6059, %v5930
          %v6061 = vpop.permute.xlu0 %6060
          %6064 = vset.pattern.permute.xlu0 0
          %6065 = vperm.xlu0 %6064, %v5931
          %v6066 = vpop.permute.xlu0 %6065
          %6069 = vset.pattern.permute.xlu0 0
          %6070 = vperm.xlu0 %6069, %v5932
          %v6071 = vpop.permute.xlu0 %6070
          %6074 = vset.pattern.permute.xlu0 0
          %6075 = vperm.xlu0 %6074, %v5933
          %v6076 = vpop.permute.xlu0 %6075
          %6079 = vset.pattern.permute.xlu0 0
          %6080 = vperm.xlu0 %6079, %v5934
          %v6081 = vpop.permute.xlu0 %6080
          %6084 = vset.pattern.permute.xlu0 0
          %6085 = vperm.xlu0 %6084, %v5935
          %v6086 = vpop.permute.xlu0 %6085
          %6089 = vset.pattern.permute.xlu0 0
          %6090 = vperm.xlu0 %6089, %v5936
          %v6091 = vpop.permute.xlu0 %6090
          %6094 = vset.pattern.permute.xlu0 0
          %6095 = vperm.xlu0 %6094, %v5937
          %v6096 = vpop.permute.xlu0 %6095
          %6099 = vset.pattern.permute.xlu0 0
          %6100 = vperm.xlu0 %6099, %v5938
          %v6101 = vpop.permute.xlu0 %6100
          %6104 = vset.pattern.permute.xlu0 0
          %6105 = vperm.xlu0 %6104, %v5939
          %v6106 = vpop.permute.xlu0 %6105
          %6109 = vset.pattern.permute.xlu0 0
          %6110 = vperm.xlu0 %6109, %v5940
          %v6111 = vpop.permute.xlu0 %6110
          %6114 = vset.pattern.permute.xlu0 0
          %6115 = vperm.xlu0 %6114, %v5941
          %v6116 = vpop.permute.xlu0 %6115
          %6119 = vset.pattern.permute.xlu0 0
          %6120 = vperm.xlu0 %6119, %v5942
          %v6121 = vpop.permute.xlu0 %6120
          %6124 = vset.pattern.permute.xlu0 0
          %6125 = vperm.xlu0 %6124, %v5943
          %v6126 = vpop.permute.xlu0 %6125
          %6129 = vset.pattern.permute.xlu0 0
          %6130 = vperm.xlu0 %6129, %v5944
          %v6131 = vpop.permute.xlu0 %6130
          %6134 = vset.pattern.permute.xlu0 0
          %6135 = vperm.xlu0 %6134, %v5945
          %v6136 = vpop.permute.xlu0 %6135
          %6139 = vset.pattern.permute.xlu0 0
          %6140 = vperm.xlu0 %6139, %v5946
          %v6141 = vpop.permute.xlu0 %6140
          %6144 = vset.pattern.permute.xlu0 0
          %6145 = vperm.xlu0 %6144, %v5947
          %v6146 = vpop.permute.xlu0 %6145
          %6149 = vset.pattern.permute.xlu0 0
          %6150 = vperm.xlu0 %6149, %v5948
          %v6151 = vpop.permute.xlu0 %6150
          %6154 = vset.pattern.permute.xlu0 0
          %6155 = vperm.xlu0 %6154, %v5949
          %v6156 = vpop.permute.xlu0 %6155
          %6159 = vset.pattern.permute.xlu0 0
          %6160 = vperm.xlu0 %6159, %v5950
          %v6161 = vpop.permute.xlu0 %6160
          %6164 = vset.pattern.permute.xlu0 0
          %6165 = vperm.xlu0 %6164, %v5951
          %v6166 = vpop.permute.xlu0 %6165
          %6169 = vset.pattern.permute.xlu0 0
          %6170 = vperm.xlu0 %6169, %v5952
          %v6171 = vpop.permute.xlu0 %6170
          %6174 = vset.pattern.permute.xlu0 0
          %6175 = vperm.xlu0 %6174, %v5953
          %v6176 = vpop.permute.xlu0 %6175
          %6179 = vset.pattern.permute.xlu0 0
          %6180 = vperm.xlu0 %6179, %v5954
          %v6181 = vpop.permute.xlu0 %6180
          %6184 = vset.pattern.permute.xlu0 0
          %6185 = vperm.xlu0 %6184, %v5955
          %v6186 = vpop.permute.xlu0 %6185
          %6189 = vset.pattern.permute.xlu0 0
          %6190 = vperm.xlu0 %6189, %v5956
          %v6191 = vpop.permute.xlu0 %6190
          %6194 = vset.pattern.permute.xlu0 0
          %6195 = vperm.xlu0 %6194, %v5957
          %v6196 = vpop.permute.xlu0 %6195
          %6199 = vset.pattern.permute.xlu0 0
          %6200 = vperm.xlu0 %6199, %v5958
          %v6201 = vpop.permute.xlu0 %6200
          %6204 = vset.pattern.permute.xlu0 0
          %6205 = vperm.xlu0 %6204, %v5959
          %v6206 = vpop.permute.xlu0 %6205
          %6209 = vset.pattern.permute.xlu0 0
          %6210 = vperm.xlu0 %6209, %v5960
          %v6211 = vpop.permute.xlu0 %6210
          %6214 = vset.pattern.permute.xlu0 0
          %6215 = vperm.xlu0 %6214, %v5961
          %v6216 = vpop.permute.xlu0 %6215
          %6219 = vset.pattern.permute.xlu0 0
          %6220 = vperm.xlu0 %6219, %v5962
          %v6221 = vpop.permute.xlu0 %6220
          %6224 = vset.pattern.permute.xlu0 0
          %6225 = vperm.xlu0 %6224, %v5963
          %v6226 = vpop.permute.xlu0 %6225
          %6229 = vset.pattern.permute.xlu0 0
          %6230 = vperm.xlu0 %6229, %v5964
          %v6231 = vpop.permute.xlu0 %6230
          %6234 = vset.pattern.permute.xlu0 0
          %6235 = vperm.xlu0 %6234, %v5965
          %v6236 = vpop.permute.xlu0 %6235
          %6239 = vset.pattern.permute.xlu0 0
          %6240 = vperm.xlu0 %6239, %v5966
          %v6241 = vpop.permute.xlu0 %6240
          %6244 = vset.pattern.permute.xlu0 0
          %6245 = vperm.xlu0 %6244, %v5967
          %v6246 = vpop.permute.xlu0 %6245
          %6249 = vset.pattern.permute.xlu0 0
          %6250 = vperm.xlu0 %6249, %v5968
          %v6251 = vpop.permute.xlu0 %6250
          %6254 = vset.pattern.permute.xlu0 0
          %6255 = vperm.xlu0 %6254, %v5969
          %v6256 = vpop.permute.xlu0 %6255
          %6259 = vset.pattern.permute.xlu0 0
          %6260 = vperm.xlu0 %6259, %v5970
          %v6261 = vpop.permute.xlu0 %6260
          %6264 = vset.pattern.permute.xlu0 0
          %6265 = vperm.xlu0 %6264, %v5971
          %v6266 = vpop.permute.xlu0 %6265
          %6269 = vset.pattern.permute.xlu0 0
          %6270 = vperm.xlu0 %6269, %v5972
          %v6271 = vpop.permute.xlu0 %6270
          %6274 = vset.pattern.permute.xlu0 0
          %6275 = vperm.xlu0 %6274, %v5973
          %v6276 = vpop.permute.xlu0 %6275
          %6279 = vset.pattern.permute.xlu0 0
          %6280 = vperm.xlu0 %6279, %v5974
          %v6281 = vpop.permute.xlu0 %6280
          %6284 = vset.pattern.permute.xlu0 0
          %6285 = vperm.xlu0 %6284, %v5975
          %v6286 = vpop.permute.xlu0 %6285
          %6289 = vset.pattern.permute.xlu0 0
          %6290 = vperm.xlu0 %6289, %v5976
          %v6291 = vpop.permute.xlu0 %6290
          %6294 = vset.pattern.permute.xlu0 0
          %6295 = vperm.xlu0 %6294, %v5977
          %v6296 = vpop.permute.xlu0 %6295
          %v6298 = vrcp.pop %v5981
          %v6299 = vmul.f32 %v5850, %v6298
          %v6300 = vrcp.pop %v5986
          %v6301 = vmul.f32 %v5851, %v6300
          %v6302 = vrcp.pop %v5991
          %v6303 = vmul.f32 %v5852, %v6302
          %v6304 = vrcp.pop %v5996
          %v6305 = vmul.f32 %v5853, %v6304
          %v6306 = vrcp.pop %v6001
          %v6307 = vmul.f32 %v5854, %v6306
          %v6308 = vrcp.pop %v6006
          %v6309 = vmul.f32 %v5855, %v6308
          %v6310 = vrcp.pop %v6011
          %v6311 = vmul.f32 %v5856, %v6310
          %v6312 = vrcp.pop %v6016
          %v6313 = vmul.f32 %v5857, %v6312
          %v6314 = vrcp.pop %v6021
          %v6315 = vmul.f32 %v5858, %v6314
          %v6316 = vrcp.pop %v6026
          %v6317 = vmul.f32 %v5859, %v6316
          %v6318 = vrcp.pop %v6031
          %v6319 = vmul.f32 %v5860, %v6318
          %v6320 = vrcp.pop %v6036
          %v6321 = vmul.f32 %v5861, %v6320
          %v6322 = vrcp.pop %v6041
          %v6323 = vmul.f32 %v5862, %v6322
          %v6324 = vrcp.pop %v6046
          %v6325 = vmul.f32 %v5863, %v6324
          %v6326 = vrcp.pop %v6051
          %v6327 = vmul.f32 %v5864, %v6326
          %v6328 = vrcp.pop %v6056
          %v6329 = vmul.f32 %v5865, %v6328
          %v6330 = vrcp.pop %v6061
          %v6331 = vmul.f32 %v5866, %v6330
          %v6332 = vrcp.pop %v6066
          %v6333 = vmul.f32 %v5867, %v6332
          %v6334 = vrcp.pop %v6071
          %v6335 = vmul.f32 %v5868, %v6334
          %v6336 = vrcp.pop %v6076
          %v6337 = vmul.f32 %v5869, %v6336
          %v6338 = vrcp.pop %v6081
          %v6339 = vmul.f32 %v5870, %v6338
          %v6340 = vrcp.pop %v6086
          %v6341 = vmul.f32 %v5871, %v6340
          %v6342 = vrcp.pop %v6091
          %v6343 = vmul.f32 %v5872, %v6342
          %v6344 = vrcp.pop %v6096
          %v6345 = vmul.f32 %v5873, %v6344
          %v6346 = vrcp.pop %v6101
          %v6347 = vmul.f32 %v5874, %v6346
          %v6348 = vrcp.pop %v6106
          %v6349 = vmul.f32 %v5875, %v6348
          %v6350 = vrcp.pop %v6111
          %v6351 = vmul.f32 %v5876, %v6350
          %v6352 = vrcp.pop %v6116
          %v6353 = vmul.f32 %v5877, %v6352
          %v6354 = vrcp.pop %v6121
          %v6355 = vmul.f32 %v5878, %v6354
          %v6356 = vrcp.pop %v6126
          %v6357 = vmul.f32 %v5879, %v6356
          %v6358 = vrcp.pop %v6131
          %v6359 = vmul.f32 %v5880, %v6358
          %v6360 = vrcp.pop %v6136
          %v6361 = vmul.f32 %v5881, %v6360
          %v6362 = vrcp.pop %v6141
          %v6363 = vmul.f32 %v5882, %v6362
          %v6364 = vrcp.pop %v6146
          %v6365 = vmul.f32 %v5883, %v6364
          %v6366 = vrcp.pop %v6151
          %v6367 = vmul.f32 %v5884, %v6366
          %v6368 = vrcp.pop %v6156
          %v6369 = vmul.f32 %v5885, %v6368
          %v6370 = vrcp.pop %v6161
          %v6371 = vmul.f32 %v5886, %v6370
          %v6372 = vrcp.pop %v6166
          %v6373 = vmul.f32 %v5887, %v6372
          %v6374 = vrcp.pop %v6171
          %v6375 = vmul.f32 %v5888, %v6374
          %v6376 = vrcp.pop %v6176
          %v6377 = vmul.f32 %v5889, %v6376
          %v6378 = vrcp.pop %v6181
          %v6379 = vmul.f32 %v5890, %v6378
          %v6380 = vrcp.pop %v6186
          %v6381 = vmul.f32 %v5891, %v6380
          %v6382 = vrcp.pop %v6191
          %v6383 = vmul.f32 %v5892, %v6382
          %v6384 = vrcp.pop %v6196
          %v6385 = vmul.f32 %v5893, %v6384
          %v6386 = vrcp.pop %v6201
          %v6387 = vmul.f32 %v5894, %v6386
          %v6388 = vrcp.pop %v6206
          %v6389 = vmul.f32 %v5895, %v6388
          %v6390 = vrcp.pop %v6211
          %v6391 = vmul.f32 %v5896, %v6390
          %v6392 = vrcp.pop %v6216
          %v6393 = vmul.f32 %v5897, %v6392
          %v6394 = vrcp.pop %v6221
          %v6395 = vmul.f32 %v5898, %v6394
          %v6396 = vrcp.pop %v6226
          %v6397 = vmul.f32 %v5899, %v6396
          %v6398 = vrcp.pop %v6231
          %v6399 = vmul.f32 %v5900, %v6398
          %v6400 = vrcp.pop %v6236
          %v6401 = vmul.f32 %v5901, %v6400
          %v6402 = vrcp.pop %v6241
          %v6403 = vmul.f32 %v5902, %v6402
          %v6404 = vrcp.pop %v6246
          %v6405 = vmul.f32 %v5903, %v6404
          %v6406 = vrcp.pop %v6251
          %v6407 = vmul.f32 %v5904, %v6406
          %v6408 = vrcp.pop %v6256
          %v6409 = vmul.f32 %v5905, %v6408
          %v6410 = vrcp.pop %v6261
          %v6411 = vmul.f32 %v5906, %v6410
          %v6412 = vrcp.pop %v6266
          %v6413 = vmul.f32 %v5907, %v6412
          %v6414 = vrcp.pop %v6271
          %v6415 = vmul.f32 %v5908, %v6414
          %v6416 = vrcp.pop %v6276
          %v6417 = vmul.f32 %v5909, %v6416
          %v6418 = vrcp.pop %v6281
          %v6419 = vmul.f32 %v5910, %v6418
          %v6420 = vrcp.pop %v6286
          %v6421 = vmul.f32 %v5911, %v6420
          %v6422 = vrcp.pop %v6291
          %v6423 = vmul.f32 %v5912, %v6422
          %v6424 = vrcp.pop %v6296
          %v6425 = vmul.f32 %v5913, %v6424
          %6426 = vst.msk [vmem:[%s1614] sm:$0xff] %vm2172, %v6299
          %6427 = vst.msk [vmem:[%s1614 + $0x8] sm:$0xff] %vm2172, %v6301
          %6428 = vst.msk [vmem:[%s1614 + $0x10] sm:$0xff] %vm2172, %v6303
          %6429 = vst.msk [vmem:[%s1614 + $0x18] sm:$0xff] %vm2172, %v6305
          %6430 = vst.msk [vmem:[%s1614 + $0x20] sm:$0xff] %vm2172, %v6307
          %6431 = vst.msk [vmem:[%s1614 + $0x28] sm:$0xff] %vm2172, %v6309
          %6432 = vst.msk [vmem:[%s1614 + $0x30] sm:$0xff] %vm2172, %v6311
          %6433 = vst.msk [vmem:[%s1614 + $0x38] sm:$0xff] %vm2172, %v6313
          %6434 = vst.msk [vmem:[%s1614 + $0x40] sm:$0xff] %vm2172, %v6315
          %6435 = vst.msk [vmem:[%s1614 + $0x48] sm:$0xff] %vm2172, %v6317
          %6436 = vst.msk [vmem:[%s1614 + $0x50] sm:$0xff] %vm2172, %v6319
          %6437 = vst.msk [vmem:[%s1614 + $0x58] sm:$0xff] %vm2172, %v6321
          %6438 = vst.msk [vmem:[%s1614 + $0x60] sm:$0xff] %vm2172, %v6323
          %6439 = vst.msk [vmem:[%s1614 + $0x68] sm:$0xff] %vm2172, %v6325
          %6440 = vst.msk [vmem:[%s1614 + $0x70] sm:$0xff] %vm2172, %v6327
          %6441 = vst.msk [vmem:[%s1614 + $0x78] sm:$0xff] %vm2172, %v6329
          %6442 = vst.msk [vmem:[%s1614 + $0x80] sm:$0xff] %vm2172, %v6331
          %6443 = vst.msk [vmem:[%s1614 + $0x88] sm:$0xff] %vm2172, %v6333
          %6444 = vst.msk [vmem:[%s1614 + $0x90] sm:$0xff] %vm2172, %v6335
          %6445 = vst.msk [vmem:[%s1614 + $0x98] sm:$0xff] %vm2172, %v6337
          %6446 = vst.msk [vmem:[%s1614 + $0xa0] sm:$0xff] %vm2172, %v6339
          %6447 = vst.msk [vmem:[%s1614 + $0xa8] sm:$0xff] %vm2172, %v6341
          %6448 = vst.msk [vmem:[%s1614 + $0xb0] sm:$0xff] %vm2172, %v6343
          %6449 = vst.msk [vmem:[%s1614 + $0xb8] sm:$0xff] %vm2172, %v6345
          %6450 = vst.msk [vmem:[%s1614 + $0xc0] sm:$0xff] %vm2172, %v6347
          %6451 = vst.msk [vmem:[%s1614 + $0xc8] sm:$0xff] %vm2172, %v6349
          %6452 = vst.msk [vmem:[%s1614 + $0xd0] sm:$0xff] %vm2172, %v6351
          %6453 = vst.msk [vmem:[%s1614 + $0xd8] sm:$0xff] %vm2172, %v6353
          %6454 = vst.msk [vmem:[%s1614 + $0xe0] sm:$0xff] %vm2172, %v6355
          %6455 = vst.msk [vmem:[%s1614 + $0xe8] sm:$0xff] %vm2172, %v6357
          %6456 = vst.msk [vmem:[%s1614 + $0xf0] sm:$0xff] %vm2172, %v6359
          %6457 = vst.msk [vmem:[%s1614 + $0xf8] sm:$0xff] %vm2172, %v6361
          %6458 = vst.msk [vmem:[%s1614 + $0x100] sm:$0xff] %vm2172, %v6363
          %6459 = vst.msk [vmem:[%s1614 + $0x108] sm:$0xff] %vm2172, %v6365
          %6460 = vst.msk [vmem:[%s1614 + $0x110] sm:$0xff] %vm2172, %v6367
          %6461 = vst.msk [vmem:[%s1614 + $0x118] sm:$0xff] %vm2172, %v6369
          %6462 = vst.msk [vmem:[%s1614 + $0x120] sm:$0xff] %vm2172, %v6371
          %6463 = vst.msk [vmem:[%s1614 + $0x128] sm:$0xff] %vm2172, %v6373
          %6464 = vst.msk [vmem:[%s1614 + $0x130] sm:$0xff] %vm2172, %v6375
          %6465 = vst.msk [vmem:[%s1614 + $0x138] sm:$0xff] %vm2172, %v6377
          %6466 = vst.msk [vmem:[%s1614 + $0x140] sm:$0xff] %vm2172, %v6379
          %6467 = vst.msk [vmem:[%s1614 + $0x148] sm:$0xff] %vm2172, %v6381
          %6468 = vst.msk [vmem:[%s1614 + $0x150] sm:$0xff] %vm2172, %v6383
          %6469 = vst.msk [vmem:[%s1614 + $0x158] sm:$0xff] %vm2172, %v6385
          %6470 = vst.msk [vmem:[%s1614 + $0x160] sm:$0xff] %vm2172, %v6387
          %6471 = vst.msk [vmem:[%s1614 + $0x168] sm:$0xff] %vm2172, %v6389
          %6472 = vst.msk [vmem:[%s1614 + $0x170] sm:$0xff] %vm2172, %v6391
          %6473 = vst.msk [vmem:[%s1614 + $0x178] sm:$0xff] %vm2172, %v6393
          %6474 = vst.msk [vmem:[%s1614 + $0x180] sm:$0xff] %vm2172, %v6395
          %6475 = vst.msk [vmem:[%s1614 + $0x188] sm:$0xff] %vm2172, %v6397
          %6476 = vst.msk [vmem:[%s1614 + $0x190] sm:$0xff] %vm2172, %v6399
          %6477 = vst.msk [vmem:[%s1614 + $0x198] sm:$0xff] %vm2172, %v6401
          %6478 = vst.msk [vmem:[%s1614 + $0x1a0] sm:$0xff] %vm2172, %v6403
          %6479 = vst.msk [vmem:[%s1614 + $0x1a8] sm:$0xff] %vm2172, %v6405
          %6480 = vst.msk [vmem:[%s1614 + $0x1b0] sm:$0xff] %vm2172, %v6407
          %6481 = vst.msk [vmem:[%s1614 + $0x1b8] sm:$0xff] %vm2172, %v6409
          %6482 = vst.msk [vmem:[%s1614 + $0x1c0] sm:$0xff] %vm2172, %v6411
          %6483 = vst.msk [vmem:[%s1614 + $0x1c8] sm:$0xff] %vm2172, %v6413
          %6484 = vst.msk [vmem:[%s1614 + $0x1d0] sm:$0xff] %vm2172, %v6415
          %6485 = vst.msk [vmem:[%s1614 + $0x1d8] sm:$0xff] %vm2172, %v6417
          %6486 = vst.msk [vmem:[%s1614 + $0x1e0] sm:$0xff] %vm2172, %v6419
          %6487 = vst.msk [vmem:[%s1614 + $0x1e8] sm:$0xff] %vm2172, %v6421
          %6488 = vst.msk [vmem:[%s1614 + $0x1f0] sm:$0xff] %vm2172, %v6423
          %6489 = vst.msk [vmem:[%s1614 + $0x1f8] sm:$0xff] %vm2172, %v6425
        $region250: #{tpu_custom_call.1} parent=221 // pred_fallthru
          _
        %s6490 = sand.u32 %s187, 1
        %s6491 = sand.u32 %s187, 1
        %s6492 = smul.addr %s6491, 512
        %s6493 = scalar_lea.vmem [#allocation10], %s6492
        // Predicated region
        $region251: #{tpu_custom_call.1} parent=221 // pred_check
          %p6494 = pneg %p197
        $region252: #{tpu_custom_call.1} parent=221 // pred_check_branch
          %6496 = sbr.rel (%p6494) target = $region254
        $region253: #{tpu_custom_call.1} parent=221 // pred_region
          %s6497 = smul.u32 16, %s22
          %s6498 = smul.addr %s21, 128
          %s6499 = sadd.s32 %s6497, %s6498
          %s6500 = smul.addr %s6499, 8
          %s6501 = scalar_lea.vmem %s5, %s6500
          // Predicated region
          $region255: #{tpu_custom_call.1} parent=253 // pred_check
            _
          $region256: #{tpu_custom_call.1} parent=253 // pred_check_branch
            %6503 = sbr.rel (0) target = $region258
          $region257: #{tpu_custom_call.1} parent=253 // pred_region
            // Predicated region
            $region259: #{tpu_custom_call.1} parent=257 // pred_check
              _
            $region260: #{tpu_custom_call.1} parent=257 // pred_check_branch
              %6505 = sbr.rel (0) target = $region262
            $region261: #{tpu_custom_call.1} parent=257 // pred_region
              // Predicated region
              $region274: #{tpu_custom_call.1} parent=261 // pred_check
                _
              $region275: #{tpu_custom_call.1} parent=261 // pred_check_branch
                %6646 = sbr.rel (0) target = $region277
              $region276: #{tpu_custom_call.1} parent=261 // pred_region
                loop: start=0, step=1, limit=1
                $region278: #{tpu_custom_call.1} parent=276 // loop_pre_header
                  _
                $region279: #{tpu_custom_call.1} parent=276 // loop_header
                  %s6648 = sphi 0, %s6652
                  %p6649 = scmp.ge.s32.totalorder %s6648, 1
                  %s6653 = sphi %s6493, %s6493
                  %s6654 = sphi %s6501, %s6501
                $region280: #{tpu_custom_call.1} parent=276 // loop_header_branch
                  %6651 = sbr.rel (%p6649) target = $region284
                $region281: #{tpu_custom_call.1} parent=276 // loop_body
                  %v6655 = vld [vmem:[%s6653] sm:$0xff]
                  %6656 = vst [vmem:[%s6654] sm:$0xff] %v6655
                  %v6657 = vld [vmem:[%s6653 + $0x8] sm:$0xff]
                  %6658 = vst [vmem:[%s6654 + $0x8] sm:$0xff] %v6657
                  %v6659 = vld [vmem:[%s6653 + $0x10] sm:$0xff]
                  %6660 = vst [vmem:[%s6654 + $0x10] sm:$0xff] %v6659
                  %v6661 = vld [vmem:[%s6653 + $0x18] sm:$0xff]
                  %6662 = vst [vmem:[%s6654 + $0x18] sm:$0xff] %v6661
                  %v6663 = vld [vmem:[%s6653 + $0x20] sm:$0xff]
                  %6664 = vst [vmem:[%s6654 + $0x20] sm:$0xff] %v6663
                  %v6665 = vld [vmem:[%s6653 + $0x28] sm:$0xff]
                  %6666 = vst [vmem:[%s6654 + $0x28] sm:$0xff] %v6665
                  %v6667 = vld [vmem:[%s6653 + $0x30] sm:$0xff]
                  %6668 = vst [vmem:[%s6654 + $0x30] sm:$0xff] %v6667
                  %v6669 = vld [vmem:[%s6653 + $0x38] sm:$0xff]
                  %6670 = vst [vmem:[%s6654 + $0x38] sm:$0xff] %v6669
                  %v6671 = vld [vmem:[%s6653 + $0x40] sm:$0xff]
                  %6672 = vst [vmem:[%s6654 + $0x40] sm:$0xff] %v6671
                  %v6673 = vld [vmem:[%s6653 + $0x48] sm:$0xff]
                  %6674 = vst [vmem:[%s6654 + $0x48] sm:$0xff] %v6673
                  %v6675 = vld [vmem:[%s6653 + $0x50] sm:$0xff]
                  %6676 = vst [vmem:[%s6654 + $0x50] sm:$0xff] %v6675
                  %v6677 = vld [vmem:[%s6653 + $0x58] sm:$0xff]
                  %6678 = vst [vmem:[%s6654 + $0x58] sm:$0xff] %v6677
                  %v6679 = vld [vmem:[%s6653 + $0x60] sm:$0xff]
                  %6680 = vst [vmem:[%s6654 + $0x60] sm:$0xff] %v6679
                  %v6681 = vld [vmem:[%s6653 + $0x68] sm:$0xff]
                  %6682 = vst [vmem:[%s6654 + $0x68] sm:$0xff] %v6681
                  %v6683 = vld [vmem:[%s6653 + $0x70] sm:$0xff]
                  %6684 = vst [vmem:[%s6654 + $0x70] sm:$0xff] %v6683
                  %v6685 = vld [vmem:[%s6653 + $0x78] sm:$0xff]
                  %6686 = vst [vmem:[%s6654 + $0x78] sm:$0xff] %v6685
                  %v6687 = vld [vmem:[%s6653 + $0x80] sm:$0xff]
                  %6688 = vst [vmem:[%s6654 + $0x100] sm:$0xff] %v6687
                  %v6689 = vld [vmem:[%s6653 + $0x88] sm:$0xff]
                  %6690 = vst [vmem:[%s6654 + $0x108] sm:$0xff] %v6689
                  %v6691 = vld [vmem:[%s6653 + $0x90] sm:$0xff]
                  %6692 = vst [vmem:[%s6654 + $0x110] sm:$0xff] %v6691
                  %v6693 = vld [vmem:[%s6653 + $0x98] sm:$0xff]
                  %6694 = vst [vmem:[%s6654 + $0x118] sm:$0xff] %v6693
                  %v6695 = vld [vmem:[%s6653 + $0xa0] sm:$0xff]
                  %6696 = vst [vmem:[%s6654 + $0x120] sm:$0xff] %v6695
                  %v6697 = vld [vmem:[%s6653 + $0xa8] sm:$0xff]
                  %6698 = vst [vmem:[%s6654 + $0x128] sm:$0xff] %v6697
                  %v6699 = vld [vmem:[%s6653 + $0xb0] sm:$0xff]
                  %6700 = vst [vmem:[%s6654 + $0x130] sm:$0xff] %v6699
                  %v6701 = vld [vmem:[%s6653 + $0xb8] sm:$0xff]
                  %6702 = vst [vmem:[%s6654 + $0x138] sm:$0xff] %v6701
                  %v6703 = vld [vmem:[%s6653 + $0xc0] sm:$0xff]
                  %6704 = vst [vmem:[%s6654 + $0x140] sm:$0xff] %v6703
                  %v6705 = vld [vmem:[%s6653 + $0xc8] sm:$0xff]
                  %6706 = vst [vmem:[%s6654 + $0x148] sm:$0xff] %v6705
                  %v6707 = vld [vmem:[%s6653 + $0xd0] sm:$0xff]
                  %6708 = vst [vmem:[%s6654 + $0x150] sm:$0xff] %v6707
                  %v6709 = vld [vmem:[%s6653 + $0xd8] sm:$0xff]
                  %6710 = vst [vmem:[%s6654 + $0x158] sm:$0xff] %v6709
                  %v6711 = vld [vmem:[%s6653 + $0xe0] sm:$0xff]
                  %6712 = vst [vmem:[%s6654 + $0x160] sm:$0xff] %v6711
                  %v6713 = vld [vmem:[%s6653 + $0xe8] sm:$0xff]
                  %6714 = vst [vmem:[%s6654 + $0x168] sm:$0xff] %v6713
                  %v6715 = vld [vmem:[%s6653 + $0xf0] sm:$0xff]
                  %6716 = vst [vmem:[%s6654 + $0x170] sm:$0xff] %v6715
                  %v6717 = vld [vmem:[%s6653 + $0xf8] sm:$0xff]
                  %6718 = vst [vmem:[%s6654 + $0x178] sm:$0xff] %v6717
                  %v6719 = vld [vmem:[%s6653 + $0x100] sm:$0xff]
                  %6720 = vst [vmem:[%s6654 + $0x200] sm:$0xff] %v6719
                  %v6721 = vld [vmem:[%s6653 + $0x108] sm:$0xff]
                  %6722 = vst [vmem:[%s6654 + $0x208] sm:$0xff] %v6721
                  %v6723 = vld [vmem:[%s6653 + $0x110] sm:$0xff]
                  %6724 = vst [vmem:[%s6654 + $0x210] sm:$0xff] %v6723
                  %v6725 = vld [vmem:[%s6653 + $0x118] sm:$0xff]
                  %6726 = vst [vmem:[%s6654 + $0x218] sm:$0xff] %v6725
                  %v6727 = vld [vmem:[%s6653 + $0x120] sm:$0xff]
                  %6728 = vst [vmem:[%s6654 + $0x220] sm:$0xff] %v6727
                  %v6729 = vld [vmem:[%s6653 + $0x128] sm:$0xff]
                  %6730 = vst [vmem:[%s6654 + $0x228] sm:$0xff] %v6729
                  %v6731 = vld [vmem:[%s6653 + $0x130] sm:$0xff]
                  %6732 = vst [vmem:[%s6654 + $0x230] sm:$0xff] %v6731
                  %v6733 = vld [vmem:[%s6653 + $0x138] sm:$0xff]
                  %6734 = vst [vmem:[%s6654 + $0x238] sm:$0xff] %v6733
                  %v6735 = vld [vmem:[%s6653 + $0x140] sm:$0xff]
                  %6736 = vst [vmem:[%s6654 + $0x240] sm:$0xff] %v6735
                  %v6737 = vld [vmem:[%s6653 + $0x148] sm:$0xff]
                  %6738 = vst [vmem:[%s6654 + $0x248] sm:$0xff] %v6737
                  %v6739 = vld [vmem:[%s6653 + $0x150] sm:$0xff]
                  %6740 = vst [vmem:[%s6654 + $0x250] sm:$0xff] %v6739
                  %v6741 = vld [vmem:[%s6653 + $0x158] sm:$0xff]
                  %6742 = vst [vmem:[%s6654 + $0x258] sm:$0xff] %v6741
                  %v6743 = vld [vmem:[%s6653 + $0x160] sm:$0xff]
                  %6744 = vst [vmem:[%s6654 + $0x260] sm:$0xff] %v6743
                  %v6745 = vld [vmem:[%s6653 + $0x168] sm:$0xff]
                  %6746 = vst [vmem:[%s6654 + $0x268] sm:$0xff] %v6745
                  %v6747 = vld [vmem:[%s6653 + $0x170] sm:$0xff]
                  %6748 = vst [vmem:[%s6654 + $0x270] sm:$0xff] %v6747
                  %v6749 = vld [vmem:[%s6653 + $0x178] sm:$0xff]
                  %6750 = vst [vmem:[%s6654 + $0x278] sm:$0xff] %v6749
                  %v6751 = vld [vmem:[%s6653 + $0x180] sm:$0xff]
                  %6752 = vst [vmem:[%s6654 + $0x300] sm:$0xff] %v6751
                  %v6753 = vld [vmem:[%s6653 + $0x188] sm:$0xff]
                  %6754 = vst [vmem:[%s6654 + $0x308] sm:$0xff] %v6753
                  %v6755 = vld [vmem:[%s6653 + $0x190] sm:$0xff]
                  %6756 = vst [vmem:[%s6654 + $0x310] sm:$0xff] %v6755
                  %v6757 = vld [vmem:[%s6653 + $0x198] sm:$0xff]
                  %6758 = vst [vmem:[%s6654 + $0x318] sm:$0xff] %v6757
                  %v6759 = vld [vmem:[%s6653 + $0x1a0] sm:$0xff]
                  %6760 = vst [vmem:[%s6654 + $0x320] sm:$0xff] %v6759
                  %v6761 = vld [vmem:[%s6653 + $0x1a8] sm:$0xff]
                  %6762 = vst [vmem:[%s6654 + $0x328] sm:$0xff] %v6761
                  %v6763 = vld [vmem:[%s6653 + $0x1b0] sm:$0xff]
                  %6764 = vst [vmem:[%s6654 + $0x330] sm:$0xff] %v6763
                  %v6765 = vld [vmem:[%s6653 + $0x1b8] sm:$0xff]
                  %6766 = vst [vmem:[%s6654 + $0x338] sm:$0xff] %v6765
                  %v6767 = vld [vmem:[%s6653 + $0x1c0] sm:$0xff]
                  %6768 = vst [vmem:[%s6654 + $0x340] sm:$0xff] %v6767
                  %v6769 = vld [vmem:[%s6653 + $0x1c8] sm:$0xff]
                  %6770 = vst [vmem:[%s6654 + $0x348] sm:$0xff] %v6769
                  %v6771 = vld [vmem:[%s6653 + $0x1d0] sm:$0xff]
                  %6772 = vst [vmem:[%s6654 + $0x350] sm:$0xff] %v6771
                  %v6773 = vld [vmem:[%s6653 + $0x1d8] sm:$0xff]
                  %6774 = vst [vmem:[%s6654 + $0x358] sm:$0xff] %v6773
                  %v6775 = vld [vmem:[%s6653 + $0x1e0] sm:$0xff]
                  %6776 = vst [vmem:[%s6654 + $0x360] sm:$0xff] %v6775
                  %v6777 = vld [vmem:[%s6653 + $0x1e8] sm:$0xff]
                  %6778 = vst [vmem:[%s6654 + $0x368] sm:$0xff] %v6777
                  %v6779 = vld [vmem:[%s6653 + $0x1f0] sm:$0xff]
                  %6780 = vst [vmem:[%s6654 + $0x370] sm:$0xff] %v6779
                  %v6781 = vld [vmem:[%s6653 + $0x1f8] sm:$0xff]
                  %6782 = vst [vmem:[%s6654 + $0x378] sm:$0xff] %v6781
                $region282: #{tpu_custom_call.1} parent=276 // loop_footer
                  %s6652 = sadd.s32 1, %s6648
                $region283: #{tpu_custom_call.1} parent=276 // loop_footer_branch
                  %6647 = sbr.rel target = $region279
                $region284: #{tpu_custom_call.1} parent=276 // loop_exit
                  _
              $region277: #{tpu_custom_call.1} parent=261 // pred_fallthru
                _
              // Predicated region
              $region285: #{tpu_custom_call.1} parent=261 // pred_check
                _
              $region286: #{tpu_custom_call.1} parent=261 // pred_check_branch
                %6784 = sbr.rel target = $region288
              $region287: #{tpu_custom_call.1} parent=261 // pred_region
                _
              $region288: #{tpu_custom_call.1} parent=261 // pred_fallthru
                _
            $region262: #{tpu_custom_call.1} parent=257 // pred_fallthru
              _
            // Predicated region
            $region263: #{tpu_custom_call.1} parent=257 // pred_check
              _
            $region264: #{tpu_custom_call.1} parent=257 // pred_check_branch
              %6507 = sbr.rel target = $region266
            $region265: #{tpu_custom_call.1} parent=257 // pred_region
              loop: start=0, step=1, limit=1
              $region267: #{tpu_custom_call.1} parent=265 // loop_pre_header
                _
              $region268: #{tpu_custom_call.1} parent=265 // loop_header
                %s6510 = sphi 0, %s6514
                %p6511 = scmp.ge.s32.totalorder %s6510, 1
                %s6515 = sphi %s6493, %s6493
                %s6516 = sphi %s6501, %s6501
              $region269: #{tpu_custom_call.1} parent=265 // loop_header_branch
                %6513 = sbr.rel (%p6511) target = $region273
              $region270: #{tpu_custom_call.1} parent=265 // loop_body
                %v6517 = vld [vmem:[%s6515] sm:$0xff]
                %6518 = vst [vmem:[%s6516] sm:$0xff] %v6517
                %v6519 = vld [vmem:[%s6515 + $0x8] sm:$0xff]
                %6520 = vst [vmem:[%s6516 + $0x8] sm:$0xff] %v6519
                %v6521 = vld [vmem:[%s6515 + $0x10] sm:$0xff]
                %6522 = vst [vmem:[%s6516 + $0x10] sm:$0xff] %v6521
                %v6523 = vld [vmem:[%s6515 + $0x18] sm:$0xff]
                %6524 = vst [vmem:[%s6516 + $0x18] sm:$0xff] %v6523
                %v6525 = vld [vmem:[%s6515 + $0x20] sm:$0xff]
                %6526 = vst [vmem:[%s6516 + $0x20] sm:$0xff] %v6525
                %v6527 = vld [vmem:[%s6515 + $0x28] sm:$0xff]
                %6528 = vst [vmem:[%s6516 + $0x28] sm:$0xff] %v6527
                %v6529 = vld [vmem:[%s6515 + $0x30] sm:$0xff]
                %6530 = vst [vmem:[%s6516 + $0x30] sm:$0xff] %v6529
                %v6531 = vld [vmem:[%s6515 + $0x38] sm:$0xff]
                %6532 = vst [vmem:[%s6516 + $0x38] sm:$0xff] %v6531
                %v6533 = vld [vmem:[%s6515 + $0x40] sm:$0xff]
                %6534 = vst [vmem:[%s6516 + $0x40] sm:$0xff] %v6533
                %v6535 = vld [vmem:[%s6515 + $0x48] sm:$0xff]
                %6536 = vst [vmem:[%s6516 + $0x48] sm:$0xff] %v6535
                %v6537 = vld [vmem:[%s6515 + $0x50] sm:$0xff]
                %6538 = vst [vmem:[%s6516 + $0x50] sm:$0xff] %v6537
                %v6539 = vld [vmem:[%s6515 + $0x58] sm:$0xff]
                %6540 = vst [vmem:[%s6516 + $0x58] sm:$0xff] %v6539
                %v6541 = vld [vmem:[%s6515 + $0x60] sm:$0xff]
                %6542 = vst [vmem:[%s6516 + $0x60] sm:$0xff] %v6541
                %v6543 = vld [vmem:[%s6515 + $0x68] sm:$0xff]
                %6544 = vst [vmem:[%s6516 + $0x68] sm:$0xff] %v6543
                %v6545 = vld [vmem:[%s6515 + $0x70] sm:$0xff]
                %6546 = vst [vmem:[%s6516 + $0x70] sm:$0xff] %v6545
                %v6547 = vld [vmem:[%s6515 + $0x78] sm:$0xff]
                %6548 = vst [vmem:[%s6516 + $0x78] sm:$0xff] %v6547
                %v6549 = vld [vmem:[%s6515 + $0x80] sm:$0xff]
                %6550 = vst [vmem:[%s6516 + $0x100] sm:$0xff] %v6549
                %v6551 = vld [vmem:[%s6515 + $0x88] sm:$0xff]
                %6552 = vst [vmem:[%s6516 + $0x108] sm:$0xff] %v6551
                %v6553 = vld [vmem:[%s6515 + $0x90] sm:$0xff]
                %6554 = vst [vmem:[%s6516 + $0x110] sm:$0xff] %v6553
                %v6555 = vld [vmem:[%s6515 + $0x98] sm:$0xff]
                %6556 = vst [vmem:[%s6516 + $0x118] sm:$0xff] %v6555
                %v6557 = vld [vmem:[%s6515 + $0xa0] sm:$0xff]
                %6558 = vst [vmem:[%s6516 + $0x120] sm:$0xff] %v6557
                %v6559 = vld [vmem:[%s6515 + $0xa8] sm:$0xff]
                %6560 = vst [vmem:[%s6516 + $0x128] sm:$0xff] %v6559
                %v6561 = vld [vmem:[%s6515 + $0xb0] sm:$0xff]
                %6562 = vst [vmem:[%s6516 + $0x130] sm:$0xff] %v6561
                %v6563 = vld [vmem:[%s6515 + $0xb8] sm:$0xff]
                %6564 = vst [vmem:[%s6516 + $0x138] sm:$0xff] %v6563
                %v6565 = vld [vmem:[%s6515 + $0xc0] sm:$0xff]
                %6566 = vst [vmem:[%s6516 + $0x140] sm:$0xff] %v6565
                %v6567 = vld [vmem:[%s6515 + $0xc8] sm:$0xff]
                %6568 = vst [vmem:[%s6516 + $0x148] sm:$0xff] %v6567
                %v6569 = vld [vmem:[%s6515 + $0xd0] sm:$0xff]
                %6570 = vst [vmem:[%s6516 + $0x150] sm:$0xff] %v6569
                %v6571 = vld [vmem:[%s6515 + $0xd8] sm:$0xff]
                %6572 = vst [vmem:[%s6516 + $0x158] sm:$0xff] %v6571
                %v6573 = vld [vmem:[%s6515 + $0xe0] sm:$0xff]
                %6574 = vst [vmem:[%s6516 + $0x160] sm:$0xff] %v6573
                %v6575 = vld [vmem:[%s6515 + $0xe8] sm:$0xff]
                %6576 = vst [vmem:[%s6516 + $0x168] sm:$0xff] %v6575
                %v6577 = vld [vmem:[%s6515 + $0xf0] sm:$0xff]
                %6578 = vst [vmem:[%s6516 + $0x170] sm:$0xff] %v6577
                %v6579 = vld [vmem:[%s6515 + $0xf8] sm:$0xff]
                %6580 = vst [vmem:[%s6516 + $0x178] sm:$0xff] %v6579
                %v6581 = vld [vmem:[%s6515 + $0x100] sm:$0xff]
                %6582 = vst [vmem:[%s6516 + $0x200] sm:$0xff] %v6581
                %v6583 = vld [vmem:[%s6515 + $0x108] sm:$0xff]
                %6584 = vst [vmem:[%s6516 + $0x208] sm:$0xff] %v6583
                %v6585 = vld [vmem:[%s6515 + $0x110] sm:$0xff]
                %6586 = vst [vmem:[%s6516 + $0x210] sm:$0xff] %v6585
                %v6587 = vld [vmem:[%s6515 + $0x118] sm:$0xff]
                %6588 = vst [vmem:[%s6516 + $0x218] sm:$0xff] %v6587
                %v6589 = vld [vmem:[%s6515 + $0x120] sm:$0xff]
                %6590 = vst [vmem:[%s6516 + $0x220] sm:$0xff] %v6589
                %v6591 = vld [vmem:[%s6515 + $0x128] sm:$0xff]
                %6592 = vst [vmem:[%s6516 + $0x228] sm:$0xff] %v6591
                %v6593 = vld [vmem:[%s6515 + $0x130] sm:$0xff]
                %6594 = vst [vmem:[%s6516 + $0x230] sm:$0xff] %v6593
                %v6595 = vld [vmem:[%s6515 + $0x138] sm:$0xff]
                %6596 = vst [vmem:[%s6516 + $0x238] sm:$0xff] %v6595
                %v6597 = vld [vmem:[%s6515 + $0x140] sm:$0xff]
                %6598 = vst [vmem:[%s6516 + $0x240] sm:$0xff] %v6597
                %v6599 = vld [vmem:[%s6515 + $0x148] sm:$0xff]
                %6600 = vst [vmem:[%s6516 + $0x248] sm:$0xff] %v6599
                %v6601 = vld [vmem:[%s6515 + $0x150] sm:$0xff]
                %6602 = vst [vmem:[%s6516 + $0x250] sm:$0xff] %v6601
                %v6603 = vld [vmem:[%s6515 + $0x158] sm:$0xff]
                %6604 = vst [vmem:[%s6516 + $0x258] sm:$0xff] %v6603
                %v6605 = vld [vmem:[%s6515 + $0x160] sm:$0xff]
                %6606 = vst [vmem:[%s6516 + $0x260] sm:$0xff] %v6605
                %v6607 = vld [vmem:[%s6515 + $0x168] sm:$0xff]
                %6608 = vst [vmem:[%s6516 + $0x268] sm:$0xff] %v6607
                %v6609 = vld [vmem:[%s6515 + $0x170] sm:$0xff]
                %6610 = vst [vmem:[%s6516 + $0x270] sm:$0xff] %v6609
                %v6611 = vld [vmem:[%s6515 + $0x178] sm:$0xff]
                %6612 = vst [vmem:[%s6516 + $0x278] sm:$0xff] %v6611
                %v6613 = vld [vmem:[%s6515 + $0x180] sm:$0xff]
                %6614 = vst [vmem:[%s6516 + $0x300] sm:$0xff] %v6613
                %v6615 = vld [vmem:[%s6515 + $0x188] sm:$0xff]
                %6616 = vst [vmem:[%s6516 + $0x308] sm:$0xff] %v6615
                %v6617 = vld [vmem:[%s6515 + $0x190] sm:$0xff]
                %6618 = vst [vmem:[%s6516 + $0x310] sm:$0xff] %v6617
                %v6619 = vld [vmem:[%s6515 + $0x198] sm:$0xff]
                %6620 = vst [vmem:[%s6516 + $0x318] sm:$0xff] %v6619
                %v6621 = vld [vmem:[%s6515 + $0x1a0] sm:$0xff]
                %6622 = vst [vmem:[%s6516 + $0x320] sm:$0xff] %v6621
                %v6623 = vld [vmem:[%s6515 + $0x1a8] sm:$0xff]
                %6624 = vst [vmem:[%s6516 + $0x328] sm:$0xff] %v6623
                %v6625 = vld [vmem:[%s6515 + $0x1b0] sm:$0xff]
                %6626 = vst [vmem:[%s6516 + $0x330] sm:$0xff] %v6625
                %v6627 = vld [vmem:[%s6515 + $0x1b8] sm:$0xff]
                %6628 = vst [vmem:[%s6516 + $0x338] sm:$0xff] %v6627
                %v6629 = vld [vmem:[%s6515 + $0x1c0] sm:$0xff]
                %6630 = vst [vmem:[%s6516 + $0x340] sm:$0xff] %v6629
                %v6631 = vld [vmem:[%s6515 + $0x1c8] sm:$0xff]
                %6632 = vst [vmem:[%s6516 + $0x348] sm:$0xff] %v6631
                %v6633 = vld [vmem:[%s6515 + $0x1d0] sm:$0xff]
                %6634 = vst [vmem:[%s6516 + $0x350] sm:$0xff] %v6633
                %v6635 = vld [vmem:[%s6515 + $0x1d8] sm:$0xff]
                %6636 = vst [vmem:[%s6516 + $0x358] sm:$0xff] %v6635
                %v6637 = vld [vmem:[%s6515 + $0x1e0] sm:$0xff]
                %6638 = vst [vmem:[%s6516 + $0x360] sm:$0xff] %v6637
                %v6639 = vld [vmem:[%s6515 + $0x1e8] sm:$0xff]
                %6640 = vst [vmem:[%s6516 + $0x368] sm:$0xff] %v6639
                %v6641 = vld [vmem:[%s6515 + $0x1f0] sm:$0xff]
                %6642 = vst [vmem:[%s6516 + $0x370] sm:$0xff] %v6641
                %v6643 = vld [vmem:[%s6515 + $0x1f8] sm:$0xff]
                %6644 = vst [vmem:[%s6516 + $0x378] sm:$0xff] %v6643
              $region271: #{tpu_custom_call.1} parent=265 // loop_footer
                %s6514 = sadd.s32 1, %s6510
              $region272: #{tpu_custom_call.1} parent=265 // loop_footer_branch
                %6509 = sbr.rel target = $region268
              $region273: #{tpu_custom_call.1} parent=265 // loop_exit
                _
            $region266: #{tpu_custom_call.1} parent=257 // pred_fallthru
              _
          $region258: #{tpu_custom_call.1} parent=253 // pred_fallthru
            _
          %6785 = vnop
        $region254: #{tpu_custom_call.1} parent=221 // pred_fallthru
          _
      $region222: #{tpu_custom_call.1} parent=5 // pred_fallthru
        _
      %p6786 = scmp.le.s32.totalorder 2, %s11
      // Predicated region
      $region289: #{tpu_custom_call.1} parent=5 // pred_check
        %p6787 = pneg %p6786
      $region290: #{tpu_custom_call.1} parent=5 // pred_check_branch
        %6789 = sbr.rel (%p6787) target = $region292
      $region291: #{tpu_custom_call.1} parent=5 // pred_region
        %s6790 = ssub.s32 %s11, 2
        // Predicated region
        $region293: #{tpu_custom_call.1} parent=291 // pred_check
          %p6791 = pneg %p203
        $region294: #{tpu_custom_call.1} parent=291 // pred_check_branch
          %6793 = sbr.rel (%p6791) target = $region296
        $region295: #{tpu_custom_call.1} parent=291 // pred_region
          %s6794 = sand.u32 %s188, 1
          %s6795 = sand.u32 %s188, 1
          %s6796 = smul.addr %s6795, 512
          %s6797 = scalar_lea.vmem [#allocation10], %s6796
        $region296: #{tpu_custom_call.1} parent=291 // pred_fallthru
          _
      $region292: #{tpu_custom_call.1} parent=5 // pred_fallthru
        _
    $region6: #{tpu_custom_call.1} parent=1 // loop_footer
      %s15 = sadd.s32 1, %s11
    $region7: #{tpu_custom_call.1} parent=1 // loop_footer_branch
      %10 = sbr.rel target = $region3
    $region8: #{tpu_custom_call.1} parent=1 // loop_exit
      _

</llo_original>
